<compile_context>
chip_gen: v7x
topology: tpu7x:2x2x1
jax: 0.10.0
libtpu: 0.0.40
codegen_flags: <defaults>
</compile_context>

<pallas_src>
import functools

import numpy as np
import jax
import jax.numpy as jnp
from jax.experimental import pallas as pl
from jax.experimental.pallas import tpu as pltpu

# ----------------------------- configuration -----------------------------
HID_CHANNEL = 30          # hid_channel
OUT_CHANNEL = 4           # channel (MapNet3 output channels)
KERNEL_SIZE = 3           # rotConv size used by TRGNet's MapNet3
THETA_NUM   = 4
H = W = 16
BATCH = 2

BN_EPS       = 1e-5       # nn.BatchNorm2d default
RES_CHANGE   = 0.1        # rotResBlock default `change`
USE_BF16_MXU = False      # opt-in (v6e/v7x): bf16 MXU inputs, f32 accumulation

_HIGHEST = jax.lax.Precision.HIGHEST


# ------------------------------- in-kernel helper -------------------------------
def _mxu(a, b):
    """MXU matmul with f32 accumulation (optionally bf16 inputs)."""
    if USE_BF16_MXU:
        a = a.astype(jnp.bfloat16)
        b = b.astype(jnp.bfloat16)
    return jax.lax.dot_general(a, b, (((1,), (0,)), ((), ())),
                               preferred_element_type=jnp.float32)


# --------------------------- the fused MapNet3 kernel ---------------------------
def _mapnet3_kernel(hh, ww, cin_pad,
                    x_ref, w1_ref, b1_ref, kall_ref, p1_ref, p2_ref,
                    masks_ref, w2_ref, b2_ref, o_ref, patches_ref):
    """Whole MapNet3 forward, grid=() (single invocation, batch unrolled in-kernel).

    Channel-major (lane-dense) layout throughout: columns index (b, i, j) flat.
      x_ref    : (3, B*H*W)                       input pixels
      w1_ref   : (hid, 3),  b1_ref: (hid, 1)      1x1 conv #1
      kall_ref : (4, B, hid, 9*cin_pad)           per-sample 3x3 taps, cols = (tap, cin)
      p?_ref   : (hid, 6)  cols = [c1, gamma1, beta1, c2, gamma2, beta2]
      masks_ref: (9, B*H*W)                       0/1 'same'-padding validity per tap
      w2_ref   : (outC, hid), b2_ref: (outC, 1)   1x1 conv #2
      o_ref    : (B, outC, H*W)                   == NCHW flattened (lane-dense store)
      patches_ref (scratch): (9*cin_pad, B*H*W)   im2col buffer, tap rows 8-aligned
    """
    hid = w1_ref.shape[0]
    bsz = o_ref.shape[0]
    hw = hh * ww
    n = bsz * hw

    # Zero the im2col scratch once: the 2 pad rows per tap stay zero forever.
    patches_ref[...] = jnp.zeros_like(patches_ref)

    # ---- conv1 (1x1) + bias: (hid,3)@(3,n) -> (hid, n), lane-dense ----
    y = _mxu(w1_ref[...], x_ref[...]) + b1_ref[...]

    # ---- training-mode BatchNorm over the whole batch (biased variance) ----
    def bn(z, gamma, beta):
        mean = jnp.mean(z, axis=1, keepdims=True)
        var = jnp.mean(jnp.square(z - mean), axis=1, keepdims=True)
        scale = gamma * jax.lax.rsqrt(var + BN_EPS)
        return (z - mean) * scale + beta

    def shift_cols(z, off):
        """out[:, p] = z[:, (p + off) mod n]  (cyclic; wrap entries get masked)."""
        k = off % n
        if k == 0:
            return z
        return jnp.concatenate([z[:, k:], z[:, :k]], axis=1)

    # ---- per-sample 3x3 'same' conv: one im2col build (whole batch) + 1 MXU matmul
    #      per sample with K = 9*cin_pad ----
    def conv3x3(z, q):
        for t in range(9):
            dy, dx = t // 3 - 1, t % 3 - 1
            off = dy * ww + dx
            s = shift_cols(z, off)
            if off != 0:                       # center tap needs no shift/mask
                s = s * masks_ref[t:t + 1, :]
            patches_ref[t * cin_pad:t * cin_pad + hid, :] = s
        cols = [_mxu(kall_ref[q, b], patches_ref[:, b * hw:(b + 1) * hw])
                for b in range(bsz)]
        return jnp.concatenate(cols, axis=1)   # (hid, n), lane-aligned concat

    # ---- fused rotResBlock: conv -> BN -> ReLU -> conv -> BN -> *change + skip ----
    def resblock(y0, qa, qb, p_ref):
        p = p_ref[...]                                    # (hid, 6)
        ya = conv3x3(y0, qa) + p[:, 0:1]
        ya = jnp.maximum(bn(ya, p[:, 1:2], p[:, 2:3]), 0.0)
        yb = conv3x3(ya, qb) + p[:, 3:4]
        yb = bn(yb, p[:, 4:5], p[:, 5:6])
        return yb * RES_CHANGE + y0

    y = resblock(y, 0, 1, p1_ref)
    y = resblock(y, 2, 3, p2_ref)

    # ---- conv2 (1x1) + bias + ReLU; store lane-dense NCHW-flat output ----
    out = jnp.maximum(_mxu(w2_ref[...], y) + b2_ref[...], 0.0)    # (outC, n)
    for b in range(bsz):
        o_ref[b] = out[:, b * hw:(b + 1) * hw]


# ----------------------------- plain-JAX glue (hoisted, tiny) -----------------------------
def get_basis(theta, s_w, s_l, sizeP):
    """GetBasis.forward — scalar-scale trig on sizeP x sizeP grids (stays in XLA)."""
    inP = sizeP
    pp = (sizeP - 1) / 2
    x = np.arange(-pp, pp + 1) / pp
    Xg, Yg = np.meshgrid(x, x)
    inX = jnp.asarray(Xg, jnp.float32)[None, None]
    inY = jnp.asarray(Yg, jnp.float32)[None, None]
    th = theta[:, :, None, None]
    sw = s_w[:, :, None, None]
    sl = s_l[:, :, None, None]
    X = jnp.cos(th) * inX - jnp.sin(th) * inY
    Y = jnp.sin(th) * inX + jnp.cos(th) * inY
    X = (X * sw)[..., None, None]
    Y = (Y * sl)[..., None, None]
    Mask = jnp.exp(-jnp.maximum(X ** 2 + Y ** 2 - 1.0, 0.0) / 0.2)
    v = np.pi / inP * (inP - 1)
    k = np.arange(inP, dtype=np.float32).reshape(1, 1, 1, 1, inP, 1)
    l = np.arange(inP, dtype=np.float32).reshape(1, 1, 1, 1, 1, inP)
    kk = jnp.asarray(k - inP * (k > inP / 2), jnp.float32)
    ll = jnp.asarray(l - inP * (l > inP / 2), jnp.float32)
    arg = kk * v * X + ll * v * Y
    BasisC = jnp.cos(arg) * Mask
    BasisS = jnp.sin(arg) * Mask
    b, c = BasisC.shape[0], BasisC.shape[1]
    BasisC = BasisC.reshape(b, c, sizeP, sizeP, inP * inP)
    BasisS = BasisS.reshape(b, c, sizeP, sizeP, inP * inP)
    return BasisC, BasisS, Mask


def synth_rot_kernels(weights_stack, theta, sizeP, cin_pad):
    """Synthesize per-sample taps for all Q rotConvs at once (basis computed once).

    weights_stack: (Q, outC, 2*sizeP^2, inC)
    returns (Q, B, outC, sizeP*sizeP*cin_pad); columns ordered (tap, cin) with the
    cin axis zero-padded to cin_pad, matching the im2col patch-row layout.
    """
    ones = jnp.ones((1, 1), jnp.float32)
    BasisC, BasisS, _ = get_basis(theta, ones, ones, sizeP)
    Basis = jnp.concatenate([BasisC, BasisS], axis=4)        # (B, theta, sP, sP, 2*sP^2)
    if Basis.shape[1] == weights_stack.shape[3]:
        Ck = jnp.einsum('bmijk,qnkm->qbnijm', Basis, weights_stack, precision=_HIGHEST)
    else:
        Ck = jnp.einsum('bcijk,qnkm->qbnijm', Basis, weights_stack, precision=_HIGHEST)
    q, bsz, outc = Ck.shape[0], Ck.shape[1], Ck.shape[2]
    inc = Ck.shape[5]
    km = Ck.reshape(q, bsz, outc, sizeP * sizeP, inc)
    km = jnp.pad(km, ((0, 0), (0, 0), (0, 0), (0, 0), (0, cin_pad - inc)))
    return km.reshape(q, bsz, outc, sizeP * sizeP * cin_pad)


def _tap_masks(hh, ww, bsz):
    """0/1 validity mask per 3x3 tap for the flattened (b, i, j) column index."""
    hw = hh * ww
    p = np.arange(bsz * hw)
    qq = p % hw
    i = qq // ww
    j = qq % ww
    rows = []
    for t in range(9):
        dy, dx = t // 3 - 1, t % 3 - 1
        ok = (i + dy >= 0) & (i + dy < hh) & (j + dx >= 0) & (j + dx < ww)
        rows.append(ok.astype(np.float32))
    return np.stack(rows, axis=0)                            # (9, bsz*hh*ww)


def mapnet3_forward(params, x_nchw, theta):
    """MapNet3.forward(input, theta): NCHW in -> NCHW out, one fused Pallas call."""
    bsz, cin0, hh, ww = x_nchw.shape
    hid = params['conv1']['w'].shape[0]
    outc = params['conv2']['w'].shape[0]
    hw = hh * ww
    n = bsz * hw
    cin_pad = ((hid + 7) // 8) * 8
    # TODO(synk): only the 3x3 rotConv path (kernel_size == 3, as used by TRGNet) is implemented.
    assert KERNEL_SIZE == 3

    # Hoisted basis + one batched einsum synthesizing all four rotConv kernel tensors.
    wstack = jnp.stack([params['rb1']['conv1']['w'], params['rb1']['conv2']['w'],
                        params['rb2']['conv1']['w'], params['rb2']['conv2']['w']], axis=0)
    kall = synth_rot_kernels(wstack, theta, KERNEL_SIZE, cin_pad)   # (4, B, hid, 9*cin_pad)

    def pack(rb):   # rotConv bias + BN affine params of one resblock -> (hid, 6) columns
        return jnp.stack([rb['conv1']['c'], rb['bn1']['gamma'], rb['bn1']['beta'],
                          rb['conv2']['c'], rb['bn2']['gamma'], rb['bn2']['beta']], axis=1)

    x_cm = jnp.transpose(x_nchw, (1, 0, 2, 3)).reshape(cin0, n)     # (3, B*H*W)
    masks = jnp.asarray(_tap_masks(hh, ww, bsz))                    # (9, B*H*W), static

    vmem = pl.BlockSpec(memory_space=pltpu.MemorySpace.VMEM)
    out_cm = pl.pallas_call(
        functools.partial(_mapnet3_kernel, hh, ww, cin_pad),
        out_shape=jax.ShapeDtypeStruct((bsz, outc, hw), jnp.float32),
        in_specs=[vmem] * 9,
        out_specs=vmem,
        scratch_shapes=[pltpu.VMEM((9 * cin_pad, n), jnp.float32)],
    )(x_cm,
      params['conv1']['w'], params['conv1']['b'].reshape(hid, 1),
      kall, pack(params['rb1']), pack(params['rb2']),
      masks,
      params['conv2']['w'], params['conv2']['b'].reshape(outc, 1))

    # (B, outC, H*W) is exactly NCHW flattened -> free reshape.
    return out_cm.reshape(bsz, outc, hh, ww)


# ----------------------- pure-JAX reference (direct PyTorch translation) -----------------------
def _ref_bn(x, gamma, beta):
    mean = jnp.mean(x, axis=(0, 2, 3), keepdims=True)
    var = jnp.mean((x - mean) ** 2, axis=(0, 2, 3), keepdims=True)
    xh = (x - mean) * jax.lax.rsqrt(var + BN_EPS)
    return xh * gamma.reshape(1, -1, 1, 1) + beta.reshape(1, -1, 1, 1)


def _ref_rotconv(x, theta, w, c, sizeP=3):
    ones = jnp.ones((1, 1), jnp.float32)
    BasisC, BasisS, _ = get_basis(theta, ones, ones, sizeP)
    Basis = jnp.concatenate([BasisC, BasisS], axis=4)
    if Basis.shape[1] == w.shape[2]:
        Ck = jnp.einsum('bmijk,nkm->bnmij', Basis, w, precision=_HIGHEST)
    else:
        Ck = jnp.einsum('bcijk,nkm->bnmij', Basis, w, precision=_HIGHEST)
    bsz, outc, inc = Ck.shape[0], Ck.shape[1], Ck.shape[2]
    y = jax.lax.conv_general_dilated(
        x.reshape(1, bsz * inc, x.shape[2], x.shape[3]),
        Ck.reshape(bsz * outc, inc, sizeP, sizeP),
        (1, 1), 'SAME', dimension_numbers=('NCHW', 'OIHW', 'NCHW'),
        feature_group_count=bsz, precision=_HIGHEST)
    return y.reshape(bsz, outc, x.shape[2], x.shape[3]) + c.reshape(1, outc, 1, 1)


def _ref_resblock(p, x, theta):
    y = _ref_rotconv(x, theta, p['conv1']['w'], p['conv1']['c'])
    y = jax.nn.relu(_ref_bn(y, p['bn1']['gamma'], p['bn1']['beta']))
    y = _ref_rotconv(y, theta, p['conv2']['w'], p['conv2']['c'])
    y = _ref_bn(y, p['bn2']['gamma'], p['bn2']['beta'])
    return y * RES_CHANGE + x


def mapnet3_reference(params, x, theta):
    y = jnp.einsum('oc,bchw->bohw', params['conv1']['w'], x,
                   precision=_HIGHEST) + params['conv1']['b'].reshape(1, -1, 1, 1)
    y = _ref_resblock(params['rb1'], y, theta)
    y = _ref_resblock(params['rb2'], y, theta)
    y = jnp.einsum('oc,bchw->bohw', params['conv2']['w'], y,
                   precision=_HIGHEST) + params['conv2']['b'].reshape(1, -1, 1, 1)
    return jax.nn.relu(y)


# ----------------------------- parameter init -----------------------------
_rng = np.random.default_rng(0)
def _randn(*shape): return _rng.standard_normal(shape).astype(np.float32)
def _f(a): return jnp.asarray(a, jnp.float32)

def init_rotconv(sizeP, inC, outC):
    w = np.concatenate([_randn(outC, sizeP * sizeP, inC) / sizeP / sizeP / 100,
                        _randn(outC, sizeP * sizeP, inC) / sizeP / sizeP / 100], axis=1)
    return {'w': _f(w), 'c': jnp.zeros((outC,), jnp.float32)}

def init_bn(c):
    return {'gamma': jnp.ones((c,), jnp.float32), 'beta': jnp.zeros((c,), jnp.float32)}

def init_resblock(ch):
    return {'conv1': init_rotconv(KERNEL_SIZE, ch, ch), 'bn1': init_bn(ch),
            'conv2': init_rotconv(KERNEL_SIZE, ch, ch), 'bn2': init_bn(ch)}

def init_conv1x1(inC, outC):
    return {'w': _f(_randn(outC, inC) / np.sqrt(inC)), 'b': _f(_randn(outC) * 0.01)}

def init_mapnet3(hid, outc):
    return {'conv1': init_conv1x1(3, hid), 'rb1': init_resblock(hid),
            'rb2': init_resblock(hid), 'conv2': init_conv1x1(hid, outc)}


# --------------------------------- main ---------------------------------
if __name__ == "__main__":
    params = init_mapnet3(HID_CHANNEL, OUT_CHANNEL)

    key = jax.random.PRNGKey(0)
    kx, kt = jax.random.split(key)
    x = jax.random.uniform(kx, (BATCH, 3, H, W), jnp.float32)
    theta = jax.random.uniform(kt, (BATCH, THETA_NUM), jnp.float32,
                               minval=-np.pi / 2, maxval=np.pi / 2)

    fwd = jax.jit(mapnet3_forward)
    out = fwd(params, x, theta)
    jax.block_until_ready(out)

    assert out.shape == (BATCH, OUT_CHANNEL, H, W)
    assert bool(jnp.all(jnp.isfinite(out)))
    assert bool(jnp.all(out >= 0.0))            # final ReLU

    # correctness: compare against a direct pure-JAX translation of the PyTorch module
    ref = jax.jit(mapnet3_reference)(params, x, theta)
    err = float(jnp.max(jnp.abs(out - ref)))
    assert err < 1e-2, f"mismatch vs reference: {err}"

    print("KERNEL_OK")
</pallas_src>

<mosaic_0001>
module attributes {stable_mosaic.version = 11 : i64} {
  func.func @_mapnet3_kernel(%arg0: memref<3x512xf32, #tpu.memory_space<vmem>>, %arg1: memref<30x3xf32, #tpu.memory_space<vmem>>, %arg2: memref<30x1xf32, #tpu.memory_space<vmem>>, %arg3: memref<4x2x30x288xf32, #tpu.memory_space<vmem>>, %arg4: memref<30x6xf32, #tpu.memory_space<vmem>>, %arg5: memref<30x6xf32, #tpu.memory_space<vmem>>, %arg6: memref<9x512xf32, #tpu.memory_space<vmem>>, %arg7: memref<4x30xf32, #tpu.memory_space<vmem>>, %arg8: memref<4x1xf32, #tpu.memory_space<vmem>>, %arg9: memref<2x4x256xf32, #tpu.memory_space<vmem>>, %arg10: memref<288x512xf32, #tpu.memory_space<vmem>>) attributes {dimension_semantics = [], scalar_prefetch = 0 : i64, scratch_operands = 1 : i64, tpu.core_type = #tpu.core_type<tc>} {
    %cst = arith.constant 0.000000e+00 : f32
    %0 = vector.broadcast %cst : f32 to vector<288x512xf32>
    %c0 = arith.constant 0 : index
    %c0_0 = arith.constant 0 : index
    %1 = vector.load %arg10[%c0, %c0_0] : memref<288x512xf32, #tpu.memory_space<vmem>>, vector<288x512xf32>
    tpu.vector_store %arg10[%c0, %c0_0], %0 {strides = array<i32>} : memref<288x512xf32, #tpu.memory_space<vmem>>, vector<288x512xf32>,
    %c0_1 = arith.constant 0 : index
    %c0_2 = arith.constant 0 : index
    %2 = vector.load %arg1[%c0_1, %c0_2] : memref<30x3xf32, #tpu.memory_space<vmem>>, vector<30x3xf32>
    %c0_3 = arith.constant 0 : index
    %c0_4 = arith.constant 0 : index
    %3 = vector.load %arg0[%c0_3, %c0_4] : memref<3x512xf32, #tpu.memory_space<vmem>>, vector<3x512xf32>
    %cst_5 = arith.constant dense<0.000000e+00> : vector<30x512xf32>
    %4 = tpu.matmul %2, %3, %cst_5 {dimension_numbers = #tpu.dot_dimension_numbers<[1], [0], [0], [1], [0, 0, 1, 1], [], []>} : vector<30x3xf32>, vector<3x512xf32>, vector<30x512xf32> -> vector<30x512xf32>
    %c0_6 = arith.constant 0 : index
    %c0_7 = arith.constant 0 : index
    %5 = vector.load %arg2[%c0_6, %c0_7] : memref<30x1xf32, #tpu.memory_space<vmem>>, vector<30x1xf32>
    %6 = vector.broadcast %5 : vector<30x1xf32> to vector<30x512xf32>
    %7 = arith.addf %4, %6 : vector<30x512xf32>
    %c0_8 = arith.constant 0 : index
    %c0_9 = arith.constant 0 : index
    %8 = vector.load %arg4[%c0_8, %c0_9] : memref<30x6xf32, #tpu.memory_space<vmem>>, vector<30x6xf32>
    %9 = vector.extract_strided_slice %7 {offsets = [0, 495], sizes = [30, 17], strides = [1, 1]} : vector<30x512xf32> to vector<30x17xf32>
    %10 = vector.extract_strided_slice %7 {offsets = [0, 0], sizes = [30, 495], strides = [1, 1]} : vector<30x512xf32> to vector<30x495xf32>
    %11 = tpu.concatenate %9, %10 in 1 : vector<30x17xf32>, vector<30x495xf32> -> vector<30x512xf32>
    %c0_10 = arith.constant 0 : index
    %c0_11 = arith.constant 0 : index
    %12 = vector.load %arg6[%c0_10, %c0_11] : memref<9x512xf32, #tpu.memory_space<vmem>>, vector<1x512xf32>
    %13 = vector.broadcast %12 : vector<1x512xf32> to vector<30x512xf32>
    %14 = arith.mulf %11, %13 : vector<30x512xf32>
    %c0_12 = arith.constant 0 : index
    %c0_13 = arith.constant 0 : index
    %15 = vector.load %arg10[%c0_12, %c0_13] : memref<288x512xf32, #tpu.memory_space<vmem>>, vector<30x512xf32>
    tpu.vector_store %arg10[%c0_12, %c0_13], %14 {strides = array<i32>} : memref<288x512xf32, #tpu.memory_space<vmem>>, vector<30x512xf32>,
    %16 = vector.extract_strided_slice %7 {offsets = [0, 496], sizes = [30, 16], strides = [1, 1]} : vector<30x512xf32> to vector<30x16xf32>
    %17 = vector.extract_strided_slice %7 {offsets = [0, 0], sizes = [30, 496], strides = [1, 1]} : vector<30x512xf32> to vector<30x496xf32>
    %18 = tpu.concatenate %16, %17 in 1 : vector<30x16xf32>, vector<30x496xf32> -> vector<30x512xf32>
    %c1 = arith.constant 1 : index
    %c0_14 = arith.constant 0 : index
    %19 = vector.load %arg6[%c1, %c0_14] : memref<9x512xf32, #tpu.memory_space<vmem>>, vector<1x512xf32>
    %20 = vector.broadcast %19 : vector<1x512xf32> to vector<30x512xf32>
    %21 = arith.mulf %18, %20 : vector<30x512xf32>
    %c32 = arith.constant 32 : index
    %c0_15 = arith.constant 0 : index
    %22 = vector.load %arg10[%c32, %c0_15] : memref<288x512xf32, #tpu.memory_space<vmem>>, vector<30x512xf32>
    tpu.vector_store %arg10[%c32, %c0_15], %21 {strides = array<i32>} : memref<288x512xf32, #tpu.memory_space<vmem>>, vector<30x512xf32>,
    %23 = vector.extract_strided_slice %7 {offsets = [0, 497], sizes = [30, 15], strides = [1, 1]} : vector<30x512xf32> to vector<30x15xf32>
    %24 = vector.extract_strided_slice %7 {offsets = [0, 0], sizes = [30, 497], strides = [1, 1]} : vector<30x512xf32> to vector<30x497xf32>
    %25 = tpu.concatenate %23, %24 in 1 : vector<30x15xf32>, vector<30x497xf32> -> vector<30x512xf32>
    %c2 = arith.constant 2 : index
    %c0_16 = arith.constant 0 : index
    %26 = vector.load %arg6[%c2, %c0_16] : memref<9x512xf32, #tpu.memory_space<vmem>>, vector<1x512xf32>
    %27 = vector.broadcast %26 : vector<1x512xf32> to vector<30x512xf32>
    %28 = arith.mulf %25, %27 : vector<30x512xf32>
    %c64 = arith.constant 64 : index
    %c0_17 = arith.constant 0 : index
    %29 = vector.load %arg10[%c64, %c0_17] : memref<288x512xf32, #tpu.memory_space<vmem>>, vector<30x512xf32>
    tpu.vector_store %arg10[%c64, %c0_17], %28 {strides = array<i32>} : memref<288x512xf32, #tpu.memory_space<vmem>>, vector<30x512xf32>,
    %30 = vector.extract_strided_slice %7 {offsets = [0, 511], sizes = [30, 1], strides = [1, 1]} : vector<30x512xf32> to vector<30x1xf32>
    %31 = vector.extract_strided_slice %7 {offsets = [0, 0], sizes = [30, 511], strides = [1, 1]} : vector<30x512xf32> to vector<30x511xf32>
    %32 = tpu.concatenate %30, %31 in 1 : vector<30x1xf32>, vector<30x511xf32> -> vector<30x512xf32>
    %c3 = arith.constant 3 : index
    %c0_18 = arith.constant 0 : index
    %33 = vector.load %arg6[%c3, %c0_18] : memref<9x512xf32, #tpu.memory_space<vmem>>, vector<1x512xf32>
    %34 = vector.broadcast %33 : vector<1x512xf32> to vector<30x512xf32>
    %35 = arith.mulf %32, %34 : vector<30x512xf32>
    %c96 = arith.constant 96 : index
    %c0_19 = arith.constant 0 : index
    %36 = vector.load %arg10[%c96, %c0_19] : memref<288x512xf32, #tpu.memory_space<vmem>>, vector<30x512xf32>
    tpu.vector_store %arg10[%c96, %c0_19], %35 {strides = array<i32>} : memref<288x512xf32, #tpu.memory_space<vmem>>, vector<30x512xf32>,
    %c128 = arith.constant 128 : index
    %c0_20 = arith.constant 0 : index
    %37 = vector.load %arg10[%c128, %c0_20] : memref<288x512xf32, #tpu.memory_space<vmem>>, vector<30x512xf32>
    tpu.vector_store %arg10[%c128, %c0_20], %7 {strides = array<i32>} : memref<288x512xf32, #tpu.memory_space<vmem>>, vector<30x512xf32>,
    %38 = vector.extract_strided_slice %7 {offsets = [0, 1], sizes = [30, 511], strides = [1, 1]} : vector<30x512xf32> to vector<30x511xf32>
    %39 = vector.extract_strided_slice %7 {offsets = [0, 0], sizes = [30, 1], strides = [1, 1]} : vector<30x512xf32> to vector<30x1xf32>
    %40 = tpu.concatenate %38, %39 in 1 : vector<30x511xf32>, vector<30x1xf32> -> vector<30x512xf32>
    %c5 = arith.constant 5 : index
    %c0_21 = arith.constant 0 : index
    %41 = vector.load %arg6[%c5, %c0_21] : memref<9x512xf32, #tpu.memory_space<vmem>>, vector<1x512xf32>
    %42 = vector.broadcast %41 : vector<1x512xf32> to vector<30x512xf32>
    %43 = arith.mulf %40, %42 : vector<30x512xf32>
    %c160 = arith.constant 160 : index
    %c0_22 = arith.constant 0 : index
    %44 = vector.load %arg10[%c160, %c0_22] : memref<288x512xf32, #tpu.memory_space<vmem>>, vector<30x512xf32>
    tpu.vector_store %arg10[%c160, %c0_22], %43 {strides = array<i32>} : memref<288x512xf32, #tpu.memory_space<vmem>>, vector<30x512xf32>,
    %45 = vector.extract_strided_slice %7 {offsets = [0, 15], sizes = [30, 497], strides = [1, 1]} : vector<30x512xf32> to vector<30x497xf32>
    %46 = vector.extract_strided_slice %7 {offsets = [0, 0], sizes = [30, 15], strides = [1, 1]} : vector<30x512xf32> to vector<30x15xf32>
    %47 = tpu.concatenate %45, %46 in 1 : vector<30x497xf32>, vector<30x15xf32> -> vector<30x512xf32>
    %c6 = arith.constant 6 : index
    %c0_23 = arith.constant 0 : index
    %48 = vector.load %arg6[%c6, %c0_23] : memref<9x512xf32, #tpu.memory_space<vmem>>, vector<1x512xf32>
    %49 = vector.broadcast %48 : vector<1x512xf32> to vector<30x512xf32>
    %50 = arith.mulf %47, %49 : vector<30x512xf32>
    %c192 = arith.constant 192 : index
    %c0_24 = arith.constant 0 : index
    %51 = vector.load %arg10[%c192, %c0_24] : memref<288x512xf32, #tpu.memory_space<vmem>>, vector<30x512xf32>
    tpu.vector_store %arg10[%c192, %c0_24], %50 {strides = array<i32>} : memref<288x512xf32, #tpu.memory_space<vmem>>, vector<30x512xf32>,
    %52 = vector.extract_strided_slice %7 {offsets = [0, 16], sizes = [30, 496], strides = [1, 1]} : vector<30x512xf32> to vector<30x496xf32>
    %53 = vector.extract_strided_slice %7 {offsets = [0, 0], sizes = [30, 16], strides = [1, 1]} : vector<30x512xf32> to vector<30x16xf32>
    %54 = tpu.concatenate %52, %53 in 1 : vector<30x496xf32>, vector<30x16xf32> -> vector<30x512xf32>
    %c7 = arith.constant 7 : index
    %c0_25 = arith.constant 0 : index
    %55 = vector.load %arg6[%c7, %c0_25] : memref<9x512xf32, #tpu.memory_space<vmem>>, vector<1x512xf32>
    %56 = vector.broadcast %55 : vector<1x512xf32> to vector<30x512xf32>
    %57 = arith.mulf %54, %56 : vector<30x512xf32>
    %c224 = arith.constant 224 : index
    %c0_26 = arith.constant 0 : index
    %58 = vector.load %arg10[%c224, %c0_26] : memref<288x512xf32, #tpu.memory_space<vmem>>, vector<30x512xf32>
    tpu.vector_store %arg10[%c224, %c0_26], %57 {strides = array<i32>} : memref<288x512xf32, #tpu.memory_space<vmem>>, vector<30x512xf32>,
    %59 = vector.extract_strided_slice %7 {offsets = [0, 17], sizes = [30, 495], strides = [1, 1]} : vector<30x512xf32> to vector<30x495xf32>
    %60 = vector.extract_strided_slice %7 {offsets = [0, 0], sizes = [30, 17], strides = [1, 1]} : vector<30x512xf32> to vector<30x17xf32>
    %61 = tpu.concatenate %59, %60 in 1 : vector<30x495xf32>, vector<30x17xf32> -> vector<30x512xf32>
    %c8 = arith.constant 8 : index
    %c0_27 = arith.constant 0 : index
    %62 = vector.load %arg6[%c8, %c0_27] : memref<9x512xf32, #tpu.memory_space<vmem>>, vector<1x512xf32>
    %63 = vector.broadcast %62 : vector<1x512xf32> to vector<30x512xf32>
    %64 = arith.mulf %61, %63 : vector<30x512xf32>
    %c256 = arith.constant 256 : index
    %c0_28 = arith.constant 0 : index
    %65 = vector.load %arg10[%c256, %c0_28] : memref<288x512xf32, #tpu.memory_space<vmem>>, vector<30x512xf32>
    tpu.vector_store %arg10[%c256, %c0_28], %64 {strides = array<i32>} : memref<288x512xf32, #tpu.memory_space<vmem>>, vector<30x512xf32>,
    %c0_29 = arith.constant 0 : index
    %c0_30 = arith.constant 0 : index
    %c0_31 = arith.constant 0 : index
    %c0_32 = arith.constant 0 : index
    %66 = vector.load %arg3[%c0_29, %c0_30, %c0_31, %c0_32] : memref<4x2x30x288xf32, #tpu.memory_space<vmem>>, vector<1x1x30x288xf32>
    %67 = vector.shape_cast %66 : vector<1x1x30x288xf32> to vector<30x288xf32>
    %c0_33 = arith.constant 0 : index
    %c0_34 = arith.constant 0 : index
    %68 = vector.load %arg10[%c0_33, %c0_34] : memref<288x512xf32, #tpu.memory_space<vmem>>, vector<288x256xf32>
    %cst_35 = arith.constant dense<0.000000e+00> : vector<30x256xf32>
    %69 = tpu.matmul %67, %68, %cst_35 {dimension_numbers = #tpu.dot_dimension_numbers<[1], [0], [0], [1], [0, 0, 1, 1], [], []>} : vector<30x288xf32>, vector<288x256xf32>, vector<30x256xf32> -> vector<30x256xf32>
    %c0_36 = arith.constant 0 : index
    %c1_37 = arith.constant 1 : index
    %c0_38 = arith.constant 0 : index
    %c0_39 = arith.constant 0 : index
    %70 = vector.load %arg3[%c0_36, %c1_37, %c0_38, %c0_39] : memref<4x2x30x288xf32, #tpu.memory_space<vmem>>, vector<1x1x30x288xf32>
    %71 = vector.shape_cast %70 : vector<1x1x30x288xf32> to vector<30x288xf32>
    %c0_40 = arith.constant 0 : index
    %c256_41 = arith.constant 256 : index
    %72 = vector.load %arg10[%c0_40, %c256_41] : memref<288x512xf32, #tpu.memory_space<vmem>>, vector<288x256xf32>
    %cst_42 = arith.constant dense<0.000000e+00> : vector<30x256xf32>
    %73 = tpu.matmul %71, %72, %cst_42 {dimension_numbers = #tpu.dot_dimension_numbers<[1], [0], [0], [1], [0, 0, 1, 1], [], []>} : vector<30x288xf32>, vector<288x256xf32>, vector<30x256xf32> -> vector<30x256xf32>
    %74 = tpu.concatenate %69, %73 in 1 : vector<30x256xf32>, vector<30x256xf32> -> vector<30x512xf32>
    %75 = vector.extract_strided_slice %8 {offsets = [0, 0], sizes = [30, 1], strides = [1, 1]} : vector<30x6xf32> to vector<30x1xf32>
    %76 = vector.broadcast %75 : vector<30x1xf32> to vector<30x512xf32>
    %77 = arith.addf %74, %76 : vector<30x512xf32>
    %78 = vector.extract_strided_slice %8 {offsets = [0, 1], sizes = [30, 1], strides = [1, 1]} : vector<30x6xf32> to vector<30x1xf32>
    %79 = vector.extract_strided_slice %8 {offsets = [0, 2], sizes = [30, 1], strides = [1, 1]} : vector<30x6xf32> to vector<30x1xf32>
    %cst_43 = arith.constant dense<0.000000e+00> : vector<30xf32>
    %80 = vector.multi_reduction <add>, %77, %cst_43 [1] : vector<30x512xf32> to vector<30xf32>
    %81 = vector.shape_cast %80 : vector<30xf32> to vector<30x1xf32>
    %cst_44 = arith.constant 5.120000e+02 : f32
    %82 = vector.broadcast %cst_44 : f32 to vector<30x1xf32>
    %83 = arith.divf %81, %82 : vector<30x1xf32>
    %84 = vector.broadcast %83 : vector<30x1xf32> to vector<30x512xf32>
    %85 = arith.subf %77, %84 : vector<30x512xf32>
    %86 = arith.mulf %85, %85 : vector<30x512xf32>
    %cst_45 = arith.constant dense<0.000000e+00> : vector<30xf32>
    %87 = vector.multi_reduction <add>, %86, %cst_45 [1] : vector<30x512xf32> to vector<30xf32>
    %88 = vector.shape_cast %87 : vector<30xf32> to vector<30x1xf32>
    %cst_46 = arith.constant 5.120000e+02 : f32
    %89 = vector.broadcast %cst_46 : f32 to vector<30x1xf32>
    %90 = arith.divf %88, %89 : vector<30x1xf32>
    %cst_47 = arith.constant 9.99999974E-6 : f32
    %91 = vector.broadcast %cst_47 : f32 to vector<30x1xf32>
    %92 = arith.addf %90, %91 : vector<30x1xf32>
    %93 = math.rsqrt %92 : vector<30x1xf32>
    %94 = arith.mulf %78, %93 : vector<30x1xf32>
    %95 = vector.broadcast %83 : vector<30x1xf32> to vector<30x512xf32>
    %96 = arith.subf %77, %95 : vector<30x512xf32>
    %97 = vector.broadcast %94 : vector<30x1xf32> to vector<30x512xf32>
    %98 = arith.mulf %96, %97 : vector<30x512xf32>
    %99 = vector.broadcast %79 : vector<30x1xf32> to vector<30x512xf32>
    %100 = arith.addf %98, %99 : vector<30x512xf32>
    %cst_48 = arith.constant 0.000000e+00 : f32
    %101 = vector.broadcast %cst_48 : f32 to vector<30x512xf32>
    %102 = arith.maximumf %100, %101 : vector<30x512xf32>
    %103 = vector.extract_strided_slice %102 {offsets = [0, 495], sizes = [30, 17], strides = [1, 1]} : vector<30x512xf32> to vector<30x17xf32>
    %104 = vector.extract_strided_slice %102 {offsets = [0, 0], sizes = [30, 495], strides = [1, 1]} : vector<30x512xf32> to vector<30x495xf32>
    %105 = tpu.concatenate %103, %104 in 1 : vector<30x17xf32>, vector<30x495xf32> -> vector<30x512xf32>
    %c0_49 = arith.constant 0 : index
    %c0_50 = arith.constant 0 : index
    %106 = vector.load %arg6[%c0_49, %c0_50] : memref<9x512xf32, #tpu.memory_space<vmem>>, vector<1x512xf32>
    %107 = vector.broadcast %106 : vector<1x512xf32> to vector<30x512xf32>
    %108 = arith.mulf %105, %107 : vector<30x512xf32>
    %c0_51 = arith.constant 0 : index
    %c0_52 = arith.constant 0 : index
    %109 = vector.load %arg10[%c0_51, %c0_52] : memref<288x512xf32, #tpu.memory_space<vmem>>, vector<30x512xf32>
    tpu.vector_store %arg10[%c0_51, %c0_52], %108 {strides = array<i32>} : memref<288x512xf32, #tpu.memory_space<vmem>>, vector<30x512xf32>,
    %110 = vector.extract_strided_slice %102 {offsets = [0, 496], sizes = [30, 16], strides = [1, 1]} : vector<30x512xf32> to vector<30x16xf32>
    %111 = vector.extract_strided_slice %102 {offsets = [0, 0], sizes = [30, 496], strides = [1, 1]} : vector<30x512xf32> to vector<30x496xf32>
    %112 = tpu.concatenate %110, %111 in 1 : vector<30x16xf32>, vector<30x496xf32> -> vector<30x512xf32>
    %c1_53 = arith.constant 1 : index
    %c0_54 = arith.constant 0 : index
    %113 = vector.load %arg6[%c1_53, %c0_54] : memref<9x512xf32, #tpu.memory_space<vmem>>, vector<1x512xf32>
    %114 = vector.broadcast %113 : vector<1x512xf32> to vector<30x512xf32>
    %115 = arith.mulf %112, %114 : vector<30x512xf32>
    %c32_55 = arith.constant 32 : index
    %c0_56 = arith.constant 0 : index
    %116 = vector.load %arg10[%c32_55, %c0_56] : memref<288x512xf32, #tpu.memory_space<vmem>>, vector<30x512xf32>
    tpu.vector_store %arg10[%c32_55, %c0_56], %115 {strides = array<i32>} : memref<288x512xf32, #tpu.memory_space<vmem>>, vector<30x512xf32>,
    %117 = vector.extract_strided_slice %102 {offsets = [0, 497], sizes = [30, 15], strides = [1, 1]} : vector<30x512xf32> to vector<30x15xf32>
    %118 = vector.extract_strided_slice %102 {offsets = [0, 0], sizes = [30, 497], strides = [1, 1]} : vector<30x512xf32> to vector<30x497xf32>
    %119 = tpu.concatenate %117, %118 in 1 : vector<30x15xf32>, vector<30x497xf32> -> vector<30x512xf32>
    %c2_57 = arith.constant 2 : index
    %c0_58 = arith.constant 0 : index
    %120 = vector.load %arg6[%c2_57, %c0_58] : memref<9x512xf32, #tpu.memory_space<vmem>>, vector<1x512xf32>
    %121 = vector.broadcast %120 : vector<1x512xf32> to vector<30x512xf32>
    %122 = arith.mulf %119, %121 : vector<30x512xf32>
    %c64_59 = arith.constant 64 : index
    %c0_60 = arith.constant 0 : index
    %123 = vector.load %arg10[%c64_59, %c0_60] : memref<288x512xf32, #tpu.memory_space<vmem>>, vector<30x512xf32>
    tpu.vector_store %arg10[%c64_59, %c0_60], %122 {strides = array<i32>} : memref<288x512xf32, #tpu.memory_space<vmem>>, vector<30x512xf32>,
    %124 = vector.extract_strided_slice %102 {offsets = [0, 511], sizes = [30, 1], strides = [1, 1]} : vector<30x512xf32> to vector<30x1xf32>
    %125 = vector.extract_strided_slice %102 {offsets = [0, 0], sizes = [30, 511], strides = [1, 1]} : vector<30x512xf32> to vector<30x511xf32>
    %126 = tpu.concatenate %124, %125 in 1 : vector<30x1xf32>, vector<30x511xf32> -> vector<30x512xf32>
    %c3_61 = arith.constant 3 : index
    %c0_62 = arith.constant 0 : index
    %127 = vector.load %arg6[%c3_61, %c0_62] : memref<9x512xf32, #tpu.memory_space<vmem>>, vector<1x512xf32>
    %128 = vector.broadcast %127 : vector<1x512xf32> to vector<30x512xf32>
    %129 = arith.mulf %126, %128 : vector<30x512xf32>
    %c96_63 = arith.constant 96 : index
    %c0_64 = arith.constant 0 : index
    %130 = vector.load %arg10[%c96_63, %c0_64] : memref<288x512xf32, #tpu.memory_space<vmem>>, vector<30x512xf32>
    tpu.vector_store %arg10[%c96_63, %c0_64], %129 {strides = array<i32>} : memref<288x512xf32, #tpu.memory_space<vmem>>, vector<30x512xf32>,
    %c128_65 = arith.constant 128 : index
    %c0_66 = arith.constant 0 : index
    %131 = vector.load %arg10[%c128_65, %c0_66] : memref<288x512xf32, #tpu.memory_space<vmem>>, vector<30x512xf32>
    tpu.vector_store %arg10[%c128_65, %c0_66], %102 {strides = array<i32>} : memref<288x512xf32, #tpu.memory_space<vmem>>, vector<30x512xf32>,
    %132 = vector.extract_strided_slice %102 {offsets = [0, 1], sizes = [30, 511], strides = [1, 1]} : vector<30x512xf32> to vector<30x511xf32>
    %133 = vector.extract_strided_slice %102 {offsets = [0, 0], sizes = [30, 1], strides = [1, 1]} : vector<30x512xf32> to vector<30x1xf32>
    %134 = tpu.concatenate %132, %133 in 1 : vector<30x511xf32>, vector<30x1xf32> -> vector<30x512xf32>
    %c5_67 = arith.constant 5 : index
    %c0_68 = arith.constant 0 : index
    %135 = vector.load %arg6[%c5_67, %c0_68] : memref<9x512xf32, #tpu.memory_space<vmem>>, vector<1x512xf32>
    %136 = vector.broadcast %135 : vector<1x512xf32> to vector<30x512xf32>
    %137 = arith.mulf %134, %136 : vector<30x512xf32>
    %c160_69 = arith.constant 160 : index
    %c0_70 = arith.constant 0 : index
    %138 = vector.load %arg10[%c160_69, %c0_70] : memref<288x512xf32, #tpu.memory_space<vmem>>, vector<30x512xf32>
    tpu.vector_store %arg10[%c160_69, %c0_70], %137 {strides = array<i32>} : memref<288x512xf32, #tpu.memory_space<vmem>>, vector<30x512xf32>,
    %139 = vector.extract_strided_slice %102 {offsets = [0, 15], sizes = [30, 497], strides = [1, 1]} : vector<30x512xf32> to vector<30x497xf32>
    %140 = vector.extract_strided_slice %102 {offsets = [0, 0], sizes = [30, 15], strides = [1, 1]} : vector<30x512xf32> to vector<30x15xf32>
    %141 = tpu.concatenate %139, %140 in 1 : vector<30x497xf32>, vector<30x15xf32> -> vector<30x512xf32>
    %c6_71 = arith.constant 6 : index
    %c0_72 = arith.constant 0 : index
    %142 = vector.load %arg6[%c6_71, %c0_72] : memref<9x512xf32, #tpu.memory_space<vmem>>, vector<1x512xf32>
    %143 = vector.broadcast %142 : vector<1x512xf32> to vector<30x512xf32>
    %144 = arith.mulf %141, %143 : vector<30x512xf32>
    %c192_73 = arith.constant 192 : index
    %c0_74 = arith.constant 0 : index
    %145 = vector.load %arg10[%c192_73, %c0_74] : memref<288x512xf32, #tpu.memory_space<vmem>>, vector<30x512xf32>
    tpu.vector_store %arg10[%c192_73, %c0_74], %144 {strides = array<i32>} : memref<288x512xf32, #tpu.memory_space<vmem>>, vector<30x512xf32>,
    %146 = vector.extract_strided_slice %102 {offsets = [0, 16], sizes = [30, 496], strides = [1, 1]} : vector<30x512xf32> to vector<30x496xf32>
    %147 = vector.extract_strided_slice %102 {offsets = [0, 0], sizes = [30, 16], strides = [1, 1]} : vector<30x512xf32> to vector<30x16xf32>
    %148 = tpu.concatenate %146, %147 in 1 : vector<30x496xf32>, vector<30x16xf32> -> vector<30x512xf32>
    %c7_75 = arith.constant 7 : index
    %c0_76 = arith.constant 0 : index
    %149 = vector.load %arg6[%c7_75, %c0_76] : memref<9x512xf32, #tpu.memory_space<vmem>>, vector<1x512xf32>
    %150 = vector.broadcast %149 : vector<1x512xf32> to vector<30x512xf32>
    %151 = arith.mulf %148, %150 : vector<30x512xf32>
    %c224_77 = arith.constant 224 : index
    %c0_78 = arith.constant 0 : index
    %152 = vector.load %arg10[%c224_77, %c0_78] : memref<288x512xf32, #tpu.memory_space<vmem>>, vector<30x512xf32>
    tpu.vector_store %arg10[%c224_77, %c0_78], %151 {strides = array<i32>} : memref<288x512xf32, #tpu.memory_space<vmem>>, vector<30x512xf32>,
    %153 = vector.extract_strided_slice %102 {offsets = [0, 17], sizes = [30, 495], strides = [1, 1]} : vector<30x512xf32> to vector<30x495xf32>
    %154 = vector.extract_strided_slice %102 {offsets = [0, 0], sizes = [30, 17], strides = [1, 1]} : vector<30x512xf32> to vector<30x17xf32>
    %155 = tpu.concatenate %153, %154 in 1 : vector<30x495xf32>, vector<30x17xf32> -> vector<30x512xf32>
    %c8_79 = arith.constant 8 : index
    %c0_80 = arith.constant 0 : index
    %156 = vector.load %arg6[%c8_79, %c0_80] : memref<9x512xf32, #tpu.memory_space<vmem>>, vector<1x512xf32>
    %157 = vector.broadcast %156 : vector<1x512xf32> to vector<30x512xf32>
    %158 = arith.mulf %155, %157 : vector<30x512xf32>
    %c256_81 = arith.constant 256 : index
    %c0_82 = arith.constant 0 : index
    %159 = vector.load %arg10[%c256_81, %c0_82] : memref<288x512xf32, #tpu.memory_space<vmem>>, vector<30x512xf32>
    tpu.vector_store %arg10[%c256_81, %c0_82], %158 {strides = array<i32>} : memref<288x512xf32, #tpu.memory_space<vmem>>, vector<30x512xf32>,
    %c1_83 = arith.constant 1 : index
    %c0_84 = arith.constant 0 : index
    %c0_85 = arith.constant 0 : index
    %c0_86 = arith.constant 0 : index
    %160 = vector.load %arg3[%c1_83, %c0_84, %c0_85, %c0_86] : memref<4x2x30x288xf32, #tpu.memory_space<vmem>>, vector<1x1x30x288xf32>
    %161 = vector.shape_cast %160 : vector<1x1x30x288xf32> to vector<30x288xf32>
    %c0_87 = arith.constant 0 : index
    %c0_88 = arith.constant 0 : index
    %162 = vector.load %arg10[%c0_87, %c0_88] : memref<288x512xf32, #tpu.memory_space<vmem>>, vector<288x256xf32>
    %cst_89 = arith.constant dense<0.000000e+00> : vector<30x256xf32>
    %163 = tpu.matmul %161, %162, %cst_89 {dimension_numbers = #tpu.dot_dimension_numbers<[1], [0], [0], [1], [0, 0, 1, 1], [], []>} : vector<30x288xf32>, vector<288x256xf32>, vector<30x256xf32> -> vector<30x256xf32>
    %c1_90 = arith.constant 1 : index
    %c1_91 = arith.constant 1 : index
    %c0_92 = arith.constant 0 : index
    %c0_93 = arith.constant 0 : index
    %164 = vector.load %arg3[%c1_90, %c1_91, %c0_92, %c0_93] : memref<4x2x30x288xf32, #tpu.memory_space<vmem>>, vector<1x1x30x288xf32>
    %165 = vector.shape_cast %164 : vector<1x1x30x288xf32> to vector<30x288xf32>
    %c0_94 = arith.constant 0 : index
    %c256_95 = arith.constant 256 : index
    %166 = vector.load %arg10[%c0_94, %c256_95] : memref<288x512xf32, #tpu.memory_space<vmem>>, vector<288x256xf32>
    %cst_96 = arith.constant dense<0.000000e+00> : vector<30x256xf32>
    %167 = tpu.matmul %165, %166, %cst_96 {dimension_numbers = #tpu.dot_dimension_numbers<[1], [0], [0], [1], [0, 0, 1, 1], [], []>} : vector<30x288xf32>, vector<288x256xf32>, vector<30x256xf32> -> vector<30x256xf32>
    %168 = tpu.concatenate %163, %167 in 1 : vector<30x256xf32>, vector<30x256xf32> -> vector<30x512xf32>
    %169 = vector.extract_strided_slice %8 {offsets = [0, 3], sizes = [30, 1], strides = [1, 1]} : vector<30x6xf32> to vector<30x1xf32>
    %170 = vector.broadcast %169 : vector<30x1xf32> to vector<30x512xf32>
    %171 = arith.addf %168, %170 : vector<30x512xf32>
    %172 = vector.extract_strided_slice %8 {offsets = [0, 4], sizes = [30, 1], strides = [1, 1]} : vector<30x6xf32> to vector<30x1xf32>
    %173 = vector.extract_strided_slice %8 {offsets = [0, 5], sizes = [30, 1], strides = [1, 1]} : vector<30x6xf32> to vector<30x1xf32>
    %cst_97 = arith.constant dense<0.000000e+00> : vector<30xf32>
    %174 = vector.multi_reduction <add>, %171, %cst_97 [1] : vector<30x512xf32> to vector<30xf32>
    %175 = vector.shape_cast %174 : vector<30xf32> to vector<30x1xf32>
    %cst_98 = arith.constant 5.120000e+02 : f32
    %176 = vector.broadcast %cst_98 : f32 to vector<30x1xf32>
    %177 = arith.divf %175, %176 : vector<30x1xf32>
    %178 = vector.broadcast %177 : vector<30x1xf32> to vector<30x512xf32>
    %179 = arith.subf %171, %178 : vector<30x512xf32>
    %180 = arith.mulf %179, %179 : vector<30x512xf32>
    %cst_99 = arith.constant dense<0.000000e+00> : vector<30xf32>
    %181 = vector.multi_reduction <add>, %180, %cst_99 [1] : vector<30x512xf32> to vector<30xf32>
    %182 = vector.shape_cast %181 : vector<30xf32> to vector<30x1xf32>
    %cst_100 = arith.constant 5.120000e+02 : f32
    %183 = vector.broadcast %cst_100 : f32 to vector<30x1xf32>
    %184 = arith.divf %182, %183 : vector<30x1xf32>
    %cst_101 = arith.constant 9.99999974E-6 : f32
    %185 = vector.broadcast %cst_101 : f32 to vector<30x1xf32>
    %186 = arith.addf %184, %185 : vector<30x1xf32>
    %187 = math.rsqrt %186 : vector<30x1xf32>
    %188 = arith.mulf %172, %187 : vector<30x1xf32>
    %189 = vector.broadcast %177 : vector<30x1xf32> to vector<30x512xf32>
    %190 = arith.subf %171, %189 : vector<30x512xf32>
    %191 = vector.broadcast %188 : vector<30x1xf32> to vector<30x512xf32>
    %192 = arith.mulf %190, %191 : vector<30x512xf32>
    %193 = vector.broadcast %173 : vector<30x1xf32> to vector<30x512xf32>
    %194 = arith.addf %192, %193 : vector<30x512xf32>
    %cst_102 = arith.constant 1.000000e-01 : f32
    %195 = vector.broadcast %cst_102 : f32 to vector<30x512xf32>
    %196 = arith.mulf %194, %195 : vector<30x512xf32>
    %197 = arith.addf %196, %7 : vector<30x512xf32>
    %c0_103 = arith.constant 0 : index
    %c0_104 = arith.constant 0 : index
    %198 = vector.load %arg5[%c0_103, %c0_104] : memref<30x6xf32, #tpu.memory_space<vmem>>, vector<30x6xf32>
    %199 = vector.extract_strided_slice %197 {offsets = [0, 495], sizes = [30, 17], strides = [1, 1]} : vector<30x512xf32> to vector<30x17xf32>
    %200 = vector.extract_strided_slice %197 {offsets = [0, 0], sizes = [30, 495], strides = [1, 1]} : vector<30x512xf32> to vector<30x495xf32>
    %201 = tpu.concatenate %199, %200 in 1 : vector<30x17xf32>, vector<30x495xf32> -> vector<30x512xf32>
    %c0_105 = arith.constant 0 : index
    %c0_106 = arith.constant 0 : index
    %202 = vector.load %arg6[%c0_105, %c0_106] : memref<9x512xf32, #tpu.memory_space<vmem>>, vector<1x512xf32>
    %203 = vector.broadcast %202 : vector<1x512xf32> to vector<30x512xf32>
    %204 = arith.mulf %201, %203 : vector<30x512xf32>
    %c0_107 = arith.constant 0 : index
    %c0_108 = arith.constant 0 : index
    %205 = vector.load %arg10[%c0_107, %c0_108] : memref<288x512xf32, #tpu.memory_space<vmem>>, vector<30x512xf32>
    tpu.vector_store %arg10[%c0_107, %c0_108], %204 {strides = array<i32>} : memref<288x512xf32, #tpu.memory_space<vmem>>, vector<30x512xf32>,
    %206 = vector.extract_strided_slice %197 {offsets = [0, 496], sizes = [30, 16], strides = [1, 1]} : vector<30x512xf32> to vector<30x16xf32>
    %207 = vector.extract_strided_slice %197 {offsets = [0, 0], sizes = [30, 496], strides = [1, 1]} : vector<30x512xf32> to vector<30x496xf32>
    %208 = tpu.concatenate %206, %207 in 1 : vector<30x16xf32>, vector<30x496xf32> -> vector<30x512xf32>
    %c1_109 = arith.constant 1 : index
    %c0_110 = arith.constant 0 : index
    %209 = vector.load %arg6[%c1_109, %c0_110] : memref<9x512xf32, #tpu.memory_space<vmem>>, vector<1x512xf32>
    %210 = vector.broadcast %209 : vector<1x512xf32> to vector<30x512xf32>
    %211 = arith.mulf %208, %210 : vector<30x512xf32>
    %c32_111 = arith.constant 32 : index
    %c0_112 = arith.constant 0 : index
    %212 = vector.load %arg10[%c32_111, %c0_112] : memref<288x512xf32, #tpu.memory_space<vmem>>, vector<30x512xf32>
    tpu.vector_store %arg10[%c32_111, %c0_112], %211 {strides = array<i32>} : memref<288x512xf32, #tpu.memory_space<vmem>>, vector<30x512xf32>,
    %213 = vector.extract_strided_slice %197 {offsets = [0, 497], sizes = [30, 15], strides = [1, 1]} : vector<30x512xf32> to vector<30x15xf32>
    %214 = vector.extract_strided_slice %197 {offsets = [0, 0], sizes = [30, 497], strides = [1, 1]} : vector<30x512xf32> to vector<30x497xf32>
    %215 = tpu.concatenate %213, %214 in 1 : vector<30x15xf32>, vector<30x497xf32> -> vector<30x512xf32>
    %c2_113 = arith.constant 2 : index
    %c0_114 = arith.constant 0 : index
    %216 = vector.load %arg6[%c2_113, %c0_114] : memref<9x512xf32, #tpu.memory_space<vmem>>, vector<1x512xf32>
    %217 = vector.broadcast %216 : vector<1x512xf32> to vector<30x512xf32>
    %218 = arith.mulf %215, %217 : vector<30x512xf32>
    %c64_115 = arith.constant 64 : index
    %c0_116 = arith.constant 0 : index
    %219 = vector.load %arg10[%c64_115, %c0_116] : memref<288x512xf32, #tpu.memory_space<vmem>>, vector<30x512xf32>
    tpu.vector_store %arg10[%c64_115, %c0_116], %218 {strides = array<i32>} : memref<288x512xf32, #tpu.memory_space<vmem>>, vector<30x512xf32>,
    %220 = vector.extract_strided_slice %197 {offsets = [0, 511], sizes = [30, 1], strides = [1, 1]} : vector<30x512xf32> to vector<30x1xf32>
    %221 = vector.extract_strided_slice %197 {offsets = [0, 0], sizes = [30, 511], strides = [1, 1]} : vector<30x512xf32> to vector<30x511xf32>
    %222 = tpu.concatenate %220, %221 in 1 : vector<30x1xf32>, vector<30x511xf32> -> vector<30x512xf32>
    %c3_117 = arith.constant 3 : index
    %c0_118 = arith.constant 0 : index
    %223 = vector.load %arg6[%c3_117, %c0_118] : memref<9x512xf32, #tpu.memory_space<vmem>>, vector<1x512xf32>
    %224 = vector.broadcast %223 : vector<1x512xf32> to vector<30x512xf32>
    %225 = arith.mulf %222, %224 : vector<30x512xf32>
    %c96_119 = arith.constant 96 : index
    %c0_120 = arith.constant 0 : index
    %226 = vector.load %arg10[%c96_119, %c0_120] : memref<288x512xf32, #tpu.memory_space<vmem>>, vector<30x512xf32>
    tpu.vector_store %arg10[%c96_119, %c0_120], %225 {strides = array<i32>} : memref<288x512xf32, #tpu.memory_space<vmem>>, vector<30x512xf32>,
    %c128_121 = arith.constant 128 : index
    %c0_122 = arith.constant 0 : index
    %227 = vector.load %arg10[%c128_121, %c0_122] : memref<288x512xf32, #tpu.memory_space<vmem>>, vector<30x512xf32>
    tpu.vector_store %arg10[%c128_121, %c0_122], %197 {strides = array<i32>} : memref<288x512xf32, #tpu.memory_space<vmem>>, vector<30x512xf32>,
    %228 = vector.extract_strided_slice %197 {offsets = [0, 1], sizes = [30, 511], strides = [1, 1]} : vector<30x512xf32> to vector<30x511xf32>
    %229 = vector.extract_strided_slice %197 {offsets = [0, 0], sizes = [30, 1], strides = [1, 1]} : vector<30x512xf32> to vector<30x1xf32>
    %230 = tpu.concatenate %228, %229 in 1 : vector<30x511xf32>, vector<30x1xf32> -> vector<30x512xf32>
    %c5_123 = arith.constant 5 : index
    %c0_124 = arith.constant 0 : index
    %231 = vector.load %arg6[%c5_123, %c0_124] : memref<9x512xf32, #tpu.memory_space<vmem>>, vector<1x512xf32>
    %232 = vector.broadcast %231 : vector<1x512xf32> to vector<30x512xf32>
    %233 = arith.mulf %230, %232 : vector<30x512xf32>
    %c160_125 = arith.constant 160 : index
    %c0_126 = arith.constant 0 : index
    %234 = vector.load %arg10[%c160_125, %c0_126] : memref<288x512xf32, #tpu.memory_space<vmem>>, vector<30x512xf32>
    tpu.vector_store %arg10[%c160_125, %c0_126], %233 {strides = array<i32>} : memref<288x512xf32, #tpu.memory_space<vmem>>, vector<30x512xf32>,
    %235 = vector.extract_strided_slice %197 {offsets = [0, 15], sizes = [30, 497], strides = [1, 1]} : vector<30x512xf32> to vector<30x497xf32>
    %236 = vector.extract_strided_slice %197 {offsets = [0, 0], sizes = [30, 15], strides = [1, 1]} : vector<30x512xf32> to vector<30x15xf32>
    %237 = tpu.concatenate %235, %236 in 1 : vector<30x497xf32>, vector<30x15xf32> -> vector<30x512xf32>
    %c6_127 = arith.constant 6 : index
    %c0_128 = arith.constant 0 : index
    %238 = vector.load %arg6[%c6_127, %c0_128] : memref<9x512xf32, #tpu.memory_space<vmem>>, vector<1x512xf32>
    %239 = vector.broadcast %238 : vector<1x512xf32> to vector<30x512xf32>
    %240 = arith.mulf %237, %239 : vector<30x512xf32>
    %c192_129 = arith.constant 192 : index
    %c0_130 = arith.constant 0 : index
    %241 = vector.load %arg10[%c192_129, %c0_130] : memref<288x512xf32, #tpu.memory_space<vmem>>, vector<30x512xf32>
    tpu.vector_store %arg10[%c192_129, %c0_130], %240 {strides = array<i32>} : memref<288x512xf32, #tpu.memory_space<vmem>>, vector<30x512xf32>,
    %242 = vector.extract_strided_slice %197 {offsets = [0, 16], sizes = [30, 496], strides = [1, 1]} : vector<30x512xf32> to vector<30x496xf32>
    %243 = vector.extract_strided_slice %197 {offsets = [0, 0], sizes = [30, 16], strides = [1, 1]} : vector<30x512xf32> to vector<30x16xf32>
    %244 = tpu.concatenate %242, %243 in 1 : vector<30x496xf32>, vector<30x16xf32> -> vector<30x512xf32>
    %c7_131 = arith.constant 7 : index
    %c0_132 = arith.constant 0 : index
    %245 = vector.load %arg6[%c7_131, %c0_132] : memref<9x512xf32, #tpu.memory_space<vmem>>, vector<1x512xf32>
    %246 = vector.broadcast %245 : vector<1x512xf32> to vector<30x512xf32>
    %247 = arith.mulf %244, %246 : vector<30x512xf32>
    %c224_133 = arith.constant 224 : index
    %c0_134 = arith.constant 0 : index
    %248 = vector.load %arg10[%c224_133, %c0_134] : memref<288x512xf32, #tpu.memory_space<vmem>>, vector<30x512xf32>
    tpu.vector_store %arg10[%c224_133, %c0_134], %247 {strides = array<i32>} : memref<288x512xf32, #tpu.memory_space<vmem>>, vector<30x512xf32>,
    %249 = vector.extract_strided_slice %197 {offsets = [0, 17], sizes = [30, 495], strides = [1, 1]} : vector<30x512xf32> to vector<30x495xf32>
    %250 = vector.extract_strided_slice %197 {offsets = [0, 0], sizes = [30, 17], strides = [1, 1]} : vector<30x512xf32> to vector<30x17xf32>
    %251 = tpu.concatenate %249, %250 in 1 : vector<30x495xf32>, vector<30x17xf32> -> vector<30x512xf32>
    %c8_135 = arith.constant 8 : index
    %c0_136 = arith.constant 0 : index
    %252 = vector.load %arg6[%c8_135, %c0_136] : memref<9x512xf32, #tpu.memory_space<vmem>>, vector<1x512xf32>
    %253 = vector.broadcast %252 : vector<1x512xf32> to vector<30x512xf32>
    %254 = arith.mulf %251, %253 : vector<30x512xf32>
    %c256_137 = arith.constant 256 : index
    %c0_138 = arith.constant 0 : index
    %255 = vector.load %arg10[%c256_137, %c0_138] : memref<288x512xf32, #tpu.memory_space<vmem>>, vector<30x512xf32>
    tpu.vector_store %arg10[%c256_137, %c0_138], %254 {strides = array<i32>} : memref<288x512xf32, #tpu.memory_space<vmem>>, vector<30x512xf32>,
    %c2_139 = arith.constant 2 : index
    %c0_140 = arith.constant 0 : index
    %c0_141 = arith.constant 0 : index
    %c0_142 = arith.constant 0 : index
    %256 = vector.load %arg3[%c2_139, %c0_140, %c0_141, %c0_142] : memref<4x2x30x288xf32, #tpu.memory_space<vmem>>, vector<1x1x30x288xf32>
    %257 = vector.shape_cast %256 : vector<1x1x30x288xf32> to vector<30x288xf32>
    %c0_143 = arith.constant 0 : index
    %c0_144 = arith.constant 0 : index
    %258 = vector.load %arg10[%c0_143, %c0_144] : memref<288x512xf32, #tpu.memory_space<vmem>>, vector<288x256xf32>
    %cst_145 = arith.constant dense<0.000000e+00> : vector<30x256xf32>
    %259 = tpu.matmul %257, %258, %cst_145 {dimension_numbers = #tpu.dot_dimension_numbers<[1], [0], [0], [1], [0, 0, 1, 1], [], []>} : vector<30x288xf32>, vector<288x256xf32>, vector<30x256xf32> -> vector<30x256xf32>
    %c2_146 = arith.constant 2 : index
    %c1_147 = arith.constant 1 : index
    %c0_148 = arith.constant 0 : index
    %c0_149 = arith.constant 0 : index
    %260 = vector.load %arg3[%c2_146, %c1_147, %c0_148, %c0_149] : memref<4x2x30x288xf32, #tpu.memory_space<vmem>>, vector<1x1x30x288xf32>
    %261 = vector.shape_cast %260 : vector<1x1x30x288xf32> to vector<30x288xf32>
    %c0_150 = arith.constant 0 : index
    %c256_151 = arith.constant 256 : index
    %262 = vector.load %arg10[%c0_150, %c256_151] : memref<288x512xf32, #tpu.memory_space<vmem>>, vector<288x256xf32>
    %cst_152 = arith.constant dense<0.000000e+00> : vector<30x256xf32>
    %263 = tpu.matmul %261, %262, %cst_152 {dimension_numbers = #tpu.dot_dimension_numbers<[1], [0], [0], [1], [0, 0, 1, 1], [], []>} : vector<30x288xf32>, vector<288x256xf32>, vector<30x256xf32> -> vector<30x256xf32>
    %264 = tpu.concatenate %259, %263 in 1 : vector<30x256xf32>, vector<30x256xf32> -> vector<30x512xf32>
    %265 = vector.extract_strided_slice %198 {offsets = [0, 0], sizes = [30, 1], strides = [1, 1]} : vector<30x6xf32> to vector<30x1xf32>
    %266 = vector.broadcast %265 : vector<30x1xf32> to vector<30x512xf32>
    %267 = arith.addf %264, %266 : vector<30x512xf32>
    %268 = vector.extract_strided_slice %198 {offsets = [0, 1], sizes = [30, 1], strides = [1, 1]} : vector<30x6xf32> to vector<30x1xf32>
    %269 = vector.extract_strided_slice %198 {offsets = [0, 2], sizes = [30, 1], strides = [1, 1]} : vector<30x6xf32> to vector<30x1xf32>
    %cst_153 = arith.constant dense<0.000000e+00> : vector<30xf32>
    %270 = vector.multi_reduction <add>, %267, %cst_153 [1] : vector<30x512xf32> to vector<30xf32>
    %271 = vector.shape_cast %270 : vector<30xf32> to vector<30x1xf32>
    %cst_154 = arith.constant 5.120000e+02 : f32
    %272 = vector.broadcast %cst_154 : f32 to vector<30x1xf32>
    %273 = arith.divf %271, %272 : vector<30x1xf32>
    %274 = vector.broadcast %273 : vector<30x1xf32> to vector<30x512xf32>
    %275 = arith.subf %267, %274 : vector<30x512xf32>
    %276 = arith.mulf %275, %275 : vector<30x512xf32>
    %cst_155 = arith.constant dense<0.000000e+00> : vector<30xf32>
    %277 = vector.multi_reduction <add>, %276, %cst_155 [1] : vector<30x512xf32> to vector<30xf32>
    %278 = vector.shape_cast %277 : vector<30xf32> to vector<30x1xf32>
    %cst_156 = arith.constant 5.120000e+02 : f32
    %279 = vector.broadcast %cst_156 : f32 to vector<30x1xf32>
    %280 = arith.divf %278, %279 : vector<30x1xf32>
    %cst_157 = arith.constant 9.99999974E-6 : f32
    %281 = vector.broadcast %cst_157 : f32 to vector<30x1xf32>
    %282 = arith.addf %280, %281 : vector<30x1xf32>
    %283 = math.rsqrt %282 : vector<30x1xf32>
    %284 = arith.mulf %268, %283 : vector<30x1xf32>
    %285 = vector.broadcast %273 : vector<30x1xf32> to vector<30x512xf32>
    %286 = arith.subf %267, %285 : vector<30x512xf32>
    %287 = vector.broadcast %284 : vector<30x1xf32> to vector<30x512xf32>
    %288 = arith.mulf %286, %287 : vector<30x512xf32>
    %289 = vector.broadcast %269 : vector<30x1xf32> to vector<30x512xf32>
    %290 = arith.addf %288, %289 : vector<30x512xf32>
    %cst_158 = arith.constant 0.000000e+00 : f32
    %291 = vector.broadcast %cst_158 : f32 to vector<30x512xf32>
    %292 = arith.maximumf %290, %291 : vector<30x512xf32>
    %293 = vector.extract_strided_slice %292 {offsets = [0, 495], sizes = [30, 17], strides = [1, 1]} : vector<30x512xf32> to vector<30x17xf32>
    %294 = vector.extract_strided_slice %292 {offsets = [0, 0], sizes = [30, 495], strides = [1, 1]} : vector<30x512xf32> to vector<30x495xf32>
    %295 = tpu.concatenate %293, %294 in 1 : vector<30x17xf32>, vector<30x495xf32> -> vector<30x512xf32>
    %c0_159 = arith.constant 0 : index
    %c0_160 = arith.constant 0 : index
    %296 = vector.load %arg6[%c0_159, %c0_160] : memref<9x512xf32, #tpu.memory_space<vmem>>, vector<1x512xf32>
    %297 = vector.broadcast %296 : vector<1x512xf32> to vector<30x512xf32>
    %298 = arith.mulf %295, %297 : vector<30x512xf32>
    %c0_161 = arith.constant 0 : index
    %c0_162 = arith.constant 0 : index
    %299 = vector.load %arg10[%c0_161, %c0_162] : memref<288x512xf32, #tpu.memory_space<vmem>>, vector<30x512xf32>
    tpu.vector_store %arg10[%c0_161, %c0_162], %298 {strides = array<i32>} : memref<288x512xf32, #tpu.memory_space<vmem>>, vector<30x512xf32>,
    %300 = vector.extract_strided_slice %292 {offsets = [0, 496], sizes = [30, 16], strides = [1, 1]} : vector<30x512xf32> to vector<30x16xf32>
    %301 = vector.extract_strided_slice %292 {offsets = [0, 0], sizes = [30, 496], strides = [1, 1]} : vector<30x512xf32> to vector<30x496xf32>
    %302 = tpu.concatenate %300, %301 in 1 : vector<30x16xf32>, vector<30x496xf32> -> vector<30x512xf32>
    %c1_163 = arith.constant 1 : index
    %c0_164 = arith.constant 0 : index
    %303 = vector.load %arg6[%c1_163, %c0_164] : memref<9x512xf32, #tpu.memory_space<vmem>>, vector<1x512xf32>
    %304 = vector.broadcast %303 : vector<1x512xf32> to vector<30x512xf32>
    %305 = arith.mulf %302, %304 : vector<30x512xf32>
    %c32_165 = arith.constant 32 : index
    %c0_166 = arith.constant 0 : index
    %306 = vector.load %arg10[%c32_165, %c0_166] : memref<288x512xf32, #tpu.memory_space<vmem>>, vector<30x512xf32>
    tpu.vector_store %arg10[%c32_165, %c0_166], %305 {strides = array<i32>} : memref<288x512xf32, #tpu.memory_space<vmem>>, vector<30x512xf32>,
    %307 = vector.extract_strided_slice %292 {offsets = [0, 497], sizes = [30, 15], strides = [1, 1]} : vector<30x512xf32> to vector<30x15xf32>
    %308 = vector.extract_strided_slice %292 {offsets = [0, 0], sizes = [30, 497], strides = [1, 1]} : vector<30x512xf32> to vector<30x497xf32>
    %309 = tpu.concatenate %307, %308 in 1 : vector<30x15xf32>, vector<30x497xf32> -> vector<30x512xf32>
    %c2_167 = arith.constant 2 : index
    %c0_168 = arith.constant 0 : index
    %310 = vector.load %arg6[%c2_167, %c0_168] : memref<9x512xf32, #tpu.memory_space<vmem>>, vector<1x512xf32>
    %311 = vector.broadcast %310 : vector<1x512xf32> to vector<30x512xf32>
    %312 = arith.mulf %309, %311 : vector<30x512xf32>
    %c64_169 = arith.constant 64 : index
    %c0_170 = arith.constant 0 : index
    %313 = vector.load %arg10[%c64_169, %c0_170] : memref<288x512xf32, #tpu.memory_space<vmem>>, vector<30x512xf32>
    tpu.vector_store %arg10[%c64_169, %c0_170], %312 {strides = array<i32>} : memref<288x512xf32, #tpu.memory_space<vmem>>, vector<30x512xf32>,
    %314 = vector.extract_strided_slice %292 {offsets = [0, 511], sizes = [30, 1], strides = [1, 1]} : vector<30x512xf32> to vector<30x1xf32>
    %315 = vector.extract_strided_slice %292 {offsets = [0, 0], sizes = [30, 511], strides = [1, 1]} : vector<30x512xf32> to vector<30x511xf32>
    %316 = tpu.concatenate %314, %315 in 1 : vector<30x1xf32>, vector<30x511xf32> -> vector<30x512xf32>
    %c3_171 = arith.constant 3 : index
    %c0_172 = arith.constant 0 : index
    %317 = vector.load %arg6[%c3_171, %c0_172] : memref<9x512xf32, #tpu.memory_space<vmem>>, vector<1x512xf32>
    %318 = vector.broadcast %317 : vector<1x512xf32> to vector<30x512xf32>
    %319 = arith.mulf %316, %318 : vector<30x512xf32>
    %c96_173 = arith.constant 96 : index
    %c0_174 = arith.constant 0 : index
    %320 = vector.load %arg10[%c96_173, %c0_174] : memref<288x512xf32, #tpu.memory_space<vmem>>, vector<30x512xf32>
    tpu.vector_store %arg10[%c96_173, %c0_174], %319 {strides = array<i32>} : memref<288x512xf32, #tpu.memory_space<vmem>>, vector<30x512xf32>,
    %c128_175 = arith.constant 128 : index
    %c0_176 = arith.constant 0 : index
    %321 = vector.load %arg10[%c128_175, %c0_176] : memref<288x512xf32, #tpu.memory_space<vmem>>, vector<30x512xf32>
    tpu.vector_store %arg10[%c128_175, %c0_176], %292 {strides = array<i32>} : memref<288x512xf32, #tpu.memory_space<vmem>>, vector<30x512xf32>,
    %322 = vector.extract_strided_slice %292 {offsets = [0, 1], sizes = [30, 511], strides = [1, 1]} : vector<30x512xf32> to vector<30x511xf32>
    %323 = vector.extract_strided_slice %292 {offsets = [0, 0], sizes = [30, 1], strides = [1, 1]} : vector<30x512xf32> to vector<30x1xf32>
    %324 = tpu.concatenate %322, %323 in 1 : vector<30x511xf32>, vector<30x1xf32> -> vector<30x512xf32>
    %c5_177 = arith.constant 5 : index
    %c0_178 = arith.constant 0 : index
    %325 = vector.load %arg6[%c5_177, %c0_178] : memref<9x512xf32, #tpu.memory_space<vmem>>, vector<1x512xf32>
    %326 = vector.broadcast %325 : vector<1x512xf32> to vector<30x512xf32>
    %327 = arith.mulf %324, %326 : vector<30x512xf32>
    %c160_179 = arith.constant 160 : index
    %c0_180 = arith.constant 0 : index
    %328 = vector.load %arg10[%c160_179, %c0_180] : memref<288x512xf32, #tpu.memory_space<vmem>>, vector<30x512xf32>
    tpu.vector_store %arg10[%c160_179, %c0_180], %327 {strides = array<i32>} : memref<288x512xf32, #tpu.memory_space<vmem>>, vector<30x512xf32>,
    %329 = vector.extract_strided_slice %292 {offsets = [0, 15], sizes = [30, 497], strides = [1, 1]} : vector<30x512xf32> to vector<30x497xf32>
    %330 = vector.extract_strided_slice %292 {offsets = [0, 0], sizes = [30, 15], strides = [1, 1]} : vector<30x512xf32> to vector<30x15xf32>
    %331 = tpu.concatenate %329, %330 in 1 : vector<30x497xf32>, vector<30x15xf32> -> vector<30x512xf32>
    %c6_181 = arith.constant 6 : index
    %c0_182 = arith.constant 0 : index
    %332 = vector.load %arg6[%c6_181, %c0_182] : memref<9x512xf32, #tpu.memory_space<vmem>>, vector<1x512xf32>
    %333 = vector.broadcast %332 : vector<1x512xf32> to vector<30x512xf32>
    %334 = arith.mulf %331, %333 : vector<30x512xf32>
    %c192_183 = arith.constant 192 : index
    %c0_184 = arith.constant 0 : index
    %335 = vector.load %arg10[%c192_183, %c0_184] : memref<288x512xf32, #tpu.memory_space<vmem>>, vector<30x512xf32>
    tpu.vector_store %arg10[%c192_183, %c0_184], %334 {strides = array<i32>} : memref<288x512xf32, #tpu.memory_space<vmem>>, vector<30x512xf32>,
    %336 = vector.extract_strided_slice %292 {offsets = [0, 16], sizes = [30, 496], strides = [1, 1]} : vector<30x512xf32> to vector<30x496xf32>
    %337 = vector.extract_strided_slice %292 {offsets = [0, 0], sizes = [30, 16], strides = [1, 1]} : vector<30x512xf32> to vector<30x16xf32>
    %338 = tpu.concatenate %336, %337 in 1 : vector<30x496xf32>, vector<30x16xf32> -> vector<30x512xf32>
    %c7_185 = arith.constant 7 : index
    %c0_186 = arith.constant 0 : index
    %339 = vector.load %arg6[%c7_185, %c0_186] : memref<9x512xf32, #tpu.memory_space<vmem>>, vector<1x512xf32>
    %340 = vector.broadcast %339 : vector<1x512xf32> to vector<30x512xf32>
    %341 = arith.mulf %338, %340 : vector<30x512xf32>
    %c224_187 = arith.constant 224 : index
    %c0_188 = arith.constant 0 : index
    %342 = vector.load %arg10[%c224_187, %c0_188] : memref<288x512xf32, #tpu.memory_space<vmem>>, vector<30x512xf32>
    tpu.vector_store %arg10[%c224_187, %c0_188], %341 {strides = array<i32>} : memref<288x512xf32, #tpu.memory_space<vmem>>, vector<30x512xf32>,
    %343 = vector.extract_strided_slice %292 {offsets = [0, 17], sizes = [30, 495], strides = [1, 1]} : vector<30x512xf32> to vector<30x495xf32>
    %344 = vector.extract_strided_slice %292 {offsets = [0, 0], sizes = [30, 17], strides = [1, 1]} : vector<30x512xf32> to vector<30x17xf32>
    %345 = tpu.concatenate %343, %344 in 1 : vector<30x495xf32>, vector<30x17xf32> -> vector<30x512xf32>
    %c8_189 = arith.constant 8 : index
    %c0_190 = arith.constant 0 : index
    %346 = vector.load %arg6[%c8_189, %c0_190] : memref<9x512xf32, #tpu.memory_space<vmem>>, vector<1x512xf32>
    %347 = vector.broadcast %346 : vector<1x512xf32> to vector<30x512xf32>
    %348 = arith.mulf %345, %347 : vector<30x512xf32>
    %c256_191 = arith.constant 256 : index
    %c0_192 = arith.constant 0 : index
    %349 = vector.load %arg10[%c256_191, %c0_192] : memref<288x512xf32, #tpu.memory_space<vmem>>, vector<30x512xf32>
    tpu.vector_store %arg10[%c256_191, %c0_192], %348 {strides = array<i32>} : memref<288x512xf32, #tpu.memory_space<vmem>>, vector<30x512xf32>,
    %c3_193 = arith.constant 3 : index
    %c0_194 = arith.constant 0 : index
    %c0_195 = arith.constant 0 : index
    %c0_196 = arith.constant 0 : index
    %350 = vector.load %arg3[%c3_193, %c0_194, %c0_195, %c0_196] : memref<4x2x30x288xf32, #tpu.memory_space<vmem>>, vector<1x1x30x288xf32>
    %351 = vector.shape_cast %350 : vector<1x1x30x288xf32> to vector<30x288xf32>
    %c0_197 = arith.constant 0 : index
    %c0_198 = arith.constant 0 : index
    %352 = vector.load %arg10[%c0_197, %c0_198] : memref<288x512xf32, #tpu.memory_space<vmem>>, vector<288x256xf32>
    %cst_199 = arith.constant dense<0.000000e+00> : vector<30x256xf32>
    %353 = tpu.matmul %351, %352, %cst_199 {dimension_numbers = #tpu.dot_dimension_numbers<[1], [0], [0], [1], [0, 0, 1, 1], [], []>} : vector<30x288xf32>, vector<288x256xf32>, vector<30x256xf32> -> vector<30x256xf32>
    %c3_200 = arith.constant 3 : index
    %c1_201 = arith.constant 1 : index
    %c0_202 = arith.constant 0 : index
    %c0_203 = arith.constant 0 : index
    %354 = vector.load %arg3[%c3_200, %c1_201, %c0_202, %c0_203] : memref<4x2x30x288xf32, #tpu.memory_space<vmem>>, vector<1x1x30x288xf32>
    %355 = vector.shape_cast %354 : vector<1x1x30x288xf32> to vector<30x288xf32>
    %c0_204 = arith.constant 0 : index
    %c256_205 = arith.constant 256 : index
    %356 = vector.load %arg10[%c0_204, %c256_205] : memref<288x512xf32, #tpu.memory_space<vmem>>, vector<288x256xf32>
    %cst_206 = arith.constant dense<0.000000e+00> : vector<30x256xf32>
    %357 = tpu.matmul %355, %356, %cst_206 {dimension_numbers = #tpu.dot_dimension_numbers<[1], [0], [0], [1], [0, 0, 1, 1], [], []>} : vector<30x288xf32>, vector<288x256xf32>, vector<30x256xf32> -> vector<30x256xf32>
    %358 = tpu.concatenate %353, %357 in 1 : vector<30x256xf32>, vector<30x256xf32> -> vector<30x512xf32>
    %359 = vector.extract_strided_slice %198 {offsets = [0, 3], sizes = [30, 1], strides = [1, 1]} : vector<30x6xf32> to vector<30x1xf32>
    %360 = vector.broadcast %359 : vector<30x1xf32> to vector<30x512xf32>
    %361 = arith.addf %358, %360 : vector<30x512xf32>
    %362 = vector.extract_strided_slice %198 {offsets = [0, 4], sizes = [30, 1], strides = [1, 1]} : vector<30x6xf32> to vector<30x1xf32>
    %363 = vector.extract_strided_slice %198 {offsets = [0, 5], sizes = [30, 1], strides = [1, 1]} : vector<30x6xf32> to vector<30x1xf32>
    %cst_207 = arith.constant dense<0.000000e+00> : vector<30xf32>
    %364 = vector.multi_reduction <add>, %361, %cst_207 [1] : vector<30x512xf32> to vector<30xf32>
    %365 = vector.shape_cast %364 : vector<30xf32> to vector<30x1xf32>
    %cst_208 = arith.constant 5.120000e+02 : f32
    %366 = vector.broadcast %cst_208 : f32 to vector<30x1xf32>
    %367 = arith.divf %365, %366 : vector<30x1xf32>
    %368 = vector.broadcast %367 : vector<30x1xf32> to vector<30x512xf32>
    %369 = arith.subf %361, %368 : vector<30x512xf32>
    %370 = arith.mulf %369, %369 : vector<30x512xf32>
    %cst_209 = arith.constant dense<0.000000e+00> : vector<30xf32>
    %371 = vector.multi_reduction <add>, %370, %cst_209 [1] : vector<30x512xf32> to vector<30xf32>
    %372 = vector.shape_cast %371 : vector<30xf32> to vector<30x1xf32>
    %cst_210 = arith.constant 5.120000e+02 : f32
    %373 = vector.broadcast %cst_210 : f32 to vector<30x1xf32>
    %374 = arith.divf %372, %373 : vector<30x1xf32>
    %cst_211 = arith.constant 9.99999974E-6 : f32
    %375 = vector.broadcast %cst_211 : f32 to vector<30x1xf32>
    %376 = arith.addf %374, %375 : vector<30x1xf32>
    %377 = math.rsqrt %376 : vector<30x1xf32>
    %378 = arith.mulf %362, %377 : vector<30x1xf32>
    %379 = vector.broadcast %367 : vector<30x1xf32> to vector<30x512xf32>
    %380 = arith.subf %361, %379 : vector<30x512xf32>
    %381 = vector.broadcast %378 : vector<30x1xf32> to vector<30x512xf32>
    %382 = arith.mulf %380, %381 : vector<30x512xf32>
    %383 = vector.broadcast %363 : vector<30x1xf32> to vector<30x512xf32>
    %384 = arith.addf %382, %383 : vector<30x512xf32>
    %cst_212 = arith.constant 1.000000e-01 : f32
    %385 = vector.broadcast %cst_212 : f32 to vector<30x512xf32>
    %386 = arith.mulf %384, %385 : vector<30x512xf32>
    %387 = arith.addf %386, %197 : vector<30x512xf32>
    %c0_213 = arith.constant 0 : index
    %c0_214 = arith.constant 0 : index
    %388 = vector.load %arg7[%c0_213, %c0_214] : memref<4x30xf32, #tpu.memory_space<vmem>>, vector<4x30xf32>
    %cst_215 = arith.constant dense<0.000000e+00> : vector<4x512xf32>
    %389 = tpu.matmul %388, %387, %cst_215 {dimension_numbers = #tpu.dot_dimension_numbers<[1], [0], [0], [1], [0, 0, 1, 1], [], []>} : vector<4x30xf32>, vector<30x512xf32>, vector<4x512xf32> -> vector<4x512xf32>
    %c0_216 = arith.constant 0 : index
    %c0_217 = arith.constant 0 : index
    %390 = vector.load %arg8[%c0_216, %c0_217] : memref<4x1xf32, #tpu.memory_space<vmem>>, vector<4x1xf32>
    %391 = vector.broadcast %390 : vector<4x1xf32> to vector<4x512xf32>
    %392 = arith.addf %389, %391 : vector<4x512xf32>
    %cst_218 = arith.constant 0.000000e+00 : f32
    %393 = vector.broadcast %cst_218 : f32 to vector<4x512xf32>
    %394 = arith.maximumf %392, %393 : vector<4x512xf32>
    %395 = vector.extract_strided_slice %394 {offsets = [0, 0], sizes = [4, 256], strides = [1, 1]} : vector<4x512xf32> to vector<4x256xf32>
    %c0_219 = arith.constant 0 : index
    %c0_220 = arith.constant 0 : index
    %c0_221 = arith.constant 0 : index
    %396 = vector.load %arg9[%c0_219, %c0_220, %c0_221] : memref<2x4x256xf32, #tpu.memory_space<vmem>>, vector<1x4x256xf32>
    %397 = vector.shape_cast %396 : vector<1x4x256xf32> to vector<4x256xf32>
    %398 = vector.shape_cast %395 : vector<4x256xf32> to vector<1x4x256xf32>
    tpu.vector_store %arg9[%c0_219, %c0_220, %c0_221], %398 {strides = array<i32>} : memref<2x4x256xf32, #tpu.memory_space<vmem>>, vector<1x4x256xf32>,
    %399 = vector.extract_strided_slice %394 {offsets = [0, 256], sizes = [4, 256], strides = [1, 1]} : vector<4x512xf32> to vector<4x256xf32>
    %c1_222 = arith.constant 1 : index
    %c0_223 = arith.constant 0 : index
    %c0_224 = arith.constant 0 : index
    %400 = vector.load %arg9[%c1_222, %c0_223, %c0_224] : memref<2x4x256xf32, #tpu.memory_space<vmem>>, vector<1x4x256xf32>
    %401 = vector.shape_cast %400 : vector<1x4x256xf32> to vector<4x256xf32>
    %402 = vector.shape_cast %399 : vector<4x256xf32> to vector<1x4x256xf32>
    tpu.vector_store %arg9[%c1_222, %c0_223, %c0_224], %402 {strides = array<i32>} : memref<2x4x256xf32, #tpu.memory_space<vmem>>, vector<1x4x256xf32>,
    return
  }
}

</mosaic_0001>

<llo_original>
// kernel: mapnet3_forward.1
$region0: #{mapnet3_forward.1}
  #allocation0 [shape = 'u32[]', space=smem, size = 0x4, offset = 0x4, fixed_abs, tag = 'smem constant byte address 0x4 - core index']
  #allocation1 [shape = 'u32[144,128]{1,0:T(1,128)}', space=vmem, size = 0x12000, scoped, tag = 'internal scratch']
  #allocation2 [shape = 'f32[288,512]{1,0:T(8,128)}', space=vmem, size = 0x90000, scoped, tag = 'scratch operand']
  %s0 = inlined_call_operand.vmem [shape: f32[3,512], index: 0, kind: input, shape index: {}]
  %s1 = inlined_call_operand.vmem [shape: f32[30,3], index: 1, kind: input, shape index: {}]
  %s2 = inlined_call_operand.vmem [shape: f32[30,1], index: 2, kind: input, shape index: {}]
  %s3 = inlined_call_operand.vmem [shape: f32[4,2,30,288], index: 3, kind: input, shape index: {}]
  %s4 = inlined_call_operand.vmem [shape: f32[30,6], index: 4, kind: input, shape index: {}]
  %s5 = inlined_call_operand.vmem [shape: f32[30,6], index: 5, kind: input, shape index: {}]
  %s6 = inlined_call_operand.vmem [shape: f32[9,512], index: 6, kind: input, shape index: {}]
  %s7 = inlined_call_operand.vmem [shape: f32[4,30], index: 7, kind: input, shape index: {}]
  %s8 = inlined_call_operand.vmem [shape: f32[4,1], index: 8, kind: input, shape index: {}]
  %s9 = inlined_call_operand.vmem [shape: f32[2,4,256], index: 9, kind: output, shape index: {}]
  %s10 = sld [smem:[#allocation0]]
  $region46: #{mapnet3_forward.1} parent=0
    _
  %s12 = ssub.s32 1, %s10
  %s13 = scalar_select 0, %s12, %s10
  // Predicated region
  $region2: #{mapnet3_forward.1} parent=0 // pred_check
    _
  $region3: #{mapnet3_forward.1} parent=0 // pred_check_branch
    %15 = sbr.rel (0) target = $region5
  $region4: #{mapnet3_forward.1} parent=0 // pred_region
    _
  $region5: #{mapnet3_forward.1} parent=0 // pred_fallthru
    _
  // Predicated region
  $region6: #{mapnet3_forward.1} parent=0 // pred_check
    _
  $region7: #{mapnet3_forward.1} parent=0 // pred_check_branch
    %17 = sbr.rel (0) target = $region9
  $region8: #{mapnet3_forward.1} parent=0 // pred_region
    _
  $region9: #{mapnet3_forward.1} parent=0 // pred_fallthru
    _
  // Predicated region
  $region10: #{mapnet3_forward.1} parent=0 // pred_check
    _
  $region11: #{mapnet3_forward.1} parent=0 // pred_check_branch
    %19 = sbr.rel (0) target = $region13
  $region12: #{mapnet3_forward.1} parent=0 // pred_region
    _
  $region13: #{mapnet3_forward.1} parent=0 // pred_fallthru
    _
  // Predicated region
  $region14: #{mapnet3_forward.1} parent=0 // pred_check
    _
  $region15: #{mapnet3_forward.1} parent=0 // pred_check_branch
    %21 = sbr.rel (0) target = $region17
  $region16: #{mapnet3_forward.1} parent=0 // pred_region
    _
  $region17: #{mapnet3_forward.1} parent=0 // pred_fallthru
    _
  // Predicated region
  $region18: #{mapnet3_forward.1} parent=0 // pred_check
    _
  $region19: #{mapnet3_forward.1} parent=0 // pred_check_branch
    %23 = sbr.rel (0) target = $region21
  $region20: #{mapnet3_forward.1} parent=0 // pred_region
    _
  $region21: #{mapnet3_forward.1} parent=0 // pred_fallthru
    _
  // Predicated region
  $region22: #{mapnet3_forward.1} parent=0 // pred_check
    _
  $region23: #{mapnet3_forward.1} parent=0 // pred_check_branch
    %25 = sbr.rel (0) target = $region25
  $region24: #{mapnet3_forward.1} parent=0 // pred_region
    _
  $region25: #{mapnet3_forward.1} parent=0 // pred_fallthru
    _
  // Predicated region
  $region26: #{mapnet3_forward.1} parent=0 // pred_check
    _
  $region27: #{mapnet3_forward.1} parent=0 // pred_check_branch
    %27 = sbr.rel (0) target = $region29
  $region28: #{mapnet3_forward.1} parent=0 // pred_region
    _
  $region29: #{mapnet3_forward.1} parent=0 // pred_fallthru
    _
  // Predicated region
  $region30: #{mapnet3_forward.1} parent=0 // pred_check
    _
  $region31: #{mapnet3_forward.1} parent=0 // pred_check_branch
    %29 = sbr.rel (0) target = $region33
  $region32: #{mapnet3_forward.1} parent=0 // pred_region
    _
  $region33: #{mapnet3_forward.1} parent=0 // pred_fallthru
    _
  // Predicated region
  $region34: #{mapnet3_forward.1} parent=0 // pred_check
    _
  $region35: #{mapnet3_forward.1} parent=0 // pred_check_branch
    %31 = sbr.rel (0) target = $region37
  $region36: #{mapnet3_forward.1} parent=0 // pred_region
    _
  $region37: #{mapnet3_forward.1} parent=0 // pred_fallthru
    _
  %32 = vst [vmem:[#allocation2] sm:$0xff] 0.0
  %33 = vst [vmem:[#allocation2 + $0x8] sm:$0xff] 0.0
  %34 = vst [vmem:[#allocation2 + $0x10] sm:$0xff] 0.0
  %35 = vst [vmem:[#allocation2 + $0x18] sm:$0xff] 0.0
  %36 = vst [vmem:[#allocation2 + $0x20] sm:$0xff] 0.0
  %37 = vst [vmem:[#allocation2 + $0x28] sm:$0xff] 0.0
  %38 = vst [vmem:[#allocation2 + $0x30] sm:$0xff] 0.0
  %39 = vst [vmem:[#allocation2 + $0x38] sm:$0xff] 0.0
  %40 = vst [vmem:[#allocation2 + $0x40] sm:$0xff] 0.0
  %41 = vst [vmem:[#allocation2 + $0x48] sm:$0xff] 0.0
  %42 = vst [vmem:[#allocation2 + $0x50] sm:$0xff] 0.0
  %43 = vst [vmem:[#allocation2 + $0x58] sm:$0xff] 0.0
  %44 = vst [vmem:[#allocation2 + $0x60] sm:$0xff] 0.0
  %45 = vst [vmem:[#allocation2 + $0x68] sm:$0xff] 0.0
  %46 = vst [vmem:[#allocation2 + $0x70] sm:$0xff] 0.0
  %47 = vst [vmem:[#allocation2 + $0x78] sm:$0xff] 0.0
  %48 = vst [vmem:[#allocation2 + $0x80] sm:$0xff] 0.0
  %49 = vst [vmem:[#allocation2 + $0x88] sm:$0xff] 0.0
  %50 = vst [vmem:[#allocation2 + $0x90] sm:$0xff] 0.0
  %51 = vst [vmem:[#allocation2 + $0x98] sm:$0xff] 0.0
  %52 = vst [vmem:[#allocation2 + $0xa0] sm:$0xff] 0.0
  %53 = vst [vmem:[#allocation2 + $0xa8] sm:$0xff] 0.0
  %54 = vst [vmem:[#allocation2 + $0xb0] sm:$0xff] 0.0
  %55 = vst [vmem:[#allocation2 + $0xb8] sm:$0xff] 0.0
  %56 = vst [vmem:[#allocation2 + $0xc0] sm:$0xff] 0.0
  %57 = vst [vmem:[#allocation2 + $0xc8] sm:$0xff] 0.0
  %58 = vst [vmem:[#allocation2 + $0xd0] sm:$0xff] 0.0
  %59 = vst [vmem:[#allocation2 + $0xd8] sm:$0xff] 0.0
  %60 = vst [vmem:[#allocation2 + $0xe0] sm:$0xff] 0.0
  %61 = vst [vmem:[#allocation2 + $0xe8] sm:$0xff] 0.0
  %62 = vst [vmem:[#allocation2 + $0xf0] sm:$0xff] 0.0
  %63 = vst [vmem:[#allocation2 + $0xf8] sm:$0xff] 0.0
  %64 = vst [vmem:[#allocation2 + $0x100] sm:$0xff] 0.0
  %65 = vst [vmem:[#allocation2 + $0x108] sm:$0xff] 0.0
  %66 = vst [vmem:[#allocation2 + $0x110] sm:$0xff] 0.0
  %67 = vst [vmem:[#allocation2 + $0x118] sm:$0xff] 0.0
  %68 = vst [vmem:[#allocation2 + $0x120] sm:$0xff] 0.0
  %69 = vst [vmem:[#allocation2 + $0x128] sm:$0xff] 0.0
  %70 = vst [vmem:[#allocation2 + $0x130] sm:$0xff] 0.0
  %71 = vst [vmem:[#allocation2 + $0x138] sm:$0xff] 0.0
  %72 = vst [vmem:[#allocation2 + $0x140] sm:$0xff] 0.0
  %73 = vst [vmem:[#allocation2 + $0x148] sm:$0xff] 0.0
  %74 = vst [vmem:[#allocation2 + $0x150] sm:$0xff] 0.0
  %75 = vst [vmem:[#allocation2 + $0x158] sm:$0xff] 0.0
  %76 = vst [vmem:[#allocation2 + $0x160] sm:$0xff] 0.0
  %77 = vst [vmem:[#allocation2 + $0x168] sm:$0xff] 0.0
  %78 = vst [vmem:[#allocation2 + $0x170] sm:$0xff] 0.0
  %79 = vst [vmem:[#allocation2 + $0x178] sm:$0xff] 0.0
  %80 = vst [vmem:[#allocation2 + $0x180] sm:$0xff] 0.0
  %81 = vst [vmem:[#allocation2 + $0x188] sm:$0xff] 0.0
  %82 = vst [vmem:[#allocation2 + $0x190] sm:$0xff] 0.0
  %83 = vst [vmem:[#allocation2 + $0x198] sm:$0xff] 0.0
  %84 = vst [vmem:[#allocation2 + $0x1a0] sm:$0xff] 0.0
  %85 = vst [vmem:[#allocation2 + $0x1a8] sm:$0xff] 0.0
  %86 = vst [vmem:[#allocation2 + $0x1b0] sm:$0xff] 0.0
  %87 = vst [vmem:[#allocation2 + $0x1b8] sm:$0xff] 0.0
  %88 = vst [vmem:[#allocation2 + $0x1c0] sm:$0xff] 0.0
  %89 = vst [vmem:[#allocation2 + $0x1c8] sm:$0xff] 0.0
  %90 = vst [vmem:[#allocation2 + $0x1d0] sm:$0xff] 0.0
  %91 = vst [vmem:[#allocation2 + $0x1d8] sm:$0xff] 0.0
  %92 = vst [vmem:[#allocation2 + $0x1e0] sm:$0xff] 0.0
  %93 = vst [vmem:[#allocation2 + $0x1e8] sm:$0xff] 0.0
  %94 = vst [vmem:[#allocation2 + $0x1f0] sm:$0xff] 0.0
  %95 = vst [vmem:[#allocation2 + $0x1f8] sm:$0xff] 0.0
  %96 = vst [vmem:[#allocation2 + $0x200] sm:$0xff] 0.0
  %97 = vst [vmem:[#allocation2 + $0x208] sm:$0xff] 0.0
  %98 = vst [vmem:[#allocation2 + $0x210] sm:$0xff] 0.0
  %99 = vst [vmem:[#allocation2 + $0x218] sm:$0xff] 0.0
  %100 = vst [vmem:[#allocation2 + $0x220] sm:$0xff] 0.0
  %101 = vst [vmem:[#allocation2 + $0x228] sm:$0xff] 0.0
  %102 = vst [vmem:[#allocation2 + $0x230] sm:$0xff] 0.0
  %103 = vst [vmem:[#allocation2 + $0x238] sm:$0xff] 0.0
  %104 = vst [vmem:[#allocation2 + $0x240] sm:$0xff] 0.0
  %105 = vst [vmem:[#allocation2 + $0x248] sm:$0xff] 0.0
  %106 = vst [vmem:[#allocation2 + $0x250] sm:$0xff] 0.0
  %107 = vst [vmem:[#allocation2 + $0x258] sm:$0xff] 0.0
  %108 = vst [vmem:[#allocation2 + $0x260] sm:$0xff] 0.0
  %109 = vst [vmem:[#allocation2 + $0x268] sm:$0xff] 0.0
  %110 = vst [vmem:[#allocation2 + $0x270] sm:$0xff] 0.0
  %111 = vst [vmem:[#allocation2 + $0x278] sm:$0xff] 0.0
  %112 = vst [vmem:[#allocation2 + $0x280] sm:$0xff] 0.0
  %113 = vst [vmem:[#allocation2 + $0x288] sm:$0xff] 0.0
  %114 = vst [vmem:[#allocation2 + $0x290] sm:$0xff] 0.0
  %115 = vst [vmem:[#allocation2 + $0x298] sm:$0xff] 0.0
  %116 = vst [vmem:[#allocation2 + $0x2a0] sm:$0xff] 0.0
  %117 = vst [vmem:[#allocation2 + $0x2a8] sm:$0xff] 0.0
  %118 = vst [vmem:[#allocation2 + $0x2b0] sm:$0xff] 0.0
  %119 = vst [vmem:[#allocation2 + $0x2b8] sm:$0xff] 0.0
  %120 = vst [vmem:[#allocation2 + $0x2c0] sm:$0xff] 0.0
  %121 = vst [vmem:[#allocation2 + $0x2c8] sm:$0xff] 0.0
  %122 = vst [vmem:[#allocation2 + $0x2d0] sm:$0xff] 0.0
  %123 = vst [vmem:[#allocation2 + $0x2d8] sm:$0xff] 0.0
  %124 = vst [vmem:[#allocation2 + $0x2e0] sm:$0xff] 0.0
  %125 = vst [vmem:[#allocation2 + $0x2e8] sm:$0xff] 0.0
  %126 = vst [vmem:[#allocation2 + $0x2f0] sm:$0xff] 0.0
  %127 = vst [vmem:[#allocation2 + $0x2f8] sm:$0xff] 0.0
  %128 = vst [vmem:[#allocation2 + $0x300] sm:$0xff] 0.0
  %129 = vst [vmem:[#allocation2 + $0x308] sm:$0xff] 0.0
  %130 = vst [vmem:[#allocation2 + $0x310] sm:$0xff] 0.0
  %131 = vst [vmem:[#allocation2 + $0x318] sm:$0xff] 0.0
  %132 = vst [vmem:[#allocation2 + $0x320] sm:$0xff] 0.0
  %133 = vst [vmem:[#allocation2 + $0x328] sm:$0xff] 0.0
  %134 = vst [vmem:[#allocation2 + $0x330] sm:$0xff] 0.0
  %135 = vst [vmem:[#allocation2 + $0x338] sm:$0xff] 0.0
  %136 = vst [vmem:[#allocation2 + $0x340] sm:$0xff] 0.0
  %137 = vst [vmem:[#allocation2 + $0x348] sm:$0xff] 0.0
  %138 = vst [vmem:[#allocation2 + $0x350] sm:$0xff] 0.0
  %139 = vst [vmem:[#allocation2 + $0x358] sm:$0xff] 0.0
  %140 = vst [vmem:[#allocation2 + $0x360] sm:$0xff] 0.0
  %141 = vst [vmem:[#allocation2 + $0x368] sm:$0xff] 0.0
  %142 = vst [vmem:[#allocation2 + $0x370] sm:$0xff] 0.0
  %143 = vst [vmem:[#allocation2 + $0x378] sm:$0xff] 0.0
  %144 = vst [vmem:[#allocation2 + $0x380] sm:$0xff] 0.0
  %145 = vst [vmem:[#allocation2 + $0x388] sm:$0xff] 0.0
  %146 = vst [vmem:[#allocation2 + $0x390] sm:$0xff] 0.0
  %147 = vst [vmem:[#allocation2 + $0x398] sm:$0xff] 0.0
  %148 = vst [vmem:[#allocation2 + $0x3a0] sm:$0xff] 0.0
  %149 = vst [vmem:[#allocation2 + $0x3a8] sm:$0xff] 0.0
  %150 = vst [vmem:[#allocation2 + $0x3b0] sm:$0xff] 0.0
  %151 = vst [vmem:[#allocation2 + $0x3b8] sm:$0xff] 0.0
  %152 = vst [vmem:[#allocation2 + $0x3c0] sm:$0xff] 0.0
  %153 = vst [vmem:[#allocation2 + $0x3c8] sm:$0xff] 0.0
  %154 = vst [vmem:[#allocation2 + $0x3d0] sm:$0xff] 0.0
  %155 = vst [vmem:[#allocation2 + $0x3d8] sm:$0xff] 0.0
  %156 = vst [vmem:[#allocation2 + $0x3e0] sm:$0xff] 0.0
  %157 = vst [vmem:[#allocation2 + $0x3e8] sm:$0xff] 0.0
  %158 = vst [vmem:[#allocation2 + $0x3f0] sm:$0xff] 0.0
  %159 = vst [vmem:[#allocation2 + $0x3f8] sm:$0xff] 0.0
  %160 = vst [vmem:[#allocation2 + $0x400] sm:$0xff] 0.0
  %161 = vst [vmem:[#allocation2 + $0x408] sm:$0xff] 0.0
  %162 = vst [vmem:[#allocation2 + $0x410] sm:$0xff] 0.0
  %163 = vst [vmem:[#allocation2 + $0x418] sm:$0xff] 0.0
  %164 = vst [vmem:[#allocation2 + $0x420] sm:$0xff] 0.0
  %165 = vst [vmem:[#allocation2 + $0x428] sm:$0xff] 0.0
  %166 = vst [vmem:[#allocation2 + $0x430] sm:$0xff] 0.0
  %167 = vst [vmem:[#allocation2 + $0x438] sm:$0xff] 0.0
  %168 = vst [vmem:[#allocation2 + $0x440] sm:$0xff] 0.0
  %169 = vst [vmem:[#allocation2 + $0x448] sm:$0xff] 0.0
  %170 = vst [vmem:[#allocation2 + $0x450] sm:$0xff] 0.0
  %171 = vst [vmem:[#allocation2 + $0x458] sm:$0xff] 0.0
  %172 = vst [vmem:[#allocation2 + $0x460] sm:$0xff] 0.0
  %173 = vst [vmem:[#allocation2 + $0x468] sm:$0xff] 0.0
  %174 = vst [vmem:[#allocation2 + $0x470] sm:$0xff] 0.0
  %175 = vst [vmem:[#allocation2 + $0x478] sm:$0xff] 0.0
  %v176 = vld [vmem:[%s1] sm:$0xff]
  %v177 = vld [vmem:[%s1 + $0x8] sm:$0xff]
  %v178 = vld [vmem:[%s1 + $0x10] sm:$0xff]
  %v179 = vld [vmem:[%s1 + $0x18] sm:$0x3f]
  %v180 = vld [vmem:[%s0] sm:$0x77]
  %v181 = vld [vmem:[%s0 + $0x8] sm:$0x77]
  %v182 = vld [vmem:[%s2] sm:$0xff]
  %v183 = vld [vmem:[%s2 + $0x8] sm:$0xff]
  %v184 = vld [vmem:[%s2 + $0x10] sm:$0xff]
  %v185 = vld [vmem:[%s2 + $0x18] sm:$0x3f]
  %187 = vset.pattern.permute.xlu0 0
  %188 = vperm.xlu0 %187, %v182
  %v189 = vpop.permute.xlu0 %188
  %192 = vset.pattern.permute.xlu0 0
  %193 = vperm.xlu0 %192, %v183
  %v194 = vpop.permute.xlu0 %193
  %197 = vset.pattern.permute.xlu0 0
  %198 = vperm.xlu0 %197, %v184
  %v199 = vpop.permute.xlu0 %198
  %202 = vset.pattern.permute.xlu0 0
  %203 = vperm.xlu0 %202, %v185
  %v204 = vpop.permute.xlu0 %203
  %v208 = vcombine.high %v180, %v180
  %v209 = vcombine.high %v181, %v181
  %vm210 = vcmask 23552
  %v212 = vsel %vm210, %v176, 0
  %v215 = vsel %vm210, %v177, 0
  %v218 = vsel %vm210, %v178, 0
  %v221 = vsel %vm210, %v179, 0
  %vm223 = vcmask 1042432
  %v224 = vsel %vm223, %v180, 0
  %v226 = vsel %vm223, %v208, 0
  %v228 = vsel %vm223, %v181, 0
  %v230 = vsel %vm223, %v209, 0
  %232 = vmatprep.subr.mxu0 %v226
  %233 = vmatpush1.msra.mxu0 %v224
  %234 = vmatprep.subr.mxu0 0.0
  %235 = vmatpush1.msra.mxu0 0.0
  %236 = vmatprep.subr.mxu0 0.0
  %237 = vmatpush1.msra.mxu0 0.0
  %238 = vmatprep.subr.mxu0 0.0
  %239 = vmatpush1.msra.mxu0 0.0
  %240 = vmatprep.subr.mxu0 0.0
  %241 = vmatpush1.msra.mxu0 0.0
  %242 = vmatprep.subr.mxu0 0.0
  %243 = vmatpush1.msra.mxu0 0.0
  %244 = vmatprep.subr.mxu0 0.0
  %245 = vmatpush1.msra.mxu0 0.0
  %246 = vmatprep.subr.mxu0 0.0
  %247 = vmatpush1.msra.mxu0 0.0
  %248 = vmatprep.subr.mxu0 0.0
  %249 = vmatpush1.msra.mxu0 0.0
  %250 = vmatprep.subr.mxu0 0.0
  %251 = vmatpush1.msra.mxu0 0.0
  %252 = vmatprep.subr.mxu0 0.0
  %253 = vmatpush1.msra.mxu0 0.0
  %254 = vmatprep.subr.mxu0 0.0
  %255 = vmatpush1.msra.mxu0 0.0
  %256 = vmatprep.subr.mxu0 0.0
  %257 = vmatpush1.msra.mxu0 0.0
  %258 = vmatprep.subr.mxu0 0.0
  %259 = vmatpush1.msra.mxu0 0.0
  %260 = vmatprep.subr.mxu0 0.0
  %261 = vmatpush1.msra.mxu0 0.0
  %262 = vmatprep.subr.mxu0 0.0
  %263 = vmatpush1.msra.mxu0 0.0
  %264 = vmatprep.subr.mxu0 0.0
  %265 = vmatpush1.msra.mxu0 0.0
  %266 = vmatprep.subr.mxu0 0.0
  %267 = vmatpush1.msra.mxu0 0.0
  %268 = vmatprep.subr.mxu0 0.0
  %269 = vmatpush1.msra.mxu0 0.0
  %270 = vmatprep.subr.mxu0 0.0
  %271 = vmatpush1.msra.mxu0 0.0
  %272 = vmatprep.subr.mxu0 0.0
  %273 = vmatpush1.msra.mxu0 0.0
  %274 = vmatprep.subr.mxu0 0.0
  %275 = vmatpush1.msra.mxu0 0.0
  %276 = vmatprep.subr.mxu0 0.0
  %277 = vmatpush1.msra.mxu0 0.0
  %278 = vmatprep.subr.mxu0 0.0
  %279 = vmatpush1.msra.mxu0 0.0
  %280 = vmatprep.subr.mxu0 0.0
  %281 = vmatpush1.msra.mxu0 0.0
  %282 = vmatprep.subr.mxu0 0.0
  %283 = vmatpush1.msra.mxu0 0.0
  %284 = vmatprep.subr.mxu0 0.0
  %285 = vmatpush1.msra.mxu0 0.0
  %286 = vmatprep.subr.mxu0 0.0
  %287 = vmatpush1.msra.mxu0 0.0
  %288 = vmatprep.subr.mxu0 0.0
  %289 = vmatpush1.msra.mxu0 0.0
  %290 = vmatprep.subr.mxu0 0.0
  %291 = vmatpush1.msra.mxu0 0.0
  %292 = vmatprep.subr.mxu0 0.0
  %293 = vmatpush1.msra.mxu0 0.0
  %294 = vmatprep.subr.mxu0 0.0
  %295 = vmatpush1.msra.mxu0 0.0
  %296 = vmatprep.mubr.f32.mxu0 0.0
  %297 = vmatmul.mubr.f32.gmra.mrb[0].mxu0 %v212
  %v298 = vpop.f32.mrb[0].mxu0
  %v299 = vadd.f32 %v189, %v298
  %v300 = vpop.f32.mrb[0].mxu0
  %v301 = vadd.f32 %v189, %v300
  %302 = vmatprep.mubr.f32.mxu0 0.0
  %303 = vmatmul.mubr.f32.gmra.mrb[0].mxu0 %v215
  %v304 = vpop.f32.mrb[0].mxu0
  %v305 = vadd.f32 %v194, %v304
  %v306 = vpop.f32.mrb[0].mxu0
  %v307 = vadd.f32 %v194, %v306
  %308 = vmatprep.mubr.f32.mxu0 0.0
  %309 = vmatmul.mubr.f32.gmra.mrb[0].mxu0 %v218
  %v310 = vpop.f32.mrb[0].mxu0
  %v311 = vadd.f32 %v199, %v310
  %v312 = vpop.f32.mrb[0].mxu0
  %v313 = vadd.f32 %v199, %v312
  %314 = vmatprep.mubr.f32.mxu0 0.0
  %315 = vmatmul.mubr.f32.gmra.mrb[0].mxu0 %v221
  %v316 = vpop.f32.mrb[0].mxu0
  %v317 = vadd.f32 %v204, %v316
  %v318 = vpop.f32.mrb[0].mxu0
  %v319 = vadd.f32 %v204, %v318
  %320 = vdwg.mxu0
  %321 = vmatprep.subr.mxu0 %v230
  %322 = vmatpush1.msra.mxu0 %v228
  %323 = vmatprep.subr.mxu0 0.0
  %324 = vmatpush1.msra.mxu0 0.0
  %325 = vmatprep.subr.mxu0 0.0
  %326 = vmatpush1.msra.mxu0 0.0
  %327 = vmatprep.subr.mxu0 0.0
  %328 = vmatpush1.msra.mxu0 0.0
  %329 = vmatprep.subr.mxu0 0.0
  %330 = vmatpush1.msra.mxu0 0.0
  %331 = vmatprep.subr.mxu0 0.0
  %332 = vmatpush1.msra.mxu0 0.0
  %333 = vmatprep.subr.mxu0 0.0
  %334 = vmatpush1.msra.mxu0 0.0
  %335 = vmatprep.subr.mxu0 0.0
  %336 = vmatpush1.msra.mxu0 0.0
  %337 = vmatprep.subr.mxu0 0.0
  %338 = vmatpush1.msra.mxu0 0.0
  %339 = vmatprep.subr.mxu0 0.0
  %340 = vmatpush1.msra.mxu0 0.0
  %341 = vmatprep.subr.mxu0 0.0
  %342 = vmatpush1.msra.mxu0 0.0
  %343 = vmatprep.subr.mxu0 0.0
  %344 = vmatpush1.msra.mxu0 0.0
  %345 = vmatprep.subr.mxu0 0.0
  %346 = vmatpush1.msra.mxu0 0.0
  %347 = vmatprep.subr.mxu0 0.0
  %348 = vmatpush1.msra.mxu0 0.0
  %349 = vmatprep.subr.mxu0 0.0
  %350 = vmatpush1.msra.mxu0 0.0
  %351 = vmatprep.subr.mxu0 0.0
  %352 = vmatpush1.msra.mxu0 0.0
  %353 = vmatprep.subr.mxu0 0.0
  %354 = vmatpush1.msra.mxu0 0.0
  %355 = vmatprep.subr.mxu0 0.0
  %356 = vmatpush1.msra.mxu0 0.0
  %357 = vmatprep.subr.mxu0 0.0
  %358 = vmatpush1.msra.mxu0 0.0
  %359 = vmatprep.subr.mxu0 0.0
  %360 = vmatpush1.msra.mxu0 0.0
  %361 = vmatprep.subr.mxu0 0.0
  %362 = vmatpush1.msra.mxu0 0.0
  %363 = vmatprep.subr.mxu0 0.0
  %364 = vmatpush1.msra.mxu0 0.0
  %365 = vmatprep.subr.mxu0 0.0
  %366 = vmatpush1.msra.mxu0 0.0
  %367 = vmatprep.subr.mxu0 0.0
  %368 = vmatpush1.msra.mxu0 0.0
  %369 = vmatprep.subr.mxu0 0.0
  %370 = vmatpush1.msra.mxu0 0.0
  %371 = vmatprep.subr.mxu0 0.0
  %372 = vmatpush1.msra.mxu0 0.0
  %373 = vmatprep.subr.mxu0 0.0
  %374 = vmatpush1.msra.mxu0 0.0
  %375 = vmatprep.subr.mxu0 0.0
  %376 = vmatpush1.msra.mxu0 0.0
  %377 = vmatprep.subr.mxu0 0.0
  %378 = vmatpush1.msra.mxu0 0.0
  %379 = vmatprep.subr.mxu0 0.0
  %380 = vmatpush1.msra.mxu0 0.0
  %381 = vmatprep.subr.mxu0 0.0
  %382 = vmatpush1.msra.mxu0 0.0
  %383 = vmatprep.subr.mxu0 0.0
  %384 = vmatpush1.msra.mxu0 0.0
  %385 = vmatprep.mubr.f32.mxu0 0.0
  %386 = vmatmul.mubr.f32.gmra.mrb[0].mxu0 %v212
  %v387 = vpop.f32.mrb[0].mxu0
  %v388 = vadd.f32 %v189, %v387
  %v389 = vpop.f32.mrb[0].mxu0
  %v390 = vadd.f32 %v189, %v389
  %391 = vmatprep.mubr.f32.mxu0 0.0
  %392 = vmatmul.mubr.f32.gmra.mrb[0].mxu0 %v215
  %v393 = vpop.f32.mrb[0].mxu0
  %v394 = vadd.f32 %v194, %v393
  %v395 = vpop.f32.mrb[0].mxu0
  %v396 = vadd.f32 %v194, %v395
  %397 = vmatprep.mubr.f32.mxu0 0.0
  %398 = vmatmul.mubr.f32.gmra.mrb[0].mxu0 %v218
  %v399 = vpop.f32.mrb[0].mxu0
  %v400 = vadd.f32 %v199, %v399
  %v401 = vpop.f32.mrb[0].mxu0
  %v402 = vadd.f32 %v199, %v401
  %403 = vmatprep.mubr.f32.mxu0 0.0
  %404 = vmatmul.mubr.f32.gmra.mrb[0].mxu0 %v221
  %v405 = vpop.f32.mrb[0].mxu0
  %v406 = vadd.f32 %v204, %v405
  %v407 = vpop.f32.mrb[0].mxu0
  %v408 = vadd.f32 %v204, %v407
  %409 = vdwg.mxu0
  %v410 = vld [vmem:[%s4] sm:$0xff]
  %v411 = vld [vmem:[%s4 + $0x8] sm:$0xff]
  %v412 = vld [vmem:[%s4 + $0x10] sm:$0xff]
  %v413 = vld [vmem:[%s4 + $0x18] sm:$0x3f]
  %418 = vrot.lane.b32.xlu0 %v390, 17
  %v419 = vpop.permute.xlu0 %418
  %420 = vrot.lane.b32.xlu0 %v396, 17
  %v421 = vpop.permute.xlu0 %420
  %422 = vrot.lane.b32.xlu0 %v402, 17
  %v423 = vpop.permute.xlu0 %422
  %424 = vrot.lane.b32.xlu0 %v408, 17
  %v425 = vpop.permute.xlu0 %424
  %442 = vrot.lane.b32.xlu0 %v299, 17
  %v443 = vpop.permute.xlu0 %442
  %444 = vrot.lane.b32.xlu0 %v301, 17
  %v445 = vpop.permute.xlu0 %444
  %446 = vrot.lane.b32.xlu0 %v388, 17
  %v447 = vpop.permute.xlu0 %446
  %448 = vrot.lane.b32.xlu0 %v305, 17
  %v449 = vpop.permute.xlu0 %448
  %450 = vrot.lane.b32.xlu0 %v307, 17
  %v451 = vpop.permute.xlu0 %450
  %452 = vrot.lane.b32.xlu0 %v394, 17
  %v453 = vpop.permute.xlu0 %452
  %454 = vrot.lane.b32.xlu0 %v311, 17
  %v455 = vpop.permute.xlu0 %454
  %456 = vrot.lane.b32.xlu0 %v313, 17
  %v457 = vpop.permute.xlu0 %456
  %458 = vrot.lane.b32.xlu0 %v400, 17
  %v459 = vpop.permute.xlu0 %458
  %460 = vrot.lane.b32.xlu0 %v317, 17
  %v461 = vpop.permute.xlu0 %460
  %462 = vrot.lane.b32.xlu0 %v319, 17
  %v463 = vpop.permute.xlu0 %462
  %464 = vrot.lane.b32.xlu0 %v406, 17
  %v465 = vpop.permute.xlu0 %464
  %vm466 = vcmask 138240
  %v467 = vsel %vm466, %v443, %v445
  %v468 = vsel %vm466, %v445, %v447
  %v469 = vsel %vm466, %v447, %v419
  %v470 = vsel %vm466, %v449, %v451
  %v471 = vsel %vm466, %v451, %v453
  %v472 = vsel %vm466, %v453, %v421
  %v473 = vsel %vm466, %v455, %v457
  %v474 = vsel %vm466, %v457, %v459
  %v475 = vsel %vm466, %v459, %v423
  %v476 = vsel %vm466, %v461, %v463
  %v477 = vsel %vm466, %v463, %v465
  %v478 = vsel %vm466, %v465, %v425
  %v495 = vsel %vm466, %v419, %v443
  %v496 = vsel %vm466, %v421, %v449
  %v497 = vsel %vm466, %v423, %v455
  %v498 = vsel %vm466, %v425, %v461
  %v499 = vld [vmem:[%s6] ss:$8 sm:$0xf]
  %v501 = vlaneseq
  %v502 = vshrl.u32 %v501, 7
  %v503 = vsub.s32 0, %v502
  %v504 = vrot.slane %v499, %v503
  %v505 = vlaneseq
  %v506 = vshrl.u32 %v505, 7
  %v507 = vsub.s32 1, %v506
  %v508 = vrot.slane %v499, %v507
  %v509 = vlaneseq
  %v510 = vshrl.u32 %v509, 7
  %v511 = vsub.s32 2, %v510
  %v512 = vrot.slane %v499, %v511
  %v513 = vlaneseq
  %v514 = vshrl.u32 %v513, 7
  %v515 = vsub.s32 3, %v514
  %v516 = vrot.slane %v499, %v515
  %v521 = vmul.f32 %v495, %v504
  %v522 = vmul.f32 %v467, %v508
  %v523 = vmul.f32 %v468, %v512
  %v524 = vmul.f32 %v469, %v516
  %v525 = vmul.f32 %v496, %v504
  %v526 = vmul.f32 %v470, %v508
  %v527 = vmul.f32 %v471, %v512
  %v528 = vmul.f32 %v472, %v516
  %v529 = vmul.f32 %v497, %v504
  %v530 = vmul.f32 %v473, %v508
  %v531 = vmul.f32 %v474, %v512
  %v532 = vmul.f32 %v475, %v516
  %v533 = vmul.f32 %v498, %v504
  %v534 = vmul.f32 %v476, %v508
  %v535 = vmul.f32 %v477, %v512
  %v536 = vmul.f32 %v478, %v516
  %537 = vst [vmem:[#allocation2] sm:$0xff] %v521
  %538 = vst [vmem:[#allocation2 + $0x8] sm:$0xff] %v522
  %539 = vst [vmem:[#allocation2 + $0x10] sm:$0xff] %v523
  %540 = vst [vmem:[#allocation2 + $0x18] sm:$0xff] %v524
  %541 = vst [vmem:[#allocation2 + $0x20] sm:$0xff] %v525
  %542 = vst [vmem:[#allocation2 + $0x28] sm:$0xff] %v526
  %543 = vst [vmem:[#allocation2 + $0x30] sm:$0xff] %v527
  %544 = vst [vmem:[#allocation2 + $0x38] sm:$0xff] %v528
  %545 = vst [vmem:[#allocation2 + $0x40] sm:$0xff] %v529
  %546 = vst [vmem:[#allocation2 + $0x48] sm:$0xff] %v530
  %547 = vst [vmem:[#allocation2 + $0x50] sm:$0xff] %v531
  %548 = vst [vmem:[#allocation2 + $0x58] sm:$0xff] %v532
  %549 = vst [vmem:[#allocation2 + $0x60] sm:$0x3f] %v533
  %550 = vst [vmem:[#allocation2 + $0x68] sm:$0x3f] %v534
  %551 = vst [vmem:[#allocation2 + $0x70] sm:$0x3f] %v535
  %552 = vst [vmem:[#allocation2 + $0x78] sm:$0x3f] %v536
  %553 = vrot.lane.b32.xlu0 %v390, 16
  %v554 = vpop.permute.xlu0 %553
  %555 = vrot.lane.b32.xlu0 %v396, 16
  %v556 = vpop.permute.xlu0 %555
  %557 = vrot.lane.b32.xlu0 %v402, 16
  %v558 = vpop.permute.xlu0 %557
  %559 = vrot.lane.b32.xlu0 %v408, 16
  %v560 = vpop.permute.xlu0 %559
  %565 = vrot.lane.b32.xlu0 %v299, 16
  %v566 = vpop.permute.xlu0 %565
  %567 = vrot.lane.b32.xlu0 %v301, 16
  %v568 = vpop.permute.xlu0 %567
  %569 = vrot.lane.b32.xlu0 %v388, 16
  %v570 = vpop.permute.xlu0 %569
  %571 = vrot.lane.b32.xlu0 %v305, 16
  %v572 = vpop.permute.xlu0 %571
  %573 = vrot.lane.b32.xlu0 %v307, 16
  %v574 = vpop.permute.xlu0 %573
  %575 = vrot.lane.b32.xlu0 %v394, 16
  %v576 = vpop.permute.xlu0 %575
  %577 = vrot.lane.b32.xlu0 %v311, 16
  %v578 = vpop.permute.xlu0 %577
  %579 = vrot.lane.b32.xlu0 %v313, 16
  %v580 = vpop.permute.xlu0 %579
  %581 = vrot.lane.b32.xlu0 %v400, 16
  %v582 = vpop.permute.xlu0 %581
  %583 = vrot.lane.b32.xlu0 %v317, 16
  %v584 = vpop.permute.xlu0 %583
  %585 = vrot.lane.b32.xlu0 %v319, 16
  %v586 = vpop.permute.xlu0 %585
  %587 = vrot.lane.b32.xlu0 %v406, 16
  %v588 = vpop.permute.xlu0 %587
  %vm589 = vcmask 130048
  %v590 = vsel %vm589, %v566, %v568
  %v591 = vsel %vm589, %v568, %v570
  %v592 = vsel %vm589, %v570, %v554
  %v593 = vsel %vm589, %v572, %v574
  %v594 = vsel %vm589, %v574, %v576
  %v595 = vsel %vm589, %v576, %v556
  %v596 = vsel %vm589, %v578, %v580
  %v597 = vsel %vm589, %v580, %v582
  %v598 = vsel %vm589, %v582, %v558
  %v599 = vsel %vm589, %v584, %v586
  %v600 = vsel %vm589, %v586, %v588
  %v601 = vsel %vm589, %v588, %v560
  %v618 = vsel %vm589, %v554, %v566
  %v619 = vsel %vm589, %v556, %v572
  %v620 = vsel %vm589, %v558, %v578
  %v621 = vsel %vm589, %v560, %v584
  %s622 = scalar_lea.vmem %s6, 1
  %v623 = vld [vmem:[%s622] ss:$8 sm:$0xf]
  %v625 = vlaneseq
  %v626 = vshrl.u32 %v625, 7
  %v627 = vsub.s32 0, %v626
  %v628 = vrot.slane %v623, %v627
  %v629 = vlaneseq
  %v630 = vshrl.u32 %v629, 7
  %v631 = vsub.s32 1, %v630
  %v632 = vrot.slane %v623, %v631
  %v633 = vlaneseq
  %v634 = vshrl.u32 %v633, 7
  %v635 = vsub.s32 2, %v634
  %v636 = vrot.slane %v623, %v635
  %v637 = vlaneseq
  %v638 = vshrl.u32 %v637, 7
  %v639 = vsub.s32 3, %v638
  %v640 = vrot.slane %v623, %v639
  %v645 = vmul.f32 %v618, %v628
  %v646 = vmul.f32 %v590, %v632
  %v647 = vmul.f32 %v591, %v636
  %v648 = vmul.f32 %v592, %v640
  %v649 = vmul.f32 %v619, %v628
  %v650 = vmul.f32 %v593, %v632
  %v651 = vmul.f32 %v594, %v636
  %v652 = vmul.f32 %v595, %v640
  %v653 = vmul.f32 %v620, %v628
  %v654 = vmul.f32 %v596, %v632
  %v655 = vmul.f32 %v597, %v636
  %v656 = vmul.f32 %v598, %v640
  %v657 = vmul.f32 %v621, %v628
  %v658 = vmul.f32 %v599, %v632
  %v659 = vmul.f32 %v600, %v636
  %v660 = vmul.f32 %v601, %v640
  %661 = vst [vmem:[#allocation2 + $0x80] sm:$0xff] %v645
  %662 = vst [vmem:[#allocation2 + $0x88] sm:$0xff] %v646
  %663 = vst [vmem:[#allocation2 + $0x90] sm:$0xff] %v647
  %664 = vst [vmem:[#allocation2 + $0x98] sm:$0xff] %v648
  %665 = vst [vmem:[#allocation2 + $0xa0] sm:$0xff] %v649
  %666 = vst [vmem:[#allocation2 + $0xa8] sm:$0xff] %v650
  %667 = vst [vmem:[#allocation2 + $0xb0] sm:$0xff] %v651
  %668 = vst [vmem:[#allocation2 + $0xb8] sm:$0xff] %v652
  %669 = vst [vmem:[#allocation2 + $0xc0] sm:$0xff] %v653
  %670 = vst [vmem:[#allocation2 + $0xc8] sm:$0xff] %v654
  %671 = vst [vmem:[#allocation2 + $0xd0] sm:$0xff] %v655
  %672 = vst [vmem:[#allocation2 + $0xd8] sm:$0xff] %v656
  %673 = vst [vmem:[#allocation2 + $0xe0] sm:$0x3f] %v657
  %674 = vst [vmem:[#allocation2 + $0xe8] sm:$0x3f] %v658
  %675 = vst [vmem:[#allocation2 + $0xf0] sm:$0x3f] %v659
  %676 = vst [vmem:[#allocation2 + $0xf8] sm:$0x3f] %v660
  %677 = vrot.lane.b32.xlu0 %v390, 15
  %v678 = vpop.permute.xlu0 %677
  %679 = vrot.lane.b32.xlu0 %v396, 15
  %v680 = vpop.permute.xlu0 %679
  %681 = vrot.lane.b32.xlu0 %v402, 15
  %v682 = vpop.permute.xlu0 %681
  %683 = vrot.lane.b32.xlu0 %v408, 15
  %v684 = vpop.permute.xlu0 %683
  %689 = vrot.lane.b32.xlu0 %v299, 15
  %v690 = vpop.permute.xlu0 %689
  %691 = vrot.lane.b32.xlu0 %v301, 15
  %v692 = vpop.permute.xlu0 %691
  %693 = vrot.lane.b32.xlu0 %v388, 15
  %v694 = vpop.permute.xlu0 %693
  %695 = vrot.lane.b32.xlu0 %v305, 15
  %v696 = vpop.permute.xlu0 %695
  %697 = vrot.lane.b32.xlu0 %v307, 15
  %v698 = vpop.permute.xlu0 %697
  %699 = vrot.lane.b32.xlu0 %v394, 15
  %v700 = vpop.permute.xlu0 %699
  %701 = vrot.lane.b32.xlu0 %v311, 15
  %v702 = vpop.permute.xlu0 %701
  %703 = vrot.lane.b32.xlu0 %v313, 15
  %v704 = vpop.permute.xlu0 %703
  %705 = vrot.lane.b32.xlu0 %v400, 15
  %v706 = vpop.permute.xlu0 %705
  %707 = vrot.lane.b32.xlu0 %v317, 15
  %v708 = vpop.permute.xlu0 %707
  %709 = vrot.lane.b32.xlu0 %v319, 15
  %v710 = vpop.permute.xlu0 %709
  %711 = vrot.lane.b32.xlu0 %v406, 15
  %v712 = vpop.permute.xlu0 %711
  %vm713 = vcmask 121856
  %v714 = vsel %vm713, %v690, %v692
  %v715 = vsel %vm713, %v692, %v694
  %v716 = vsel %vm713, %v694, %v678
  %v717 = vsel %vm713, %v696, %v698
  %v718 = vsel %vm713, %v698, %v700
  %v719 = vsel %vm713, %v700, %v680
  %v720 = vsel %vm713, %v702, %v704
  %v721 = vsel %vm713, %v704, %v706
  %v722 = vsel %vm713, %v706, %v682
  %v723 = vsel %vm713, %v708, %v710
  %v724 = vsel %vm713, %v710, %v712
  %v725 = vsel %vm713, %v712, %v684
  %v742 = vsel %vm713, %v678, %v690
  %v743 = vsel %vm713, %v680, %v696
  %v744 = vsel %vm713, %v682, %v702
  %v745 = vsel %vm713, %v684, %v708
  %s746 = scalar_lea.vmem %s6, 2
  %v747 = vld [vmem:[%s746] ss:$8 sm:$0xf]
  %v749 = vlaneseq
  %v750 = vshrl.u32 %v749, 7
  %v751 = vsub.s32 0, %v750
  %v752 = vrot.slane %v747, %v751
  %v753 = vlaneseq
  %v754 = vshrl.u32 %v753, 7
  %v755 = vsub.s32 1, %v754
  %v756 = vrot.slane %v747, %v755
  %v757 = vlaneseq
  %v758 = vshrl.u32 %v757, 7
  %v759 = vsub.s32 2, %v758
  %v760 = vrot.slane %v747, %v759
  %v761 = vlaneseq
  %v762 = vshrl.u32 %v761, 7
  %v763 = vsub.s32 3, %v762
  %v764 = vrot.slane %v747, %v763
  %v769 = vmul.f32 %v742, %v752
  %v770 = vmul.f32 %v714, %v756
  %v771 = vmul.f32 %v715, %v760
  %v772 = vmul.f32 %v716, %v764
  %v773 = vmul.f32 %v743, %v752
  %v774 = vmul.f32 %v717, %v756
  %v775 = vmul.f32 %v718, %v760
  %v776 = vmul.f32 %v719, %v764
  %v777 = vmul.f32 %v744, %v752
  %v778 = vmul.f32 %v720, %v756
  %v779 = vmul.f32 %v721, %v760
  %v780 = vmul.f32 %v722, %v764
  %v781 = vmul.f32 %v745, %v752
  %v782 = vmul.f32 %v723, %v756
  %v783 = vmul.f32 %v724, %v760
  %v784 = vmul.f32 %v725, %v764
  %785 = vst [vmem:[#allocation2 + $0x100] sm:$0xff] %v769
  %786 = vst [vmem:[#allocation2 + $0x108] sm:$0xff] %v770
  %787 = vst [vmem:[#allocation2 + $0x110] sm:$0xff] %v771
  %788 = vst [vmem:[#allocation2 + $0x118] sm:$0xff] %v772
  %789 = vst [vmem:[#allocation2 + $0x120] sm:$0xff] %v773
  %790 = vst [vmem:[#allocation2 + $0x128] sm:$0xff] %v774
  %791 = vst [vmem:[#allocation2 + $0x130] sm:$0xff] %v775
  %792 = vst [vmem:[#allocation2 + $0x138] sm:$0xff] %v776
  %793 = vst [vmem:[#allocation2 + $0x140] sm:$0xff] %v777
  %794 = vst [vmem:[#allocation2 + $0x148] sm:$0xff] %v778
  %795 = vst [vmem:[#allocation2 + $0x150] sm:$0xff] %v779
  %796 = vst [vmem:[#allocation2 + $0x158] sm:$0xff] %v780
  %797 = vst [vmem:[#allocation2 + $0x160] sm:$0x3f] %v781
  %798 = vst [vmem:[#allocation2 + $0x168] sm:$0x3f] %v782
  %799 = vst [vmem:[#allocation2 + $0x170] sm:$0x3f] %v783
  %800 = vst [vmem:[#allocation2 + $0x178] sm:$0x3f] %v784
  %801 = vrot.lane.b32.xlu0 %v390, 1
  %v802 = vpop.permute.xlu0 %801
  %803 = vrot.lane.b32.xlu0 %v396, 1
  %v804 = vpop.permute.xlu0 %803
  %805 = vrot.lane.b32.xlu0 %v402, 1
  %v806 = vpop.permute.xlu0 %805
  %807 = vrot.lane.b32.xlu0 %v408, 1
  %v808 = vpop.permute.xlu0 %807
  %813 = vrot.lane.b32.xlu0 %v299, 1
  %v814 = vpop.permute.xlu0 %813
  %815 = vrot.lane.b32.xlu0 %v301, 1
  %v816 = vpop.permute.xlu0 %815
  %817 = vrot.lane.b32.xlu0 %v388, 1
  %v818 = vpop.permute.xlu0 %817
  %819 = vrot.lane.b32.xlu0 %v305, 1
  %v820 = vpop.permute.xlu0 %819
  %821 = vrot.lane.b32.xlu0 %v307, 1
  %v822 = vpop.permute.xlu0 %821
  %823 = vrot.lane.b32.xlu0 %v394, 1
  %v824 = vpop.permute.xlu0 %823
  %825 = vrot.lane.b32.xlu0 %v311, 1
  %v826 = vpop.permute.xlu0 %825
  %827 = vrot.lane.b32.xlu0 %v313, 1
  %v828 = vpop.permute.xlu0 %827
  %829 = vrot.lane.b32.xlu0 %v400, 1
  %v830 = vpop.permute.xlu0 %829
  %831 = vrot.lane.b32.xlu0 %v317, 1
  %v832 = vpop.permute.xlu0 %831
  %833 = vrot.lane.b32.xlu0 %v319, 1
  %v834 = vpop.permute.xlu0 %833
  %835 = vrot.lane.b32.xlu0 %v406, 1
  %v836 = vpop.permute.xlu0 %835
  %vm837 = vcmask 7168
  %v838 = vsel %vm837, %v814, %v816
  %v839 = vsel %vm837, %v816, %v818
  %v840 = vsel %vm837, %v818, %v802
  %v841 = vsel %vm837, %v820, %v822
  %v842 = vsel %vm837, %v822, %v824
  %v843 = vsel %vm837, %v824, %v804
  %v844 = vsel %vm837, %v826, %v828
  %v845 = vsel %vm837, %v828, %v830
  %v846 = vsel %vm837, %v830, %v806
  %v847 = vsel %vm837, %v832, %v834
  %v848 = vsel %vm837, %v834, %v836
  %v849 = vsel %vm837, %v836, %v808
  %v866 = vsel %vm837, %v802, %v814
  %v867 = vsel %vm837, %v804, %v820
  %v868 = vsel %vm837, %v806, %v826
  %v869 = vsel %vm837, %v808, %v832
  %s870 = scalar_lea.vmem %s6, 3
  %v871 = vld [vmem:[%s870] ss:$8 sm:$0xf]
  %v873 = vlaneseq
  %v874 = vshrl.u32 %v873, 7
  %v875 = vsub.s32 0, %v874
  %v876 = vrot.slane %v871, %v875
  %v877 = vlaneseq
  %v878 = vshrl.u32 %v877, 7
  %v879 = vsub.s32 1, %v878
  %v880 = vrot.slane %v871, %v879
  %v881 = vlaneseq
  %v882 = vshrl.u32 %v881, 7
  %v883 = vsub.s32 2, %v882
  %v884 = vrot.slane %v871, %v883
  %v885 = vlaneseq
  %v886 = vshrl.u32 %v885, 7
  %v887 = vsub.s32 3, %v886
  %v888 = vrot.slane %v871, %v887
  %v893 = vmul.f32 %v866, %v876
  %v894 = vmul.f32 %v838, %v880
  %v895 = vmul.f32 %v839, %v884
  %v896 = vmul.f32 %v840, %v888
  %v897 = vmul.f32 %v867, %v876
  %v898 = vmul.f32 %v841, %v880
  %v899 = vmul.f32 %v842, %v884
  %v900 = vmul.f32 %v843, %v888
  %v901 = vmul.f32 %v868, %v876
  %v902 = vmul.f32 %v844, %v880
  %v903 = vmul.f32 %v845, %v884
  %v904 = vmul.f32 %v846, %v888
  %v905 = vmul.f32 %v869, %v876
  %v906 = vmul.f32 %v847, %v880
  %v907 = vmul.f32 %v848, %v884
  %v908 = vmul.f32 %v849, %v888
  %909 = vst [vmem:[#allocation2 + $0x180] sm:$0xff] %v893
  %910 = vst [vmem:[#allocation2 + $0x188] sm:$0xff] %v894
  %911 = vst [vmem:[#allocation2 + $0x190] sm:$0xff] %v895
  %912 = vst [vmem:[#allocation2 + $0x198] sm:$0xff] %v896
  %913 = vst [vmem:[#allocation2 + $0x1a0] sm:$0xff] %v897
  %914 = vst [vmem:[#allocation2 + $0x1a8] sm:$0xff] %v898
  %915 = vst [vmem:[#allocation2 + $0x1b0] sm:$0xff] %v899
  %916 = vst [vmem:[#allocation2 + $0x1b8] sm:$0xff] %v900
  %917 = vst [vmem:[#allocation2 + $0x1c0] sm:$0xff] %v901
  %918 = vst [vmem:[#allocation2 + $0x1c8] sm:$0xff] %v902
  %919 = vst [vmem:[#allocation2 + $0x1d0] sm:$0xff] %v903
  %920 = vst [vmem:[#allocation2 + $0x1d8] sm:$0xff] %v904
  %921 = vst [vmem:[#allocation2 + $0x1e0] sm:$0x3f] %v905
  %922 = vst [vmem:[#allocation2 + $0x1e8] sm:$0x3f] %v906
  %923 = vst [vmem:[#allocation2 + $0x1f0] sm:$0x3f] %v907
  %924 = vst [vmem:[#allocation2 + $0x1f8] sm:$0x3f] %v908
  %925 = vst [vmem:[#allocation2 + $0x200] sm:$0xff] %v299
  %926 = vst [vmem:[#allocation2 + $0x208] sm:$0xff] %v301
  %927 = vst [vmem:[#allocation2 + $0x210] sm:$0xff] %v388
  %928 = vst [vmem:[#allocation2 + $0x218] sm:$0xff] %v390
  %929 = vst [vmem:[#allocation2 + $0x220] sm:$0xff] %v305
  %930 = vst [vmem:[#allocation2 + $0x228] sm:$0xff] %v307
  %931 = vst [vmem:[#allocation2 + $0x230] sm:$0xff] %v394
  %932 = vst [vmem:[#allocation2 + $0x238] sm:$0xff] %v396
  %933 = vst [vmem:[#allocation2 + $0x240] sm:$0xff] %v311
  %934 = vst [vmem:[#allocation2 + $0x248] sm:$0xff] %v313
  %935 = vst [vmem:[#allocation2 + $0x250] sm:$0xff] %v400
  %936 = vst [vmem:[#allocation2 + $0x258] sm:$0xff] %v402
  %937 = vst [vmem:[#allocation2 + $0x260] sm:$0x3f] %v317
  %938 = vst [vmem:[#allocation2 + $0x268] sm:$0x3f] %v319
  %939 = vst [vmem:[#allocation2 + $0x270] sm:$0x3f] %v406
  %940 = vst [vmem:[#allocation2 + $0x278] sm:$0x3f] %v408
  %941 = vrot.lane.b32.xlu0 %v299, 127
  %v942 = vpop.permute.xlu0 %941
  %943 = vrot.lane.b32.xlu0 %v301, 127
  %v944 = vpop.permute.xlu0 %943
  %945 = vrot.lane.b32.xlu0 %v388, 127
  %v946 = vpop.permute.xlu0 %945
  %947 = vrot.lane.b32.xlu0 %v390, 127
  %v948 = vpop.permute.xlu0 %947
  %949 = vrot.lane.b32.xlu0 %v305, 127
  %v950 = vpop.permute.xlu0 %949
  %951 = vrot.lane.b32.xlu0 %v307, 127
  %v952 = vpop.permute.xlu0 %951
  %953 = vrot.lane.b32.xlu0 %v394, 127
  %v954 = vpop.permute.xlu0 %953
  %955 = vrot.lane.b32.xlu0 %v396, 127
  %v956 = vpop.permute.xlu0 %955
  %957 = vrot.lane.b32.xlu0 %v311, 127
  %v958 = vpop.permute.xlu0 %957
  %959 = vrot.lane.b32.xlu0 %v313, 127
  %v960 = vpop.permute.xlu0 %959
  %961 = vrot.lane.b32.xlu0 %v400, 127
  %v962 = vpop.permute.xlu0 %961
  %963 = vrot.lane.b32.xlu0 %v402, 127
  %v964 = vpop.permute.xlu0 %963
  %965 = vrot.lane.b32.xlu0 %v317, 127
  %v966 = vpop.permute.xlu0 %965
  %967 = vrot.lane.b32.xlu0 %v319, 127
  %v968 = vpop.permute.xlu0 %967
  %969 = vrot.lane.b32.xlu0 %v406, 127
  %v970 = vpop.permute.xlu0 %969
  %971 = vrot.lane.b32.xlu0 %v408, 127
  %v972 = vpop.permute.xlu0 %971
  %vm973 = vcmask 1039360
  %v974 = vsel %vm973, %v942, %v944
  %v975 = vsel %vm973, %v944, %v946
  %v976 = vsel %vm973, %v946, %v948
  %v977 = vsel %vm973, %v950, %v952
  %v978 = vsel %vm973, %v952, %v954
  %v979 = vsel %vm973, %v954, %v956
  %v980 = vsel %vm973, %v958, %v960
  %v981 = vsel %vm973, %v960, %v962
  %v982 = vsel %vm973, %v962, %v964
  %v983 = vsel %vm973, %v966, %v968
  %v984 = vsel %vm973, %v968, %v970
  %v985 = vsel %vm973, %v970, %v972
  %v1006 = vsel %vm973, %v948, %v942
  %v1007 = vsel %vm973, %v956, %v950
  %v1008 = vsel %vm973, %v964, %v958
  %v1009 = vsel %vm973, %v972, %v966
  %s1010 = scalar_lea.vmem %s6, 5
  %v1011 = vld [vmem:[%s1010] ss:$8 sm:$0xf]
  %v1013 = vlaneseq
  %v1014 = vshrl.u32 %v1013, 7
  %v1015 = vsub.s32 0, %v1014
  %v1016 = vrot.slane %v1011, %v1015
  %v1017 = vlaneseq
  %v1018 = vshrl.u32 %v1017, 7
  %v1019 = vsub.s32 1, %v1018
  %v1020 = vrot.slane %v1011, %v1019
  %v1021 = vlaneseq
  %v1022 = vshrl.u32 %v1021, 7
  %v1023 = vsub.s32 2, %v1022
  %v1024 = vrot.slane %v1011, %v1023
  %v1025 = vlaneseq
  %v1026 = vshrl.u32 %v1025, 7
  %v1027 = vsub.s32 3, %v1026
  %v1028 = vrot.slane %v1011, %v1027
  %v1033 = vmul.f32 %v974, %v1016
  %v1034 = vmul.f32 %v975, %v1020
  %v1035 = vmul.f32 %v976, %v1024
  %v1036 = vmul.f32 %v1006, %v1028
  %v1037 = vmul.f32 %v977, %v1016
  %v1038 = vmul.f32 %v978, %v1020
  %v1039 = vmul.f32 %v979, %v1024
  %v1040 = vmul.f32 %v1007, %v1028
  %v1041 = vmul.f32 %v980, %v1016
  %v1042 = vmul.f32 %v981, %v1020
  %v1043 = vmul.f32 %v982, %v1024
  %v1044 = vmul.f32 %v1008, %v1028
  %v1045 = vmul.f32 %v983, %v1016
  %v1046 = vmul.f32 %v984, %v1020
  %v1047 = vmul.f32 %v985, %v1024
  %v1048 = vmul.f32 %v1009, %v1028
  %1049 = vst [vmem:[#allocation2 + $0x280] sm:$0xff] %v1033
  %1050 = vst [vmem:[#allocation2 + $0x288] sm:$0xff] %v1034
  %1051 = vst [vmem:[#allocation2 + $0x290] sm:$0xff] %v1035
  %1052 = vst [vmem:[#allocation2 + $0x298] sm:$0xff] %v1036
  %1053 = vst [vmem:[#allocation2 + $0x2a0] sm:$0xff] %v1037
  %1054 = vst [vmem:[#allocation2 + $0x2a8] sm:$0xff] %v1038
  %1055 = vst [vmem:[#allocation2 + $0x2b0] sm:$0xff] %v1039
  %1056 = vst [vmem:[#allocation2 + $0x2b8] sm:$0xff] %v1040
  %1057 = vst [vmem:[#allocation2 + $0x2c0] sm:$0xff] %v1041
  %1058 = vst [vmem:[#allocation2 + $0x2c8] sm:$0xff] %v1042
  %1059 = vst [vmem:[#allocation2 + $0x2d0] sm:$0xff] %v1043
  %1060 = vst [vmem:[#allocation2 + $0x2d8] sm:$0xff] %v1044
  %1061 = vst [vmem:[#allocation2 + $0x2e0] sm:$0x3f] %v1045
  %1062 = vst [vmem:[#allocation2 + $0x2e8] sm:$0x3f] %v1046
  %1063 = vst [vmem:[#allocation2 + $0x2f0] sm:$0x3f] %v1047
  %1064 = vst [vmem:[#allocation2 + $0x2f8] sm:$0x3f] %v1048
  %1065 = vrot.lane.b32.xlu0 %v299, 113
  %v1066 = vpop.permute.xlu0 %1065
  %1067 = vrot.lane.b32.xlu0 %v301, 113
  %v1068 = vpop.permute.xlu0 %1067
  %1069 = vrot.lane.b32.xlu0 %v388, 113
  %v1070 = vpop.permute.xlu0 %1069
  %1071 = vrot.lane.b32.xlu0 %v390, 113
  %v1072 = vpop.permute.xlu0 %1071
  %1073 = vrot.lane.b32.xlu0 %v305, 113
  %v1074 = vpop.permute.xlu0 %1073
  %1075 = vrot.lane.b32.xlu0 %v307, 113
  %v1076 = vpop.permute.xlu0 %1075
  %1077 = vrot.lane.b32.xlu0 %v394, 113
  %v1078 = vpop.permute.xlu0 %1077
  %1079 = vrot.lane.b32.xlu0 %v396, 113
  %v1080 = vpop.permute.xlu0 %1079
  %1081 = vrot.lane.b32.xlu0 %v311, 113
  %v1082 = vpop.permute.xlu0 %1081
  %1083 = vrot.lane.b32.xlu0 %v313, 113
  %v1084 = vpop.permute.xlu0 %1083
  %1085 = vrot.lane.b32.xlu0 %v400, 113
  %v1086 = vpop.permute.xlu0 %1085
  %1087 = vrot.lane.b32.xlu0 %v402, 113
  %v1088 = vpop.permute.xlu0 %1087
  %1089 = vrot.lane.b32.xlu0 %v317, 113
  %v1090 = vpop.permute.xlu0 %1089
  %1091 = vrot.lane.b32.xlu0 %v319, 113
  %v1092 = vpop.permute.xlu0 %1091
  %1093 = vrot.lane.b32.xlu0 %v406, 113
  %v1094 = vpop.permute.xlu0 %1093
  %1095 = vrot.lane.b32.xlu0 %v408, 113
  %v1096 = vpop.permute.xlu0 %1095
  %vm1097 = vcmask 924672
  %v1098 = vsel %vm1097, %v1066, %v1068
  %v1099 = vsel %vm1097, %v1068, %v1070
  %v1100 = vsel %vm1097, %v1070, %v1072
  %v1101 = vsel %vm1097, %v1074, %v1076
  %v1102 = vsel %vm1097, %v1076, %v1078
  %v1103 = vsel %vm1097, %v1078, %v1080
  %v1104 = vsel %vm1097, %v1082, %v1084
  %v1105 = vsel %vm1097, %v1084, %v1086
  %v1106 = vsel %vm1097, %v1086, %v1088
  %v1107 = vsel %vm1097, %v1090, %v1092
  %v1108 = vsel %vm1097, %v1092, %v1094
  %v1109 = vsel %vm1097, %v1094, %v1096
  %v1130 = vsel %vm1097, %v1072, %v1066
  %v1131 = vsel %vm1097, %v1080, %v1074
  %v1132 = vsel %vm1097, %v1088, %v1082
  %v1133 = vsel %vm1097, %v1096, %v1090
  %s1134 = scalar_lea.vmem %s6, 6
  %v1135 = vld [vmem:[%s1134] ss:$8 sm:$0xf]
  %v1137 = vlaneseq
  %v1138 = vshrl.u32 %v1137, 7
  %v1139 = vsub.s32 0, %v1138
  %v1140 = vrot.slane %v1135, %v1139
  %v1141 = vlaneseq
  %v1142 = vshrl.u32 %v1141, 7
  %v1143 = vsub.s32 1, %v1142
  %v1144 = vrot.slane %v1135, %v1143
  %v1145 = vlaneseq
  %v1146 = vshrl.u32 %v1145, 7
  %v1147 = vsub.s32 2, %v1146
  %v1148 = vrot.slane %v1135, %v1147
  %v1149 = vlaneseq
  %v1150 = vshrl.u32 %v1149, 7
  %v1151 = vsub.s32 3, %v1150
  %v1152 = vrot.slane %v1135, %v1151
  %v1157 = vmul.f32 %v1098, %v1140
  %v1158 = vmul.f32 %v1099, %v1144
  %v1159 = vmul.f32 %v1100, %v1148
  %v1160 = vmul.f32 %v1130, %v1152
  %v1161 = vmul.f32 %v1101, %v1140
  %v1162 = vmul.f32 %v1102, %v1144
  %v1163 = vmul.f32 %v1103, %v1148
  %v1164 = vmul.f32 %v1131, %v1152
  %v1165 = vmul.f32 %v1104, %v1140
  %v1166 = vmul.f32 %v1105, %v1144
  %v1167 = vmul.f32 %v1106, %v1148
  %v1168 = vmul.f32 %v1132, %v1152
  %v1169 = vmul.f32 %v1107, %v1140
  %v1170 = vmul.f32 %v1108, %v1144
  %v1171 = vmul.f32 %v1109, %v1148
  %v1172 = vmul.f32 %v1133, %v1152
  %1173 = vst [vmem:[#allocation2 + $0x300] sm:$0xff] %v1157
  %1174 = vst [vmem:[#allocation2 + $0x308] sm:$0xff] %v1158
  %1175 = vst [vmem:[#allocation2 + $0x310] sm:$0xff] %v1159
  %1176 = vst [vmem:[#allocation2 + $0x318] sm:$0xff] %v1160
  %1177 = vst [vmem:[#allocation2 + $0x320] sm:$0xff] %v1161
  %1178 = vst [vmem:[#allocation2 + $0x328] sm:$0xff] %v1162
  %1179 = vst [vmem:[#allocation2 + $0x330] sm:$0xff] %v1163
  %1180 = vst [vmem:[#allocation2 + $0x338] sm:$0xff] %v1164
  %1181 = vst [vmem:[#allocation2 + $0x340] sm:$0xff] %v1165
  %1182 = vst [vmem:[#allocation2 + $0x348] sm:$0xff] %v1166
  %1183 = vst [vmem:[#allocation2 + $0x350] sm:$0xff] %v1167
  %1184 = vst [vmem:[#allocation2 + $0x358] sm:$0xff] %v1168
  %1185 = vst [vmem:[#allocation2 + $0x360] sm:$0x3f] %v1169
  %1186 = vst [vmem:[#allocation2 + $0x368] sm:$0x3f] %v1170
  %1187 = vst [vmem:[#allocation2 + $0x370] sm:$0x3f] %v1171
  %1188 = vst [vmem:[#allocation2 + $0x378] sm:$0x3f] %v1172
  %1189 = vrot.lane.b32.xlu0 %v299, 112
  %v1190 = vpop.permute.xlu0 %1189
  %1191 = vrot.lane.b32.xlu0 %v301, 112
  %v1192 = vpop.permute.xlu0 %1191
  %1193 = vrot.lane.b32.xlu0 %v388, 112
  %v1194 = vpop.permute.xlu0 %1193
  %1195 = vrot.lane.b32.xlu0 %v390, 112
  %v1196 = vpop.permute.xlu0 %1195
  %1197 = vrot.lane.b32.xlu0 %v305, 112
  %v1198 = vpop.permute.xlu0 %1197
  %1199 = vrot.lane.b32.xlu0 %v307, 112
  %v1200 = vpop.permute.xlu0 %1199
  %1201 = vrot.lane.b32.xlu0 %v394, 112
  %v1202 = vpop.permute.xlu0 %1201
  %1203 = vrot.lane.b32.xlu0 %v396, 112
  %v1204 = vpop.permute.xlu0 %1203
  %1205 = vrot.lane.b32.xlu0 %v311, 112
  %v1206 = vpop.permute.xlu0 %1205
  %1207 = vrot.lane.b32.xlu0 %v313, 112
  %v1208 = vpop.permute.xlu0 %1207
  %1209 = vrot.lane.b32.xlu0 %v400, 112
  %v1210 = vpop.permute.xlu0 %1209
  %1211 = vrot.lane.b32.xlu0 %v402, 112
  %v1212 = vpop.permute.xlu0 %1211
  %1213 = vrot.lane.b32.xlu0 %v317, 112
  %v1214 = vpop.permute.xlu0 %1213
  %1215 = vrot.lane.b32.xlu0 %v319, 112
  %v1216 = vpop.permute.xlu0 %1215
  %1217 = vrot.lane.b32.xlu0 %v406, 112
  %v1218 = vpop.permute.xlu0 %1217
  %1219 = vrot.lane.b32.xlu0 %v408, 112
  %v1220 = vpop.permute.xlu0 %1219
  %vm1221 = vcmask 916480
  %v1222 = vsel %vm1221, %v1190, %v1192
  %v1223 = vsel %vm1221, %v1192, %v1194
  %v1224 = vsel %vm1221, %v1194, %v1196
  %v1225 = vsel %vm1221, %v1198, %v1200
  %v1226 = vsel %vm1221, %v1200, %v1202
  %v1227 = vsel %vm1221, %v1202, %v1204
  %v1228 = vsel %vm1221, %v1206, %v1208
  %v1229 = vsel %vm1221, %v1208, %v1210
  %v1230 = vsel %vm1221, %v1210, %v1212
  %v1231 = vsel %vm1221, %v1214, %v1216
  %v1232 = vsel %vm1221, %v1216, %v1218
  %v1233 = vsel %vm1221, %v1218, %v1220
  %v1254 = vsel %vm1221, %v1196, %v1190
  %v1255 = vsel %vm1221, %v1204, %v1198
  %v1256 = vsel %vm1221, %v1212, %v1206
  %v1257 = vsel %vm1221, %v1220, %v1214
  %s1258 = scalar_lea.vmem %s6, 7
  %v1259 = vld [vmem:[%s1258] ss:$8 sm:$0xf]
  %v1261 = vlaneseq
  %v1262 = vshrl.u32 %v1261, 7
  %v1263 = vsub.s32 0, %v1262
  %v1264 = vrot.slane %v1259, %v1263
  %v1265 = vlaneseq
  %v1266 = vshrl.u32 %v1265, 7
  %v1267 = vsub.s32 1, %v1266
  %v1268 = vrot.slane %v1259, %v1267
  %v1269 = vlaneseq
  %v1270 = vshrl.u32 %v1269, 7
  %v1271 = vsub.s32 2, %v1270
  %v1272 = vrot.slane %v1259, %v1271
  %v1273 = vlaneseq
  %v1274 = vshrl.u32 %v1273, 7
  %v1275 = vsub.s32 3, %v1274
  %v1276 = vrot.slane %v1259, %v1275
  %v1281 = vmul.f32 %v1222, %v1264
  %v1282 = vmul.f32 %v1223, %v1268
  %v1283 = vmul.f32 %v1224, %v1272
  %v1284 = vmul.f32 %v1254, %v1276
  %v1285 = vmul.f32 %v1225, %v1264
  %v1286 = vmul.f32 %v1226, %v1268
  %v1287 = vmul.f32 %v1227, %v1272
  %v1288 = vmul.f32 %v1255, %v1276
  %v1289 = vmul.f32 %v1228, %v1264
  %v1290 = vmul.f32 %v1229, %v1268
  %v1291 = vmul.f32 %v1230, %v1272
  %v1292 = vmul.f32 %v1256, %v1276
  %v1293 = vmul.f32 %v1231, %v1264
  %v1294 = vmul.f32 %v1232, %v1268
  %v1295 = vmul.f32 %v1233, %v1272
  %v1296 = vmul.f32 %v1257, %v1276
  %1297 = vst [vmem:[#allocation2 + $0x380] sm:$0xff] %v1281
  %1298 = vst [vmem:[#allocation2 + $0x388] sm:$0xff] %v1282
  %1299 = vst [vmem:[#allocation2 + $0x390] sm:$0xff] %v1283
  %1300 = vst [vmem:[#allocation2 + $0x398] sm:$0xff] %v1284
  %1301 = vst [vmem:[#allocation2 + $0x3a0] sm:$0xff] %v1285
  %1302 = vst [vmem:[#allocation2 + $0x3a8] sm:$0xff] %v1286
  %1303 = vst [vmem:[#allocation2 + $0x3b0] sm:$0xff] %v1287
  %1304 = vst [vmem:[#allocation2 + $0x3b8] sm:$0xff] %v1288
  %1305 = vst [vmem:[#allocation2 + $0x3c0] sm:$0xff] %v1289
  %1306 = vst [vmem:[#allocation2 + $0x3c8] sm:$0xff] %v1290
  %1307 = vst [vmem:[#allocation2 + $0x3d0] sm:$0xff] %v1291
  %1308 = vst [vmem:[#allocation2 + $0x3d8] sm:$0xff] %v1292
  %1309 = vst [vmem:[#allocation2 + $0x3e0] sm:$0x3f] %v1293
  %1310 = vst [vmem:[#allocation2 + $0x3e8] sm:$0x3f] %v1294
  %1311 = vst [vmem:[#allocation2 + $0x3f0] sm:$0x3f] %v1295
  %1312 = vst [vmem:[#allocation2 + $0x3f8] sm:$0x3f] %v1296
  %1313 = vrot.lane.b32.xlu0 %v299, 111
  %v1314 = vpop.permute.xlu0 %1313
  %1315 = vrot.lane.b32.xlu0 %v301, 111
  %v1316 = vpop.permute.xlu0 %1315
  %1317 = vrot.lane.b32.xlu0 %v388, 111
  %v1318 = vpop.permute.xlu0 %1317
  %1319 = vrot.lane.b32.xlu0 %v390, 111
  %v1320 = vpop.permute.xlu0 %1319
  %1321 = vrot.lane.b32.xlu0 %v305, 111
  %v1322 = vpop.permute.xlu0 %1321
  %1323 = vrot.lane.b32.xlu0 %v307, 111
  %v1324 = vpop.permute.xlu0 %1323
  %1325 = vrot.lane.b32.xlu0 %v394, 111
  %v1326 = vpop.permute.xlu0 %1325
  %1327 = vrot.lane.b32.xlu0 %v396, 111
  %v1328 = vpop.permute.xlu0 %1327
  %1329 = vrot.lane.b32.xlu0 %v311, 111
  %v1330 = vpop.permute.xlu0 %1329
  %1331 = vrot.lane.b32.xlu0 %v313, 111
  %v1332 = vpop.permute.xlu0 %1331
  %1333 = vrot.lane.b32.xlu0 %v400, 111
  %v1334 = vpop.permute.xlu0 %1333
  %1335 = vrot.lane.b32.xlu0 %v402, 111
  %v1336 = vpop.permute.xlu0 %1335
  %1337 = vrot.lane.b32.xlu0 %v317, 111
  %v1338 = vpop.permute.xlu0 %1337
  %1339 = vrot.lane.b32.xlu0 %v319, 111
  %v1340 = vpop.permute.xlu0 %1339
  %1341 = vrot.lane.b32.xlu0 %v406, 111
  %v1342 = vpop.permute.xlu0 %1341
  %1343 = vrot.lane.b32.xlu0 %v408, 111
  %v1344 = vpop.permute.xlu0 %1343
  %vm1345 = vcmask 908288
  %v1346 = vsel %vm1345, %v1314, %v1316
  %v1347 = vsel %vm1345, %v1316, %v1318
  %v1348 = vsel %vm1345, %v1318, %v1320
  %v1349 = vsel %vm1345, %v1322, %v1324
  %v1350 = vsel %vm1345, %v1324, %v1326
  %v1351 = vsel %vm1345, %v1326, %v1328
  %v1352 = vsel %vm1345, %v1330, %v1332
  %v1353 = vsel %vm1345, %v1332, %v1334
  %v1354 = vsel %vm1345, %v1334, %v1336
  %v1355 = vsel %vm1345, %v1338, %v1340
  %v1356 = vsel %vm1345, %v1340, %v1342
  %v1357 = vsel %vm1345, %v1342, %v1344
  %v1378 = vsel %vm1345, %v1320, %v1314
  %v1379 = vsel %vm1345, %v1328, %v1322
  %v1380 = vsel %vm1345, %v1336, %v1330
  %v1381 = vsel %vm1345, %v1344, %v1338
  %s1382 = scalar_lea.vmem %s6, 32
  %v1383 = vld [vmem:[%s1382] ss:$8 sm:$0xf]
  %v1385 = vlaneseq
  %v1386 = vshrl.u32 %v1385, 7
  %v1387 = vsub.s32 0, %v1386
  %v1388 = vrot.slane %v1383, %v1387
  %v1389 = vlaneseq
  %v1390 = vshrl.u32 %v1389, 7
  %v1391 = vsub.s32 1, %v1390
  %v1392 = vrot.slane %v1383, %v1391
  %v1393 = vlaneseq
  %v1394 = vshrl.u32 %v1393, 7
  %v1395 = vsub.s32 2, %v1394
  %v1396 = vrot.slane %v1383, %v1395
  %v1397 = vlaneseq
  %v1398 = vshrl.u32 %v1397, 7
  %v1399 = vsub.s32 3, %v1398
  %v1400 = vrot.slane %v1383, %v1399
  %v1405 = vmul.f32 %v1346, %v1388
  %v1406 = vmul.f32 %v1347, %v1392
  %v1407 = vmul.f32 %v1348, %v1396
  %v1408 = vmul.f32 %v1378, %v1400
  %v1409 = vmul.f32 %v1349, %v1388
  %v1410 = vmul.f32 %v1350, %v1392
  %v1411 = vmul.f32 %v1351, %v1396
  %v1412 = vmul.f32 %v1379, %v1400
  %v1413 = vmul.f32 %v1352, %v1388
  %v1414 = vmul.f32 %v1353, %v1392
  %v1415 = vmul.f32 %v1354, %v1396
  %v1416 = vmul.f32 %v1380, %v1400
  %v1417 = vmul.f32 %v1355, %v1388
  %v1418 = vmul.f32 %v1356, %v1392
  %v1419 = vmul.f32 %v1357, %v1396
  %v1420 = vmul.f32 %v1381, %v1400
  %1421 = vst [vmem:[#allocation2 + $0x400] sm:$0xff] %v1405
  %1422 = vst [vmem:[#allocation2 + $0x408] sm:$0xff] %v1406
  %1423 = vst [vmem:[#allocation2 + $0x410] sm:$0xff] %v1407
  %1424 = vst [vmem:[#allocation2 + $0x418] sm:$0xff] %v1408
  %1425 = vst [vmem:[#allocation2 + $0x420] sm:$0xff] %v1409
  %1426 = vst [vmem:[#allocation2 + $0x428] sm:$0xff] %v1410
  %1427 = vst [vmem:[#allocation2 + $0x430] sm:$0xff] %v1411
  %1428 = vst [vmem:[#allocation2 + $0x438] sm:$0xff] %v1412
  %1429 = vst [vmem:[#allocation2 + $0x440] sm:$0xff] %v1413
  %1430 = vst [vmem:[#allocation2 + $0x448] sm:$0xff] %v1414
  %1431 = vst [vmem:[#allocation2 + $0x450] sm:$0xff] %v1415
  %1432 = vst [vmem:[#allocation2 + $0x458] sm:$0xff] %v1416
  %1433 = vst [vmem:[#allocation2 + $0x460] sm:$0x3f] %v1417
  %1434 = vst [vmem:[#allocation2 + $0x468] sm:$0x3f] %v1418
  %1435 = vst [vmem:[#allocation2 + $0x470] sm:$0x3f] %v1419
  %1436 = vst [vmem:[#allocation2 + $0x478] sm:$0x3f] %v1420
  %v1437 = vld [vmem:[%s3] sm:$0xff]
  %v1438 = vld [vmem:[%s3 + $0x8] sm:$0xff]
  %v1439 = vld [vmem:[%s3 + $0x10] sm:$0xff]
  %v1440 = vld [vmem:[%s3 + $0x18] sm:$0xff]
  %v1441 = vld [vmem:[%s3 + $0x20] sm:$0xff]
  %v1442 = vld [vmem:[%s3 + $0x28] sm:$0xff]
  %v1443 = vld [vmem:[%s3 + $0x30] sm:$0xff]
  %v1444 = vld [vmem:[%s3 + $0x38] sm:$0xff]
  %v1445 = vld [vmem:[%s3 + $0x40] sm:$0xff]
  %v1446 = vld [vmem:[%s3 + $0x48] sm:$0x3f]
  %v1447 = vld [vmem:[%s3 + $0x50] sm:$0x3f]
  %v1448 = vld [vmem:[%s3 + $0x58] sm:$0x3f]
  %v1449 = vld [vmem:[#allocation2] sm:$0xff]
  %v1450 = vld [vmem:[#allocation2 + $0x8] sm:$0xff]
  %v1451 = vld [vmem:[#allocation2 + $0x20] sm:$0xff]
  %v1452 = vld [vmem:[#allocation2 + $0x28] sm:$0xff]
  %v1453 = vld [vmem:[#allocation2 + $0x40] sm:$0xff]
  %v1454 = vld [vmem:[#allocation2 + $0x48] sm:$0xff]
  %v1455 = vld [vmem:[#allocation2 + $0x60] sm:$0xff]
  %v1456 = vld [vmem:[#allocation2 + $0x68] sm:$0xff]
  %v1457 = vld [vmem:[#allocation2 + $0x80] sm:$0xff]
  %v1458 = vld [vmem:[#allocation2 + $0x88] sm:$0xff]
  %v1459 = vld [vmem:[#allocation2 + $0xa0] sm:$0xff]
  %v1460 = vld [vmem:[#allocation2 + $0xa8] sm:$0xff]
  %v1461 = vld [vmem:[#allocation2 + $0xc0] sm:$0xff]
  %v1462 = vld [vmem:[#allocation2 + $0xc8] sm:$0xff]
  %v1463 = vld [vmem:[#allocation2 + $0xe0] sm:$0xff]
  %v1464 = vld [vmem:[#allocation2 + $0xe8] sm:$0xff]
  %v1465 = vld [vmem:[#allocation2 + $0x100] sm:$0xff]
  %v1466 = vld [vmem:[#allocation2 + $0x108] sm:$0xff]
  %v1467 = vld [vmem:[#allocation2 + $0x120] sm:$0xff]
  %v1468 = vld [vmem:[#allocation2 + $0x128] sm:$0xff]
  %v1469 = vld [vmem:[#allocation2 + $0x140] sm:$0xff]
  %v1470 = vld [vmem:[#allocation2 + $0x148] sm:$0xff]
  %v1471 = vld [vmem:[#allocation2 + $0x160] sm:$0xff]
  %v1472 = vld [vmem:[#allocation2 + $0x168] sm:$0xff]
  %v1473 = vld [vmem:[#allocation2 + $0x180] sm:$0xff]
  %v1474 = vld [vmem:[#allocation2 + $0x188] sm:$0xff]
  %v1475 = vld [vmem:[#allocation2 + $0x1a0] sm:$0xff]
  %v1476 = vld [vmem:[#allocation2 + $0x1a8] sm:$0xff]
  %v1477 = vld [vmem:[#allocation2 + $0x1c0] sm:$0xff]
  %v1478 = vld [vmem:[#allocation2 + $0x1c8] sm:$0xff]
  %v1479 = vld [vmem:[#allocation2 + $0x1e0] sm:$0xff]
  %v1480 = vld [vmem:[#allocation2 + $0x1e8] sm:$0xff]
  %v1481 = vld [vmem:[#allocation2 + $0x200] sm:$0xff]
  %v1482 = vld [vmem:[#allocation2 + $0x208] sm:$0xff]
  %v1483 = vld [vmem:[#allocation2 + $0x220] sm:$0xff]
  %v1484 = vld [vmem:[#allocation2 + $0x228] sm:$0xff]
  %v1485 = vld [vmem:[#allocation2 + $0x240] sm:$0xff]
  %v1486 = vld [vmem:[#allocation2 + $0x248] sm:$0xff]
  %v1487 = vld [vmem:[#allocation2 + $0x260] sm:$0xff]
  %v1488 = vld [vmem:[#allocation2 + $0x268] sm:$0xff]
  %v1489 = vld [vmem:[#allocation2 + $0x280] sm:$0xff]
  %v1490 = vld [vmem:[#allocation2 + $0x288] sm:$0xff]
  %v1491 = vld [vmem:[#allocation2 + $0x2a0] sm:$0xff]
  %v1492 = vld [vmem:[#allocation2 + $0x2a8] sm:$0xff]
  %v1493 = vld [vmem:[#allocation2 + $0x2c0] sm:$0xff]
  %v1494 = vld [vmem:[#allocation2 + $0x2c8] sm:$0xff]
  %v1495 = vld [vmem:[#allocation2 + $0x2e0] sm:$0xff]
  %v1496 = vld [vmem:[#allocation2 + $0x2e8] sm:$0xff]
  %v1497 = vld [vmem:[#allocation2 + $0x300] sm:$0xff]
  %v1498 = vld [vmem:[#allocation2 + $0x308] sm:$0xff]
  %v1499 = vld [vmem:[#allocation2 + $0x320] sm:$0xff]
  %v1500 = vld [vmem:[#allocation2 + $0x328] sm:$0xff]
  %v1501 = vld [vmem:[#allocation2 + $0x340] sm:$0xff]
  %v1502 = vld [vmem:[#allocation2 + $0x348] sm:$0xff]
  %v1503 = vld [vmem:[#allocation2 + $0x360] sm:$0xff]
  %v1504 = vld [vmem:[#allocation2 + $0x368] sm:$0xff]
  %v1505 = vld [vmem:[#allocation2 + $0x380] sm:$0xff]
  %v1506 = vld [vmem:[#allocation2 + $0x388] sm:$0xff]
  %v1507 = vld [vmem:[#allocation2 + $0x3a0] sm:$0xff]
  %v1508 = vld [vmem:[#allocation2 + $0x3a8] sm:$0xff]
  %v1509 = vld [vmem:[#allocation2 + $0x3c0] sm:$0xff]
  %v1510 = vld [vmem:[#allocation2 + $0x3c8] sm:$0xff]
  %v1511 = vld [vmem:[#allocation2 + $0x3e0] sm:$0xff]
  %v1512 = vld [vmem:[#allocation2 + $0x3e8] sm:$0xff]
  %v1513 = vld [vmem:[#allocation2 + $0x400] sm:$0xff]
  %v1514 = vld [vmem:[#allocation2 + $0x408] sm:$0xff]
  %v1515 = vld [vmem:[#allocation2 + $0x420] sm:$0xff]
  %v1516 = vld [vmem:[#allocation2 + $0x428] sm:$0xff]
  %v1517 = vld [vmem:[#allocation2 + $0x440] sm:$0xff]
  %v1518 = vld [vmem:[#allocation2 + $0x448] sm:$0xff]
  %v1519 = vld [vmem:[#allocation2 + $0x460] sm:$0xff]
  %v1520 = vld [vmem:[#allocation2 + $0x468] sm:$0xff]
  %vm1521 = vcmask 261120
  %v1523 = vsel %vm1521, %v1439, 0
  %v1526 = vsel %vm1521, %v1442, 0
  %v1529 = vsel %vm1521, %v1445, 0
  %v1532 = vsel %vm1521, %v1448, 0
  %1534 = vmatprep.subr.mxu0 %v1450
  %1535 = vmatpush1.msra.mxu0 %v1449
  %1536 = vmatprep.subr.mxu0 %v1452
  %1537 = vmatpush1.msra.mxu0 %v1451
  %1538 = vmatprep.subr.mxu0 %v1454
  %1539 = vmatpush1.msra.mxu0 %v1453
  %1540 = vmatprep.subr.mxu0 %v1456
  %1541 = vmatpush1.msra.mxu0 %v1455
  %1542 = vmatprep.subr.mxu0 %v1458
  %1543 = vmatpush1.msra.mxu0 %v1457
  %1544 = vmatprep.subr.mxu0 %v1460
  %1545 = vmatpush1.msra.mxu0 %v1459
  %1546 = vmatprep.subr.mxu0 %v1462
  %1547 = vmatpush1.msra.mxu0 %v1461
  %1548 = vmatprep.subr.mxu0 %v1464
  %1549 = vmatpush1.msra.mxu0 %v1463
  %1550 = vmatprep.subr.mxu0 %v1466
  %1551 = vmatpush1.msra.mxu0 %v1465
  %1552 = vmatprep.subr.mxu0 %v1468
  %1553 = vmatpush1.msra.mxu0 %v1467
  %1554 = vmatprep.subr.mxu0 %v1470
  %1555 = vmatpush1.msra.mxu0 %v1469
  %1556 = vmatprep.subr.mxu0 %v1472
  %1557 = vmatpush1.msra.mxu0 %v1471
  %1558 = vmatprep.subr.mxu0 %v1474
  %1559 = vmatpush1.msra.mxu0 %v1473
  %1560 = vmatprep.subr.mxu0 %v1476
  %1561 = vmatpush1.msra.mxu0 %v1475
  %1562 = vmatprep.subr.mxu0 %v1478
  %1563 = vmatpush1.msra.mxu0 %v1477
  %1564 = vmatprep.subr.mxu0 %v1480
  %1565 = vmatpush1.msra.mxu0 %v1479
  %1566 = vmatprep.subr.mxu0 %v1482
  %1567 = vmatpush1.msra.mxu0 %v1481
  %1568 = vmatprep.subr.mxu0 %v1484
  %1569 = vmatpush1.msra.mxu0 %v1483
  %1570 = vmatprep.subr.mxu0 %v1486
  %1571 = vmatpush1.msra.mxu0 %v1485
  %1572 = vmatprep.subr.mxu0 %v1488
  %1573 = vmatpush1.msra.mxu0 %v1487
  %1574 = vmatprep.subr.mxu0 %v1490
  %1575 = vmatpush1.msra.mxu0 %v1489
  %1576 = vmatprep.subr.mxu0 %v1492
  %1577 = vmatpush1.msra.mxu0 %v1491
  %1578 = vmatprep.subr.mxu0 %v1494
  %1579 = vmatpush1.msra.mxu0 %v1493
  %1580 = vmatprep.subr.mxu0 %v1496
  %1581 = vmatpush1.msra.mxu0 %v1495
  %1582 = vmatprep.subr.mxu0 %v1498
  %1583 = vmatpush1.msra.mxu0 %v1497
  %1584 = vmatprep.subr.mxu0 %v1500
  %1585 = vmatpush1.msra.mxu0 %v1499
  %1586 = vmatprep.subr.mxu0 %v1502
  %1587 = vmatpush1.msra.mxu0 %v1501
  %1588 = vmatprep.subr.mxu0 %v1504
  %1589 = vmatpush1.msra.mxu0 %v1503
  %1590 = vmatprep.subr.mxu0 %v1506
  %1591 = vmatpush1.msra.mxu0 %v1505
  %1592 = vmatprep.subr.mxu0 %v1508
  %1593 = vmatpush1.msra.mxu0 %v1507
  %1594 = vmatprep.subr.mxu0 %v1510
  %1595 = vmatpush1.msra.mxu0 %v1509
  %1596 = vmatprep.subr.mxu0 %v1512
  %1597 = vmatpush1.msra.mxu0 %v1511
  %1598 = vmatprep.mubr.f32.mxu0 %v1438
  %1599 = vmatmul.mubr.f32.gmra.mrb[0].mxu0 %v1437
  %v1600 = vpop.f32.mrb[0].mxu0
  %v1601 = vadd.f32 0.0, %v1600
  %v1602 = vpop.f32.mrb[0].mxu0
  %v1603 = vadd.f32 0.0, %v1602
  %1604 = vmatprep.mubr.f32.mxu0 %v1441
  %1605 = vmatmul.mubr.f32.gmra.mrb[0].mxu0 %v1440
  %v1606 = vpop.f32.mrb[0].mxu0
  %v1607 = vadd.f32 0.0, %v1606
  %v1608 = vpop.f32.mrb[0].mxu0
  %v1609 = vadd.f32 0.0, %v1608
  %1610 = vmatprep.mubr.f32.mxu0 %v1444
  %1611 = vmatmul.mubr.f32.gmra.mrb[0].mxu0 %v1443
  %v1612 = vpop.f32.mrb[0].mxu0
  %v1613 = vadd.f32 0.0, %v1612
  %v1614 = vpop.f32.mrb[0].mxu0
  %v1615 = vadd.f32 0.0, %v1614
  %1616 = vmatprep.mubr.f32.mxu0 %v1447
  %1617 = vmatmul.mubr.f32.gmra.mrb[0].mxu0 %v1446
  %v1618 = vpop.f32.mrb[0].mxu0
  %v1619 = vadd.f32 0.0, %v1618
  %v1620 = vpop.f32.mrb[0].mxu0
  %v1621 = vadd.f32 0.0, %v1620
  %1622 = vdwg.mxu0
  %1623 = vmatprep.subr.mxu0 %v1514
  %1624 = vmatpush1.msra.mxu0 %v1513
  %1625 = vmatprep.subr.mxu0 %v1516
  %1626 = vmatpush1.msra.mxu0 %v1515
  %1627 = vmatprep.subr.mxu0 %v1518
  %1628 = vmatpush1.msra.mxu0 %v1517
  %1629 = vmatprep.subr.mxu0 %v1520
  %1630 = vmatpush1.msra.mxu0 %v1519
  %1631 = vmatprep.subr.mxu0 0.0
  %1632 = vmatpush1.msra.mxu0 0.0
  %1633 = vmatprep.subr.mxu0 0.0
  %1634 = vmatpush1.msra.mxu0 0.0
  %1635 = vmatprep.subr.mxu0 0.0
  %1636 = vmatpush1.msra.mxu0 0.0
  %1637 = vmatprep.subr.mxu0 0.0
  %1638 = vmatpush1.msra.mxu0 0.0
  %1639 = vmatprep.subr.mxu0 0.0
  %1640 = vmatpush1.msra.mxu0 0.0
  %1641 = vmatprep.subr.mxu0 0.0
  %1642 = vmatpush1.msra.mxu0 0.0
  %1643 = vmatprep.subr.mxu0 0.0
  %1644 = vmatpush1.msra.mxu0 0.0
  %1645 = vmatprep.subr.mxu0 0.0
  %1646 = vmatpush1.msra.mxu0 0.0
  %1647 = vmatprep.subr.mxu0 0.0
  %1648 = vmatpush1.msra.mxu0 0.0
  %1649 = vmatprep.subr.mxu0 0.0
  %1650 = vmatpush1.msra.mxu0 0.0
  %1651 = vmatprep.subr.mxu0 0.0
  %1652 = vmatpush1.msra.mxu0 0.0
  %1653 = vmatprep.subr.mxu0 0.0
  %1654 = vmatpush1.msra.mxu0 0.0
  %1655 = vmatprep.subr.mxu0 0.0
  %1656 = vmatpush1.msra.mxu0 0.0
  %1657 = vmatprep.subr.mxu0 0.0
  %1658 = vmatpush1.msra.mxu0 0.0
  %1659 = vmatprep.subr.mxu0 0.0
  %1660 = vmatpush1.msra.mxu0 0.0
  %1661 = vmatprep.subr.mxu0 0.0
  %1662 = vmatpush1.msra.mxu0 0.0
  %1663 = vmatprep.subr.mxu0 0.0
  %1664 = vmatpush1.msra.mxu0 0.0
  %1665 = vmatprep.subr.mxu0 0.0
  %1666 = vmatpush1.msra.mxu0 0.0
  %1667 = vmatprep.subr.mxu0 0.0
  %1668 = vmatpush1.msra.mxu0 0.0
  %1669 = vmatprep.subr.mxu0 0.0
  %1670 = vmatpush1.msra.mxu0 0.0
  %1671 = vmatprep.subr.mxu0 0.0
  %1672 = vmatpush1.msra.mxu0 0.0
  %1673 = vmatprep.subr.mxu0 0.0
  %1674 = vmatpush1.msra.mxu0 0.0
  %1675 = vmatprep.subr.mxu0 0.0
  %1676 = vmatpush1.msra.mxu0 0.0
  %1677 = vmatprep.subr.mxu0 0.0
  %1678 = vmatpush1.msra.mxu0 0.0
  %1679 = vmatprep.subr.mxu0 0.0
  %1680 = vmatpush1.msra.mxu0 0.0
  %1681 = vmatprep.subr.mxu0 0.0
  %1682 = vmatpush1.msra.mxu0 0.0
  %1683 = vmatprep.subr.mxu0 0.0
  %1684 = vmatpush1.msra.mxu0 0.0
  %1685 = vmatprep.subr.mxu0 0.0
  %1686 = vmatpush1.msra.mxu0 0.0
  %1687 = vmatprep.mubr.f32.mxu0 0.0
  %1688 = vmatmul.mubr.f32.gmra.mrb[0].mxu0 %v1523
  %v1689 = vpop.f32.mrb[0].mxu0
  %v1690 = vadd.f32 %v1601, %v1689
  %v1691 = vpop.f32.mrb[0].mxu0
  %v1692 = vadd.f32 %v1603, %v1691
  %1693 = vmatprep.mubr.f32.mxu0 0.0
  %1694 = vmatmul.mubr.f32.gmra.mrb[0].mxu0 %v1526
  %v1695 = vpop.f32.mrb[0].mxu0
  %v1696 = vadd.f32 %v1607, %v1695
  %v1697 = vpop.f32.mrb[0].mxu0
  %v1698 = vadd.f32 %v1609, %v1697
  %1699 = vmatprep.mubr.f32.mxu0 0.0
  %1700 = vmatmul.mubr.f32.gmra.mrb[0].mxu0 %v1529
  %v1701 = vpop.f32.mrb[0].mxu0
  %v1702 = vadd.f32 %v1613, %v1701
  %v1703 = vpop.f32.mrb[0].mxu0
  %v1704 = vadd.f32 %v1615, %v1703
  %1705 = vmatprep.mubr.f32.mxu0 0.0
  %1706 = vmatmul.mubr.f32.gmra.mrb[0].mxu0 %v1532
  %v1707 = vpop.f32.mrb[0].mxu0
  %v1708 = vadd.f32 %v1619, %v1707
  %v1709 = vpop.f32.mrb[0].mxu0
  %v1710 = vadd.f32 %v1621, %v1709
  %1711 = vdwg.mxu0
  %s1712 = scalar_lea.vmem %s3, 96
  %v1713 = vld [vmem:[%s1712] sm:$0xff]
  %v1714 = vld [vmem:[%s1712 + $0x8] sm:$0xff]
  %v1715 = vld [vmem:[%s1712 + $0x10] sm:$0xff]
  %v1716 = vld [vmem:[%s1712 + $0x18] sm:$0xff]
  %v1717 = vld [vmem:[%s1712 + $0x20] sm:$0xff]
  %v1718 = vld [vmem:[%s1712 + $0x28] sm:$0xff]
  %v1719 = vld [vmem:[%s1712 + $0x30] sm:$0xff]
  %v1720 = vld [vmem:[%s1712 + $0x38] sm:$0xff]
  %v1721 = vld [vmem:[%s1712 + $0x40] sm:$0xff]
  %v1722 = vld [vmem:[%s1712 + $0x48] sm:$0x3f]
  %v1723 = vld [vmem:[%s1712 + $0x50] sm:$0x3f]
  %v1724 = vld [vmem:[%s1712 + $0x58] sm:$0x3f]
  %v1725 = vld [vmem:[#allocation2 + $0x10] sm:$0xff]
  %v1726 = vld [vmem:[#allocation2 + $0x18] sm:$0xff]
  %v1727 = vld [vmem:[#allocation2 + $0x30] sm:$0xff]
  %v1728 = vld [vmem:[#allocation2 + $0x38] sm:$0xff]
  %v1729 = vld [vmem:[#allocation2 + $0x50] sm:$0xff]
  %v1730 = vld [vmem:[#allocation2 + $0x58] sm:$0xff]
  %v1731 = vld [vmem:[#allocation2 + $0x70] sm:$0xff]
  %v1732 = vld [vmem:[#allocation2 + $0x78] sm:$0xff]
  %v1733 = vld [vmem:[#allocation2 + $0x90] sm:$0xff]
  %v1734 = vld [vmem:[#allocation2 + $0x98] sm:$0xff]
  %v1735 = vld [vmem:[#allocation2 + $0xb0] sm:$0xff]
  %v1736 = vld [vmem:[#allocation2 + $0xb8] sm:$0xff]
  %v1737 = vld [vmem:[#allocation2 + $0xd0] sm:$0xff]
  %v1738 = vld [vmem:[#allocation2 + $0xd8] sm:$0xff]
  %v1739 = vld [vmem:[#allocation2 + $0xf0] sm:$0xff]
  %v1740 = vld [vmem:[#allocation2 + $0xf8] sm:$0xff]
  %v1741 = vld [vmem:[#allocation2 + $0x110] sm:$0xff]
  %v1742 = vld [vmem:[#allocation2 + $0x118] sm:$0xff]
  %v1743 = vld [vmem:[#allocation2 + $0x130] sm:$0xff]
  %v1744 = vld [vmem:[#allocation2 + $0x138] sm:$0xff]
  %v1745 = vld [vmem:[#allocation2 + $0x150] sm:$0xff]
  %v1746 = vld [vmem:[#allocation2 + $0x158] sm:$0xff]
  %v1747 = vld [vmem:[#allocation2 + $0x170] sm:$0xff]
  %v1748 = vld [vmem:[#allocation2 + $0x178] sm:$0xff]
  %v1749 = vld [vmem:[#allocation2 + $0x190] sm:$0xff]
  %v1750 = vld [vmem:[#allocation2 + $0x198] sm:$0xff]
  %v1751 = vld [vmem:[#allocation2 + $0x1b0] sm:$0xff]
  %v1752 = vld [vmem:[#allocation2 + $0x1b8] sm:$0xff]
  %v1753 = vld [vmem:[#allocation2 + $0x1d0] sm:$0xff]
  %v1754 = vld [vmem:[#allocation2 + $0x1d8] sm:$0xff]
  %v1755 = vld [vmem:[#allocation2 + $0x1f0] sm:$0xff]
  %v1756 = vld [vmem:[#allocation2 + $0x1f8] sm:$0xff]
  %v1757 = vld [vmem:[#allocation2 + $0x210] sm:$0xff]
  %v1758 = vld [vmem:[#allocation2 + $0x218] sm:$0xff]
  %v1759 = vld [vmem:[#allocation2 + $0x230] sm:$0xff]
  %v1760 = vld [vmem:[#allocation2 + $0x238] sm:$0xff]
  %v1761 = vld [vmem:[#allocation2 + $0x250] sm:$0xff]
  %v1762 = vld [vmem:[#allocation2 + $0x258] sm:$0xff]
  %v1763 = vld [vmem:[#allocation2 + $0x270] sm:$0xff]
  %v1764 = vld [vmem:[#allocation2 + $0x278] sm:$0xff]
  %v1765 = vld [vmem:[#allocation2 + $0x290] sm:$0xff]
  %v1766 = vld [vmem:[#allocation2 + $0x298] sm:$0xff]
  %v1767 = vld [vmem:[#allocation2 + $0x2b0] sm:$0xff]
  %v1768 = vld [vmem:[#allocation2 + $0x2b8] sm:$0xff]
  %v1769 = vld [vmem:[#allocation2 + $0x2d0] sm:$0xff]
  %v1770 = vld [vmem:[#allocation2 + $0x2d8] sm:$0xff]
  %v1771 = vld [vmem:[#allocation2 + $0x2f0] sm:$0xff]
  %v1772 = vld [vmem:[#allocation2 + $0x2f8] sm:$0xff]
  %v1773 = vld [vmem:[#allocation2 + $0x310] sm:$0xff]
  %v1774 = vld [vmem:[#allocation2 + $0x318] sm:$0xff]
  %v1775 = vld [vmem:[#allocation2 + $0x330] sm:$0xff]
  %v1776 = vld [vmem:[#allocation2 + $0x338] sm:$0xff]
  %v1777 = vld [vmem:[#allocation2 + $0x350] sm:$0xff]
  %v1778 = vld [vmem:[#allocation2 + $0x358] sm:$0xff]
  %v1779 = vld [vmem:[#allocation2 + $0x370] sm:$0xff]
  %v1780 = vld [vmem:[#allocation2 + $0x378] sm:$0xff]
  %v1781 = vld [vmem:[#allocation2 + $0x390] sm:$0xff]
  %v1782 = vld [vmem:[#allocation2 + $0x398] sm:$0xff]
  %v1783 = vld [vmem:[#allocation2 + $0x3b0] sm:$0xff]
  %v1784 = vld [vmem:[#allocation2 + $0x3b8] sm:$0xff]
  %v1785 = vld [vmem:[#allocation2 + $0x3d0] sm:$0xff]
  %v1786 = vld [vmem:[#allocation2 + $0x3d8] sm:$0xff]
  %v1787 = vld [vmem:[#allocation2 + $0x3f0] sm:$0xff]
  %v1788 = vld [vmem:[#allocation2 + $0x3f8] sm:$0xff]
  %v1789 = vld [vmem:[#allocation2 + $0x410] sm:$0xff]
  %v1790 = vld [vmem:[#allocation2 + $0x418] sm:$0xff]
  %v1791 = vld [vmem:[#allocation2 + $0x430] sm:$0xff]
  %v1792 = vld [vmem:[#allocation2 + $0x438] sm:$0xff]
  %v1793 = vld [vmem:[#allocation2 + $0x450] sm:$0xff]
  %v1794 = vld [vmem:[#allocation2 + $0x458] sm:$0xff]
  %v1795 = vld [vmem:[#allocation2 + $0x470] sm:$0xff]
  %v1796 = vld [vmem:[#allocation2 + $0x478] sm:$0xff]
  %v1798 = vsel %vm1521, %v1715, 0
  %v1801 = vsel %vm1521, %v1718, 0
  %v1804 = vsel %vm1521, %v1721, 0
  %v1807 = vsel %vm1521, %v1724, 0
  %1809 = vmatprep.subr.mxu0 %v1726
  %1810 = vmatpush1.msra.mxu0 %v1725
  %1811 = vmatprep.subr.mxu0 %v1728
  %1812 = vmatpush1.msra.mxu0 %v1727
  %1813 = vmatprep.subr.mxu0 %v1730
  %1814 = vmatpush1.msra.mxu0 %v1729
  %1815 = vmatprep.subr.mxu0 %v1732
  %1816 = vmatpush1.msra.mxu0 %v1731
  %1817 = vmatprep.subr.mxu0 %v1734
  %1818 = vmatpush1.msra.mxu0 %v1733
  %1819 = vmatprep.subr.mxu0 %v1736
  %1820 = vmatpush1.msra.mxu0 %v1735
  %1821 = vmatprep.subr.mxu0 %v1738
  %1822 = vmatpush1.msra.mxu0 %v1737
  %1823 = vmatprep.subr.mxu0 %v1740
  %1824 = vmatpush1.msra.mxu0 %v1739
  %1825 = vmatprep.subr.mxu0 %v1742
  %1826 = vmatpush1.msra.mxu0 %v1741
  %1827 = vmatprep.subr.mxu0 %v1744
  %1828 = vmatpush1.msra.mxu0 %v1743
  %1829 = vmatprep.subr.mxu0 %v1746
  %1830 = vmatpush1.msra.mxu0 %v1745
  %1831 = vmatprep.subr.mxu0 %v1748
  %1832 = vmatpush1.msra.mxu0 %v1747
  %1833 = vmatprep.subr.mxu0 %v1750
  %1834 = vmatpush1.msra.mxu0 %v1749
  %1835 = vmatprep.subr.mxu0 %v1752
  %1836 = vmatpush1.msra.mxu0 %v1751
  %1837 = vmatprep.subr.mxu0 %v1754
  %1838 = vmatpush1.msra.mxu0 %v1753
  %1839 = vmatprep.subr.mxu0 %v1756
  %1840 = vmatpush1.msra.mxu0 %v1755
  %1841 = vmatprep.subr.mxu0 %v1758
  %1842 = vmatpush1.msra.mxu0 %v1757
  %1843 = vmatprep.subr.mxu0 %v1760
  %1844 = vmatpush1.msra.mxu0 %v1759
  %1845 = vmatprep.subr.mxu0 %v1762
  %1846 = vmatpush1.msra.mxu0 %v1761
  %1847 = vmatprep.subr.mxu0 %v1764
  %1848 = vmatpush1.msra.mxu0 %v1763
  %1849 = vmatprep.subr.mxu0 %v1766
  %1850 = vmatpush1.msra.mxu0 %v1765
  %1851 = vmatprep.subr.mxu0 %v1768
  %1852 = vmatpush1.msra.mxu0 %v1767
  %1853 = vmatprep.subr.mxu0 %v1770
  %1854 = vmatpush1.msra.mxu0 %v1769
  %1855 = vmatprep.subr.mxu0 %v1772
  %1856 = vmatpush1.msra.mxu0 %v1771
  %1857 = vmatprep.subr.mxu0 %v1774
  %1858 = vmatpush1.msra.mxu0 %v1773
  %1859 = vmatprep.subr.mxu0 %v1776
  %1860 = vmatpush1.msra.mxu0 %v1775
  %1861 = vmatprep.subr.mxu0 %v1778
  %1862 = vmatpush1.msra.mxu0 %v1777
  %1863 = vmatprep.subr.mxu0 %v1780
  %1864 = vmatpush1.msra.mxu0 %v1779
  %1865 = vmatprep.subr.mxu0 %v1782
  %1866 = vmatpush1.msra.mxu0 %v1781
  %1867 = vmatprep.subr.mxu0 %v1784
  %1868 = vmatpush1.msra.mxu0 %v1783
  %1869 = vmatprep.subr.mxu0 %v1786
  %1870 = vmatpush1.msra.mxu0 %v1785
  %1871 = vmatprep.subr.mxu0 %v1788
  %1872 = vmatpush1.msra.mxu0 %v1787
  %1873 = vmatprep.mubr.f32.mxu0 %v1714
  %1874 = vmatmul.mubr.f32.gmra.mrb[0].mxu0 %v1713
  %v1875 = vpop.f32.mrb[0].mxu0
  %v1876 = vadd.f32 0.0, %v1875
  %v1877 = vpop.f32.mrb[0].mxu0
  %v1878 = vadd.f32 0.0, %v1877
  %1879 = vmatprep.mubr.f32.mxu0 %v1717
  %1880 = vmatmul.mubr.f32.gmra.mrb[0].mxu0 %v1716
  %v1881 = vpop.f32.mrb[0].mxu0
  %v1882 = vadd.f32 0.0, %v1881
  %v1883 = vpop.f32.mrb[0].mxu0
  %v1884 = vadd.f32 0.0, %v1883
  %1885 = vmatprep.mubr.f32.mxu0 %v1720
  %1886 = vmatmul.mubr.f32.gmra.mrb[0].mxu0 %v1719
  %v1887 = vpop.f32.mrb[0].mxu0
  %v1888 = vadd.f32 0.0, %v1887
  %v1889 = vpop.f32.mrb[0].mxu0
  %v1890 = vadd.f32 0.0, %v1889
  %1891 = vmatprep.mubr.f32.mxu0 %v1723
  %1892 = vmatmul.mubr.f32.gmra.mrb[0].mxu0 %v1722
  %v1893 = vpop.f32.mrb[0].mxu0
  %v1894 = vadd.f32 0.0, %v1893
  %v1895 = vpop.f32.mrb[0].mxu0
  %v1896 = vadd.f32 0.0, %v1895
  %1897 = vdwg.mxu0
  %1898 = vmatprep.subr.mxu0 %v1790
  %1899 = vmatpush1.msra.mxu0 %v1789
  %1900 = vmatprep.subr.mxu0 %v1792
  %1901 = vmatpush1.msra.mxu0 %v1791
  %1902 = vmatprep.subr.mxu0 %v1794
  %1903 = vmatpush1.msra.mxu0 %v1793
  %1904 = vmatprep.subr.mxu0 %v1796
  %1905 = vmatpush1.msra.mxu0 %v1795
  %1906 = vmatprep.subr.mxu0 0.0
  %1907 = vmatpush1.msra.mxu0 0.0
  %1908 = vmatprep.subr.mxu0 0.0
  %1909 = vmatpush1.msra.mxu0 0.0
  %1910 = vmatprep.subr.mxu0 0.0
  %1911 = vmatpush1.msra.mxu0 0.0
  %1912 = vmatprep.subr.mxu0 0.0
  %1913 = vmatpush1.msra.mxu0 0.0
  %1914 = vmatprep.subr.mxu0 0.0
  %1915 = vmatpush1.msra.mxu0 0.0
  %1916 = vmatprep.subr.mxu0 0.0
  %1917 = vmatpush1.msra.mxu0 0.0
  %1918 = vmatprep.subr.mxu0 0.0
  %1919 = vmatpush1.msra.mxu0 0.0
  %1920 = vmatprep.subr.mxu0 0.0
  %1921 = vmatpush1.msra.mxu0 0.0
  %1922 = vmatprep.subr.mxu0 0.0
  %1923 = vmatpush1.msra.mxu0 0.0
  %1924 = vmatprep.subr.mxu0 0.0
  %1925 = vmatpush1.msra.mxu0 0.0
  %1926 = vmatprep.subr.mxu0 0.0
  %1927 = vmatpush1.msra.mxu0 0.0
  %1928 = vmatprep.subr.mxu0 0.0
  %1929 = vmatpush1.msra.mxu0 0.0
  %1930 = vmatprep.subr.mxu0 0.0
  %1931 = vmatpush1.msra.mxu0 0.0
  %1932 = vmatprep.subr.mxu0 0.0
  %1933 = vmatpush1.msra.mxu0 0.0
  %1934 = vmatprep.subr.mxu0 0.0
  %1935 = vmatpush1.msra.mxu0 0.0
  %1936 = vmatprep.subr.mxu0 0.0
  %1937 = vmatpush1.msra.mxu0 0.0
  %1938 = vmatprep.subr.mxu0 0.0
  %1939 = vmatpush1.msra.mxu0 0.0
  %1940 = vmatprep.subr.mxu0 0.0
  %1941 = vmatpush1.msra.mxu0 0.0
  %1942 = vmatprep.subr.mxu0 0.0
  %1943 = vmatpush1.msra.mxu0 0.0
  %1944 = vmatprep.subr.mxu0 0.0
  %1945 = vmatpush1.msra.mxu0 0.0
  %1946 = vmatprep.subr.mxu0 0.0
  %1947 = vmatpush1.msra.mxu0 0.0
  %1948 = vmatprep.subr.mxu0 0.0
  %1949 = vmatpush1.msra.mxu0 0.0
  %1950 = vmatprep.subr.mxu0 0.0
  %1951 = vmatpush1.msra.mxu0 0.0
  %1952 = vmatprep.subr.mxu0 0.0
  %1953 = vmatpush1.msra.mxu0 0.0
  %1954 = vmatprep.subr.mxu0 0.0
  %1955 = vmatpush1.msra.mxu0 0.0
  %1956 = vmatprep.subr.mxu0 0.0
  %1957 = vmatpush1.msra.mxu0 0.0
  %1958 = vmatprep.subr.mxu0 0.0
  %1959 = vmatpush1.msra.mxu0 0.0
  %1960 = vmatprep.subr.mxu0 0.0
  %1961 = vmatpush1.msra.mxu0 0.0
  %1962 = vmatprep.mubr.f32.mxu0 0.0
  %1963 = vmatmul.mubr.f32.gmra.mrb[0].mxu0 %v1798
  %v1964 = vpop.f32.mrb[0].mxu0
  %v1965 = vadd.f32 %v1876, %v1964
  %v1966 = vpop.f32.mrb[0].mxu0
  %v1967 = vadd.f32 %v1878, %v1966
  %1968 = vmatprep.mubr.f32.mxu0 0.0
  %1969 = vmatmul.mubr.f32.gmra.mrb[0].mxu0 %v1801
  %v1970 = vpop.f32.mrb[0].mxu0
  %v1971 = vadd.f32 %v1882, %v1970
  %v1972 = vpop.f32.mrb[0].mxu0
  %v1973 = vadd.f32 %v1884, %v1972
  %1974 = vmatprep.mubr.f32.mxu0 0.0
  %1975 = vmatmul.mubr.f32.gmra.mrb[0].mxu0 %v1804
  %v1976 = vpop.f32.mrb[0].mxu0
  %v1977 = vadd.f32 %v1888, %v1976
  %v1978 = vpop.f32.mrb[0].mxu0
  %v1979 = vadd.f32 %v1890, %v1978
  %1980 = vmatprep.mubr.f32.mxu0 0.0
  %1981 = vmatmul.mubr.f32.gmra.mrb[0].mxu0 %v1807
  %v1982 = vpop.f32.mrb[0].mxu0
  %v1983 = vadd.f32 %v1894, %v1982
  %v1984 = vpop.f32.mrb[0].mxu0
  %v1985 = vadd.f32 %v1896, %v1984
  %1986 = vdwg.mxu0
  %1988 = vset.pattern.permute.xlu0 0
  %1989 = vperm.xlu0 %1988, %v410
  %v1990 = vpop.permute.xlu0 %1989
  %1993 = vset.pattern.permute.xlu0 0
  %1994 = vperm.xlu0 %1993, %v411
  %v1995 = vpop.permute.xlu0 %1994
  %1998 = vset.pattern.permute.xlu0 0
  %1999 = vperm.xlu0 %1998, %v412
  %v2000 = vpop.permute.xlu0 %1999
  %2003 = vset.pattern.permute.xlu0 0
  %2004 = vperm.xlu0 %2003, %v413
  %v2005 = vpop.permute.xlu0 %2004
  %v2007 = vadd.f32 %v1690, %v1990
  %v2008 = vadd.f32 %v1692, %v1990
  %v2009 = vadd.f32 %v1965, %v1990
  %v2010 = vadd.f32 %v1967, %v1990
  %v2011 = vadd.f32 %v1696, %v1995
  %v2012 = vadd.f32 %v1698, %v1995
  %v2013 = vadd.f32 %v1971, %v1995
  %v2014 = vadd.f32 %v1973, %v1995
  %v2015 = vadd.f32 %v1702, %v2000
  %v2016 = vadd.f32 %v1704, %v2000
  %v2017 = vadd.f32 %v1977, %v2000
  %v2018 = vadd.f32 %v1979, %v2000
  %v2019 = vadd.f32 %v1708, %v2005
  %v2020 = vadd.f32 %v1710, %v2005
  %v2021 = vadd.f32 %v1983, %v2005
  %v2022 = vadd.f32 %v1985, %v2005
  %v2023 = vadd.f32 %v2007, %v2008
  %v2024 = vadd.f32 %v2023, %v2009
  %v2025 = vadd.f32 %v2024, %v2010
  %2026 = vadd.xlane.f32.xlu0 %v2025
  %v2027 = vpop.xlane.xlu0 %2026
  %v2028 = vadd.f32 %v2011, %v2012
  %v2029 = vadd.f32 %v2028, %v2013
  %v2030 = vadd.f32 %v2029, %v2014
  %2031 = vadd.xlane.f32.xlu0 %v2030
  %v2032 = vpop.xlane.xlu0 %2031
  %v2033 = vadd.f32 %v2015, %v2016
  %v2034 = vadd.f32 %v2033, %v2017
  %v2035 = vadd.f32 %v2034, %v2018
  %2036 = vadd.xlane.f32.xlu0 %v2035
  %v2037 = vpop.xlane.xlu0 %2036
  %vm2038 = vcmask 1045504
  %v2039 = vsel %vm2038, %v2019, 0.0
  %v2040 = vsel %vm2038, %v2020, 0.0
  %v2041 = vadd.f32 %v2039, %v2040
  %v2042 = vsel %vm2038, %v2021, 0.0
  %v2043 = vadd.f32 %v2041, %v2042
  %v2044 = vsel %vm2038, %v2022, 0.0
  %v2045 = vadd.f32 %v2043, %v2044
  %2046 = vadd.xlane.f32.xlu0 %v2045
  %v2047 = vpop.xlane.xlu0 %2046
  %v2048 = vrcp.pop 512.0
  %v2049 = vmul.f32 %v2027, %v2048
  %v2050 = vmul.f32 %v2032, %v2048
  %v2051 = vmul.f32 %v2037, %v2048
  %v2052 = vmul.f32 %v2047, %v2048
  %v2053 = vsub.f32 %v2007, %v2049
  %v2054 = vsub.f32 %v2008, %v2049
  %v2055 = vsub.f32 %v2009, %v2049
  %v2056 = vsub.f32 %v2010, %v2049
  %v2057 = vsub.f32 %v2011, %v2050
  %v2058 = vsub.f32 %v2012, %v2050
  %v2059 = vsub.f32 %v2013, %v2050
  %v2060 = vsub.f32 %v2014, %v2050
  %v2061 = vsub.f32 %v2015, %v2051
  %v2062 = vsub.f32 %v2016, %v2051
  %v2063 = vsub.f32 %v2017, %v2051
  %v2064 = vsub.f32 %v2018, %v2051
  %v2065 = vsub.f32 %v2019, %v2052
  %v2066 = vsub.f32 %v2020, %v2052
  %v2067 = vsub.f32 %v2021, %v2052
  %v2068 = vsub.f32 %v2022, %v2052
  %v2069 = vmul.f32 %v2053, %v2053
  %v2070 = vmul.f32 %v2054, %v2054
  %v2071 = vmul.f32 %v2055, %v2055
  %v2072 = vmul.f32 %v2056, %v2056
  %v2073 = vmul.f32 %v2057, %v2057
  %v2074 = vmul.f32 %v2058, %v2058
  %v2075 = vmul.f32 %v2059, %v2059
  %v2076 = vmul.f32 %v2060, %v2060
  %v2077 = vmul.f32 %v2061, %v2061
  %v2078 = vmul.f32 %v2062, %v2062
  %v2079 = vmul.f32 %v2063, %v2063
  %v2080 = vmul.f32 %v2064, %v2064
  %v2081 = vmul.f32 %v2065, %v2065
  %v2082 = vmul.f32 %v2066, %v2066
  %v2083 = vmul.f32 %v2067, %v2067
  %v2084 = vmul.f32 %v2068, %v2068
  %v2085 = vadd.f32 %v2069, %v2070
  %v2086 = vadd.f32 %v2085, %v2071
  %v2087 = vadd.f32 %v2086, %v2072
  %2088 = vadd.xlane.f32.xlu0 %v2087
  %v2089 = vpop.xlane.xlu0 %2088
  %v2090 = vadd.f32 %v2073, %v2074
  %v2091 = vadd.f32 %v2090, %v2075
  %v2092 = vadd.f32 %v2091, %v2076
  %2093 = vadd.xlane.f32.xlu0 %v2092
  %v2094 = vpop.xlane.xlu0 %2093
  %v2095 = vadd.f32 %v2077, %v2078
  %v2096 = vadd.f32 %v2095, %v2079
  %v2097 = vadd.f32 %v2096, %v2080
  %2098 = vadd.xlane.f32.xlu0 %v2097
  %v2099 = vpop.xlane.xlu0 %2098
  %v2100 = vsel %vm2038, %v2081, 0.0
  %v2101 = vsel %vm2038, %v2082, 0.0
  %v2102 = vadd.f32 %v2100, %v2101
  %v2103 = vsel %vm2038, %v2083, 0.0
  %v2104 = vadd.f32 %v2102, %v2103
  %v2105 = vsel %vm2038, %v2084, 0.0
  %v2106 = vadd.f32 %v2104, %v2105
  %2107 = vadd.xlane.f32.xlu0 %v2106
  %v2108 = vpop.xlane.xlu0 %2107
  %v2109 = vmul.f32 %v2089, %v2048
  %v2110 = vmul.f32 %v2094, %v2048
  %v2111 = vmul.f32 %v2099, %v2048
  %v2112 = vmul.f32 %v2108, %v2048
  %v2113 = vadd.f32 %v2109, 1e-05
  %v2114 = vadd.f32 %v2110, 1e-05
  %v2115 = vadd.f32 %v2111, 1e-05
  %v2116 = vadd.f32 %v2112, 1e-05
  %v2117 = vrsqrt.pop %v2113
  %v2118 = vrsqrt.pop %v2114
  %v2119 = vrsqrt.pop %v2115
  %v2120 = vrsqrt.pop %v2116
  %v2121 = vmul.f32 %v410, %v2117
  %v2122 = vmul.f32 %v411, %v2118
  %v2123 = vmul.f32 %v412, %v2119
  %v2124 = vmul.f32 %v413, %v2120
  %2126 = vset.pattern.permute.xlu0 1
  %2127 = vperm.xlu0 %2126, %v2121
  %v2128 = vpop.permute.xlu0 %2127
  %2131 = vset.pattern.permute.xlu0 1
  %2132 = vperm.xlu0 %2131, %v2122
  %v2133 = vpop.permute.xlu0 %2132
  %2136 = vset.pattern.permute.xlu0 1
  %2137 = vperm.xlu0 %2136, %v2123
  %v2138 = vpop.permute.xlu0 %2137
  %2141 = vset.pattern.permute.xlu0 1
  %2142 = vperm.xlu0 %2141, %v2124
  %v2143 = vpop.permute.xlu0 %2142
  %v2145 = vmul.f32 %v2053, %v2128
  %v2146 = vmul.f32 %v2054, %v2128
  %v2147 = vmul.f32 %v2055, %v2128
  %v2148 = vmul.f32 %v2056, %v2128
  %v2149 = vmul.f32 %v2057, %v2133
  %v2150 = vmul.f32 %v2058, %v2133
  %v2151 = vmul.f32 %v2059, %v2133
  %v2152 = vmul.f32 %v2060, %v2133
  %v2153 = vmul.f32 %v2061, %v2138
  %v2154 = vmul.f32 %v2062, %v2138
  %v2155 = vmul.f32 %v2063, %v2138
  %v2156 = vmul.f32 %v2064, %v2138
  %v2157 = vmul.f32 %v2065, %v2143
  %v2158 = vmul.f32 %v2066, %v2143
  %v2159 = vmul.f32 %v2067, %v2143
  %v2160 = vmul.f32 %v2068, %v2143
  %2161 = vset.pattern.permute.xlu0 2
  %2162 = vperm.xlu0 %2161, %v410
  %v2163 = vpop.permute.xlu0 %2162
  %2165 = vset.pattern.permute.xlu0 2
  %2166 = vperm.xlu0 %2165, %v411
  %v2167 = vpop.permute.xlu0 %2166
  %2169 = vset.pattern.permute.xlu0 2
  %2170 = vperm.xlu0 %2169, %v412
  %v2171 = vpop.permute.xlu0 %2170
  %2173 = vset.pattern.permute.xlu0 2
  %2174 = vperm.xlu0 %2173, %v413
  %v2175 = vpop.permute.xlu0 %2174
  %v2177 = vadd.f32 %v2145, %v2163
  %v2178 = vadd.f32 %v2146, %v2163
  %v2179 = vadd.f32 %v2147, %v2163
  %v2180 = vadd.f32 %v2148, %v2163
  %v2181 = vadd.f32 %v2149, %v2167
  %v2182 = vadd.f32 %v2150, %v2167
  %v2183 = vadd.f32 %v2151, %v2167
  %v2184 = vadd.f32 %v2152, %v2167
  %v2185 = vadd.f32 %v2153, %v2171
  %v2186 = vadd.f32 %v2154, %v2171
  %v2187 = vadd.f32 %v2155, %v2171
  %v2188 = vadd.f32 %v2156, %v2171
  %v2189 = vadd.f32 %v2157, %v2175
  %v2190 = vadd.f32 %v2158, %v2175
  %v2191 = vadd.f32 %v2159, %v2175
  %v2192 = vadd.f32 %v2160, %v2175
  %v2193 = vmax.f32 %v2177, 0.0
  %v2194 = vmax.f32 %v2178, 0.0
  %v2195 = vmax.f32 %v2179, 0.0
  %v2196 = vmax.f32 %v2180, 0.0
  %v2197 = vmax.f32 %v2181, 0.0
  %v2198 = vmax.f32 %v2182, 0.0
  %v2199 = vmax.f32 %v2183, 0.0
  %v2200 = vmax.f32 %v2184, 0.0
  %v2201 = vmax.f32 %v2185, 0.0
  %v2202 = vmax.f32 %v2186, 0.0
  %v2203 = vmax.f32 %v2187, 0.0
  %v2204 = vmax.f32 %v2188, 0.0
  %v2205 = vmax.f32 %v2189, 0.0
  %v2206 = vmax.f32 %v2190, 0.0
  %v2207 = vmax.f32 %v2191, 0.0
  %v2208 = vmax.f32 %v2192, 0.0
  %2213 = vrot.lane.b32.xlu0 %v2196, 17
  %v2214 = vpop.permute.xlu0 %2213
  %2215 = vrot.lane.b32.xlu0 %v2200, 17
  %v2216 = vpop.permute.xlu0 %2215
  %2217 = vrot.lane.b32.xlu0 %v2204, 17
  %v2218 = vpop.permute.xlu0 %2217
  %2219 = vrot.lane.b32.xlu0 %v2208, 17
  %v2220 = vpop.permute.xlu0 %2219
  %2237 = vrot.lane.b32.xlu0 %v2193, 17
  %v2238 = vpop.permute.xlu0 %2237
  %2239 = vrot.lane.b32.xlu0 %v2194, 17
  %v2240 = vpop.permute.xlu0 %2239
  %2241 = vrot.lane.b32.xlu0 %v2195, 17
  %v2242 = vpop.permute.xlu0 %2241
  %2243 = vrot.lane.b32.xlu0 %v2197, 17
  %v2244 = vpop.permute.xlu0 %2243
  %2245 = vrot.lane.b32.xlu0 %v2198, 17
  %v2246 = vpop.permute.xlu0 %2245
  %2247 = vrot.lane.b32.xlu0 %v2199, 17
  %v2248 = vpop.permute.xlu0 %2247
  %2249 = vrot.lane.b32.xlu0 %v2201, 17
  %v2250 = vpop.permute.xlu0 %2249
  %2251 = vrot.lane.b32.xlu0 %v2202, 17
  %v2252 = vpop.permute.xlu0 %2251
  %2253 = vrot.lane.b32.xlu0 %v2203, 17
  %v2254 = vpop.permute.xlu0 %2253
  %2255 = vrot.lane.b32.xlu0 %v2205, 17
  %v2256 = vpop.permute.xlu0 %2255
  %2257 = vrot.lane.b32.xlu0 %v2206, 17
  %v2258 = vpop.permute.xlu0 %2257
  %2259 = vrot.lane.b32.xlu0 %v2207, 17
  %v2260 = vpop.permute.xlu0 %2259
  %v2261 = vsel %vm466, %v2238, %v2240
  %v2262 = vsel %vm466, %v2240, %v2242
  %v2263 = vsel %vm466, %v2242, %v2214
  %v2264 = vsel %vm466, %v2244, %v2246
  %v2265 = vsel %vm466, %v2246, %v2248
  %v2266 = vsel %vm466, %v2248, %v2216
  %v2267 = vsel %vm466, %v2250, %v2252
  %v2268 = vsel %vm466, %v2252, %v2254
  %v2269 = vsel %vm466, %v2254, %v2218
  %v2270 = vsel %vm466, %v2256, %v2258
  %v2271 = vsel %vm466, %v2258, %v2260
  %v2272 = vsel %vm466, %v2260, %v2220
  %v2289 = vsel %vm466, %v2214, %v2238
  %v2290 = vsel %vm466, %v2216, %v2244
  %v2291 = vsel %vm466, %v2218, %v2250
  %v2292 = vsel %vm466, %v2220, %v2256
  %v2293 = vld [vmem:[%s6] ss:$8 sm:$0xf]
  %v2295 = vlaneseq
  %v2296 = vshrl.u32 %v2295, 7
  %v2297 = vsub.s32 0, %v2296
  %v2298 = vrot.slane %v2293, %v2297
  %v2299 = vlaneseq
  %v2300 = vshrl.u32 %v2299, 7
  %v2301 = vsub.s32 1, %v2300
  %v2302 = vrot.slane %v2293, %v2301
  %v2303 = vlaneseq
  %v2304 = vshrl.u32 %v2303, 7
  %v2305 = vsub.s32 2, %v2304
  %v2306 = vrot.slane %v2293, %v2305
  %v2307 = vlaneseq
  %v2308 = vshrl.u32 %v2307, 7
  %v2309 = vsub.s32 3, %v2308
  %v2310 = vrot.slane %v2293, %v2309
  %v2315 = vmul.f32 %v2289, %v2298
  %v2316 = vmul.f32 %v2261, %v2302
  %v2317 = vmul.f32 %v2262, %v2306
  %v2318 = vmul.f32 %v2263, %v2310
  %v2319 = vmul.f32 %v2290, %v2298
  %v2320 = vmul.f32 %v2264, %v2302
  %v2321 = vmul.f32 %v2265, %v2306
  %v2322 = vmul.f32 %v2266, %v2310
  %v2323 = vmul.f32 %v2291, %v2298
  %v2324 = vmul.f32 %v2267, %v2302
  %v2325 = vmul.f32 %v2268, %v2306
  %v2326 = vmul.f32 %v2269, %v2310
  %v2327 = vmul.f32 %v2292, %v2298
  %v2328 = vmul.f32 %v2270, %v2302
  %v2329 = vmul.f32 %v2271, %v2306
  %v2330 = vmul.f32 %v2272, %v2310
  %2331 = vst [vmem:[#allocation2] sm:$0xff] %v2315
  %2332 = vst [vmem:[#allocation2 + $0x8] sm:$0xff] %v2316
  %2333 = vst [vmem:[#allocation2 + $0x10] sm:$0xff] %v2317
  %2334 = vst [vmem:[#allocation2 + $0x18] sm:$0xff] %v2318
  %2335 = vst [vmem:[#allocation2 + $0x20] sm:$0xff] %v2319
  %2336 = vst [vmem:[#allocation2 + $0x28] sm:$0xff] %v2320
  %2337 = vst [vmem:[#allocation2 + $0x30] sm:$0xff] %v2321
  %2338 = vst [vmem:[#allocation2 + $0x38] sm:$0xff] %v2322
  %2339 = vst [vmem:[#allocation2 + $0x40] sm:$0xff] %v2323
  %2340 = vst [vmem:[#allocation2 + $0x48] sm:$0xff] %v2324
  %2341 = vst [vmem:[#allocation2 + $0x50] sm:$0xff] %v2325
  %2342 = vst [vmem:[#allocation2 + $0x58] sm:$0xff] %v2326
  %2343 = vst [vmem:[#allocation2 + $0x60] sm:$0x3f] %v2327
  %2344 = vst [vmem:[#allocation2 + $0x68] sm:$0x3f] %v2328
  %2345 = vst [vmem:[#allocation2 + $0x70] sm:$0x3f] %v2329
  %2346 = vst [vmem:[#allocation2 + $0x78] sm:$0x3f] %v2330
  %2347 = vrot.lane.b32.xlu0 %v2196, 16
  %v2348 = vpop.permute.xlu0 %2347
  %2349 = vrot.lane.b32.xlu0 %v2200, 16
  %v2350 = vpop.permute.xlu0 %2349
  %2351 = vrot.lane.b32.xlu0 %v2204, 16
  %v2352 = vpop.permute.xlu0 %2351
  %2353 = vrot.lane.b32.xlu0 %v2208, 16
  %v2354 = vpop.permute.xlu0 %2353
  %2359 = vrot.lane.b32.xlu0 %v2193, 16
  %v2360 = vpop.permute.xlu0 %2359
  %2361 = vrot.lane.b32.xlu0 %v2194, 16
  %v2362 = vpop.permute.xlu0 %2361
  %2363 = vrot.lane.b32.xlu0 %v2195, 16
  %v2364 = vpop.permute.xlu0 %2363
  %2365 = vrot.lane.b32.xlu0 %v2197, 16
  %v2366 = vpop.permute.xlu0 %2365
  %2367 = vrot.lane.b32.xlu0 %v2198, 16
  %v2368 = vpop.permute.xlu0 %2367
  %2369 = vrot.lane.b32.xlu0 %v2199, 16
  %v2370 = vpop.permute.xlu0 %2369
  %2371 = vrot.lane.b32.xlu0 %v2201, 16
  %v2372 = vpop.permute.xlu0 %2371
  %2373 = vrot.lane.b32.xlu0 %v2202, 16
  %v2374 = vpop.permute.xlu0 %2373
  %2375 = vrot.lane.b32.xlu0 %v2203, 16
  %v2376 = vpop.permute.xlu0 %2375
  %2377 = vrot.lane.b32.xlu0 %v2205, 16
  %v2378 = vpop.permute.xlu0 %2377
  %2379 = vrot.lane.b32.xlu0 %v2206, 16
  %v2380 = vpop.permute.xlu0 %2379
  %2381 = vrot.lane.b32.xlu0 %v2207, 16
  %v2382 = vpop.permute.xlu0 %2381
  %v2383 = vsel %vm589, %v2360, %v2362
  %v2384 = vsel %vm589, %v2362, %v2364
  %v2385 = vsel %vm589, %v2364, %v2348
  %v2386 = vsel %vm589, %v2366, %v2368
  %v2387 = vsel %vm589, %v2368, %v2370
  %v2388 = vsel %vm589, %v2370, %v2350
  %v2389 = vsel %vm589, %v2372, %v2374
  %v2390 = vsel %vm589, %v2374, %v2376
  %v2391 = vsel %vm589, %v2376, %v2352
  %v2392 = vsel %vm589, %v2378, %v2380
  %v2393 = vsel %vm589, %v2380, %v2382
  %v2394 = vsel %vm589, %v2382, %v2354
  %v2411 = vsel %vm589, %v2348, %v2360
  %v2412 = vsel %vm589, %v2350, %v2366
  %v2413 = vsel %vm589, %v2352, %v2372
  %v2414 = vsel %vm589, %v2354, %v2378
  %v2415 = vld [vmem:[%s622] ss:$8 sm:$0xf]
  %v2417 = vlaneseq
  %v2418 = vshrl.u32 %v2417, 7
  %v2419 = vsub.s32 0, %v2418
  %v2420 = vrot.slane %v2415, %v2419
  %v2421 = vlaneseq
  %v2422 = vshrl.u32 %v2421, 7
  %v2423 = vsub.s32 1, %v2422
  %v2424 = vrot.slane %v2415, %v2423
  %v2425 = vlaneseq
  %v2426 = vshrl.u32 %v2425, 7
  %v2427 = vsub.s32 2, %v2426
  %v2428 = vrot.slane %v2415, %v2427
  %v2429 = vlaneseq
  %v2430 = vshrl.u32 %v2429, 7
  %v2431 = vsub.s32 3, %v2430
  %v2432 = vrot.slane %v2415, %v2431
  %v2437 = vmul.f32 %v2411, %v2420
  %v2438 = vmul.f32 %v2383, %v2424
  %v2439 = vmul.f32 %v2384, %v2428
  %v2440 = vmul.f32 %v2385, %v2432
  %v2441 = vmul.f32 %v2412, %v2420
  %v2442 = vmul.f32 %v2386, %v2424
  %v2443 = vmul.f32 %v2387, %v2428
  %v2444 = vmul.f32 %v2388, %v2432
  %v2445 = vmul.f32 %v2413, %v2420
  %v2446 = vmul.f32 %v2389, %v2424
  %v2447 = vmul.f32 %v2390, %v2428
  %v2448 = vmul.f32 %v2391, %v2432
  %v2449 = vmul.f32 %v2414, %v2420
  %v2450 = vmul.f32 %v2392, %v2424
  %v2451 = vmul.f32 %v2393, %v2428
  %v2452 = vmul.f32 %v2394, %v2432
  %2453 = vst [vmem:[#allocation2 + $0x80] sm:$0xff] %v2437
  %2454 = vst [vmem:[#allocation2 + $0x88] sm:$0xff] %v2438
  %2455 = vst [vmem:[#allocation2 + $0x90] sm:$0xff] %v2439
  %2456 = vst [vmem:[#allocation2 + $0x98] sm:$0xff] %v2440
  %2457 = vst [vmem:[#allocation2 + $0xa0] sm:$0xff] %v2441
  %2458 = vst [vmem:[#allocation2 + $0xa8] sm:$0xff] %v2442
  %2459 = vst [vmem:[#allocation2 + $0xb0] sm:$0xff] %v2443
  %2460 = vst [vmem:[#allocation2 + $0xb8] sm:$0xff] %v2444
  %2461 = vst [vmem:[#allocation2 + $0xc0] sm:$0xff] %v2445
  %2462 = vst [vmem:[#allocation2 + $0xc8] sm:$0xff] %v2446
  %2463 = vst [vmem:[#allocation2 + $0xd0] sm:$0xff] %v2447
  %2464 = vst [vmem:[#allocation2 + $0xd8] sm:$0xff] %v2448
  %2465 = vst [vmem:[#allocation2 + $0xe0] sm:$0x3f] %v2449
  %2466 = vst [vmem:[#allocation2 + $0xe8] sm:$0x3f] %v2450
  %2467 = vst [vmem:[#allocation2 + $0xf0] sm:$0x3f] %v2451
  %2468 = vst [vmem:[#allocation2 + $0xf8] sm:$0x3f] %v2452
  %2469 = vrot.lane.b32.xlu0 %v2196, 15
  %v2470 = vpop.permute.xlu0 %2469
  %2471 = vrot.lane.b32.xlu0 %v2200, 15
  %v2472 = vpop.permute.xlu0 %2471
  %2473 = vrot.lane.b32.xlu0 %v2204, 15
  %v2474 = vpop.permute.xlu0 %2473
  %2475 = vrot.lane.b32.xlu0 %v2208, 15
  %v2476 = vpop.permute.xlu0 %2475
  %2481 = vrot.lane.b32.xlu0 %v2193, 15
  %v2482 = vpop.permute.xlu0 %2481
  %2483 = vrot.lane.b32.xlu0 %v2194, 15
  %v2484 = vpop.permute.xlu0 %2483
  %2485 = vrot.lane.b32.xlu0 %v2195, 15
  %v2486 = vpop.permute.xlu0 %2485
  %2487 = vrot.lane.b32.xlu0 %v2197, 15
  %v2488 = vpop.permute.xlu0 %2487
  %2489 = vrot.lane.b32.xlu0 %v2198, 15
  %v2490 = vpop.permute.xlu0 %2489
  %2491 = vrot.lane.b32.xlu0 %v2199, 15
  %v2492 = vpop.permute.xlu0 %2491
  %2493 = vrot.lane.b32.xlu0 %v2201, 15
  %v2494 = vpop.permute.xlu0 %2493
  %2495 = vrot.lane.b32.xlu0 %v2202, 15
  %v2496 = vpop.permute.xlu0 %2495
  %2497 = vrot.lane.b32.xlu0 %v2203, 15
  %v2498 = vpop.permute.xlu0 %2497
  %2499 = vrot.lane.b32.xlu0 %v2205, 15
  %v2500 = vpop.permute.xlu0 %2499
  %2501 = vrot.lane.b32.xlu0 %v2206, 15
  %v2502 = vpop.permute.xlu0 %2501
  %2503 = vrot.lane.b32.xlu0 %v2207, 15
  %v2504 = vpop.permute.xlu0 %2503
  %v2505 = vsel %vm713, %v2482, %v2484
  %v2506 = vsel %vm713, %v2484, %v2486
  %v2507 = vsel %vm713, %v2486, %v2470
  %v2508 = vsel %vm713, %v2488, %v2490
  %v2509 = vsel %vm713, %v2490, %v2492
  %v2510 = vsel %vm713, %v2492, %v2472
  %v2511 = vsel %vm713, %v2494, %v2496
  %v2512 = vsel %vm713, %v2496, %v2498
  %v2513 = vsel %vm713, %v2498, %v2474
  %v2514 = vsel %vm713, %v2500, %v2502
  %v2515 = vsel %vm713, %v2502, %v2504
  %v2516 = vsel %vm713, %v2504, %v2476
  %v2533 = vsel %vm713, %v2470, %v2482
  %v2534 = vsel %vm713, %v2472, %v2488
  %v2535 = vsel %vm713, %v2474, %v2494
  %v2536 = vsel %vm713, %v2476, %v2500
  %v2537 = vld [vmem:[%s746] ss:$8 sm:$0xf]
  %v2539 = vlaneseq
  %v2540 = vshrl.u32 %v2539, 7
  %v2541 = vsub.s32 0, %v2540
  %v2542 = vrot.slane %v2537, %v2541
  %v2543 = vlaneseq
  %v2544 = vshrl.u32 %v2543, 7
  %v2545 = vsub.s32 1, %v2544
  %v2546 = vrot.slane %v2537, %v2545
  %v2547 = vlaneseq
  %v2548 = vshrl.u32 %v2547, 7
  %v2549 = vsub.s32 2, %v2548
  %v2550 = vrot.slane %v2537, %v2549
  %v2551 = vlaneseq
  %v2552 = vshrl.u32 %v2551, 7
  %v2553 = vsub.s32 3, %v2552
  %v2554 = vrot.slane %v2537, %v2553
  %v2559 = vmul.f32 %v2533, %v2542
  %v2560 = vmul.f32 %v2505, %v2546
  %v2561 = vmul.f32 %v2506, %v2550
  %v2562 = vmul.f32 %v2507, %v2554
  %v2563 = vmul.f32 %v2534, %v2542
  %v2564 = vmul.f32 %v2508, %v2546
  %v2565 = vmul.f32 %v2509, %v2550
  %v2566 = vmul.f32 %v2510, %v2554
  %v2567 = vmul.f32 %v2535, %v2542
  %v2568 = vmul.f32 %v2511, %v2546
  %v2569 = vmul.f32 %v2512, %v2550
  %v2570 = vmul.f32 %v2513, %v2554
  %v2571 = vmul.f32 %v2536, %v2542
  %v2572 = vmul.f32 %v2514, %v2546
  %v2573 = vmul.f32 %v2515, %v2550
  %v2574 = vmul.f32 %v2516, %v2554
  %2575 = vst [vmem:[#allocation2 + $0x100] sm:$0xff] %v2559
  %2576 = vst [vmem:[#allocation2 + $0x108] sm:$0xff] %v2560
  %2577 = vst [vmem:[#allocation2 + $0x110] sm:$0xff] %v2561
  %2578 = vst [vmem:[#allocation2 + $0x118] sm:$0xff] %v2562
  %2579 = vst [vmem:[#allocation2 + $0x120] sm:$0xff] %v2563
  %2580 = vst [vmem:[#allocation2 + $0x128] sm:$0xff] %v2564
  %2581 = vst [vmem:[#allocation2 + $0x130] sm:$0xff] %v2565
  %2582 = vst [vmem:[#allocation2 + $0x138] sm:$0xff] %v2566
  %2583 = vst [vmem:[#allocation2 + $0x140] sm:$0xff] %v2567
  %2584 = vst [vmem:[#allocation2 + $0x148] sm:$0xff] %v2568
  %2585 = vst [vmem:[#allocation2 + $0x150] sm:$0xff] %v2569
  %2586 = vst [vmem:[#allocation2 + $0x158] sm:$0xff] %v2570
  %2587 = vst [vmem:[#allocation2 + $0x160] sm:$0x3f] %v2571
  %2588 = vst [vmem:[#allocation2 + $0x168] sm:$0x3f] %v2572
  %2589 = vst [vmem:[#allocation2 + $0x170] sm:$0x3f] %v2573
  %2590 = vst [vmem:[#allocation2 + $0x178] sm:$0x3f] %v2574
  %2591 = vrot.lane.b32.xlu0 %v2196, 1
  %v2592 = vpop.permute.xlu0 %2591
  %2593 = vrot.lane.b32.xlu0 %v2200, 1
  %v2594 = vpop.permute.xlu0 %2593
  %2595 = vrot.lane.b32.xlu0 %v2204, 1
  %v2596 = vpop.permute.xlu0 %2595
  %2597 = vrot.lane.b32.xlu0 %v2208, 1
  %v2598 = vpop.permute.xlu0 %2597
  %2603 = vrot.lane.b32.xlu0 %v2193, 1
  %v2604 = vpop.permute.xlu0 %2603
  %2605 = vrot.lane.b32.xlu0 %v2194, 1
  %v2606 = vpop.permute.xlu0 %2605
  %2607 = vrot.lane.b32.xlu0 %v2195, 1
  %v2608 = vpop.permute.xlu0 %2607
  %2609 = vrot.lane.b32.xlu0 %v2197, 1
  %v2610 = vpop.permute.xlu0 %2609
  %2611 = vrot.lane.b32.xlu0 %v2198, 1
  %v2612 = vpop.permute.xlu0 %2611
  %2613 = vrot.lane.b32.xlu0 %v2199, 1
  %v2614 = vpop.permute.xlu0 %2613
  %2615 = vrot.lane.b32.xlu0 %v2201, 1
  %v2616 = vpop.permute.xlu0 %2615
  %2617 = vrot.lane.b32.xlu0 %v2202, 1
  %v2618 = vpop.permute.xlu0 %2617
  %2619 = vrot.lane.b32.xlu0 %v2203, 1
  %v2620 = vpop.permute.xlu0 %2619
  %2621 = vrot.lane.b32.xlu0 %v2205, 1
  %v2622 = vpop.permute.xlu0 %2621
  %2623 = vrot.lane.b32.xlu0 %v2206, 1
  %v2624 = vpop.permute.xlu0 %2623
  %2625 = vrot.lane.b32.xlu0 %v2207, 1
  %v2626 = vpop.permute.xlu0 %2625
  %v2627 = vsel %vm837, %v2604, %v2606
  %v2628 = vsel %vm837, %v2606, %v2608
  %v2629 = vsel %vm837, %v2608, %v2592
  %v2630 = vsel %vm837, %v2610, %v2612
  %v2631 = vsel %vm837, %v2612, %v2614
  %v2632 = vsel %vm837, %v2614, %v2594
  %v2633 = vsel %vm837, %v2616, %v2618
  %v2634 = vsel %vm837, %v2618, %v2620
  %v2635 = vsel %vm837, %v2620, %v2596
  %v2636 = vsel %vm837, %v2622, %v2624
  %v2637 = vsel %vm837, %v2624, %v2626
  %v2638 = vsel %vm837, %v2626, %v2598
  %v2655 = vsel %vm837, %v2592, %v2604
  %v2656 = vsel %vm837, %v2594, %v2610
  %v2657 = vsel %vm837, %v2596, %v2616
  %v2658 = vsel %vm837, %v2598, %v2622
  %v2659 = vld [vmem:[%s870] ss:$8 sm:$0xf]
  %v2661 = vlaneseq
  %v2662 = vshrl.u32 %v2661, 7
  %v2663 = vsub.s32 0, %v2662
  %v2664 = vrot.slane %v2659, %v2663
  %v2665 = vlaneseq
  %v2666 = vshrl.u32 %v2665, 7
  %v2667 = vsub.s32 1, %v2666
  %v2668 = vrot.slane %v2659, %v2667
  %v2669 = vlaneseq
  %v2670 = vshrl.u32 %v2669, 7
  %v2671 = vsub.s32 2, %v2670
  %v2672 = vrot.slane %v2659, %v2671
  %v2673 = vlaneseq
  %v2674 = vshrl.u32 %v2673, 7
  %v2675 = vsub.s32 3, %v2674
  %v2676 = vrot.slane %v2659, %v2675
  %v2681 = vmul.f32 %v2655, %v2664
  %v2682 = vmul.f32 %v2627, %v2668
  %v2683 = vmul.f32 %v2628, %v2672
  %v2684 = vmul.f32 %v2629, %v2676
  %v2685 = vmul.f32 %v2656, %v2664
  %v2686 = vmul.f32 %v2630, %v2668
  %v2687 = vmul.f32 %v2631, %v2672
  %v2688 = vmul.f32 %v2632, %v2676
  %v2689 = vmul.f32 %v2657, %v2664
  %v2690 = vmul.f32 %v2633, %v2668
  %v2691 = vmul.f32 %v2634, %v2672
  %v2692 = vmul.f32 %v2635, %v2676
  %v2693 = vmul.f32 %v2658, %v2664
  %v2694 = vmul.f32 %v2636, %v2668
  %v2695 = vmul.f32 %v2637, %v2672
  %v2696 = vmul.f32 %v2638, %v2676
  %2697 = vst [vmem:[#allocation2 + $0x180] sm:$0xff] %v2681
  %2698 = vst [vmem:[#allocation2 + $0x188] sm:$0xff] %v2682
  %2699 = vst [vmem:[#allocation2 + $0x190] sm:$0xff] %v2683
  %2700 = vst [vmem:[#allocation2 + $0x198] sm:$0xff] %v2684
  %2701 = vst [vmem:[#allocation2 + $0x1a0] sm:$0xff] %v2685
  %2702 = vst [vmem:[#allocation2 + $0x1a8] sm:$0xff] %v2686
  %2703 = vst [vmem:[#allocation2 + $0x1b0] sm:$0xff] %v2687
  %2704 = vst [vmem:[#allocation2 + $0x1b8] sm:$0xff] %v2688
  %2705 = vst [vmem:[#allocation2 + $0x1c0] sm:$0xff] %v2689
  %2706 = vst [vmem:[#allocation2 + $0x1c8] sm:$0xff] %v2690
  %2707 = vst [vmem:[#allocation2 + $0x1d0] sm:$0xff] %v2691
  %2708 = vst [vmem:[#allocation2 + $0x1d8] sm:$0xff] %v2692
  %2709 = vst [vmem:[#allocation2 + $0x1e0] sm:$0x3f] %v2693
  %2710 = vst [vmem:[#allocation2 + $0x1e8] sm:$0x3f] %v2694
  %2711 = vst [vmem:[#allocation2 + $0x1f0] sm:$0x3f] %v2695
  %2712 = vst [vmem:[#allocation2 + $0x1f8] sm:$0x3f] %v2696
  %2713 = vst [vmem:[#allocation2 + $0x200] sm:$0xff] %v2193
  %2714 = vst [vmem:[#allocation2 + $0x208] sm:$0xff] %v2194
  %2715 = vst [vmem:[#allocation2 + $0x210] sm:$0xff] %v2195
  %2716 = vst [vmem:[#allocation2 + $0x218] sm:$0xff] %v2196
  %2717 = vst [vmem:[#allocation2 + $0x220] sm:$0xff] %v2197
  %2718 = vst [vmem:[#allocation2 + $0x228] sm:$0xff] %v2198
  %2719 = vst [vmem:[#allocation2 + $0x230] sm:$0xff] %v2199
  %2720 = vst [vmem:[#allocation2 + $0x238] sm:$0xff] %v2200
  %2721 = vst [vmem:[#allocation2 + $0x240] sm:$0xff] %v2201
  %2722 = vst [vmem:[#allocation2 + $0x248] sm:$0xff] %v2202
  %2723 = vst [vmem:[#allocation2 + $0x250] sm:$0xff] %v2203
  %2724 = vst [vmem:[#allocation2 + $0x258] sm:$0xff] %v2204
  %2725 = vst [vmem:[#allocation2 + $0x260] sm:$0x3f] %v2205
  %2726 = vst [vmem:[#allocation2 + $0x268] sm:$0x3f] %v2206
  %2727 = vst [vmem:[#allocation2 + $0x270] sm:$0x3f] %v2207
  %2728 = vst [vmem:[#allocation2 + $0x278] sm:$0x3f] %v2208
  %2729 = vrot.lane.b32.xlu0 %v2193, 127
  %v2730 = vpop.permute.xlu0 %2729
  %2731 = vrot.lane.b32.xlu0 %v2194, 127
  %v2732 = vpop.permute.xlu0 %2731
  %2733 = vrot.lane.b32.xlu0 %v2195, 127
  %v2734 = vpop.permute.xlu0 %2733
  %2735 = vrot.lane.b32.xlu0 %v2196, 127
  %v2736 = vpop.permute.xlu0 %2735
  %2737 = vrot.lane.b32.xlu0 %v2197, 127
  %v2738 = vpop.permute.xlu0 %2737
  %2739 = vrot.lane.b32.xlu0 %v2198, 127
  %v2740 = vpop.permute.xlu0 %2739
  %2741 = vrot.lane.b32.xlu0 %v2199, 127
  %v2742 = vpop.permute.xlu0 %2741
  %2743 = vrot.lane.b32.xlu0 %v2200, 127
  %v2744 = vpop.permute.xlu0 %2743
  %2745 = vrot.lane.b32.xlu0 %v2201, 127
  %v2746 = vpop.permute.xlu0 %2745
  %2747 = vrot.lane.b32.xlu0 %v2202, 127
  %v2748 = vpop.permute.xlu0 %2747
  %2749 = vrot.lane.b32.xlu0 %v2203, 127
  %v2750 = vpop.permute.xlu0 %2749
  %2751 = vrot.lane.b32.xlu0 %v2204, 127
  %v2752 = vpop.permute.xlu0 %2751
  %2753 = vrot.lane.b32.xlu0 %v2205, 127
  %v2754 = vpop.permute.xlu0 %2753
  %2755 = vrot.lane.b32.xlu0 %v2206, 127
  %v2756 = vpop.permute.xlu0 %2755
  %2757 = vrot.lane.b32.xlu0 %v2207, 127
  %v2758 = vpop.permute.xlu0 %2757
  %2759 = vrot.lane.b32.xlu0 %v2208, 127
  %v2760 = vpop.permute.xlu0 %2759
  %v2761 = vsel %vm973, %v2730, %v2732
  %v2762 = vsel %vm973, %v2732, %v2734
  %v2763 = vsel %vm973, %v2734, %v2736
  %v2764 = vsel %vm973, %v2738, %v2740
  %v2765 = vsel %vm973, %v2740, %v2742
  %v2766 = vsel %vm973, %v2742, %v2744
  %v2767 = vsel %vm973, %v2746, %v2748
  %v2768 = vsel %vm973, %v2748, %v2750
  %v2769 = vsel %vm973, %v2750, %v2752
  %v2770 = vsel %vm973, %v2754, %v2756
  %v2771 = vsel %vm973, %v2756, %v2758
  %v2772 = vsel %vm973, %v2758, %v2760
  %v2793 = vsel %vm973, %v2736, %v2730
  %v2794 = vsel %vm973, %v2744, %v2738
  %v2795 = vsel %vm973, %v2752, %v2746
  %v2796 = vsel %vm973, %v2760, %v2754
  %v2797 = vld [vmem:[%s1010] ss:$8 sm:$0xf]
  %v2799 = vlaneseq
  %v2800 = vshrl.u32 %v2799, 7
  %v2801 = vsub.s32 0, %v2800
  %v2802 = vrot.slane %v2797, %v2801
  %v2803 = vlaneseq
  %v2804 = vshrl.u32 %v2803, 7
  %v2805 = vsub.s32 1, %v2804
  %v2806 = vrot.slane %v2797, %v2805
  %v2807 = vlaneseq
  %v2808 = vshrl.u32 %v2807, 7
  %v2809 = vsub.s32 2, %v2808
  %v2810 = vrot.slane %v2797, %v2809
  %v2811 = vlaneseq
  %v2812 = vshrl.u32 %v2811, 7
  %v2813 = vsub.s32 3, %v2812
  %v2814 = vrot.slane %v2797, %v2813
  %v2819 = vmul.f32 %v2761, %v2802
  %v2820 = vmul.f32 %v2762, %v2806
  %v2821 = vmul.f32 %v2763, %v2810
  %v2822 = vmul.f32 %v2793, %v2814
  %v2823 = vmul.f32 %v2764, %v2802
  %v2824 = vmul.f32 %v2765, %v2806
  %v2825 = vmul.f32 %v2766, %v2810
  %v2826 = vmul.f32 %v2794, %v2814
  %v2827 = vmul.f32 %v2767, %v2802
  %v2828 = vmul.f32 %v2768, %v2806
  %v2829 = vmul.f32 %v2769, %v2810
  %v2830 = vmul.f32 %v2795, %v2814
  %v2831 = vmul.f32 %v2770, %v2802
  %v2832 = vmul.f32 %v2771, %v2806
  %v2833 = vmul.f32 %v2772, %v2810
  %v2834 = vmul.f32 %v2796, %v2814
  %2835 = vst [vmem:[#allocation2 + $0x280] sm:$0xff] %v2819
  %2836 = vst [vmem:[#allocation2 + $0x288] sm:$0xff] %v2820
  %2837 = vst [vmem:[#allocation2 + $0x290] sm:$0xff] %v2821
  %2838 = vst [vmem:[#allocation2 + $0x298] sm:$0xff] %v2822
  %2839 = vst [vmem:[#allocation2 + $0x2a0] sm:$0xff] %v2823
  %2840 = vst [vmem:[#allocation2 + $0x2a8] sm:$0xff] %v2824
  %2841 = vst [vmem:[#allocation2 + $0x2b0] sm:$0xff] %v2825
  %2842 = vst [vmem:[#allocation2 + $0x2b8] sm:$0xff] %v2826
  %2843 = vst [vmem:[#allocation2 + $0x2c0] sm:$0xff] %v2827
  %2844 = vst [vmem:[#allocation2 + $0x2c8] sm:$0xff] %v2828
  %2845 = vst [vmem:[#allocation2 + $0x2d0] sm:$0xff] %v2829
  %2846 = vst [vmem:[#allocation2 + $0x2d8] sm:$0xff] %v2830
  %2847 = vst [vmem:[#allocation2 + $0x2e0] sm:$0x3f] %v2831
  %2848 = vst [vmem:[#allocation2 + $0x2e8] sm:$0x3f] %v2832
  %2849 = vst [vmem:[#allocation2 + $0x2f0] sm:$0x3f] %v2833
  %2850 = vst [vmem:[#allocation2 + $0x2f8] sm:$0x3f] %v2834
  %2851 = vrot.lane.b32.xlu0 %v2193, 113
  %v2852 = vpop.permute.xlu0 %2851
  %2853 = vrot.lane.b32.xlu0 %v2194, 113
  %v2854 = vpop.permute.xlu0 %2853
  %2855 = vrot.lane.b32.xlu0 %v2195, 113
  %v2856 = vpop.permute.xlu0 %2855
  %2857 = vrot.lane.b32.xlu0 %v2196, 113
  %v2858 = vpop.permute.xlu0 %2857
  %2859 = vrot.lane.b32.xlu0 %v2197, 113
  %v2860 = vpop.permute.xlu0 %2859
  %2861 = vrot.lane.b32.xlu0 %v2198, 113
  %v2862 = vpop.permute.xlu0 %2861
  %2863 = vrot.lane.b32.xlu0 %v2199, 113
  %v2864 = vpop.permute.xlu0 %2863
  %2865 = vrot.lane.b32.xlu0 %v2200, 113
  %v2866 = vpop.permute.xlu0 %2865
  %2867 = vrot.lane.b32.xlu0 %v2201, 113
  %v2868 = vpop.permute.xlu0 %2867
  %2869 = vrot.lane.b32.xlu0 %v2202, 113
  %v2870 = vpop.permute.xlu0 %2869
  %2871 = vrot.lane.b32.xlu0 %v2203, 113
  %v2872 = vpop.permute.xlu0 %2871
  %2873 = vrot.lane.b32.xlu0 %v2204, 113
  %v2874 = vpop.permute.xlu0 %2873
  %2875 = vrot.lane.b32.xlu0 %v2205, 113
  %v2876 = vpop.permute.xlu0 %2875
  %2877 = vrot.lane.b32.xlu0 %v2206, 113
  %v2878 = vpop.permute.xlu0 %2877
  %2879 = vrot.lane.b32.xlu0 %v2207, 113
  %v2880 = vpop.permute.xlu0 %2879
  %2881 = vrot.lane.b32.xlu0 %v2208, 113
  %v2882 = vpop.permute.xlu0 %2881
  %v2883 = vsel %vm1097, %v2852, %v2854
  %v2884 = vsel %vm1097, %v2854, %v2856
  %v2885 = vsel %vm1097, %v2856, %v2858
  %v2886 = vsel %vm1097, %v2860, %v2862
  %v2887 = vsel %vm1097, %v2862, %v2864
  %v2888 = vsel %vm1097, %v2864, %v2866
  %v2889 = vsel %vm1097, %v2868, %v2870
  %v2890 = vsel %vm1097, %v2870, %v2872
  %v2891 = vsel %vm1097, %v2872, %v2874
  %v2892 = vsel %vm1097, %v2876, %v2878
  %v2893 = vsel %vm1097, %v2878, %v2880
  %v2894 = vsel %vm1097, %v2880, %v2882
  %v2915 = vsel %vm1097, %v2858, %v2852
  %v2916 = vsel %vm1097, %v2866, %v2860
  %v2917 = vsel %vm1097, %v2874, %v2868
  %v2918 = vsel %vm1097, %v2882, %v2876
  %v2919 = vld [vmem:[%s1134] ss:$8 sm:$0xf]
  %v2921 = vlaneseq
  %v2922 = vshrl.u32 %v2921, 7
  %v2923 = vsub.s32 0, %v2922
  %v2924 = vrot.slane %v2919, %v2923
  %v2925 = vlaneseq
  %v2926 = vshrl.u32 %v2925, 7
  %v2927 = vsub.s32 1, %v2926
  %v2928 = vrot.slane %v2919, %v2927
  %v2929 = vlaneseq
  %v2930 = vshrl.u32 %v2929, 7
  %v2931 = vsub.s32 2, %v2930
  %v2932 = vrot.slane %v2919, %v2931
  %v2933 = vlaneseq
  %v2934 = vshrl.u32 %v2933, 7
  %v2935 = vsub.s32 3, %v2934
  %v2936 = vrot.slane %v2919, %v2935
  %v2941 = vmul.f32 %v2883, %v2924
  %v2942 = vmul.f32 %v2884, %v2928
  %v2943 = vmul.f32 %v2885, %v2932
  %v2944 = vmul.f32 %v2915, %v2936
  %v2945 = vmul.f32 %v2886, %v2924
  %v2946 = vmul.f32 %v2887, %v2928
  %v2947 = vmul.f32 %v2888, %v2932
  %v2948 = vmul.f32 %v2916, %v2936
  %v2949 = vmul.f32 %v2889, %v2924
  %v2950 = vmul.f32 %v2890, %v2928
  %v2951 = vmul.f32 %v2891, %v2932
  %v2952 = vmul.f32 %v2917, %v2936
  %v2953 = vmul.f32 %v2892, %v2924
  %v2954 = vmul.f32 %v2893, %v2928
  %v2955 = vmul.f32 %v2894, %v2932
  %v2956 = vmul.f32 %v2918, %v2936
  %2957 = vst [vmem:[#allocation2 + $0x300] sm:$0xff] %v2941
  %2958 = vst [vmem:[#allocation2 + $0x308] sm:$0xff] %v2942
  %2959 = vst [vmem:[#allocation2 + $0x310] sm:$0xff] %v2943
  %2960 = vst [vmem:[#allocation2 + $0x318] sm:$0xff] %v2944
  %2961 = vst [vmem:[#allocation2 + $0x320] sm:$0xff] %v2945
  %2962 = vst [vmem:[#allocation2 + $0x328] sm:$0xff] %v2946
  %2963 = vst [vmem:[#allocation2 + $0x330] sm:$0xff] %v2947
  %2964 = vst [vmem:[#allocation2 + $0x338] sm:$0xff] %v2948
  %2965 = vst [vmem:[#allocation2 + $0x340] sm:$0xff] %v2949
  %2966 = vst [vmem:[#allocation2 + $0x348] sm:$0xff] %v2950
  %2967 = vst [vmem:[#allocation2 + $0x350] sm:$0xff] %v2951
  %2968 = vst [vmem:[#allocation2 + $0x358] sm:$0xff] %v2952
  %2969 = vst [vmem:[#allocation2 + $0x360] sm:$0x3f] %v2953
  %2970 = vst [vmem:[#allocation2 + $0x368] sm:$0x3f] %v2954
  %2971 = vst [vmem:[#allocation2 + $0x370] sm:$0x3f] %v2955
  %2972 = vst [vmem:[#allocation2 + $0x378] sm:$0x3f] %v2956
  %2973 = vrot.lane.b32.xlu0 %v2193, 112
  %v2974 = vpop.permute.xlu0 %2973
  %2975 = vrot.lane.b32.xlu0 %v2194, 112
  %v2976 = vpop.permute.xlu0 %2975
  %2977 = vrot.lane.b32.xlu0 %v2195, 112
  %v2978 = vpop.permute.xlu0 %2977
  %2979 = vrot.lane.b32.xlu0 %v2196, 112
  %v2980 = vpop.permute.xlu0 %2979
  %2981 = vrot.lane.b32.xlu0 %v2197, 112
  %v2982 = vpop.permute.xlu0 %2981
  %2983 = vrot.lane.b32.xlu0 %v2198, 112
  %v2984 = vpop.permute.xlu0 %2983
  %2985 = vrot.lane.b32.xlu0 %v2199, 112
  %v2986 = vpop.permute.xlu0 %2985
  %2987 = vrot.lane.b32.xlu0 %v2200, 112
  %v2988 = vpop.permute.xlu0 %2987
  %2989 = vrot.lane.b32.xlu0 %v2201, 112
  %v2990 = vpop.permute.xlu0 %2989
  %2991 = vrot.lane.b32.xlu0 %v2202, 112
  %v2992 = vpop.permute.xlu0 %2991
  %2993 = vrot.lane.b32.xlu0 %v2203, 112
  %v2994 = vpop.permute.xlu0 %2993
  %2995 = vrot.lane.b32.xlu0 %v2204, 112
  %v2996 = vpop.permute.xlu0 %2995
  %2997 = vrot.lane.b32.xlu0 %v2205, 112
  %v2998 = vpop.permute.xlu0 %2997
  %2999 = vrot.lane.b32.xlu0 %v2206, 112
  %v3000 = vpop.permute.xlu0 %2999
  %3001 = vrot.lane.b32.xlu0 %v2207, 112
  %v3002 = vpop.permute.xlu0 %3001
  %3003 = vrot.lane.b32.xlu0 %v2208, 112
  %v3004 = vpop.permute.xlu0 %3003
  %v3005 = vsel %vm1221, %v2974, %v2976
  %v3006 = vsel %vm1221, %v2976, %v2978
  %v3007 = vsel %vm1221, %v2978, %v2980
  %v3008 = vsel %vm1221, %v2982, %v2984
  %v3009 = vsel %vm1221, %v2984, %v2986
  %v3010 = vsel %vm1221, %v2986, %v2988
  %v3011 = vsel %vm1221, %v2990, %v2992
  %v3012 = vsel %vm1221, %v2992, %v2994
  %v3013 = vsel %vm1221, %v2994, %v2996
  %v3014 = vsel %vm1221, %v2998, %v3000
  %v3015 = vsel %vm1221, %v3000, %v3002
  %v3016 = vsel %vm1221, %v3002, %v3004
  %v3037 = vsel %vm1221, %v2980, %v2974
  %v3038 = vsel %vm1221, %v2988, %v2982
  %v3039 = vsel %vm1221, %v2996, %v2990
  %v3040 = vsel %vm1221, %v3004, %v2998
  %v3041 = vld [vmem:[%s1258] ss:$8 sm:$0xf]
  %v3043 = vlaneseq
  %v3044 = vshrl.u32 %v3043, 7
  %v3045 = vsub.s32 0, %v3044
  %v3046 = vrot.slane %v3041, %v3045
  %v3047 = vlaneseq
  %v3048 = vshrl.u32 %v3047, 7
  %v3049 = vsub.s32 1, %v3048
  %v3050 = vrot.slane %v3041, %v3049
  %v3051 = vlaneseq
  %v3052 = vshrl.u32 %v3051, 7
  %v3053 = vsub.s32 2, %v3052
  %v3054 = vrot.slane %v3041, %v3053
  %v3055 = vlaneseq
  %v3056 = vshrl.u32 %v3055, 7
  %v3057 = vsub.s32 3, %v3056
  %v3058 = vrot.slane %v3041, %v3057
  %v3063 = vmul.f32 %v3005, %v3046
  %v3064 = vmul.f32 %v3006, %v3050
  %v3065 = vmul.f32 %v3007, %v3054
  %v3066 = vmul.f32 %v3037, %v3058
  %v3067 = vmul.f32 %v3008, %v3046
  %v3068 = vmul.f32 %v3009, %v3050
  %v3069 = vmul.f32 %v3010, %v3054
  %v3070 = vmul.f32 %v3038, %v3058
  %v3071 = vmul.f32 %v3011, %v3046
  %v3072 = vmul.f32 %v3012, %v3050
  %v3073 = vmul.f32 %v3013, %v3054
  %v3074 = vmul.f32 %v3039, %v3058
  %v3075 = vmul.f32 %v3014, %v3046
  %v3076 = vmul.f32 %v3015, %v3050
  %v3077 = vmul.f32 %v3016, %v3054
  %v3078 = vmul.f32 %v3040, %v3058
  %3079 = vst [vmem:[#allocation2 + $0x380] sm:$0xff] %v3063
  %3080 = vst [vmem:[#allocation2 + $0x388] sm:$0xff] %v3064
  %3081 = vst [vmem:[#allocation2 + $0x390] sm:$0xff] %v3065
  %3082 = vst [vmem:[#allocation2 + $0x398] sm:$0xff] %v3066
  %3083 = vst [vmem:[#allocation2 + $0x3a0] sm:$0xff] %v3067
  %3084 = vst [vmem:[#allocation2 + $0x3a8] sm:$0xff] %v3068
  %3085 = vst [vmem:[#allocation2 + $0x3b0] sm:$0xff] %v3069
  %3086 = vst [vmem:[#allocation2 + $0x3b8] sm:$0xff] %v3070
  %3087 = vst [vmem:[#allocation2 + $0x3c0] sm:$0xff] %v3071
  %3088 = vst [vmem:[#allocation2 + $0x3c8] sm:$0xff] %v3072
  %3089 = vst [vmem:[#allocation2 + $0x3d0] sm:$0xff] %v3073
  %3090 = vst [vmem:[#allocation2 + $0x3d8] sm:$0xff] %v3074
  %3091 = vst [vmem:[#allocation2 + $0x3e0] sm:$0x3f] %v3075
  %3092 = vst [vmem:[#allocation2 + $0x3e8] sm:$0x3f] %v3076
  %3093 = vst [vmem:[#allocation2 + $0x3f0] sm:$0x3f] %v3077
  %3094 = vst [vmem:[#allocation2 + $0x3f8] sm:$0x3f] %v3078
  %3095 = vrot.lane.b32.xlu0 %v2193, 111
  %v3096 = vpop.permute.xlu0 %3095
  %3097 = vrot.lane.b32.xlu0 %v2194, 111
  %v3098 = vpop.permute.xlu0 %3097
  %3099 = vrot.lane.b32.xlu0 %v2195, 111
  %v3100 = vpop.permute.xlu0 %3099
  %3101 = vrot.lane.b32.xlu0 %v2196, 111
  %v3102 = vpop.permute.xlu0 %3101
  %3103 = vrot.lane.b32.xlu0 %v2197, 111
  %v3104 = vpop.permute.xlu0 %3103
  %3105 = vrot.lane.b32.xlu0 %v2198, 111
  %v3106 = vpop.permute.xlu0 %3105
  %3107 = vrot.lane.b32.xlu0 %v2199, 111
  %v3108 = vpop.permute.xlu0 %3107
  %3109 = vrot.lane.b32.xlu0 %v2200, 111
  %v3110 = vpop.permute.xlu0 %3109
  %3111 = vrot.lane.b32.xlu0 %v2201, 111
  %v3112 = vpop.permute.xlu0 %3111
  %3113 = vrot.lane.b32.xlu0 %v2202, 111
  %v3114 = vpop.permute.xlu0 %3113
  %3115 = vrot.lane.b32.xlu0 %v2203, 111
  %v3116 = vpop.permute.xlu0 %3115
  %3117 = vrot.lane.b32.xlu0 %v2204, 111
  %v3118 = vpop.permute.xlu0 %3117
  %3119 = vrot.lane.b32.xlu0 %v2205, 111
  %v3120 = vpop.permute.xlu0 %3119
  %3121 = vrot.lane.b32.xlu0 %v2206, 111
  %v3122 = vpop.permute.xlu0 %3121
  %3123 = vrot.lane.b32.xlu0 %v2207, 111
  %v3124 = vpop.permute.xlu0 %3123
  %3125 = vrot.lane.b32.xlu0 %v2208, 111
  %v3126 = vpop.permute.xlu0 %3125
  %v3127 = vsel %vm1345, %v3096, %v3098
  %v3128 = vsel %vm1345, %v3098, %v3100
  %v3129 = vsel %vm1345, %v3100, %v3102
  %v3130 = vsel %vm1345, %v3104, %v3106
  %v3131 = vsel %vm1345, %v3106, %v3108
  %v3132 = vsel %vm1345, %v3108, %v3110
  %v3133 = vsel %vm1345, %v3112, %v3114
  %v3134 = vsel %vm1345, %v3114, %v3116
  %v3135 = vsel %vm1345, %v3116, %v3118
  %v3136 = vsel %vm1345, %v3120, %v3122
  %v3137 = vsel %vm1345, %v3122, %v3124
  %v3138 = vsel %vm1345, %v3124, %v3126
  %v3159 = vsel %vm1345, %v3102, %v3096
  %v3160 = vsel %vm1345, %v3110, %v3104
  %v3161 = vsel %vm1345, %v3118, %v3112
  %v3162 = vsel %vm1345, %v3126, %v3120
  %v3163 = vld [vmem:[%s1382] ss:$8 sm:$0xf]
  %v3165 = vlaneseq
  %v3166 = vshrl.u32 %v3165, 7
  %v3167 = vsub.s32 0, %v3166
  %v3168 = vrot.slane %v3163, %v3167
  %v3169 = vlaneseq
  %v3170 = vshrl.u32 %v3169, 7
  %v3171 = vsub.s32 1, %v3170
  %v3172 = vrot.slane %v3163, %v3171
  %v3173 = vlaneseq
  %v3174 = vshrl.u32 %v3173, 7
  %v3175 = vsub.s32 2, %v3174
  %v3176 = vrot.slane %v3163, %v3175
  %v3177 = vlaneseq
  %v3178 = vshrl.u32 %v3177, 7
  %v3179 = vsub.s32 3, %v3178
  %v3180 = vrot.slane %v3163, %v3179
  %v3185 = vmul.f32 %v3127, %v3168
  %v3186 = vmul.f32 %v3128, %v3172
  %v3187 = vmul.f32 %v3129, %v3176
  %v3188 = vmul.f32 %v3159, %v3180
  %v3189 = vmul.f32 %v3130, %v3168
  %v3190 = vmul.f32 %v3131, %v3172
  %v3191 = vmul.f32 %v3132, %v3176
  %v3192 = vmul.f32 %v3160, %v3180
  %v3193 = vmul.f32 %v3133, %v3168
  %v3194 = vmul.f32 %v3134, %v3172
  %v3195 = vmul.f32 %v3135, %v3176
  %v3196 = vmul.f32 %v3161, %v3180
  %v3197 = vmul.f32 %v3136, %v3168
  %v3198 = vmul.f32 %v3137, %v3172
  %v3199 = vmul.f32 %v3138, %v3176
  %v3200 = vmul.f32 %v3162, %v3180
  %3201 = vst [vmem:[#allocation2 + $0x400] sm:$0xff] %v3185
  %3202 = vst [vmem:[#allocation2 + $0x408] sm:$0xff] %v3186
  %3203 = vst [vmem:[#allocation2 + $0x410] sm:$0xff] %v3187
  %3204 = vst [vmem:[#allocation2 + $0x418] sm:$0xff] %v3188
  %3205 = vst [vmem:[#allocation2 + $0x420] sm:$0xff] %v3189
  %3206 = vst [vmem:[#allocation2 + $0x428] sm:$0xff] %v3190
  %3207 = vst [vmem:[#allocation2 + $0x430] sm:$0xff] %v3191
  %3208 = vst [vmem:[#allocation2 + $0x438] sm:$0xff] %v3192
  %3209 = vst [vmem:[#allocation2 + $0x440] sm:$0xff] %v3193
  %3210 = vst [vmem:[#allocation2 + $0x448] sm:$0xff] %v3194
  %3211 = vst [vmem:[#allocation2 + $0x450] sm:$0xff] %v3195
  %3212 = vst [vmem:[#allocation2 + $0x458] sm:$0xff] %v3196
  %3213 = vst [vmem:[#allocation2 + $0x460] sm:$0x3f] %v3197
  %3214 = vst [vmem:[#allocation2 + $0x468] sm:$0x3f] %v3198
  %3215 = vst [vmem:[#allocation2 + $0x470] sm:$0x3f] %v3199
  %3216 = vst [vmem:[#allocation2 + $0x478] sm:$0x3f] %v3200
  %s3217 = scalar_lea.vmem %s3, 192
  %v3218 = vld [vmem:[%s3217] sm:$0xff]
  %v3219 = vld [vmem:[%s3217 + $0x8] sm:$0xff]
  %v3220 = vld [vmem:[%s3217 + $0x10] sm:$0xff]
  %v3221 = vld [vmem:[%s3217 + $0x18] sm:$0xff]
  %v3222 = vld [vmem:[%s3217 + $0x20] sm:$0xff]
  %v3223 = vld [vmem:[%s3217 + $0x28] sm:$0xff]
  %v3224 = vld [vmem:[%s3217 + $0x30] sm:$0xff]
  %v3225 = vld [vmem:[%s3217 + $0x38] sm:$0xff]
  %v3226 = vld [vmem:[%s3217 + $0x40] sm:$0xff]
  %v3227 = vld [vmem:[%s3217 + $0x48] sm:$0x3f]
  %v3228 = vld [vmem:[%s3217 + $0x50] sm:$0x3f]
  %v3229 = vld [vmem:[%s3217 + $0x58] sm:$0x3f]
  %v3230 = vld [vmem:[#allocation2] sm:$0xff]
  %v3231 = vld [vmem:[#allocation2 + $0x8] sm:$0xff]
  %v3232 = vld [vmem:[#allocation2 + $0x20] sm:$0xff]
  %v3233 = vld [vmem:[#allocation2 + $0x28] sm:$0xff]
  %v3234 = vld [vmem:[#allocation2 + $0x40] sm:$0xff]
  %v3235 = vld [vmem:[#allocation2 + $0x48] sm:$0xff]
  %v3236 = vld [vmem:[#allocation2 + $0x60] sm:$0xff]
  %v3237 = vld [vmem:[#allocation2 + $0x68] sm:$0xff]
  %v3238 = vld [vmem:[#allocation2 + $0x80] sm:$0xff]
  %v3239 = vld [vmem:[#allocation2 + $0x88] sm:$0xff]
  %v3240 = vld [vmem:[#allocation2 + $0xa0] sm:$0xff]
  %v3241 = vld [vmem:[#allocation2 + $0xa8] sm:$0xff]
  %v3242 = vld [vmem:[#allocation2 + $0xc0] sm:$0xff]
  %v3243 = vld [vmem:[#allocation2 + $0xc8] sm:$0xff]
  %v3244 = vld [vmem:[#allocation2 + $0xe0] sm:$0xff]
  %v3245 = vld [vmem:[#allocation2 + $0xe8] sm:$0xff]
  %v3246 = vld [vmem:[#allocation2 + $0x100] sm:$0xff]
  %v3247 = vld [vmem:[#allocation2 + $0x108] sm:$0xff]
  %v3248 = vld [vmem:[#allocation2 + $0x120] sm:$0xff]
  %v3249 = vld [vmem:[#allocation2 + $0x128] sm:$0xff]
  %v3250 = vld [vmem:[#allocation2 + $0x140] sm:$0xff]
  %v3251 = vld [vmem:[#allocation2 + $0x148] sm:$0xff]
  %v3252 = vld [vmem:[#allocation2 + $0x160] sm:$0xff]
  %v3253 = vld [vmem:[#allocation2 + $0x168] sm:$0xff]
  %v3254 = vld [vmem:[#allocation2 + $0x180] sm:$0xff]
  %v3255 = vld [vmem:[#allocation2 + $0x188] sm:$0xff]
  %v3256 = vld [vmem:[#allocation2 + $0x1a0] sm:$0xff]
  %v3257 = vld [vmem:[#allocation2 + $0x1a8] sm:$0xff]
  %v3258 = vld [vmem:[#allocation2 + $0x1c0] sm:$0xff]
  %v3259 = vld [vmem:[#allocation2 + $0x1c8] sm:$0xff]
  %v3260 = vld [vmem:[#allocation2 + $0x1e0] sm:$0xff]
  %v3261 = vld [vmem:[#allocation2 + $0x1e8] sm:$0xff]
  %v3262 = vld [vmem:[#allocation2 + $0x200] sm:$0xff]
  %v3263 = vld [vmem:[#allocation2 + $0x208] sm:$0xff]
  %v3264 = vld [vmem:[#allocation2 + $0x220] sm:$0xff]
  %v3265 = vld [vmem:[#allocation2 + $0x228] sm:$0xff]
  %v3266 = vld [vmem:[#allocation2 + $0x240] sm:$0xff]
  %v3267 = vld [vmem:[#allocation2 + $0x248] sm:$0xff]
  %v3268 = vld [vmem:[#allocation2 + $0x260] sm:$0xff]
  %v3269 = vld [vmem:[#allocation2 + $0x268] sm:$0xff]
  %v3270 = vld [vmem:[#allocation2 + $0x280] sm:$0xff]
  %v3271 = vld [vmem:[#allocation2 + $0x288] sm:$0xff]
  %v3272 = vld [vmem:[#allocation2 + $0x2a0] sm:$0xff]
  %v3273 = vld [vmem:[#allocation2 + $0x2a8] sm:$0xff]
  %v3274 = vld [vmem:[#allocation2 + $0x2c0] sm:$0xff]
  %v3275 = vld [vmem:[#allocation2 + $0x2c8] sm:$0xff]
  %v3276 = vld [vmem:[#allocation2 + $0x2e0] sm:$0xff]
  %v3277 = vld [vmem:[#allocation2 + $0x2e8] sm:$0xff]
  %v3278 = vld [vmem:[#allocation2 + $0x300] sm:$0xff]
  %v3279 = vld [vmem:[#allocation2 + $0x308] sm:$0xff]
  %v3280 = vld [vmem:[#allocation2 + $0x320] sm:$0xff]
  %v3281 = vld [vmem:[#allocation2 + $0x328] sm:$0xff]
  %v3282 = vld [vmem:[#allocation2 + $0x340] sm:$0xff]
  %v3283 = vld [vmem:[#allocation2 + $0x348] sm:$0xff]
  %v3284 = vld [vmem:[#allocation2 + $0x360] sm:$0xff]
  %v3285 = vld [vmem:[#allocation2 + $0x368] sm:$0xff]
  %v3286 = vld [vmem:[#allocation2 + $0x380] sm:$0xff]
  %v3287 = vld [vmem:[#allocation2 + $0x388] sm:$0xff]
  %v3288 = vld [vmem:[#allocation2 + $0x3a0] sm:$0xff]
  %v3289 = vld [vmem:[#allocation2 + $0x3a8] sm:$0xff]
  %v3290 = vld [vmem:[#allocation2 + $0x3c0] sm:$0xff]
  %v3291 = vld [vmem:[#allocation2 + $0x3c8] sm:$0xff]
  %v3292 = vld [vmem:[#allocation2 + $0x3e0] sm:$0xff]
  %v3293 = vld [vmem:[#allocation2 + $0x3e8] sm:$0xff]
  %v3294 = vld [vmem:[#allocation2 + $0x400] sm:$0xff]
  %v3295 = vld [vmem:[#allocation2 + $0x408] sm:$0xff]
  %v3296 = vld [vmem:[#allocation2 + $0x420] sm:$0xff]
  %v3297 = vld [vmem:[#allocation2 + $0x428] sm:$0xff]
  %v3298 = vld [vmem:[#allocation2 + $0x440] sm:$0xff]
  %v3299 = vld [vmem:[#allocation2 + $0x448] sm:$0xff]
  %v3300 = vld [vmem:[#allocation2 + $0x460] sm:$0xff]
  %v3301 = vld [vmem:[#allocation2 + $0x468] sm:$0xff]
  %v3303 = vsel %vm1521, %v3220, 0
  %v3306 = vsel %vm1521, %v3223, 0
  %v3309 = vsel %vm1521, %v3226, 0
  %v3312 = vsel %vm1521, %v3229, 0
  %3314 = vmatprep.subr.mxu0 %v3231
  %3315 = vmatpush1.msra.mxu0 %v3230
  %3316 = vmatprep.subr.mxu0 %v3233
  %3317 = vmatpush1.msra.mxu0 %v3232
  %3318 = vmatprep.subr.mxu0 %v3235
  %3319 = vmatpush1.msra.mxu0 %v3234
  %3320 = vmatprep.subr.mxu0 %v3237
  %3321 = vmatpush1.msra.mxu0 %v3236
  %3322 = vmatprep.subr.mxu0 %v3239
  %3323 = vmatpush1.msra.mxu0 %v3238
  %3324 = vmatprep.subr.mxu0 %v3241
  %3325 = vmatpush1.msra.mxu0 %v3240
  %3326 = vmatprep.subr.mxu0 %v3243
  %3327 = vmatpush1.msra.mxu0 %v3242
  %3328 = vmatprep.subr.mxu0 %v3245
  %3329 = vmatpush1.msra.mxu0 %v3244
  %3330 = vmatprep.subr.mxu0 %v3247
  %3331 = vmatpush1.msra.mxu0 %v3246
  %3332 = vmatprep.subr.mxu0 %v3249
  %3333 = vmatpush1.msra.mxu0 %v3248
  %3334 = vmatprep.subr.mxu0 %v3251
  %3335 = vmatpush1.msra.mxu0 %v3250
  %3336 = vmatprep.subr.mxu0 %v3253
  %3337 = vmatpush1.msra.mxu0 %v3252
  %3338 = vmatprep.subr.mxu0 %v3255
  %3339 = vmatpush1.msra.mxu0 %v3254
  %3340 = vmatprep.subr.mxu0 %v3257
  %3341 = vmatpush1.msra.mxu0 %v3256
  %3342 = vmatprep.subr.mxu0 %v3259
  %3343 = vmatpush1.msra.mxu0 %v3258
  %3344 = vmatprep.subr.mxu0 %v3261
  %3345 = vmatpush1.msra.mxu0 %v3260
  %3346 = vmatprep.subr.mxu0 %v3263
  %3347 = vmatpush1.msra.mxu0 %v3262
  %3348 = vmatprep.subr.mxu0 %v3265
  %3349 = vmatpush1.msra.mxu0 %v3264
  %3350 = vmatprep.subr.mxu0 %v3267
  %3351 = vmatpush1.msra.mxu0 %v3266
  %3352 = vmatprep.subr.mxu0 %v3269
  %3353 = vmatpush1.msra.mxu0 %v3268
  %3354 = vmatprep.subr.mxu0 %v3271
  %3355 = vmatpush1.msra.mxu0 %v3270
  %3356 = vmatprep.subr.mxu0 %v3273
  %3357 = vmatpush1.msra.mxu0 %v3272
  %3358 = vmatprep.subr.mxu0 %v3275
  %3359 = vmatpush1.msra.mxu0 %v3274
  %3360 = vmatprep.subr.mxu0 %v3277
  %3361 = vmatpush1.msra.mxu0 %v3276
  %3362 = vmatprep.subr.mxu0 %v3279
  %3363 = vmatpush1.msra.mxu0 %v3278
  %3364 = vmatprep.subr.mxu0 %v3281
  %3365 = vmatpush1.msra.mxu0 %v3280
  %3366 = vmatprep.subr.mxu0 %v3283
  %3367 = vmatpush1.msra.mxu0 %v3282
  %3368 = vmatprep.subr.mxu0 %v3285
  %3369 = vmatpush1.msra.mxu0 %v3284
  %3370 = vmatprep.subr.mxu0 %v3287
  %3371 = vmatpush1.msra.mxu0 %v3286
  %3372 = vmatprep.subr.mxu0 %v3289
  %3373 = vmatpush1.msra.mxu0 %v3288
  %3374 = vmatprep.subr.mxu0 %v3291
  %3375 = vmatpush1.msra.mxu0 %v3290
  %3376 = vmatprep.subr.mxu0 %v3293
  %3377 = vmatpush1.msra.mxu0 %v3292
  %3378 = vmatprep.mubr.f32.mxu0 %v3219
  %3379 = vmatmul.mubr.f32.gmra.mrb[0].mxu0 %v3218
  %v3380 = vpop.f32.mrb[0].mxu0
  %v3381 = vadd.f32 0.0, %v3380
  %v3382 = vpop.f32.mrb[0].mxu0
  %v3383 = vadd.f32 0.0, %v3382
  %3384 = vmatprep.mubr.f32.mxu0 %v3222
  %3385 = vmatmul.mubr.f32.gmra.mrb[0].mxu0 %v3221
  %v3386 = vpop.f32.mrb[0].mxu0
  %v3387 = vadd.f32 0.0, %v3386
  %v3388 = vpop.f32.mrb[0].mxu0
  %v3389 = vadd.f32 0.0, %v3388
  %3390 = vmatprep.mubr.f32.mxu0 %v3225
  %3391 = vmatmul.mubr.f32.gmra.mrb[0].mxu0 %v3224
  %v3392 = vpop.f32.mrb[0].mxu0
  %v3393 = vadd.f32 0.0, %v3392
  %v3394 = vpop.f32.mrb[0].mxu0
  %v3395 = vadd.f32 0.0, %v3394
  %3396 = vmatprep.mubr.f32.mxu0 %v3228
  %3397 = vmatmul.mubr.f32.gmra.mrb[0].mxu0 %v3227
  %v3398 = vpop.f32.mrb[0].mxu0
  %v3399 = vadd.f32 0.0, %v3398
  %v3400 = vpop.f32.mrb[0].mxu0
  %v3401 = vadd.f32 0.0, %v3400
  %3402 = vdwg.mxu0
  %3403 = vmatprep.subr.mxu0 %v3295
  %3404 = vmatpush1.msra.mxu0 %v3294
  %3405 = vmatprep.subr.mxu0 %v3297
  %3406 = vmatpush1.msra.mxu0 %v3296
  %3407 = vmatprep.subr.mxu0 %v3299
  %3408 = vmatpush1.msra.mxu0 %v3298
  %3409 = vmatprep.subr.mxu0 %v3301
  %3410 = vmatpush1.msra.mxu0 %v3300
  %3411 = vmatprep.subr.mxu0 0.0
  %3412 = vmatpush1.msra.mxu0 0.0
  %3413 = vmatprep.subr.mxu0 0.0
  %3414 = vmatpush1.msra.mxu0 0.0
  %3415 = vmatprep.subr.mxu0 0.0
  %3416 = vmatpush1.msra.mxu0 0.0
  %3417 = vmatprep.subr.mxu0 0.0
  %3418 = vmatpush1.msra.mxu0 0.0
  %3419 = vmatprep.subr.mxu0 0.0
  %3420 = vmatpush1.msra.mxu0 0.0
  %3421 = vmatprep.subr.mxu0 0.0
  %3422 = vmatpush1.msra.mxu0 0.0
  %3423 = vmatprep.subr.mxu0 0.0
  %3424 = vmatpush1.msra.mxu0 0.0
  %3425 = vmatprep.subr.mxu0 0.0
  %3426 = vmatpush1.msra.mxu0 0.0
  %3427 = vmatprep.subr.mxu0 0.0
  %3428 = vmatpush1.msra.mxu0 0.0
  %3429 = vmatprep.subr.mxu0 0.0
  %3430 = vmatpush1.msra.mxu0 0.0
  %3431 = vmatprep.subr.mxu0 0.0
  %3432 = vmatpush1.msra.mxu0 0.0
  %3433 = vmatprep.subr.mxu0 0.0
  %3434 = vmatpush1.msra.mxu0 0.0
  %3435 = vmatprep.subr.mxu0 0.0
  %3436 = vmatpush1.msra.mxu0 0.0
  %3437 = vmatprep.subr.mxu0 0.0
  %3438 = vmatpush1.msra.mxu0 0.0
  %3439 = vmatprep.subr.mxu0 0.0
  %3440 = vmatpush1.msra.mxu0 0.0
  %3441 = vmatprep.subr.mxu0 0.0
  %3442 = vmatpush1.msra.mxu0 0.0
  %3443 = vmatprep.subr.mxu0 0.0
  %3444 = vmatpush1.msra.mxu0 0.0
  %3445 = vmatprep.subr.mxu0 0.0
  %3446 = vmatpush1.msra.mxu0 0.0
  %3447 = vmatprep.subr.mxu0 0.0
  %3448 = vmatpush1.msra.mxu0 0.0
  %3449 = vmatprep.subr.mxu0 0.0
  %3450 = vmatpush1.msra.mxu0 0.0
  %3451 = vmatprep.subr.mxu0 0.0
  %3452 = vmatpush1.msra.mxu0 0.0
  %3453 = vmatprep.subr.mxu0 0.0
  %3454 = vmatpush1.msra.mxu0 0.0
  %3455 = vmatprep.subr.mxu0 0.0
  %3456 = vmatpush1.msra.mxu0 0.0
  %3457 = vmatprep.subr.mxu0 0.0
  %3458 = vmatpush1.msra.mxu0 0.0
  %3459 = vmatprep.subr.mxu0 0.0
  %3460 = vmatpush1.msra.mxu0 0.0
  %3461 = vmatprep.subr.mxu0 0.0
  %3462 = vmatpush1.msra.mxu0 0.0
  %3463 = vmatprep.subr.mxu0 0.0
  %3464 = vmatpush1.msra.mxu0 0.0
  %3465 = vmatprep.subr.mxu0 0.0
  %3466 = vmatpush1.msra.mxu0 0.0
  %3467 = vmatprep.mubr.f32.mxu0 0.0
  %3468 = vmatmul.mubr.f32.gmra.mrb[0].mxu0 %v3303
  %v3469 = vpop.f32.mrb[0].mxu0
  %v3470 = vadd.f32 %v3381, %v3469
  %v3471 = vpop.f32.mrb[0].mxu0
  %v3472 = vadd.f32 %v3383, %v3471
  %3473 = vmatprep.mubr.f32.mxu0 0.0
  %3474 = vmatmul.mubr.f32.gmra.mrb[0].mxu0 %v3306
  %v3475 = vpop.f32.mrb[0].mxu0
  %v3476 = vadd.f32 %v3387, %v3475
  %v3477 = vpop.f32.mrb[0].mxu0
  %v3478 = vadd.f32 %v3389, %v3477
  %3479 = vmatprep.mubr.f32.mxu0 0.0
  %3480 = vmatmul.mubr.f32.gmra.mrb[0].mxu0 %v3309
  %v3481 = vpop.f32.mrb[0].mxu0
  %v3482 = vadd.f32 %v3393, %v3481
  %v3483 = vpop.f32.mrb[0].mxu0
  %v3484 = vadd.f32 %v3395, %v3483
  %3485 = vmatprep.mubr.f32.mxu0 0.0
  %3486 = vmatmul.mubr.f32.gmra.mrb[0].mxu0 %v3312
  %v3487 = vpop.f32.mrb[0].mxu0
  %v3488 = vadd.f32 %v3399, %v3487
  %v3489 = vpop.f32.mrb[0].mxu0
  %v3490 = vadd.f32 %v3401, %v3489
  %3491 = vdwg.mxu0
  %s3492 = scalar_lea.vmem %s3, 288
  %v3493 = vld [vmem:[%s3492] sm:$0xff]
  %v3494 = vld [vmem:[%s3492 + $0x8] sm:$0xff]
  %v3495 = vld [vmem:[%s3492 + $0x10] sm:$0xff]
  %v3496 = vld [vmem:[%s3492 + $0x18] sm:$0xff]
  %v3497 = vld [vmem:[%s3492 + $0x20] sm:$0xff]
  %v3498 = vld [vmem:[%s3492 + $0x28] sm:$0xff]
  %v3499 = vld [vmem:[%s3492 + $0x30] sm:$0xff]
  %v3500 = vld [vmem:[%s3492 + $0x38] sm:$0xff]
  %v3501 = vld [vmem:[%s3492 + $0x40] sm:$0xff]
  %v3502 = vld [vmem:[%s3492 + $0x48] sm:$0x3f]
  %v3503 = vld [vmem:[%s3492 + $0x50] sm:$0x3f]
  %v3504 = vld [vmem:[%s3492 + $0x58] sm:$0x3f]
  %v3505 = vld [vmem:[#allocation2 + $0x10] sm:$0xff]
  %v3506 = vld [vmem:[#allocation2 + $0x18] sm:$0xff]
  %v3507 = vld [vmem:[#allocation2 + $0x30] sm:$0xff]
  %v3508 = vld [vmem:[#allocation2 + $0x38] sm:$0xff]
  %v3509 = vld [vmem:[#allocation2 + $0x50] sm:$0xff]
  %v3510 = vld [vmem:[#allocation2 + $0x58] sm:$0xff]
  %v3511 = vld [vmem:[#allocation2 + $0x70] sm:$0xff]
  %v3512 = vld [vmem:[#allocation2 + $0x78] sm:$0xff]
  %v3513 = vld [vmem:[#allocation2 + $0x90] sm:$0xff]
  %v3514 = vld [vmem:[#allocation2 + $0x98] sm:$0xff]
  %v3515 = vld [vmem:[#allocation2 + $0xb0] sm:$0xff]
  %v3516 = vld [vmem:[#allocation2 + $0xb8] sm:$0xff]
  %v3517 = vld [vmem:[#allocation2 + $0xd0] sm:$0xff]
  %v3518 = vld [vmem:[#allocation2 + $0xd8] sm:$0xff]
  %v3519 = vld [vmem:[#allocation2 + $0xf0] sm:$0xff]
  %v3520 = vld [vmem:[#allocation2 + $0xf8] sm:$0xff]
  %v3521 = vld [vmem:[#allocation2 + $0x110] sm:$0xff]
  %v3522 = vld [vmem:[#allocation2 + $0x118] sm:$0xff]
  %v3523 = vld [vmem:[#allocation2 + $0x130] sm:$0xff]
  %v3524 = vld [vmem:[#allocation2 + $0x138] sm:$0xff]
  %v3525 = vld [vmem:[#allocation2 + $0x150] sm:$0xff]
  %v3526 = vld [vmem:[#allocation2 + $0x158] sm:$0xff]
  %v3527 = vld [vmem:[#allocation2 + $0x170] sm:$0xff]
  %v3528 = vld [vmem:[#allocation2 + $0x178] sm:$0xff]
  %v3529 = vld [vmem:[#allocation2 + $0x190] sm:$0xff]
  %v3530 = vld [vmem:[#allocation2 + $0x198] sm:$0xff]
  %v3531 = vld [vmem:[#allocation2 + $0x1b0] sm:$0xff]
  %v3532 = vld [vmem:[#allocation2 + $0x1b8] sm:$0xff]
  %v3533 = vld [vmem:[#allocation2 + $0x1d0] sm:$0xff]
  %v3534 = vld [vmem:[#allocation2 + $0x1d8] sm:$0xff]
  %v3535 = vld [vmem:[#allocation2 + $0x1f0] sm:$0xff]
  %v3536 = vld [vmem:[#allocation2 + $0x1f8] sm:$0xff]
  %v3537 = vld [vmem:[#allocation2 + $0x210] sm:$0xff]
  %v3538 = vld [vmem:[#allocation2 + $0x218] sm:$0xff]
  %v3539 = vld [vmem:[#allocation2 + $0x230] sm:$0xff]
  %v3540 = vld [vmem:[#allocation2 + $0x238] sm:$0xff]
  %v3541 = vld [vmem:[#allocation2 + $0x250] sm:$0xff]
  %v3542 = vld [vmem:[#allocation2 + $0x258] sm:$0xff]
  %v3543 = vld [vmem:[#allocation2 + $0x270] sm:$0xff]
  %v3544 = vld [vmem:[#allocation2 + $0x278] sm:$0xff]
  %v3545 = vld [vmem:[#allocation2 + $0x290] sm:$0xff]
  %v3546 = vld [vmem:[#allocation2 + $0x298] sm:$0xff]
  %v3547 = vld [vmem:[#allocation2 + $0x2b0] sm:$0xff]
  %v3548 = vld [vmem:[#allocation2 + $0x2b8] sm:$0xff]
  %v3549 = vld [vmem:[#allocation2 + $0x2d0] sm:$0xff]
  %v3550 = vld [vmem:[#allocation2 + $0x2d8] sm:$0xff]
  %v3551 = vld [vmem:[#allocation2 + $0x2f0] sm:$0xff]
  %v3552 = vld [vmem:[#allocation2 + $0x2f8] sm:$0xff]
  %v3553 = vld [vmem:[#allocation2 + $0x310] sm:$0xff]
  %v3554 = vld [vmem:[#allocation2 + $0x318] sm:$0xff]
  %v3555 = vld [vmem:[#allocation2 + $0x330] sm:$0xff]
  %v3556 = vld [vmem:[#allocation2 + $0x338] sm:$0xff]
  %v3557 = vld [vmem:[#allocation2 + $0x350] sm:$0xff]
  %v3558 = vld [vmem:[#allocation2 + $0x358] sm:$0xff]
  %v3559 = vld [vmem:[#allocation2 + $0x370] sm:$0xff]
  %v3560 = vld [vmem:[#allocation2 + $0x378] sm:$0xff]
  %v3561 = vld [vmem:[#allocation2 + $0x390] sm:$0xff]
  %v3562 = vld [vmem:[#allocation2 + $0x398] sm:$0xff]
  %v3563 = vld [vmem:[#allocation2 + $0x3b0] sm:$0xff]
  %v3564 = vld [vmem:[#allocation2 + $0x3b8] sm:$0xff]
  %v3565 = vld [vmem:[#allocation2 + $0x3d0] sm:$0xff]
  %v3566 = vld [vmem:[#allocation2 + $0x3d8] sm:$0xff]
  %v3567 = vld [vmem:[#allocation2 + $0x3f0] sm:$0xff]
  %v3568 = vld [vmem:[#allocation2 + $0x3f8] sm:$0xff]
  %v3569 = vld [vmem:[#allocation2 + $0x410] sm:$0xff]
  %v3570 = vld [vmem:[#allocation2 + $0x418] sm:$0xff]
  %v3571 = vld [vmem:[#allocation2 + $0x430] sm:$0xff]
  %v3572 = vld [vmem:[#allocation2 + $0x438] sm:$0xff]
  %v3573 = vld [vmem:[#allocation2 + $0x450] sm:$0xff]
  %v3574 = vld [vmem:[#allocation2 + $0x458] sm:$0xff]
  %v3575 = vld [vmem:[#allocation2 + $0x470] sm:$0xff]
  %v3576 = vld [vmem:[#allocation2 + $0x478] sm:$0xff]
  %v3578 = vsel %vm1521, %v3495, 0
  %v3581 = vsel %vm1521, %v3498, 0
  %v3584 = vsel %vm1521, %v3501, 0
  %v3587 = vsel %vm1521, %v3504, 0
  %3589 = vmatprep.subr.mxu0 %v3506
  %3590 = vmatpush1.msra.mxu0 %v3505
  %3591 = vmatprep.subr.mxu0 %v3508
  %3592 = vmatpush1.msra.mxu0 %v3507
  %3593 = vmatprep.subr.mxu0 %v3510
  %3594 = vmatpush1.msra.mxu0 %v3509
  %3595 = vmatprep.subr.mxu0 %v3512
  %3596 = vmatpush1.msra.mxu0 %v3511
  %3597 = vmatprep.subr.mxu0 %v3514
  %3598 = vmatpush1.msra.mxu0 %v3513
  %3599 = vmatprep.subr.mxu0 %v3516
  %3600 = vmatpush1.msra.mxu0 %v3515
  %3601 = vmatprep.subr.mxu0 %v3518
  %3602 = vmatpush1.msra.mxu0 %v3517
  %3603 = vmatprep.subr.mxu0 %v3520
  %3604 = vmatpush1.msra.mxu0 %v3519
  %3605 = vmatprep.subr.mxu0 %v3522
  %3606 = vmatpush1.msra.mxu0 %v3521
  %3607 = vmatprep.subr.mxu0 %v3524
  %3608 = vmatpush1.msra.mxu0 %v3523
  %3609 = vmatprep.subr.mxu0 %v3526
  %3610 = vmatpush1.msra.mxu0 %v3525
  %3611 = vmatprep.subr.mxu0 %v3528
  %3612 = vmatpush1.msra.mxu0 %v3527
  %3613 = vmatprep.subr.mxu0 %v3530
  %3614 = vmatpush1.msra.mxu0 %v3529
  %3615 = vmatprep.subr.mxu0 %v3532
  %3616 = vmatpush1.msra.mxu0 %v3531
  %3617 = vmatprep.subr.mxu0 %v3534
  %3618 = vmatpush1.msra.mxu0 %v3533
  %3619 = vmatprep.subr.mxu0 %v3536
  %3620 = vmatpush1.msra.mxu0 %v3535
  %3621 = vmatprep.subr.mxu0 %v3538
  %3622 = vmatpush1.msra.mxu0 %v3537
  %3623 = vmatprep.subr.mxu0 %v3540
  %3624 = vmatpush1.msra.mxu0 %v3539
  %3625 = vmatprep.subr.mxu0 %v3542
  %3626 = vmatpush1.msra.mxu0 %v3541
  %3627 = vmatprep.subr.mxu0 %v3544
  %3628 = vmatpush1.msra.mxu0 %v3543
  %3629 = vmatprep.subr.mxu0 %v3546
  %3630 = vmatpush1.msra.mxu0 %v3545
  %3631 = vmatprep.subr.mxu0 %v3548
  %3632 = vmatpush1.msra.mxu0 %v3547
  %3633 = vmatprep.subr.mxu0 %v3550
  %3634 = vmatpush1.msra.mxu0 %v3549
  %3635 = vmatprep.subr.mxu0 %v3552
  %3636 = vmatpush1.msra.mxu0 %v3551
  %3637 = vmatprep.subr.mxu0 %v3554
  %3638 = vmatpush1.msra.mxu0 %v3553
  %3639 = vmatprep.subr.mxu0 %v3556
  %3640 = vmatpush1.msra.mxu0 %v3555
  %3641 = vmatprep.subr.mxu0 %v3558
  %3642 = vmatpush1.msra.mxu0 %v3557
  %3643 = vmatprep.subr.mxu0 %v3560
  %3644 = vmatpush1.msra.mxu0 %v3559
  %3645 = vmatprep.subr.mxu0 %v3562
  %3646 = vmatpush1.msra.mxu0 %v3561
  %3647 = vmatprep.subr.mxu0 %v3564
  %3648 = vmatpush1.msra.mxu0 %v3563
  %3649 = vmatprep.subr.mxu0 %v3566
  %3650 = vmatpush1.msra.mxu0 %v3565
  %3651 = vmatprep.subr.mxu0 %v3568
  %3652 = vmatpush1.msra.mxu0 %v3567
  %3653 = vmatprep.mubr.f32.mxu0 %v3494
  %3654 = vmatmul.mubr.f32.gmra.mrb[0].mxu0 %v3493
  %v3655 = vpop.f32.mrb[0].mxu0
  %v3656 = vadd.f32 0.0, %v3655
  %v3657 = vpop.f32.mrb[0].mxu0
  %v3658 = vadd.f32 0.0, %v3657
  %3659 = vmatprep.mubr.f32.mxu0 %v3497
  %3660 = vmatmul.mubr.f32.gmra.mrb[0].mxu0 %v3496
  %v3661 = vpop.f32.mrb[0].mxu0
  %v3662 = vadd.f32 0.0, %v3661
  %v3663 = vpop.f32.mrb[0].mxu0
  %v3664 = vadd.f32 0.0, %v3663
  %3665 = vmatprep.mubr.f32.mxu0 %v3500
  %3666 = vmatmul.mubr.f32.gmra.mrb[0].mxu0 %v3499
  %v3667 = vpop.f32.mrb[0].mxu0
  %v3668 = vadd.f32 0.0, %v3667
  %v3669 = vpop.f32.mrb[0].mxu0
  %v3670 = vadd.f32 0.0, %v3669
  %3671 = vmatprep.mubr.f32.mxu0 %v3503
  %3672 = vmatmul.mubr.f32.gmra.mrb[0].mxu0 %v3502
  %v3673 = vpop.f32.mrb[0].mxu0
  %v3674 = vadd.f32 0.0, %v3673
  %v3675 = vpop.f32.mrb[0].mxu0
  %v3676 = vadd.f32 0.0, %v3675
  %3677 = vdwg.mxu0
  %3678 = vmatprep.subr.mxu0 %v3570
  %3679 = vmatpush1.msra.mxu0 %v3569
  %3680 = vmatprep.subr.mxu0 %v3572
  %3681 = vmatpush1.msra.mxu0 %v3571
  %3682 = vmatprep.subr.mxu0 %v3574
  %3683 = vmatpush1.msra.mxu0 %v3573
  %3684 = vmatprep.subr.mxu0 %v3576
  %3685 = vmatpush1.msra.mxu0 %v3575
  %3686 = vmatprep.subr.mxu0 0.0
  %3687 = vmatpush1.msra.mxu0 0.0
  %3688 = vmatprep.subr.mxu0 0.0
  %3689 = vmatpush1.msra.mxu0 0.0
  %3690 = vmatprep.subr.mxu0 0.0
  %3691 = vmatpush1.msra.mxu0 0.0
  %3692 = vmatprep.subr.mxu0 0.0
  %3693 = vmatpush1.msra.mxu0 0.0
  %3694 = vmatprep.subr.mxu0 0.0
  %3695 = vmatpush1.msra.mxu0 0.0
  %3696 = vmatprep.subr.mxu0 0.0
  %3697 = vmatpush1.msra.mxu0 0.0
  %3698 = vmatprep.subr.mxu0 0.0
  %3699 = vmatpush1.msra.mxu0 0.0
  %3700 = vmatprep.subr.mxu0 0.0
  %3701 = vmatpush1.msra.mxu0 0.0
  %3702 = vmatprep.subr.mxu0 0.0
  %3703 = vmatpush1.msra.mxu0 0.0
  %3704 = vmatprep.subr.mxu0 0.0
  %3705 = vmatpush1.msra.mxu0 0.0
  %3706 = vmatprep.subr.mxu0 0.0
  %3707 = vmatpush1.msra.mxu0 0.0
  %3708 = vmatprep.subr.mxu0 0.0
  %3709 = vmatpush1.msra.mxu0 0.0
  %3710 = vmatprep.subr.mxu0 0.0
  %3711 = vmatpush1.msra.mxu0 0.0
  %3712 = vmatprep.subr.mxu0 0.0
  %3713 = vmatpush1.msra.mxu0 0.0
  %3714 = vmatprep.subr.mxu0 0.0
  %3715 = vmatpush1.msra.mxu0 0.0
  %3716 = vmatprep.subr.mxu0 0.0
  %3717 = vmatpush1.msra.mxu0 0.0
  %3718 = vmatprep.subr.mxu0 0.0
  %3719 = vmatpush1.msra.mxu0 0.0
  %3720 = vmatprep.subr.mxu0 0.0
  %3721 = vmatpush1.msra.mxu0 0.0
  %3722 = vmatprep.subr.mxu0 0.0
  %3723 = vmatpush1.msra.mxu0 0.0
  %3724 = vmatprep.subr.mxu0 0.0
  %3725 = vmatpush1.msra.mxu0 0.0
  %3726 = vmatprep.subr.mxu0 0.0
  %3727 = vmatpush1.msra.mxu0 0.0
  %3728 = vmatprep.subr.mxu0 0.0
  %3729 = vmatpush1.msra.mxu0 0.0
  %3730 = vmatprep.subr.mxu0 0.0
  %3731 = vmatpush1.msra.mxu0 0.0
  %3732 = vmatprep.subr.mxu0 0.0
  %3733 = vmatpush1.msra.mxu0 0.0
  %3734 = vmatprep.subr.mxu0 0.0
  %3735 = vmatpush1.msra.mxu0 0.0
  %3736 = vmatprep.subr.mxu0 0.0
  %3737 = vmatpush1.msra.mxu0 0.0
  %3738 = vmatprep.subr.mxu0 0.0
  %3739 = vmatpush1.msra.mxu0 0.0
  %3740 = vmatprep.subr.mxu0 0.0
  %3741 = vmatpush1.msra.mxu0 0.0
  %3742 = vmatprep.mubr.f32.mxu0 0.0
  %3743 = vmatmul.mubr.f32.gmra.mrb[0].mxu0 %v3578
  %v3744 = vpop.f32.mrb[0].mxu0
  %v3745 = vadd.f32 %v3656, %v3744
  %v3746 = vpop.f32.mrb[0].mxu0
  %v3747 = vadd.f32 %v3658, %v3746
  %3748 = vmatprep.mubr.f32.mxu0 0.0
  %3749 = vmatmul.mubr.f32.gmra.mrb[0].mxu0 %v3581
  %v3750 = vpop.f32.mrb[0].mxu0
  %v3751 = vadd.f32 %v3662, %v3750
  %v3752 = vpop.f32.mrb[0].mxu0
  %v3753 = vadd.f32 %v3664, %v3752
  %3754 = vmatprep.mubr.f32.mxu0 0.0
  %3755 = vmatmul.mubr.f32.gmra.mrb[0].mxu0 %v3584
  %v3756 = vpop.f32.mrb[0].mxu0
  %v3757 = vadd.f32 %v3668, %v3756
  %v3758 = vpop.f32.mrb[0].mxu0
  %v3759 = vadd.f32 %v3670, %v3758
  %3760 = vmatprep.mubr.f32.mxu0 0.0
  %3761 = vmatmul.mubr.f32.gmra.mrb[0].mxu0 %v3587
  %v3762 = vpop.f32.mrb[0].mxu0
  %v3763 = vadd.f32 %v3674, %v3762
  %v3764 = vpop.f32.mrb[0].mxu0
  %v3765 = vadd.f32 %v3676, %v3764
  %3766 = vdwg.mxu0
  %3767 = vset.pattern.permute.xlu0 3
  %3768 = vperm.xlu0 %3767, %v410
  %v3769 = vpop.permute.xlu0 %3768
  %3771 = vset.pattern.permute.xlu0 3
  %3772 = vperm.xlu0 %3771, %v411
  %v3773 = vpop.permute.xlu0 %3772
  %3775 = vset.pattern.permute.xlu0 3
  %3776 = vperm.xlu0 %3775, %v412
  %v3777 = vpop.permute.xlu0 %3776
  %3779 = vset.pattern.permute.xlu0 3
  %3780 = vperm.xlu0 %3779, %v413
  %v3781 = vpop.permute.xlu0 %3780
  %v3783 = vadd.f32 %v3470, %v3769
  %v3784 = vadd.f32 %v3472, %v3769
  %v3785 = vadd.f32 %v3745, %v3769
  %v3786 = vadd.f32 %v3747, %v3769
  %v3787 = vadd.f32 %v3476, %v3773
  %v3788 = vadd.f32 %v3478, %v3773
  %v3789 = vadd.f32 %v3751, %v3773
  %v3790 = vadd.f32 %v3753, %v3773
  %v3791 = vadd.f32 %v3482, %v3777
  %v3792 = vadd.f32 %v3484, %v3777
  %v3793 = vadd.f32 %v3757, %v3777
  %v3794 = vadd.f32 %v3759, %v3777
  %v3795 = vadd.f32 %v3488, %v3781
  %v3796 = vadd.f32 %v3490, %v3781
  %v3797 = vadd.f32 %v3763, %v3781
  %v3798 = vadd.f32 %v3765, %v3781
  %v3799 = vadd.f32 %v3783, %v3784
  %v3800 = vadd.f32 %v3799, %v3785
  %v3801 = vadd.f32 %v3800, %v3786
  %3802 = vadd.xlane.f32.xlu0 %v3801
  %v3803 = vpop.xlane.xlu0 %3802
  %v3804 = vadd.f32 %v3787, %v3788
  %v3805 = vadd.f32 %v3804, %v3789
  %v3806 = vadd.f32 %v3805, %v3790
  %3807 = vadd.xlane.f32.xlu0 %v3806
  %v3808 = vpop.xlane.xlu0 %3807
  %v3809 = vadd.f32 %v3791, %v3792
  %v3810 = vadd.f32 %v3809, %v3793
  %v3811 = vadd.f32 %v3810, %v3794
  %3812 = vadd.xlane.f32.xlu0 %v3811
  %v3813 = vpop.xlane.xlu0 %3812
  %v3814 = vsel %vm2038, %v3795, 0.0
  %v3815 = vsel %vm2038, %v3796, 0.0
  %v3816 = vadd.f32 %v3814, %v3815
  %v3817 = vsel %vm2038, %v3797, 0.0
  %v3818 = vadd.f32 %v3816, %v3817
  %v3819 = vsel %vm2038, %v3798, 0.0
  %v3820 = vadd.f32 %v3818, %v3819
  %3821 = vadd.xlane.f32.xlu0 %v3820
  %v3822 = vpop.xlane.xlu0 %3821
  %v3823 = vmul.f32 %v3803, %v2048
  %v3824 = vmul.f32 %v3808, %v2048
  %v3825 = vmul.f32 %v3813, %v2048
  %v3826 = vmul.f32 %v3822, %v2048
  %v3827 = vsub.f32 %v3783, %v3823
  %v3828 = vsub.f32 %v3784, %v3823
  %v3829 = vsub.f32 %v3785, %v3823
  %v3830 = vsub.f32 %v3786, %v3823
  %v3831 = vsub.f32 %v3787, %v3824
  %v3832 = vsub.f32 %v3788, %v3824
  %v3833 = vsub.f32 %v3789, %v3824
  %v3834 = vsub.f32 %v3790, %v3824
  %v3835 = vsub.f32 %v3791, %v3825
  %v3836 = vsub.f32 %v3792, %v3825
  %v3837 = vsub.f32 %v3793, %v3825
  %v3838 = vsub.f32 %v3794, %v3825
  %v3839 = vsub.f32 %v3795, %v3826
  %v3840 = vsub.f32 %v3796, %v3826
  %v3841 = vsub.f32 %v3797, %v3826
  %v3842 = vsub.f32 %v3798, %v3826
  %v3843 = vmul.f32 %v3827, %v3827
  %v3844 = vmul.f32 %v3828, %v3828
  %v3845 = vmul.f32 %v3829, %v3829
  %v3846 = vmul.f32 %v3830, %v3830
  %v3847 = vmul.f32 %v3831, %v3831
  %v3848 = vmul.f32 %v3832, %v3832
  %v3849 = vmul.f32 %v3833, %v3833
  %v3850 = vmul.f32 %v3834, %v3834
  %v3851 = vmul.f32 %v3835, %v3835
  %v3852 = vmul.f32 %v3836, %v3836
  %v3853 = vmul.f32 %v3837, %v3837
  %v3854 = vmul.f32 %v3838, %v3838
  %v3855 = vmul.f32 %v3839, %v3839
  %v3856 = vmul.f32 %v3840, %v3840
  %v3857 = vmul.f32 %v3841, %v3841
  %v3858 = vmul.f32 %v3842, %v3842
  %v3859 = vadd.f32 %v3843, %v3844
  %v3860 = vadd.f32 %v3859, %v3845
  %v3861 = vadd.f32 %v3860, %v3846
  %3862 = vadd.xlane.f32.xlu0 %v3861
  %v3863 = vpop.xlane.xlu0 %3862
  %v3864 = vadd.f32 %v3847, %v3848
  %v3865 = vadd.f32 %v3864, %v3849
  %v3866 = vadd.f32 %v3865, %v3850
  %3867 = vadd.xlane.f32.xlu0 %v3866
  %v3868 = vpop.xlane.xlu0 %3867
  %v3869 = vadd.f32 %v3851, %v3852
  %v3870 = vadd.f32 %v3869, %v3853
  %v3871 = vadd.f32 %v3870, %v3854
  %3872 = vadd.xlane.f32.xlu0 %v3871
  %v3873 = vpop.xlane.xlu0 %3872
  %v3874 = vsel %vm2038, %v3855, 0.0
  %v3875 = vsel %vm2038, %v3856, 0.0
  %v3876 = vadd.f32 %v3874, %v3875
  %v3877 = vsel %vm2038, %v3857, 0.0
  %v3878 = vadd.f32 %v3876, %v3877
  %v3879 = vsel %vm2038, %v3858, 0.0
  %v3880 = vadd.f32 %v3878, %v3879
  %3881 = vadd.xlane.f32.xlu0 %v3880
  %v3882 = vpop.xlane.xlu0 %3881
  %v3883 = vmul.f32 %v3863, %v2048
  %v3884 = vmul.f32 %v3868, %v2048
  %v3885 = vmul.f32 %v3873, %v2048
  %v3886 = vmul.f32 %v3882, %v2048
  %v3887 = vadd.f32 %v3883, 1e-05
  %v3888 = vadd.f32 %v3884, 1e-05
  %v3889 = vadd.f32 %v3885, 1e-05
  %v3890 = vadd.f32 %v3886, 1e-05
  %v3891 = vrsqrt.pop %v3887
  %v3892 = vrsqrt.pop %v3888
  %v3893 = vrsqrt.pop %v3889
  %v3894 = vrsqrt.pop %v3890
  %v3895 = vmul.f32 %v410, %v3891
  %v3896 = vmul.f32 %v411, %v3892
  %v3897 = vmul.f32 %v412, %v3893
  %v3898 = vmul.f32 %v413, %v3894
  %3900 = vset.pattern.permute.xlu0 4
  %3901 = vperm.xlu0 %3900, %v3895
  %v3902 = vpop.permute.xlu0 %3901
  %3905 = vset.pattern.permute.xlu0 4
  %3906 = vperm.xlu0 %3905, %v3896
  %v3907 = vpop.permute.xlu0 %3906
  %3910 = vset.pattern.permute.xlu0 4
  %3911 = vperm.xlu0 %3910, %v3897
  %v3912 = vpop.permute.xlu0 %3911
  %3915 = vset.pattern.permute.xlu0 4
  %3916 = vperm.xlu0 %3915, %v3898
  %v3917 = vpop.permute.xlu0 %3916
  %v3919 = vmul.f32 %v3827, %v3902
  %v3920 = vmul.f32 %v3828, %v3902
  %v3921 = vmul.f32 %v3829, %v3902
  %v3922 = vmul.f32 %v3830, %v3902
  %v3923 = vmul.f32 %v3831, %v3907
  %v3924 = vmul.f32 %v3832, %v3907
  %v3925 = vmul.f32 %v3833, %v3907
  %v3926 = vmul.f32 %v3834, %v3907
  %v3927 = vmul.f32 %v3835, %v3912
  %v3928 = vmul.f32 %v3836, %v3912
  %v3929 = vmul.f32 %v3837, %v3912
  %v3930 = vmul.f32 %v3838, %v3912
  %v3931 = vmul.f32 %v3839, %v3917
  %v3932 = vmul.f32 %v3840, %v3917
  %v3933 = vmul.f32 %v3841, %v3917
  %v3934 = vmul.f32 %v3842, %v3917
  %3935 = vset.pattern.permute.xlu0 5
  %3936 = vperm.xlu0 %3935, %v410
  %v3937 = vpop.permute.xlu0 %3936
  %3939 = vset.pattern.permute.xlu0 5
  %3940 = vperm.xlu0 %3939, %v411
  %v3941 = vpop.permute.xlu0 %3940
  %3943 = vset.pattern.permute.xlu0 5
  %3944 = vperm.xlu0 %3943, %v412
  %v3945 = vpop.permute.xlu0 %3944
  %3947 = vset.pattern.permute.xlu0 5
  %3948 = vperm.xlu0 %3947, %v413
  %v3949 = vpop.permute.xlu0 %3948
  %v3951 = vadd.f32 %v3919, %v3937
  %v3952 = vadd.f32 %v3920, %v3937
  %v3953 = vadd.f32 %v3921, %v3937
  %v3954 = vadd.f32 %v3922, %v3937
  %v3955 = vadd.f32 %v3923, %v3941
  %v3956 = vadd.f32 %v3924, %v3941
  %v3957 = vadd.f32 %v3925, %v3941
  %v3958 = vadd.f32 %v3926, %v3941
  %v3959 = vadd.f32 %v3927, %v3945
  %v3960 = vadd.f32 %v3928, %v3945
  %v3961 = vadd.f32 %v3929, %v3945
  %v3962 = vadd.f32 %v3930, %v3945
  %v3963 = vadd.f32 %v3931, %v3949
  %v3964 = vadd.f32 %v3932, %v3949
  %v3965 = vadd.f32 %v3933, %v3949
  %v3966 = vadd.f32 %v3934, %v3949
  %v3967 = vmul.f32 %v3951, 0.1
  %v3968 = vmul.f32 %v3952, 0.1
  %v3969 = vmul.f32 %v3953, 0.1
  %v3970 = vmul.f32 %v3954, 0.1
  %v3971 = vmul.f32 %v3955, 0.1
  %v3972 = vmul.f32 %v3956, 0.1
  %v3973 = vmul.f32 %v3957, 0.1
  %v3974 = vmul.f32 %v3958, 0.1
  %v3975 = vmul.f32 %v3959, 0.1
  %v3976 = vmul.f32 %v3960, 0.1
  %v3977 = vmul.f32 %v3961, 0.1
  %v3978 = vmul.f32 %v3962, 0.1
  %v3979 = vmul.f32 %v3963, 0.1
  %v3980 = vmul.f32 %v3964, 0.1
  %v3981 = vmul.f32 %v3965, 0.1
  %v3982 = vmul.f32 %v3966, 0.1
  %v3983 = vadd.f32 %v3967, %v299
  %v3984 = vadd.f32 %v3968, %v301
  %v3985 = vadd.f32 %v3969, %v388
  %v3986 = vadd.f32 %v3970, %v390
  %v3987 = vadd.f32 %v3971, %v305
  %v3988 = vadd.f32 %v3972, %v307
  %v3989 = vadd.f32 %v3973, %v394
  %v3990 = vadd.f32 %v3974, %v396
  %v3991 = vadd.f32 %v3975, %v311
  %v3992 = vadd.f32 %v3976, %v313
  %v3993 = vadd.f32 %v3977, %v400
  %v3994 = vadd.f32 %v3978, %v402
  %v3995 = vadd.f32 %v3979, %v317
  %v3996 = vadd.f32 %v3980, %v319
  %v3997 = vadd.f32 %v3981, %v406
  %v3998 = vadd.f32 %v3982, %v408
  %v3999 = vld [vmem:[%s5] sm:$0xff]
  %v4000 = vld [vmem:[%s5 + $0x8] sm:$0xff]
  %v4001 = vld [vmem:[%s5 + $0x10] sm:$0xff]
  %v4002 = vld [vmem:[%s5 + $0x18] sm:$0x3f]
  %4007 = vrot.lane.b32.xlu0 %v3986, 17
  %v4008 = vpop.permute.xlu0 %4007
  %4009 = vrot.lane.b32.xlu0 %v3990, 17
  %v4010 = vpop.permute.xlu0 %4009
  %4011 = vrot.lane.b32.xlu0 %v3994, 17
  %v4012 = vpop.permute.xlu0 %4011
  %4013 = vrot.lane.b32.xlu0 %v3998, 17
  %v4014 = vpop.permute.xlu0 %4013
  %4031 = vrot.lane.b32.xlu0 %v3983, 17
  %v4032 = vpop.permute.xlu0 %4031
  %4033 = vrot.lane.b32.xlu0 %v3984, 17
  %v4034 = vpop.permute.xlu0 %4033
  %4035 = vrot.lane.b32.xlu0 %v3985, 17
  %v4036 = vpop.permute.xlu0 %4035
  %4037 = vrot.lane.b32.xlu0 %v3987, 17
  %v4038 = vpop.permute.xlu0 %4037
  %4039 = vrot.lane.b32.xlu0 %v3988, 17
  %v4040 = vpop.permute.xlu0 %4039
  %4041 = vrot.lane.b32.xlu0 %v3989, 17
  %v4042 = vpop.permute.xlu0 %4041
  %4043 = vrot.lane.b32.xlu0 %v3991, 17
  %v4044 = vpop.permute.xlu0 %4043
  %4045 = vrot.lane.b32.xlu0 %v3992, 17
  %v4046 = vpop.permute.xlu0 %4045
  %4047 = vrot.lane.b32.xlu0 %v3993, 17
  %v4048 = vpop.permute.xlu0 %4047
  %4049 = vrot.lane.b32.xlu0 %v3995, 17
  %v4050 = vpop.permute.xlu0 %4049
  %4051 = vrot.lane.b32.xlu0 %v3996, 17
  %v4052 = vpop.permute.xlu0 %4051
  %4053 = vrot.lane.b32.xlu0 %v3997, 17
  %v4054 = vpop.permute.xlu0 %4053
  %v4055 = vsel %vm466, %v4032, %v4034
  %v4056 = vsel %vm466, %v4034, %v4036
  %v4057 = vsel %vm466, %v4036, %v4008
  %v4058 = vsel %vm466, %v4038, %v4040
  %v4059 = vsel %vm466, %v4040, %v4042
  %v4060 = vsel %vm466, %v4042, %v4010
  %v4061 = vsel %vm466, %v4044, %v4046
  %v4062 = vsel %vm466, %v4046, %v4048
  %v4063 = vsel %vm466, %v4048, %v4012
  %v4064 = vsel %vm466, %v4050, %v4052
  %v4065 = vsel %vm466, %v4052, %v4054
  %v4066 = vsel %vm466, %v4054, %v4014
  %v4083 = vsel %vm466, %v4008, %v4032
  %v4084 = vsel %vm466, %v4010, %v4038
  %v4085 = vsel %vm466, %v4012, %v4044
  %v4086 = vsel %vm466, %v4014, %v4050
  %v4087 = vld [vmem:[%s6] ss:$8 sm:$0xf]
  %v4089 = vlaneseq
  %v4090 = vshrl.u32 %v4089, 7
  %v4091 = vsub.s32 0, %v4090
  %v4092 = vrot.slane %v4087, %v4091
  %v4093 = vlaneseq
  %v4094 = vshrl.u32 %v4093, 7
  %v4095 = vsub.s32 1, %v4094
  %v4096 = vrot.slane %v4087, %v4095
  %v4097 = vlaneseq
  %v4098 = vshrl.u32 %v4097, 7
  %v4099 = vsub.s32 2, %v4098
  %v4100 = vrot.slane %v4087, %v4099
  %v4101 = vlaneseq
  %v4102 = vshrl.u32 %v4101, 7
  %v4103 = vsub.s32 3, %v4102
  %v4104 = vrot.slane %v4087, %v4103
  %v4109 = vmul.f32 %v4083, %v4092
  %v4110 = vmul.f32 %v4055, %v4096
  %v4111 = vmul.f32 %v4056, %v4100
  %v4112 = vmul.f32 %v4057, %v4104
  %v4113 = vmul.f32 %v4084, %v4092
  %v4114 = vmul.f32 %v4058, %v4096
  %v4115 = vmul.f32 %v4059, %v4100
  %v4116 = vmul.f32 %v4060, %v4104
  %v4117 = vmul.f32 %v4085, %v4092
  %v4118 = vmul.f32 %v4061, %v4096
  %v4119 = vmul.f32 %v4062, %v4100
  %v4120 = vmul.f32 %v4063, %v4104
  %v4121 = vmul.f32 %v4086, %v4092
  %v4122 = vmul.f32 %v4064, %v4096
  %v4123 = vmul.f32 %v4065, %v4100
  %v4124 = vmul.f32 %v4066, %v4104
  %4125 = vst [vmem:[#allocation2] sm:$0xff] %v4109
  %4126 = vst [vmem:[#allocation2 + $0x8] sm:$0xff] %v4110
  %4127 = vst [vmem:[#allocation2 + $0x10] sm:$0xff] %v4111
  %4128 = vst [vmem:[#allocation2 + $0x18] sm:$0xff] %v4112
  %4129 = vst [vmem:[#allocation2 + $0x20] sm:$0xff] %v4113
  %4130 = vst [vmem:[#allocation2 + $0x28] sm:$0xff] %v4114
  %4131 = vst [vmem:[#allocation2 + $0x30] sm:$0xff] %v4115
  %4132 = vst [vmem:[#allocation2 + $0x38] sm:$0xff] %v4116
  %4133 = vst [vmem:[#allocation2 + $0x40] sm:$0xff] %v4117
  %4134 = vst [vmem:[#allocation2 + $0x48] sm:$0xff] %v4118
  %4135 = vst [vmem:[#allocation2 + $0x50] sm:$0xff] %v4119
  %4136 = vst [vmem:[#allocation2 + $0x58] sm:$0xff] %v4120
  %4137 = vst [vmem:[#allocation2 + $0x60] sm:$0x3f] %v4121
  %4138 = vst [vmem:[#allocation2 + $0x68] sm:$0x3f] %v4122
  %4139 = vst [vmem:[#allocation2 + $0x70] sm:$0x3f] %v4123
  %4140 = vst [vmem:[#allocation2 + $0x78] sm:$0x3f] %v4124
  %4141 = vrot.lane.b32.xlu0 %v3986, 16
  %v4142 = vpop.permute.xlu0 %4141
  %4143 = vrot.lane.b32.xlu0 %v3990, 16
  %v4144 = vpop.permute.xlu0 %4143
  %4145 = vrot.lane.b32.xlu0 %v3994, 16
  %v4146 = vpop.permute.xlu0 %4145
  %4147 = vrot.lane.b32.xlu0 %v3998, 16
  %v4148 = vpop.permute.xlu0 %4147
  %4153 = vrot.lane.b32.xlu0 %v3983, 16
  %v4154 = vpop.permute.xlu0 %4153
  %4155 = vrot.lane.b32.xlu0 %v3984, 16
  %v4156 = vpop.permute.xlu0 %4155
  %4157 = vrot.lane.b32.xlu0 %v3985, 16
  %v4158 = vpop.permute.xlu0 %4157
  %4159 = vrot.lane.b32.xlu0 %v3987, 16
  %v4160 = vpop.permute.xlu0 %4159
  %4161 = vrot.lane.b32.xlu0 %v3988, 16
  %v4162 = vpop.permute.xlu0 %4161
  %4163 = vrot.lane.b32.xlu0 %v3989, 16
  %v4164 = vpop.permute.xlu0 %4163
  %4165 = vrot.lane.b32.xlu0 %v3991, 16
  %v4166 = vpop.permute.xlu0 %4165
  %4167 = vrot.lane.b32.xlu0 %v3992, 16
  %v4168 = vpop.permute.xlu0 %4167
  %4169 = vrot.lane.b32.xlu0 %v3993, 16
  %v4170 = vpop.permute.xlu0 %4169
  %4171 = vrot.lane.b32.xlu0 %v3995, 16
  %v4172 = vpop.permute.xlu0 %4171
  %4173 = vrot.lane.b32.xlu0 %v3996, 16
  %v4174 = vpop.permute.xlu0 %4173
  %4175 = vrot.lane.b32.xlu0 %v3997, 16
  %v4176 = vpop.permute.xlu0 %4175
  %v4177 = vsel %vm589, %v4154, %v4156
  %v4178 = vsel %vm589, %v4156, %v4158
  %v4179 = vsel %vm589, %v4158, %v4142
  %v4180 = vsel %vm589, %v4160, %v4162
  %v4181 = vsel %vm589, %v4162, %v4164
  %v4182 = vsel %vm589, %v4164, %v4144
  %v4183 = vsel %vm589, %v4166, %v4168
  %v4184 = vsel %vm589, %v4168, %v4170
  %v4185 = vsel %vm589, %v4170, %v4146
  %v4186 = vsel %vm589, %v4172, %v4174
  %v4187 = vsel %vm589, %v4174, %v4176
  %v4188 = vsel %vm589, %v4176, %v4148
  %v4205 = vsel %vm589, %v4142, %v4154
  %v4206 = vsel %vm589, %v4144, %v4160
  %v4207 = vsel %vm589, %v4146, %v4166
  %v4208 = vsel %vm589, %v4148, %v4172
  %v4209 = vld [vmem:[%s622] ss:$8 sm:$0xf]
  %v4211 = vlaneseq
  %v4212 = vshrl.u32 %v4211, 7
  %v4213 = vsub.s32 0, %v4212
  %v4214 = vrot.slane %v4209, %v4213
  %v4215 = vlaneseq
  %v4216 = vshrl.u32 %v4215, 7
  %v4217 = vsub.s32 1, %v4216
  %v4218 = vrot.slane %v4209, %v4217
  %v4219 = vlaneseq
  %v4220 = vshrl.u32 %v4219, 7
  %v4221 = vsub.s32 2, %v4220
  %v4222 = vrot.slane %v4209, %v4221
  %v4223 = vlaneseq
  %v4224 = vshrl.u32 %v4223, 7
  %v4225 = vsub.s32 3, %v4224
  %v4226 = vrot.slane %v4209, %v4225
  %v4231 = vmul.f32 %v4205, %v4214
  %v4232 = vmul.f32 %v4177, %v4218
  %v4233 = vmul.f32 %v4178, %v4222
  %v4234 = vmul.f32 %v4179, %v4226
  %v4235 = vmul.f32 %v4206, %v4214
  %v4236 = vmul.f32 %v4180, %v4218
  %v4237 = vmul.f32 %v4181, %v4222
  %v4238 = vmul.f32 %v4182, %v4226
  %v4239 = vmul.f32 %v4207, %v4214
  %v4240 = vmul.f32 %v4183, %v4218
  %v4241 = vmul.f32 %v4184, %v4222
  %v4242 = vmul.f32 %v4185, %v4226
  %v4243 = vmul.f32 %v4208, %v4214
  %v4244 = vmul.f32 %v4186, %v4218
  %v4245 = vmul.f32 %v4187, %v4222
  %v4246 = vmul.f32 %v4188, %v4226
  %4247 = vst [vmem:[#allocation2 + $0x80] sm:$0xff] %v4231
  %4248 = vst [vmem:[#allocation2 + $0x88] sm:$0xff] %v4232
  %4249 = vst [vmem:[#allocation2 + $0x90] sm:$0xff] %v4233
  %4250 = vst [vmem:[#allocation2 + $0x98] sm:$0xff] %v4234
  %4251 = vst [vmem:[#allocation2 + $0xa0] sm:$0xff] %v4235
  %4252 = vst [vmem:[#allocation2 + $0xa8] sm:$0xff] %v4236
  %4253 = vst [vmem:[#allocation2 + $0xb0] sm:$0xff] %v4237
  %4254 = vst [vmem:[#allocation2 + $0xb8] sm:$0xff] %v4238
  %4255 = vst [vmem:[#allocation2 + $0xc0] sm:$0xff] %v4239
  %4256 = vst [vmem:[#allocation2 + $0xc8] sm:$0xff] %v4240
  %4257 = vst [vmem:[#allocation2 + $0xd0] sm:$0xff] %v4241
  %4258 = vst [vmem:[#allocation2 + $0xd8] sm:$0xff] %v4242
  %4259 = vst [vmem:[#allocation2 + $0xe0] sm:$0x3f] %v4243
  %4260 = vst [vmem:[#allocation2 + $0xe8] sm:$0x3f] %v4244
  %4261 = vst [vmem:[#allocation2 + $0xf0] sm:$0x3f] %v4245
  %4262 = vst [vmem:[#allocation2 + $0xf8] sm:$0x3f] %v4246
  %4263 = vrot.lane.b32.xlu0 %v3986, 15
  %v4264 = vpop.permute.xlu0 %4263
  %4265 = vrot.lane.b32.xlu0 %v3990, 15
  %v4266 = vpop.permute.xlu0 %4265
  %4267 = vrot.lane.b32.xlu0 %v3994, 15
  %v4268 = vpop.permute.xlu0 %4267
  %4269 = vrot.lane.b32.xlu0 %v3998, 15
  %v4270 = vpop.permute.xlu0 %4269
  %4275 = vrot.lane.b32.xlu0 %v3983, 15
  %v4276 = vpop.permute.xlu0 %4275
  %4277 = vrot.lane.b32.xlu0 %v3984, 15
  %v4278 = vpop.permute.xlu0 %4277
  %4279 = vrot.lane.b32.xlu0 %v3985, 15
  %v4280 = vpop.permute.xlu0 %4279
  %4281 = vrot.lane.b32.xlu0 %v3987, 15
  %v4282 = vpop.permute.xlu0 %4281
  %4283 = vrot.lane.b32.xlu0 %v3988, 15
  %v4284 = vpop.permute.xlu0 %4283
  %4285 = vrot.lane.b32.xlu0 %v3989, 15
  %v4286 = vpop.permute.xlu0 %4285
  %4287 = vrot.lane.b32.xlu0 %v3991, 15
  %v4288 = vpop.permute.xlu0 %4287
  %4289 = vrot.lane.b32.xlu0 %v3992, 15
  %v4290 = vpop.permute.xlu0 %4289
  %4291 = vrot.lane.b32.xlu0 %v3993, 15
  %v4292 = vpop.permute.xlu0 %4291
  %4293 = vrot.lane.b32.xlu0 %v3995, 15
  %v4294 = vpop.permute.xlu0 %4293
  %4295 = vrot.lane.b32.xlu0 %v3996, 15
  %v4296 = vpop.permute.xlu0 %4295
  %4297 = vrot.lane.b32.xlu0 %v3997, 15
  %v4298 = vpop.permute.xlu0 %4297
  %v4299 = vsel %vm713, %v4276, %v4278
  %v4300 = vsel %vm713, %v4278, %v4280
  %v4301 = vsel %vm713, %v4280, %v4264
  %v4302 = vsel %vm713, %v4282, %v4284
  %v4303 = vsel %vm713, %v4284, %v4286
  %v4304 = vsel %vm713, %v4286, %v4266
  %v4305 = vsel %vm713, %v4288, %v4290
  %v4306 = vsel %vm713, %v4290, %v4292
  %v4307 = vsel %vm713, %v4292, %v4268
  %v4308 = vsel %vm713, %v4294, %v4296
  %v4309 = vsel %vm713, %v4296, %v4298
  %v4310 = vsel %vm713, %v4298, %v4270
  %v4327 = vsel %vm713, %v4264, %v4276
  %v4328 = vsel %vm713, %v4266, %v4282
  %v4329 = vsel %vm713, %v4268, %v4288
  %v4330 = vsel %vm713, %v4270, %v4294
  %v4331 = vld [vmem:[%s746] ss:$8 sm:$0xf]
  %v4333 = vlaneseq
  %v4334 = vshrl.u32 %v4333, 7
  %v4335 = vsub.s32 0, %v4334
  %v4336 = vrot.slane %v4331, %v4335
  %v4337 = vlaneseq
  %v4338 = vshrl.u32 %v4337, 7
  %v4339 = vsub.s32 1, %v4338
  %v4340 = vrot.slane %v4331, %v4339
  %v4341 = vlaneseq
  %v4342 = vshrl.u32 %v4341, 7
  %v4343 = vsub.s32 2, %v4342
  %v4344 = vrot.slane %v4331, %v4343
  %v4345 = vlaneseq
  %v4346 = vshrl.u32 %v4345, 7
  %v4347 = vsub.s32 3, %v4346
  %v4348 = vrot.slane %v4331, %v4347
  %v4353 = vmul.f32 %v4327, %v4336
  %v4354 = vmul.f32 %v4299, %v4340
  %v4355 = vmul.f32 %v4300, %v4344
  %v4356 = vmul.f32 %v4301, %v4348
  %v4357 = vmul.f32 %v4328, %v4336
  %v4358 = vmul.f32 %v4302, %v4340
  %v4359 = vmul.f32 %v4303, %v4344
  %v4360 = vmul.f32 %v4304, %v4348
  %v4361 = vmul.f32 %v4329, %v4336
  %v4362 = vmul.f32 %v4305, %v4340
  %v4363 = vmul.f32 %v4306, %v4344
  %v4364 = vmul.f32 %v4307, %v4348
  %v4365 = vmul.f32 %v4330, %v4336
  %v4366 = vmul.f32 %v4308, %v4340
  %v4367 = vmul.f32 %v4309, %v4344
  %v4368 = vmul.f32 %v4310, %v4348
  %4369 = vst [vmem:[#allocation2 + $0x100] sm:$0xff] %v4353
  %4370 = vst [vmem:[#allocation2 + $0x108] sm:$0xff] %v4354
  %4371 = vst [vmem:[#allocation2 + $0x110] sm:$0xff] %v4355
  %4372 = vst [vmem:[#allocation2 + $0x118] sm:$0xff] %v4356
  %4373 = vst [vmem:[#allocation2 + $0x120] sm:$0xff] %v4357
  %4374 = vst [vmem:[#allocation2 + $0x128] sm:$0xff] %v4358
  %4375 = vst [vmem:[#allocation2 + $0x130] sm:$0xff] %v4359
  %4376 = vst [vmem:[#allocation2 + $0x138] sm:$0xff] %v4360
  %4377 = vst [vmem:[#allocation2 + $0x140] sm:$0xff] %v4361
  %4378 = vst [vmem:[#allocation2 + $0x148] sm:$0xff] %v4362
  %4379 = vst [vmem:[#allocation2 + $0x150] sm:$0xff] %v4363
  %4380 = vst [vmem:[#allocation2 + $0x158] sm:$0xff] %v4364
  %4381 = vst [vmem:[#allocation2 + $0x160] sm:$0x3f] %v4365
  %4382 = vst [vmem:[#allocation2 + $0x168] sm:$0x3f] %v4366
  %4383 = vst [vmem:[#allocation2 + $0x170] sm:$0x3f] %v4367
  %4384 = vst [vmem:[#allocation2 + $0x178] sm:$0x3f] %v4368
  %4385 = vrot.lane.b32.xlu0 %v3986, 1
  %v4386 = vpop.permute.xlu0 %4385
  %4387 = vrot.lane.b32.xlu0 %v3990, 1
  %v4388 = vpop.permute.xlu0 %4387
  %4389 = vrot.lane.b32.xlu0 %v3994, 1
  %v4390 = vpop.permute.xlu0 %4389
  %4391 = vrot.lane.b32.xlu0 %v3998, 1
  %v4392 = vpop.permute.xlu0 %4391
  %4397 = vrot.lane.b32.xlu0 %v3983, 1
  %v4398 = vpop.permute.xlu0 %4397
  %4399 = vrot.lane.b32.xlu0 %v3984, 1
  %v4400 = vpop.permute.xlu0 %4399
  %4401 = vrot.lane.b32.xlu0 %v3985, 1
  %v4402 = vpop.permute.xlu0 %4401
  %4403 = vrot.lane.b32.xlu0 %v3987, 1
  %v4404 = vpop.permute.xlu0 %4403
  %4405 = vrot.lane.b32.xlu0 %v3988, 1
  %v4406 = vpop.permute.xlu0 %4405
  %4407 = vrot.lane.b32.xlu0 %v3989, 1
  %v4408 = vpop.permute.xlu0 %4407
  %4409 = vrot.lane.b32.xlu0 %v3991, 1
  %v4410 = vpop.permute.xlu0 %4409
  %4411 = vrot.lane.b32.xlu0 %v3992, 1
  %v4412 = vpop.permute.xlu0 %4411
  %4413 = vrot.lane.b32.xlu0 %v3993, 1
  %v4414 = vpop.permute.xlu0 %4413
  %4415 = vrot.lane.b32.xlu0 %v3995, 1
  %v4416 = vpop.permute.xlu0 %4415
  %4417 = vrot.lane.b32.xlu0 %v3996, 1
  %v4418 = vpop.permute.xlu0 %4417
  %4419 = vrot.lane.b32.xlu0 %v3997, 1
  %v4420 = vpop.permute.xlu0 %4419
  %v4421 = vsel %vm837, %v4398, %v4400
  %v4422 = vsel %vm837, %v4400, %v4402
  %v4423 = vsel %vm837, %v4402, %v4386
  %v4424 = vsel %vm837, %v4404, %v4406
  %v4425 = vsel %vm837, %v4406, %v4408
  %v4426 = vsel %vm837, %v4408, %v4388
  %v4427 = vsel %vm837, %v4410, %v4412
  %v4428 = vsel %vm837, %v4412, %v4414
  %v4429 = vsel %vm837, %v4414, %v4390
  %v4430 = vsel %vm837, %v4416, %v4418
  %v4431 = vsel %vm837, %v4418, %v4420
  %v4432 = vsel %vm837, %v4420, %v4392
  %v4449 = vsel %vm837, %v4386, %v4398
  %v4450 = vsel %vm837, %v4388, %v4404
  %v4451 = vsel %vm837, %v4390, %v4410
  %v4452 = vsel %vm837, %v4392, %v4416
  %v4453 = vld [vmem:[%s870] ss:$8 sm:$0xf]
  %v4455 = vlaneseq
  %v4456 = vshrl.u32 %v4455, 7
  %v4457 = vsub.s32 0, %v4456
  %v4458 = vrot.slane %v4453, %v4457
  %v4459 = vlaneseq
  %v4460 = vshrl.u32 %v4459, 7
  %v4461 = vsub.s32 1, %v4460
  %v4462 = vrot.slane %v4453, %v4461
  %v4463 = vlaneseq
  %v4464 = vshrl.u32 %v4463, 7
  %v4465 = vsub.s32 2, %v4464
  %v4466 = vrot.slane %v4453, %v4465
  %v4467 = vlaneseq
  %v4468 = vshrl.u32 %v4467, 7
  %v4469 = vsub.s32 3, %v4468
  %v4470 = vrot.slane %v4453, %v4469
  %v4475 = vmul.f32 %v4449, %v4458
  %v4476 = vmul.f32 %v4421, %v4462
  %v4477 = vmul.f32 %v4422, %v4466
  %v4478 = vmul.f32 %v4423, %v4470
  %v4479 = vmul.f32 %v4450, %v4458
  %v4480 = vmul.f32 %v4424, %v4462
  %v4481 = vmul.f32 %v4425, %v4466
  %v4482 = vmul.f32 %v4426, %v4470
  %v4483 = vmul.f32 %v4451, %v4458
  %v4484 = vmul.f32 %v4427, %v4462
  %v4485 = vmul.f32 %v4428, %v4466
  %v4486 = vmul.f32 %v4429, %v4470
  %v4487 = vmul.f32 %v4452, %v4458
  %v4488 = vmul.f32 %v4430, %v4462
  %v4489 = vmul.f32 %v4431, %v4466
  %v4490 = vmul.f32 %v4432, %v4470
  %4491 = vst [vmem:[#allocation2 + $0x180] sm:$0xff] %v4475
  %4492 = vst [vmem:[#allocation2 + $0x188] sm:$0xff] %v4476
  %4493 = vst [vmem:[#allocation2 + $0x190] sm:$0xff] %v4477
  %4494 = vst [vmem:[#allocation2 + $0x198] sm:$0xff] %v4478
  %4495 = vst [vmem:[#allocation2 + $0x1a0] sm:$0xff] %v4479
  %4496 = vst [vmem:[#allocation2 + $0x1a8] sm:$0xff] %v4480
  %4497 = vst [vmem:[#allocation2 + $0x1b0] sm:$0xff] %v4481
  %4498 = vst [vmem:[#allocation2 + $0x1b8] sm:$0xff] %v4482
  %4499 = vst [vmem:[#allocation2 + $0x1c0] sm:$0xff] %v4483
  %4500 = vst [vmem:[#allocation2 + $0x1c8] sm:$0xff] %v4484
  %4501 = vst [vmem:[#allocation2 + $0x1d0] sm:$0xff] %v4485
  %4502 = vst [vmem:[#allocation2 + $0x1d8] sm:$0xff] %v4486
  %4503 = vst [vmem:[#allocation2 + $0x1e0] sm:$0x3f] %v4487
  %4504 = vst [vmem:[#allocation2 + $0x1e8] sm:$0x3f] %v4488
  %4505 = vst [vmem:[#allocation2 + $0x1f0] sm:$0x3f] %v4489
  %4506 = vst [vmem:[#allocation2 + $0x1f8] sm:$0x3f] %v4490
  %4507 = vst [vmem:[#allocation2 + $0x200] sm:$0xff] %v3983
  %4508 = vst [vmem:[#allocation2 + $0x208] sm:$0xff] %v3984
  %4509 = vst [vmem:[#allocation2 + $0x210] sm:$0xff] %v3985
  %4510 = vst [vmem:[#allocation2 + $0x218] sm:$0xff] %v3986
  %4511 = vst [vmem:[#allocation2 + $0x220] sm:$0xff] %v3987
  %4512 = vst [vmem:[#allocation2 + $0x228] sm:$0xff] %v3988
  %4513 = vst [vmem:[#allocation2 + $0x230] sm:$0xff] %v3989
  %4514 = vst [vmem:[#allocation2 + $0x238] sm:$0xff] %v3990
  %4515 = vst [vmem:[#allocation2 + $0x240] sm:$0xff] %v3991
  %4516 = vst [vmem:[#allocation2 + $0x248] sm:$0xff] %v3992
  %4517 = vst [vmem:[#allocation2 + $0x250] sm:$0xff] %v3993
  %4518 = vst [vmem:[#allocation2 + $0x258] sm:$0xff] %v3994
  %4519 = vst [vmem:[#allocation2 + $0x260] sm:$0x3f] %v3995
  %4520 = vst [vmem:[#allocation2 + $0x268] sm:$0x3f] %v3996
  %4521 = vst [vmem:[#allocation2 + $0x270] sm:$0x3f] %v3997
  %4522 = vst [vmem:[#allocation2 + $0x278] sm:$0x3f] %v3998
  %4523 = vrot.lane.b32.xlu0 %v3983, 127
  %v4524 = vpop.permute.xlu0 %4523
  %4525 = vrot.lane.b32.xlu0 %v3984, 127
  %v4526 = vpop.permute.xlu0 %4525
  %4527 = vrot.lane.b32.xlu0 %v3985, 127
  %v4528 = vpop.permute.xlu0 %4527
  %4529 = vrot.lane.b32.xlu0 %v3986, 127
  %v4530 = vpop.permute.xlu0 %4529
  %4531 = vrot.lane.b32.xlu0 %v3987, 127
  %v4532 = vpop.permute.xlu0 %4531
  %4533 = vrot.lane.b32.xlu0 %v3988, 127
  %v4534 = vpop.permute.xlu0 %4533
  %4535 = vrot.lane.b32.xlu0 %v3989, 127
  %v4536 = vpop.permute.xlu0 %4535
  %4537 = vrot.lane.b32.xlu0 %v3990, 127
  %v4538 = vpop.permute.xlu0 %4537
  %4539 = vrot.lane.b32.xlu0 %v3991, 127
  %v4540 = vpop.permute.xlu0 %4539
  %4541 = vrot.lane.b32.xlu0 %v3992, 127
  %v4542 = vpop.permute.xlu0 %4541
  %4543 = vrot.lane.b32.xlu0 %v3993, 127
  %v4544 = vpop.permute.xlu0 %4543
  %4545 = vrot.lane.b32.xlu0 %v3994, 127
  %v4546 = vpop.permute.xlu0 %4545
  %4547 = vrot.lane.b32.xlu0 %v3995, 127
  %v4548 = vpop.permute.xlu0 %4547
  %4549 = vrot.lane.b32.xlu0 %v3996, 127
  %v4550 = vpop.permute.xlu0 %4549
  %4551 = vrot.lane.b32.xlu0 %v3997, 127
  %v4552 = vpop.permute.xlu0 %4551
  %4553 = vrot.lane.b32.xlu0 %v3998, 127
  %v4554 = vpop.permute.xlu0 %4553
  %v4555 = vsel %vm973, %v4524, %v4526
  %v4556 = vsel %vm973, %v4526, %v4528
  %v4557 = vsel %vm973, %v4528, %v4530
  %v4558 = vsel %vm973, %v4532, %v4534
  %v4559 = vsel %vm973, %v4534, %v4536
  %v4560 = vsel %vm973, %v4536, %v4538
  %v4561 = vsel %vm973, %v4540, %v4542
  %v4562 = vsel %vm973, %v4542, %v4544
  %v4563 = vsel %vm973, %v4544, %v4546
  %v4564 = vsel %vm973, %v4548, %v4550
  %v4565 = vsel %vm973, %v4550, %v4552
  %v4566 = vsel %vm973, %v4552, %v4554
  %v4587 = vsel %vm973, %v4530, %v4524
  %v4588 = vsel %vm973, %v4538, %v4532
  %v4589 = vsel %vm973, %v4546, %v4540
  %v4590 = vsel %vm973, %v4554, %v4548
  %v4591 = vld [vmem:[%s1010] ss:$8 sm:$0xf]
  %v4593 = vlaneseq
  %v4594 = vshrl.u32 %v4593, 7
  %v4595 = vsub.s32 0, %v4594
  %v4596 = vrot.slane %v4591, %v4595
  %v4597 = vlaneseq
  %v4598 = vshrl.u32 %v4597, 7
  %v4599 = vsub.s32 1, %v4598
  %v4600 = vrot.slane %v4591, %v4599
  %v4601 = vlaneseq
  %v4602 = vshrl.u32 %v4601, 7
  %v4603 = vsub.s32 2, %v4602
  %v4604 = vrot.slane %v4591, %v4603
  %v4605 = vlaneseq
  %v4606 = vshrl.u32 %v4605, 7
  %v4607 = vsub.s32 3, %v4606
  %v4608 = vrot.slane %v4591, %v4607
  %v4613 = vmul.f32 %v4555, %v4596
  %v4614 = vmul.f32 %v4556, %v4600
  %v4615 = vmul.f32 %v4557, %v4604
  %v4616 = vmul.f32 %v4587, %v4608
  %v4617 = vmul.f32 %v4558, %v4596
  %v4618 = vmul.f32 %v4559, %v4600
  %v4619 = vmul.f32 %v4560, %v4604
  %v4620 = vmul.f32 %v4588, %v4608
  %v4621 = vmul.f32 %v4561, %v4596
  %v4622 = vmul.f32 %v4562, %v4600
  %v4623 = vmul.f32 %v4563, %v4604
  %v4624 = vmul.f32 %v4589, %v4608
  %v4625 = vmul.f32 %v4564, %v4596
  %v4626 = vmul.f32 %v4565, %v4600
  %v4627 = vmul.f32 %v4566, %v4604
  %v4628 = vmul.f32 %v4590, %v4608
  %4629 = vst [vmem:[#allocation2 + $0x280] sm:$0xff] %v4613
  %4630 = vst [vmem:[#allocation2 + $0x288] sm:$0xff] %v4614
  %4631 = vst [vmem:[#allocation2 + $0x290] sm:$0xff] %v4615
  %4632 = vst [vmem:[#allocation2 + $0x298] sm:$0xff] %v4616
  %4633 = vst [vmem:[#allocation2 + $0x2a0] sm:$0xff] %v4617
  %4634 = vst [vmem:[#allocation2 + $0x2a8] sm:$0xff] %v4618
  %4635 = vst [vmem:[#allocation2 + $0x2b0] sm:$0xff] %v4619
  %4636 = vst [vmem:[#allocation2 + $0x2b8] sm:$0xff] %v4620
  %4637 = vst [vmem:[#allocation2 + $0x2c0] sm:$0xff] %v4621
  %4638 = vst [vmem:[#allocation2 + $0x2c8] sm:$0xff] %v4622
  %4639 = vst [vmem:[#allocation2 + $0x2d0] sm:$0xff] %v4623
  %4640 = vst [vmem:[#allocation2 + $0x2d8] sm:$0xff] %v4624
  %4641 = vst [vmem:[#allocation2 + $0x2e0] sm:$0x3f] %v4625
  %4642 = vst [vmem:[#allocation2 + $0x2e8] sm:$0x3f] %v4626
  %4643 = vst [vmem:[#allocation2 + $0x2f0] sm:$0x3f] %v4627
  %4644 = vst [vmem:[#allocation2 + $0x2f8] sm:$0x3f] %v4628
  %4645 = vrot.lane.b32.xlu0 %v3983, 113
  %v4646 = vpop.permute.xlu0 %4645
  %4647 = vrot.lane.b32.xlu0 %v3984, 113
  %v4648 = vpop.permute.xlu0 %4647
  %4649 = vrot.lane.b32.xlu0 %v3985, 113
  %v4650 = vpop.permute.xlu0 %4649
  %4651 = vrot.lane.b32.xlu0 %v3986, 113
  %v4652 = vpop.permute.xlu0 %4651
  %4653 = vrot.lane.b32.xlu0 %v3987, 113
  %v4654 = vpop.permute.xlu0 %4653
  %4655 = vrot.lane.b32.xlu0 %v3988, 113
  %v4656 = vpop.permute.xlu0 %4655
  %4657 = vrot.lane.b32.xlu0 %v3989, 113
  %v4658 = vpop.permute.xlu0 %4657
  %4659 = vrot.lane.b32.xlu0 %v3990, 113
  %v4660 = vpop.permute.xlu0 %4659
  %4661 = vrot.lane.b32.xlu0 %v3991, 113
  %v4662 = vpop.permute.xlu0 %4661
  %4663 = vrot.lane.b32.xlu0 %v3992, 113
  %v4664 = vpop.permute.xlu0 %4663
  %4665 = vrot.lane.b32.xlu0 %v3993, 113
  %v4666 = vpop.permute.xlu0 %4665
  %4667 = vrot.lane.b32.xlu0 %v3994, 113
  %v4668 = vpop.permute.xlu0 %4667
  %4669 = vrot.lane.b32.xlu0 %v3995, 113
  %v4670 = vpop.permute.xlu0 %4669
  %4671 = vrot.lane.b32.xlu0 %v3996, 113
  %v4672 = vpop.permute.xlu0 %4671
  %4673 = vrot.lane.b32.xlu0 %v3997, 113
  %v4674 = vpop.permute.xlu0 %4673
  %4675 = vrot.lane.b32.xlu0 %v3998, 113
  %v4676 = vpop.permute.xlu0 %4675
  %v4677 = vsel %vm1097, %v4646, %v4648
  %v4678 = vsel %vm1097, %v4648, %v4650
  %v4679 = vsel %vm1097, %v4650, %v4652
  %v4680 = vsel %vm1097, %v4654, %v4656
  %v4681 = vsel %vm1097, %v4656, %v4658
  %v4682 = vsel %vm1097, %v4658, %v4660
  %v4683 = vsel %vm1097, %v4662, %v4664
  %v4684 = vsel %vm1097, %v4664, %v4666
  %v4685 = vsel %vm1097, %v4666, %v4668
  %v4686 = vsel %vm1097, %v4670, %v4672
  %v4687 = vsel %vm1097, %v4672, %v4674
  %v4688 = vsel %vm1097, %v4674, %v4676
  %v4709 = vsel %vm1097, %v4652, %v4646
  %v4710 = vsel %vm1097, %v4660, %v4654
  %v4711 = vsel %vm1097, %v4668, %v4662
  %v4712 = vsel %vm1097, %v4676, %v4670
  %v4713 = vld [vmem:[%s1134] ss:$8 sm:$0xf]
  %v4715 = vlaneseq
  %v4716 = vshrl.u32 %v4715, 7
  %v4717 = vsub.s32 0, %v4716
  %v4718 = vrot.slane %v4713, %v4717
  %v4719 = vlaneseq
  %v4720 = vshrl.u32 %v4719, 7
  %v4721 = vsub.s32 1, %v4720
  %v4722 = vrot.slane %v4713, %v4721
  %v4723 = vlaneseq
  %v4724 = vshrl.u32 %v4723, 7
  %v4725 = vsub.s32 2, %v4724
  %v4726 = vrot.slane %v4713, %v4725
  %v4727 = vlaneseq
  %v4728 = vshrl.u32 %v4727, 7
  %v4729 = vsub.s32 3, %v4728
  %v4730 = vrot.slane %v4713, %v4729
  %v4735 = vmul.f32 %v4677, %v4718
  %v4736 = vmul.f32 %v4678, %v4722
  %v4737 = vmul.f32 %v4679, %v4726
  %v4738 = vmul.f32 %v4709, %v4730
  %v4739 = vmul.f32 %v4680, %v4718
  %v4740 = vmul.f32 %v4681, %v4722
  %v4741 = vmul.f32 %v4682, %v4726
  %v4742 = vmul.f32 %v4710, %v4730
  %v4743 = vmul.f32 %v4683, %v4718
  %v4744 = vmul.f32 %v4684, %v4722
  %v4745 = vmul.f32 %v4685, %v4726
  %v4746 = vmul.f32 %v4711, %v4730
  %v4747 = vmul.f32 %v4686, %v4718
  %v4748 = vmul.f32 %v4687, %v4722
  %v4749 = vmul.f32 %v4688, %v4726
  %v4750 = vmul.f32 %v4712, %v4730
  %4751 = vst [vmem:[#allocation2 + $0x300] sm:$0xff] %v4735
  %4752 = vst [vmem:[#allocation2 + $0x308] sm:$0xff] %v4736
  %4753 = vst [vmem:[#allocation2 + $0x310] sm:$0xff] %v4737
  %4754 = vst [vmem:[#allocation2 + $0x318] sm:$0xff] %v4738
  %4755 = vst [vmem:[#allocation2 + $0x320] sm:$0xff] %v4739
  %4756 = vst [vmem:[#allocation2 + $0x328] sm:$0xff] %v4740
  %4757 = vst [vmem:[#allocation2 + $0x330] sm:$0xff] %v4741
  %4758 = vst [vmem:[#allocation2 + $0x338] sm:$0xff] %v4742
  %4759 = vst [vmem:[#allocation2 + $0x340] sm:$0xff] %v4743
  %4760 = vst [vmem:[#allocation2 + $0x348] sm:$0xff] %v4744
  %4761 = vst [vmem:[#allocation2 + $0x350] sm:$0xff] %v4745
  %4762 = vst [vmem:[#allocation2 + $0x358] sm:$0xff] %v4746
  %4763 = vst [vmem:[#allocation2 + $0x360] sm:$0x3f] %v4747
  %4764 = vst [vmem:[#allocation2 + $0x368] sm:$0x3f] %v4748
  %4765 = vst [vmem:[#allocation2 + $0x370] sm:$0x3f] %v4749
  %4766 = vst [vmem:[#allocation2 + $0x378] sm:$0x3f] %v4750
  %4767 = vrot.lane.b32.xlu0 %v3983, 112
  %v4768 = vpop.permute.xlu0 %4767
  %4769 = vrot.lane.b32.xlu0 %v3984, 112
  %v4770 = vpop.permute.xlu0 %4769
  %4771 = vrot.lane.b32.xlu0 %v3985, 112
  %v4772 = vpop.permute.xlu0 %4771
  %4773 = vrot.lane.b32.xlu0 %v3986, 112
  %v4774 = vpop.permute.xlu0 %4773
  %4775 = vrot.lane.b32.xlu0 %v3987, 112
  %v4776 = vpop.permute.xlu0 %4775
  %4777 = vrot.lane.b32.xlu0 %v3988, 112
  %v4778 = vpop.permute.xlu0 %4777
  %4779 = vrot.lane.b32.xlu0 %v3989, 112
  %v4780 = vpop.permute.xlu0 %4779
  %4781 = vrot.lane.b32.xlu0 %v3990, 112
  %v4782 = vpop.permute.xlu0 %4781
  %4783 = vrot.lane.b32.xlu0 %v3991, 112
  %v4784 = vpop.permute.xlu0 %4783
  %4785 = vrot.lane.b32.xlu0 %v3992, 112
  %v4786 = vpop.permute.xlu0 %4785
  %4787 = vrot.lane.b32.xlu0 %v3993, 112
  %v4788 = vpop.permute.xlu0 %4787
  %4789 = vrot.lane.b32.xlu0 %v3994, 112
  %v4790 = vpop.permute.xlu0 %4789
  %4791 = vrot.lane.b32.xlu0 %v3995, 112
  %v4792 = vpop.permute.xlu0 %4791
  %4793 = vrot.lane.b32.xlu0 %v3996, 112
  %v4794 = vpop.permute.xlu0 %4793
  %4795 = vrot.lane.b32.xlu0 %v3997, 112
  %v4796 = vpop.permute.xlu0 %4795
  %4797 = vrot.lane.b32.xlu0 %v3998, 112
  %v4798 = vpop.permute.xlu0 %4797
  %v4799 = vsel %vm1221, %v4768, %v4770
  %v4800 = vsel %vm1221, %v4770, %v4772
  %v4801 = vsel %vm1221, %v4772, %v4774
  %v4802 = vsel %vm1221, %v4776, %v4778
  %v4803 = vsel %vm1221, %v4778, %v4780
  %v4804 = vsel %vm1221, %v4780, %v4782
  %v4805 = vsel %vm1221, %v4784, %v4786
  %v4806 = vsel %vm1221, %v4786, %v4788
  %v4807 = vsel %vm1221, %v4788, %v4790
  %v4808 = vsel %vm1221, %v4792, %v4794
  %v4809 = vsel %vm1221, %v4794, %v4796
  %v4810 = vsel %vm1221, %v4796, %v4798
  %v4831 = vsel %vm1221, %v4774, %v4768
  %v4832 = vsel %vm1221, %v4782, %v4776
  %v4833 = vsel %vm1221, %v4790, %v4784
  %v4834 = vsel %vm1221, %v4798, %v4792
  %v4835 = vld [vmem:[%s1258] ss:$8 sm:$0xf]
  %v4837 = vlaneseq
  %v4838 = vshrl.u32 %v4837, 7
  %v4839 = vsub.s32 0, %v4838
  %v4840 = vrot.slane %v4835, %v4839
  %v4841 = vlaneseq
  %v4842 = vshrl.u32 %v4841, 7
  %v4843 = vsub.s32 1, %v4842
  %v4844 = vrot.slane %v4835, %v4843
  %v4845 = vlaneseq
  %v4846 = vshrl.u32 %v4845, 7
  %v4847 = vsub.s32 2, %v4846
  %v4848 = vrot.slane %v4835, %v4847
  %v4849 = vlaneseq
  %v4850 = vshrl.u32 %v4849, 7
  %v4851 = vsub.s32 3, %v4850
  %v4852 = vrot.slane %v4835, %v4851
  %v4857 = vmul.f32 %v4799, %v4840
  %v4858 = vmul.f32 %v4800, %v4844
  %v4859 = vmul.f32 %v4801, %v4848
  %v4860 = vmul.f32 %v4831, %v4852
  %v4861 = vmul.f32 %v4802, %v4840
  %v4862 = vmul.f32 %v4803, %v4844
  %v4863 = vmul.f32 %v4804, %v4848
  %v4864 = vmul.f32 %v4832, %v4852
  %v4865 = vmul.f32 %v4805, %v4840
  %v4866 = vmul.f32 %v4806, %v4844
  %v4867 = vmul.f32 %v4807, %v4848
  %v4868 = vmul.f32 %v4833, %v4852
  %v4869 = vmul.f32 %v4808, %v4840
  %v4870 = vmul.f32 %v4809, %v4844
  %v4871 = vmul.f32 %v4810, %v4848
  %v4872 = vmul.f32 %v4834, %v4852
  %4873 = vst [vmem:[#allocation2 + $0x380] sm:$0xff] %v4857
  %4874 = vst [vmem:[#allocation2 + $0x388] sm:$0xff] %v4858
  %4875 = vst [vmem:[#allocation2 + $0x390] sm:$0xff] %v4859
  %4876 = vst [vmem:[#allocation2 + $0x398] sm:$0xff] %v4860
  %4877 = vst [vmem:[#allocation2 + $0x3a0] sm:$0xff] %v4861
  %4878 = vst [vmem:[#allocation2 + $0x3a8] sm:$0xff] %v4862
  %4879 = vst [vmem:[#allocation2 + $0x3b0] sm:$0xff] %v4863
  %4880 = vst [vmem:[#allocation2 + $0x3b8] sm:$0xff] %v4864
  %4881 = vst [vmem:[#allocation2 + $0x3c0] sm:$0xff] %v4865
  %4882 = vst [vmem:[#allocation2 + $0x3c8] sm:$0xff] %v4866
  %4883 = vst [vmem:[#allocation2 + $0x3d0] sm:$0xff] %v4867
  %4884 = vst [vmem:[#allocation2 + $0x3d8] sm:$0xff] %v4868
  %4885 = vst [vmem:[#allocation2 + $0x3e0] sm:$0x3f] %v4869
  %4886 = vst [vmem:[#allocation2 + $0x3e8] sm:$0x3f] %v4870
  %4887 = vst [vmem:[#allocation2 + $0x3f0] sm:$0x3f] %v4871
  %4888 = vst [vmem:[#allocation2 + $0x3f8] sm:$0x3f] %v4872
  %4889 = vrot.lane.b32.xlu0 %v3983, 111
  %v4890 = vpop.permute.xlu0 %4889
  %4891 = vrot.lane.b32.xlu0 %v3984, 111
  %v4892 = vpop.permute.xlu0 %4891
  %4893 = vrot.lane.b32.xlu0 %v3985, 111
  %v4894 = vpop.permute.xlu0 %4893
  %4895 = vrot.lane.b32.xlu0 %v3986, 111
  %v4896 = vpop.permute.xlu0 %4895
  %4897 = vrot.lane.b32.xlu0 %v3987, 111
  %v4898 = vpop.permute.xlu0 %4897
  %4899 = vrot.lane.b32.xlu0 %v3988, 111
  %v4900 = vpop.permute.xlu0 %4899
  %4901 = vrot.lane.b32.xlu0 %v3989, 111
  %v4902 = vpop.permute.xlu0 %4901
  %4903 = vrot.lane.b32.xlu0 %v3990, 111
  %v4904 = vpop.permute.xlu0 %4903
  %4905 = vrot.lane.b32.xlu0 %v3991, 111
  %v4906 = vpop.permute.xlu0 %4905
  %4907 = vrot.lane.b32.xlu0 %v3992, 111
  %v4908 = vpop.permute.xlu0 %4907
  %4909 = vrot.lane.b32.xlu0 %v3993, 111
  %v4910 = vpop.permute.xlu0 %4909
  %4911 = vrot.lane.b32.xlu0 %v3994, 111
  %v4912 = vpop.permute.xlu0 %4911
  %4913 = vrot.lane.b32.xlu0 %v3995, 111
  %v4914 = vpop.permute.xlu0 %4913
  %4915 = vrot.lane.b32.xlu0 %v3996, 111
  %v4916 = vpop.permute.xlu0 %4915
  %4917 = vrot.lane.b32.xlu0 %v3997, 111
  %v4918 = vpop.permute.xlu0 %4917
  %4919 = vrot.lane.b32.xlu0 %v3998, 111
  %v4920 = vpop.permute.xlu0 %4919
  %v4921 = vsel %vm1345, %v4890, %v4892
  %v4922 = vsel %vm1345, %v4892, %v4894
  %v4923 = vsel %vm1345, %v4894, %v4896
  %v4924 = vsel %vm1345, %v4898, %v4900
  %v4925 = vsel %vm1345, %v4900, %v4902
  %v4926 = vsel %vm1345, %v4902, %v4904
  %v4927 = vsel %vm1345, %v4906, %v4908
  %v4928 = vsel %vm1345, %v4908, %v4910
  %v4929 = vsel %vm1345, %v4910, %v4912
  %v4930 = vsel %vm1345, %v4914, %v4916
  %v4931 = vsel %vm1345, %v4916, %v4918
  %v4932 = vsel %vm1345, %v4918, %v4920
  %v4953 = vsel %vm1345, %v4896, %v4890
  %v4954 = vsel %vm1345, %v4904, %v4898
  %v4955 = vsel %vm1345, %v4912, %v4906
  %v4956 = vsel %vm1345, %v4920, %v4914
  %v4957 = vld [vmem:[%s1382] ss:$8 sm:$0xf]
  %v4959 = vlaneseq
  %v4960 = vshrl.u32 %v4959, 7
  %v4961 = vsub.s32 0, %v4960
  %v4962 = vrot.slane %v4957, %v4961
  %v4963 = vlaneseq
  %v4964 = vshrl.u32 %v4963, 7
  %v4965 = vsub.s32 1, %v4964
  %v4966 = vrot.slane %v4957, %v4965
  %v4967 = vlaneseq
  %v4968 = vshrl.u32 %v4967, 7
  %v4969 = vsub.s32 2, %v4968
  %v4970 = vrot.slane %v4957, %v4969
  %v4971 = vlaneseq
  %v4972 = vshrl.u32 %v4971, 7
  %v4973 = vsub.s32 3, %v4972
  %v4974 = vrot.slane %v4957, %v4973
  %v4979 = vmul.f32 %v4921, %v4962
  %v4980 = vmul.f32 %v4922, %v4966
  %v4981 = vmul.f32 %v4923, %v4970
  %v4982 = vmul.f32 %v4953, %v4974
  %v4983 = vmul.f32 %v4924, %v4962
  %v4984 = vmul.f32 %v4925, %v4966
  %v4985 = vmul.f32 %v4926, %v4970
  %v4986 = vmul.f32 %v4954, %v4974
  %v4987 = vmul.f32 %v4927, %v4962
  %v4988 = vmul.f32 %v4928, %v4966
  %v4989 = vmul.f32 %v4929, %v4970
  %v4990 = vmul.f32 %v4955, %v4974
  %v4991 = vmul.f32 %v4930, %v4962
  %v4992 = vmul.f32 %v4931, %v4966
  %v4993 = vmul.f32 %v4932, %v4970
  %v4994 = vmul.f32 %v4956, %v4974
  %4995 = vst [vmem:[#allocation2 + $0x400] sm:$0xff] %v4979
  %4996 = vst [vmem:[#allocation2 + $0x408] sm:$0xff] %v4980
  %4997 = vst [vmem:[#allocation2 + $0x410] sm:$0xff] %v4981
  %4998 = vst [vmem:[#allocation2 + $0x418] sm:$0xff] %v4982
  %4999 = vst [vmem:[#allocation2 + $0x420] sm:$0xff] %v4983
  %5000 = vst [vmem:[#allocation2 + $0x428] sm:$0xff] %v4984
  %5001 = vst [vmem:[#allocation2 + $0x430] sm:$0xff] %v4985
  %5002 = vst [vmem:[#allocation2 + $0x438] sm:$0xff] %v4986
  %5003 = vst [vmem:[#allocation2 + $0x440] sm:$0xff] %v4987
  %5004 = vst [vmem:[#allocation2 + $0x448] sm:$0xff] %v4988
  %5005 = vst [vmem:[#allocation2 + $0x450] sm:$0xff] %v4989
  %5006 = vst [vmem:[#allocation2 + $0x458] sm:$0xff] %v4990
  %5007 = vst [vmem:[#allocation2 + $0x460] sm:$0x3f] %v4991
  %5008 = vst [vmem:[#allocation2 + $0x468] sm:$0x3f] %v4992
  %5009 = vst [vmem:[#allocation2 + $0x470] sm:$0x3f] %v4993
  %5010 = vst [vmem:[#allocation2 + $0x478] sm:$0x3f] %v4994
  %s5011 = scalar_lea.vmem %s3, 384
  %v5012 = vld [vmem:[%s5011] sm:$0xff]
  %v5013 = vld [vmem:[%s5011 + $0x8] sm:$0xff]
  %v5014 = vld [vmem:[%s5011 + $0x10] sm:$0xff]
  %v5015 = vld [vmem:[%s5011 + $0x18] sm:$0xff]
  %v5016 = vld [vmem:[%s5011 + $0x20] sm:$0xff]
  %v5017 = vld [vmem:[%s5011 + $0x28] sm:$0xff]
  %v5018 = vld [vmem:[%s5011 + $0x30] sm:$0xff]
  %v5019 = vld [vmem:[%s5011 + $0x38] sm:$0xff]
  %v5020 = vld [vmem:[%s5011 + $0x40] sm:$0xff]
  %v5021 = vld [vmem:[%s5011 + $0x48] sm:$0x3f]
  %v5022 = vld [vmem:[%s5011 + $0x50] sm:$0x3f]
  %v5023 = vld [vmem:[%s5011 + $0x58] sm:$0x3f]
  %v5024 = vld [vmem:[#allocation2] sm:$0xff]
  %v5025 = vld [vmem:[#allocation2 + $0x8] sm:$0xff]
  %v5026 = vld [vmem:[#allocation2 + $0x20] sm:$0xff]
  %v5027 = vld [vmem:[#allocation2 + $0x28] sm:$0xff]
  %v5028 = vld [vmem:[#allocation2 + $0x40] sm:$0xff]
  %v5029 = vld [vmem:[#allocation2 + $0x48] sm:$0xff]
  %v5030 = vld [vmem:[#allocation2 + $0x60] sm:$0xff]
  %v5031 = vld [vmem:[#allocation2 + $0x68] sm:$0xff]
  %v5032 = vld [vmem:[#allocation2 + $0x80] sm:$0xff]
  %v5033 = vld [vmem:[#allocation2 + $0x88] sm:$0xff]
  %v5034 = vld [vmem:[#allocation2 + $0xa0] sm:$0xff]
  %v5035 = vld [vmem:[#allocation2 + $0xa8] sm:$0xff]
  %v5036 = vld [vmem:[#allocation2 + $0xc0] sm:$0xff]
  %v5037 = vld [vmem:[#allocation2 + $0xc8] sm:$0xff]
  %v5038 = vld [vmem:[#allocation2 + $0xe0] sm:$0xff]
  %v5039 = vld [vmem:[#allocation2 + $0xe8] sm:$0xff]
  %v5040 = vld [vmem:[#allocation2 + $0x100] sm:$0xff]
  %v5041 = vld [vmem:[#allocation2 + $0x108] sm:$0xff]
  %v5042 = vld [vmem:[#allocation2 + $0x120] sm:$0xff]
  %v5043 = vld [vmem:[#allocation2 + $0x128] sm:$0xff]
  %v5044 = vld [vmem:[#allocation2 + $0x140] sm:$0xff]
  %v5045 = vld [vmem:[#allocation2 + $0x148] sm:$0xff]
  %v5046 = vld [vmem:[#allocation2 + $0x160] sm:$0xff]
  %v5047 = vld [vmem:[#allocation2 + $0x168] sm:$0xff]
  %v5048 = vld [vmem:[#allocation2 + $0x180] sm:$0xff]
  %v5049 = vld [vmem:[#allocation2 + $0x188] sm:$0xff]
  %v5050 = vld [vmem:[#allocation2 + $0x1a0] sm:$0xff]
  %v5051 = vld [vmem:[#allocation2 + $0x1a8] sm:$0xff]
  %v5052 = vld [vmem:[#allocation2 + $0x1c0] sm:$0xff]
  %v5053 = vld [vmem:[#allocation2 + $0x1c8] sm:$0xff]
  %v5054 = vld [vmem:[#allocation2 + $0x1e0] sm:$0xff]
  %v5055 = vld [vmem:[#allocation2 + $0x1e8] sm:$0xff]
  %v5056 = vld [vmem:[#allocation2 + $0x200] sm:$0xff]
  %v5057 = vld [vmem:[#allocation2 + $0x208] sm:$0xff]
  %v5058 = vld [vmem:[#allocation2 + $0x220] sm:$0xff]
  %v5059 = vld [vmem:[#allocation2 + $0x228] sm:$0xff]
  %v5060 = vld [vmem:[#allocation2 + $0x240] sm:$0xff]
  %v5061 = vld [vmem:[#allocation2 + $0x248] sm:$0xff]
  %v5062 = vld [vmem:[#allocation2 + $0x260] sm:$0xff]
  %v5063 = vld [vmem:[#allocation2 + $0x268] sm:$0xff]
  %v5064 = vld [vmem:[#allocation2 + $0x280] sm:$0xff]
  %v5065 = vld [vmem:[#allocation2 + $0x288] sm:$0xff]
  %v5066 = vld [vmem:[#allocation2 + $0x2a0] sm:$0xff]
  %v5067 = vld [vmem:[#allocation2 + $0x2a8] sm:$0xff]
  %v5068 = vld [vmem:[#allocation2 + $0x2c0] sm:$0xff]
  %v5069 = vld [vmem:[#allocation2 + $0x2c8] sm:$0xff]
  %v5070 = vld [vmem:[#allocation2 + $0x2e0] sm:$0xff]
  %v5071 = vld [vmem:[#allocation2 + $0x2e8] sm:$0xff]
  %v5072 = vld [vmem:[#allocation2 + $0x300] sm:$0xff]
  %v5073 = vld [vmem:[#allocation2 + $0x308] sm:$0xff]
  %v5074 = vld [vmem:[#allocation2 + $0x320] sm:$0xff]
  %v5075 = vld [vmem:[#allocation2 + $0x328] sm:$0xff]
  %v5076 = vld [vmem:[#allocation2 + $0x340] sm:$0xff]
  %v5077 = vld [vmem:[#allocation2 + $0x348] sm:$0xff]
  %v5078 = vld [vmem:[#allocation2 + $0x360] sm:$0xff]
  %v5079 = vld [vmem:[#allocation2 + $0x368] sm:$0xff]
  %v5080 = vld [vmem:[#allocation2 + $0x380] sm:$0xff]
  %v5081 = vld [vmem:[#allocation2 + $0x388] sm:$0xff]
  %v5082 = vld [vmem:[#allocation2 + $0x3a0] sm:$0xff]
  %v5083 = vld [vmem:[#allocation2 + $0x3a8] sm:$0xff]
  %v5084 = vld [vmem:[#allocation2 + $0x3c0] sm:$0xff]
  %v5085 = vld [vmem:[#allocation2 + $0x3c8] sm:$0xff]
  %v5086 = vld [vmem:[#allocation2 + $0x3e0] sm:$0xff]
  %v5087 = vld [vmem:[#allocation2 + $0x3e8] sm:$0xff]
  %v5088 = vld [vmem:[#allocation2 + $0x400] sm:$0xff]
  %v5089 = vld [vmem:[#allocation2 + $0x408] sm:$0xff]
  %v5090 = vld [vmem:[#allocation2 + $0x420] sm:$0xff]
  %v5091 = vld [vmem:[#allocation2 + $0x428] sm:$0xff]
  %v5092 = vld [vmem:[#allocation2 + $0x440] sm:$0xff]
  %v5093 = vld [vmem:[#allocation2 + $0x448] sm:$0xff]
  %v5094 = vld [vmem:[#allocation2 + $0x460] sm:$0xff]
  %v5095 = vld [vmem:[#allocation2 + $0x468] sm:$0xff]
  %v5097 = vsel %vm1521, %v5014, 0
  %v5100 = vsel %vm1521, %v5017, 0
  %v5103 = vsel %vm1521, %v5020, 0
  %v5106 = vsel %vm1521, %v5023, 0
  %5108 = vmatprep.subr.mxu0 %v5025
  %5109 = vmatpush1.msra.mxu0 %v5024
  %5110 = vmatprep.subr.mxu0 %v5027
  %5111 = vmatpush1.msra.mxu0 %v5026
  %5112 = vmatprep.subr.mxu0 %v5029
  %5113 = vmatpush1.msra.mxu0 %v5028
  %5114 = vmatprep.subr.mxu0 %v5031
  %5115 = vmatpush1.msra.mxu0 %v5030
  %5116 = vmatprep.subr.mxu0 %v5033
  %5117 = vmatpush1.msra.mxu0 %v5032
  %5118 = vmatprep.subr.mxu0 %v5035
  %5119 = vmatpush1.msra.mxu0 %v5034
  %5120 = vmatprep.subr.mxu0 %v5037
  %5121 = vmatpush1.msra.mxu0 %v5036
  %5122 = vmatprep.subr.mxu0 %v5039
  %5123 = vmatpush1.msra.mxu0 %v5038
  %5124 = vmatprep.subr.mxu0 %v5041
  %5125 = vmatpush1.msra.mxu0 %v5040
  %5126 = vmatprep.subr.mxu0 %v5043
  %5127 = vmatpush1.msra.mxu0 %v5042
  %5128 = vmatprep.subr.mxu0 %v5045
  %5129 = vmatpush1.msra.mxu0 %v5044
  %5130 = vmatprep.subr.mxu0 %v5047
  %5131 = vmatpush1.msra.mxu0 %v5046
  %5132 = vmatprep.subr.mxu0 %v5049
  %5133 = vmatpush1.msra.mxu0 %v5048
  %5134 = vmatprep.subr.mxu0 %v5051
  %5135 = vmatpush1.msra.mxu0 %v5050
  %5136 = vmatprep.subr.mxu0 %v5053
  %5137 = vmatpush1.msra.mxu0 %v5052
  %5138 = vmatprep.subr.mxu0 %v5055
  %5139 = vmatpush1.msra.mxu0 %v5054
  %5140 = vmatprep.subr.mxu0 %v5057
  %5141 = vmatpush1.msra.mxu0 %v5056
  %5142 = vmatprep.subr.mxu0 %v5059
  %5143 = vmatpush1.msra.mxu0 %v5058
  %5144 = vmatprep.subr.mxu0 %v5061
  %5145 = vmatpush1.msra.mxu0 %v5060
  %5146 = vmatprep.subr.mxu0 %v5063
  %5147 = vmatpush1.msra.mxu0 %v5062
  %5148 = vmatprep.subr.mxu0 %v5065
  %5149 = vmatpush1.msra.mxu0 %v5064
  %5150 = vmatprep.subr.mxu0 %v5067
  %5151 = vmatpush1.msra.mxu0 %v5066
  %5152 = vmatprep.subr.mxu0 %v5069
  %5153 = vmatpush1.msra.mxu0 %v5068
  %5154 = vmatprep.subr.mxu0 %v5071
  %5155 = vmatpush1.msra.mxu0 %v5070
  %5156 = vmatprep.subr.mxu0 %v5073
  %5157 = vmatpush1.msra.mxu0 %v5072
  %5158 = vmatprep.subr.mxu0 %v5075
  %5159 = vmatpush1.msra.mxu0 %v5074
  %5160 = vmatprep.subr.mxu0 %v5077
  %5161 = vmatpush1.msra.mxu0 %v5076
  %5162 = vmatprep.subr.mxu0 %v5079
  %5163 = vmatpush1.msra.mxu0 %v5078
  %5164 = vmatprep.subr.mxu0 %v5081
  %5165 = vmatpush1.msra.mxu0 %v5080
  %5166 = vmatprep.subr.mxu0 %v5083
  %5167 = vmatpush1.msra.mxu0 %v5082
  %5168 = vmatprep.subr.mxu0 %v5085
  %5169 = vmatpush1.msra.mxu0 %v5084
  %5170 = vmatprep.subr.mxu0 %v5087
  %5171 = vmatpush1.msra.mxu0 %v5086
  %5172 = vmatprep.mubr.f32.mxu0 %v5013
  %5173 = vmatmul.mubr.f32.gmra.mrb[0].mxu0 %v5012
  %v5174 = vpop.f32.mrb[0].mxu0
  %v5175 = vadd.f32 0.0, %v5174
  %v5176 = vpop.f32.mrb[0].mxu0
  %v5177 = vadd.f32 0.0, %v5176
  %5178 = vmatprep.mubr.f32.mxu0 %v5016
  %5179 = vmatmul.mubr.f32.gmra.mrb[0].mxu0 %v5015
  %v5180 = vpop.f32.mrb[0].mxu0
  %v5181 = vadd.f32 0.0, %v5180
  %v5182 = vpop.f32.mrb[0].mxu0
  %v5183 = vadd.f32 0.0, %v5182
  %5184 = vmatprep.mubr.f32.mxu0 %v5019
  %5185 = vmatmul.mubr.f32.gmra.mrb[0].mxu0 %v5018
  %v5186 = vpop.f32.mrb[0].mxu0
  %v5187 = vadd.f32 0.0, %v5186
  %v5188 = vpop.f32.mrb[0].mxu0
  %v5189 = vadd.f32 0.0, %v5188
  %5190 = vmatprep.mubr.f32.mxu0 %v5022
  %5191 = vmatmul.mubr.f32.gmra.mrb[0].mxu0 %v5021
  %v5192 = vpop.f32.mrb[0].mxu0
  %v5193 = vadd.f32 0.0, %v5192
  %v5194 = vpop.f32.mrb[0].mxu0
  %v5195 = vadd.f32 0.0, %v5194
  %5196 = vdwg.mxu0
  %5197 = vmatprep.subr.mxu0 %v5089
  %5198 = vmatpush1.msra.mxu0 %v5088
  %5199 = vmatprep.subr.mxu0 %v5091
  %5200 = vmatpush1.msra.mxu0 %v5090
  %5201 = vmatprep.subr.mxu0 %v5093
  %5202 = vmatpush1.msra.mxu0 %v5092
  %5203 = vmatprep.subr.mxu0 %v5095
  %5204 = vmatpush1.msra.mxu0 %v5094
  %5205 = vmatprep.subr.mxu0 0.0
  %5206 = vmatpush1.msra.mxu0 0.0
  %5207 = vmatprep.subr.mxu0 0.0
  %5208 = vmatpush1.msra.mxu0 0.0
  %5209 = vmatprep.subr.mxu0 0.0
  %5210 = vmatpush1.msra.mxu0 0.0
  %5211 = vmatprep.subr.mxu0 0.0
  %5212 = vmatpush1.msra.mxu0 0.0
  %5213 = vmatprep.subr.mxu0 0.0
  %5214 = vmatpush1.msra.mxu0 0.0
  %5215 = vmatprep.subr.mxu0 0.0
  %5216 = vmatpush1.msra.mxu0 0.0
  %5217 = vmatprep.subr.mxu0 0.0
  %5218 = vmatpush1.msra.mxu0 0.0
  %5219 = vmatprep.subr.mxu0 0.0
  %5220 = vmatpush1.msra.mxu0 0.0
  %5221 = vmatprep.subr.mxu0 0.0
  %5222 = vmatpush1.msra.mxu0 0.0
  %5223 = vmatprep.subr.mxu0 0.0
  %5224 = vmatpush1.msra.mxu0 0.0
  %5225 = vmatprep.subr.mxu0 0.0
  %5226 = vmatpush1.msra.mxu0 0.0
  %5227 = vmatprep.subr.mxu0 0.0
  %5228 = vmatpush1.msra.mxu0 0.0
  %5229 = vmatprep.subr.mxu0 0.0
  %5230 = vmatpush1.msra.mxu0 0.0
  %5231 = vmatprep.subr.mxu0 0.0
  %5232 = vmatpush1.msra.mxu0 0.0
  %5233 = vmatprep.subr.mxu0 0.0
  %5234 = vmatpush1.msra.mxu0 0.0
  %5235 = vmatprep.subr.mxu0 0.0
  %5236 = vmatpush1.msra.mxu0 0.0
  %5237 = vmatprep.subr.mxu0 0.0
  %5238 = vmatpush1.msra.mxu0 0.0
  %5239 = vmatprep.subr.mxu0 0.0
  %5240 = vmatpush1.msra.mxu0 0.0
  %5241 = vmatprep.subr.mxu0 0.0
  %5242 = vmatpush1.msra.mxu0 0.0
  %5243 = vmatprep.subr.mxu0 0.0
  %5244 = vmatpush1.msra.mxu0 0.0
  %5245 = vmatprep.subr.mxu0 0.0
  %5246 = vmatpush1.msra.mxu0 0.0
  %5247 = vmatprep.subr.mxu0 0.0
  %5248 = vmatpush1.msra.mxu0 0.0
  %5249 = vmatprep.subr.mxu0 0.0
  %5250 = vmatpush1.msra.mxu0 0.0
  %5251 = vmatprep.subr.mxu0 0.0
  %5252 = vmatpush1.msra.mxu0 0.0
  %5253 = vmatprep.subr.mxu0 0.0
  %5254 = vmatpush1.msra.mxu0 0.0
  %5255 = vmatprep.subr.mxu0 0.0
  %5256 = vmatpush1.msra.mxu0 0.0
  %5257 = vmatprep.subr.mxu0 0.0
  %5258 = vmatpush1.msra.mxu0 0.0
  %5259 = vmatprep.subr.mxu0 0.0
  %5260 = vmatpush1.msra.mxu0 0.0
  %5261 = vmatprep.mubr.f32.mxu0 0.0
  %5262 = vmatmul.mubr.f32.gmra.mrb[0].mxu0 %v5097
  %v5263 = vpop.f32.mrb[0].mxu0
  %v5264 = vadd.f32 %v5175, %v5263
  %v5265 = vpop.f32.mrb[0].mxu0
  %v5266 = vadd.f32 %v5177, %v5265
  %5267 = vmatprep.mubr.f32.mxu0 0.0
  %5268 = vmatmul.mubr.f32.gmra.mrb[0].mxu0 %v5100
  %v5269 = vpop.f32.mrb[0].mxu0
  %v5270 = vadd.f32 %v5181, %v5269
  %v5271 = vpop.f32.mrb[0].mxu0
  %v5272 = vadd.f32 %v5183, %v5271
  %5273 = vmatprep.mubr.f32.mxu0 0.0
  %5274 = vmatmul.mubr.f32.gmra.mrb[0].mxu0 %v5103
  %v5275 = vpop.f32.mrb[0].mxu0
  %v5276 = vadd.f32 %v5187, %v5275
  %v5277 = vpop.f32.mrb[0].mxu0
  %v5278 = vadd.f32 %v5189, %v5277
  %5279 = vmatprep.mubr.f32.mxu0 0.0
  %5280 = vmatmul.mubr.f32.gmra.mrb[0].mxu0 %v5106
  %v5281 = vpop.f32.mrb[0].mxu0
  %v5282 = vadd.f32 %v5193, %v5281
  %v5283 = vpop.f32.mrb[0].mxu0
  %v5284 = vadd.f32 %v5195, %v5283
  %5285 = vdwg.mxu0
  %s5286 = scalar_lea.vmem %s3, 480
  %v5287 = vld [vmem:[%s5286] sm:$0xff]
  %v5288 = vld [vmem:[%s5286 + $0x8] sm:$0xff]
  %v5289 = vld [vmem:[%s5286 + $0x10] sm:$0xff]
  %v5290 = vld [vmem:[%s5286 + $0x18] sm:$0xff]
  %v5291 = vld [vmem:[%s5286 + $0x20] sm:$0xff]
  %v5292 = vld [vmem:[%s5286 + $0x28] sm:$0xff]
  %v5293 = vld [vmem:[%s5286 + $0x30] sm:$0xff]
  %v5294 = vld [vmem:[%s5286 + $0x38] sm:$0xff]
  %v5295 = vld [vmem:[%s5286 + $0x40] sm:$0xff]
  %v5296 = vld [vmem:[%s5286 + $0x48] sm:$0x3f]
  %v5297 = vld [vmem:[%s5286 + $0x50] sm:$0x3f]
  %v5298 = vld [vmem:[%s5286 + $0x58] sm:$0x3f]
  %v5299 = vld [vmem:[#allocation2 + $0x10] sm:$0xff]
  %v5300 = vld [vmem:[#allocation2 + $0x18] sm:$0xff]
  %v5301 = vld [vmem:[#allocation2 + $0x30] sm:$0xff]
  %v5302 = vld [vmem:[#allocation2 + $0x38] sm:$0xff]
  %v5303 = vld [vmem:[#allocation2 + $0x50] sm:$0xff]
  %v5304 = vld [vmem:[#allocation2 + $0x58] sm:$0xff]
  %v5305 = vld [vmem:[#allocation2 + $0x70] sm:$0xff]
  %v5306 = vld [vmem:[#allocation2 + $0x78] sm:$0xff]
  %v5307 = vld [vmem:[#allocation2 + $0x90] sm:$0xff]
  %v5308 = vld [vmem:[#allocation2 + $0x98] sm:$0xff]
  %v5309 = vld [vmem:[#allocation2 + $0xb0] sm:$0xff]
  %v5310 = vld [vmem:[#allocation2 + $0xb8] sm:$0xff]
  %v5311 = vld [vmem:[#allocation2 + $0xd0] sm:$0xff]
  %v5312 = vld [vmem:[#allocation2 + $0xd8] sm:$0xff]
  %v5313 = vld [vmem:[#allocation2 + $0xf0] sm:$0xff]
  %v5314 = vld [vmem:[#allocation2 + $0xf8] sm:$0xff]
  %v5315 = vld [vmem:[#allocation2 + $0x110] sm:$0xff]
  %v5316 = vld [vmem:[#allocation2 + $0x118] sm:$0xff]
  %v5317 = vld [vmem:[#allocation2 + $0x130] sm:$0xff]
  %v5318 = vld [vmem:[#allocation2 + $0x138] sm:$0xff]
  %v5319 = vld [vmem:[#allocation2 + $0x150] sm:$0xff]
  %v5320 = vld [vmem:[#allocation2 + $0x158] sm:$0xff]
  %v5321 = vld [vmem:[#allocation2 + $0x170] sm:$0xff]
  %v5322 = vld [vmem:[#allocation2 + $0x178] sm:$0xff]
  %v5323 = vld [vmem:[#allocation2 + $0x190] sm:$0xff]
  %v5324 = vld [vmem:[#allocation2 + $0x198] sm:$0xff]
  %v5325 = vld [vmem:[#allocation2 + $0x1b0] sm:$0xff]
  %v5326 = vld [vmem:[#allocation2 + $0x1b8] sm:$0xff]
  %v5327 = vld [vmem:[#allocation2 + $0x1d0] sm:$0xff]
  %v5328 = vld [vmem:[#allocation2 + $0x1d8] sm:$0xff]
  %v5329 = vld [vmem:[#allocation2 + $0x1f0] sm:$0xff]
  %v5330 = vld [vmem:[#allocation2 + $0x1f8] sm:$0xff]
  %v5331 = vld [vmem:[#allocation2 + $0x210] sm:$0xff]
  %v5332 = vld [vmem:[#allocation2 + $0x218] sm:$0xff]
  %v5333 = vld [vmem:[#allocation2 + $0x230] sm:$0xff]
  %v5334 = vld [vmem:[#allocation2 + $0x238] sm:$0xff]
  %v5335 = vld [vmem:[#allocation2 + $0x250] sm:$0xff]
  %v5336 = vld [vmem:[#allocation2 + $0x258] sm:$0xff]
  %v5337 = vld [vmem:[#allocation2 + $0x270] sm:$0xff]
  %v5338 = vld [vmem:[#allocation2 + $0x278] sm:$0xff]
  %v5339 = vld [vmem:[#allocation2 + $0x290] sm:$0xff]
  %v5340 = vld [vmem:[#allocation2 + $0x298] sm:$0xff]
  %v5341 = vld [vmem:[#allocation2 + $0x2b0] sm:$0xff]
  %v5342 = vld [vmem:[#allocation2 + $0x2b8] sm:$0xff]
  %v5343 = vld [vmem:[#allocation2 + $0x2d0] sm:$0xff]
  %v5344 = vld [vmem:[#allocation2 + $0x2d8] sm:$0xff]
  %v5345 = vld [vmem:[#allocation2 + $0x2f0] sm:$0xff]
  %v5346 = vld [vmem:[#allocation2 + $0x2f8] sm:$0xff]
  %v5347 = vld [vmem:[#allocation2 + $0x310] sm:$0xff]
  %v5348 = vld [vmem:[#allocation2 + $0x318] sm:$0xff]
  %v5349 = vld [vmem:[#allocation2 + $0x330] sm:$0xff]
  %v5350 = vld [vmem:[#allocation2 + $0x338] sm:$0xff]
  %v5351 = vld [vmem:[#allocation2 + $0x350] sm:$0xff]
  %v5352 = vld [vmem:[#allocation2 + $0x358] sm:$0xff]
  %v5353 = vld [vmem:[#allocation2 + $0x370] sm:$0xff]
  %v5354 = vld [vmem:[#allocation2 + $0x378] sm:$0xff]
  %v5355 = vld [vmem:[#allocation2 + $0x390] sm:$0xff]
  %v5356 = vld [vmem:[#allocation2 + $0x398] sm:$0xff]
  %v5357 = vld [vmem:[#allocation2 + $0x3b0] sm:$0xff]
  %v5358 = vld [vmem:[#allocation2 + $0x3b8] sm:$0xff]
  %v5359 = vld [vmem:[#allocation2 + $0x3d0] sm:$0xff]
  %v5360 = vld [vmem:[#allocation2 + $0x3d8] sm:$0xff]
  %v5361 = vld [vmem:[#allocation2 + $0x3f0] sm:$0xff]
  %v5362 = vld [vmem:[#allocation2 + $0x3f8] sm:$0xff]
  %v5363 = vld [vmem:[#allocation2 + $0x410] sm:$0xff]
  %v5364 = vld [vmem:[#allocation2 + $0x418] sm:$0xff]
  %v5365 = vld [vmem:[#allocation2 + $0x430] sm:$0xff]
  %v5366 = vld [vmem:[#allocation2 + $0x438] sm:$0xff]
  %v5367 = vld [vmem:[#allocation2 + $0x450] sm:$0xff]
  %v5368 = vld [vmem:[#allocation2 + $0x458] sm:$0xff]
  %v5369 = vld [vmem:[#allocation2 + $0x470] sm:$0xff]
  %v5370 = vld [vmem:[#allocation2 + $0x478] sm:$0xff]
  %v5372 = vsel %vm1521, %v5289, 0
  %v5375 = vsel %vm1521, %v5292, 0
  %v5378 = vsel %vm1521, %v5295, 0
  %v5381 = vsel %vm1521, %v5298, 0
  %5383 = vmatprep.subr.mxu0 %v5300
  %5384 = vmatpush1.msra.mxu0 %v5299
  %5385 = vmatprep.subr.mxu0 %v5302
  %5386 = vmatpush1.msra.mxu0 %v5301
  %5387 = vmatprep.subr.mxu0 %v5304
  %5388 = vmatpush1.msra.mxu0 %v5303
  %5389 = vmatprep.subr.mxu0 %v5306
  %5390 = vmatpush1.msra.mxu0 %v5305
  %5391 = vmatprep.subr.mxu0 %v5308
  %5392 = vmatpush1.msra.mxu0 %v5307
  %5393 = vmatprep.subr.mxu0 %v5310
  %5394 = vmatpush1.msra.mxu0 %v5309
  %5395 = vmatprep.subr.mxu0 %v5312
  %5396 = vmatpush1.msra.mxu0 %v5311
  %5397 = vmatprep.subr.mxu0 %v5314
  %5398 = vmatpush1.msra.mxu0 %v5313
  %5399 = vmatprep.subr.mxu0 %v5316
  %5400 = vmatpush1.msra.mxu0 %v5315
  %5401 = vmatprep.subr.mxu0 %v5318
  %5402 = vmatpush1.msra.mxu0 %v5317
  %5403 = vmatprep.subr.mxu0 %v5320
  %5404 = vmatpush1.msra.mxu0 %v5319
  %5405 = vmatprep.subr.mxu0 %v5322
  %5406 = vmatpush1.msra.mxu0 %v5321
  %5407 = vmatprep.subr.mxu0 %v5324
  %5408 = vmatpush1.msra.mxu0 %v5323
  %5409 = vmatprep.subr.mxu0 %v5326
  %5410 = vmatpush1.msra.mxu0 %v5325
  %5411 = vmatprep.subr.mxu0 %v5328
  %5412 = vmatpush1.msra.mxu0 %v5327
  %5413 = vmatprep.subr.mxu0 %v5330
  %5414 = vmatpush1.msra.mxu0 %v5329
  %5415 = vmatprep.subr.mxu0 %v5332
  %5416 = vmatpush1.msra.mxu0 %v5331
  %5417 = vmatprep.subr.mxu0 %v5334
  %5418 = vmatpush1.msra.mxu0 %v5333
  %5419 = vmatprep.subr.mxu0 %v5336
  %5420 = vmatpush1.msra.mxu0 %v5335
  %5421 = vmatprep.subr.mxu0 %v5338
  %5422 = vmatpush1.msra.mxu0 %v5337
  %5423 = vmatprep.subr.mxu0 %v5340
  %5424 = vmatpush1.msra.mxu0 %v5339
  %5425 = vmatprep.subr.mxu0 %v5342
  %5426 = vmatpush1.msra.mxu0 %v5341
  %5427 = vmatprep.subr.mxu0 %v5344
  %5428 = vmatpush1.msra.mxu0 %v5343
  %5429 = vmatprep.subr.mxu0 %v5346
  %5430 = vmatpush1.msra.mxu0 %v5345
  %5431 = vmatprep.subr.mxu0 %v5348
  %5432 = vmatpush1.msra.mxu0 %v5347
  %5433 = vmatprep.subr.mxu0 %v5350
  %5434 = vmatpush1.msra.mxu0 %v5349
  %5435 = vmatprep.subr.mxu0 %v5352
  %5436 = vmatpush1.msra.mxu0 %v5351
  %5437 = vmatprep.subr.mxu0 %v5354
  %5438 = vmatpush1.msra.mxu0 %v5353
  %5439 = vmatprep.subr.mxu0 %v5356
  %5440 = vmatpush1.msra.mxu0 %v5355
  %5441 = vmatprep.subr.mxu0 %v5358
  %5442 = vmatpush1.msra.mxu0 %v5357
  %5443 = vmatprep.subr.mxu0 %v5360
  %5444 = vmatpush1.msra.mxu0 %v5359
  %5445 = vmatprep.subr.mxu0 %v5362
  %5446 = vmatpush1.msra.mxu0 %v5361
  %5447 = vmatprep.mubr.f32.mxu0 %v5288
  %5448 = vmatmul.mubr.f32.gmra.mrb[0].mxu0 %v5287
  %v5449 = vpop.f32.mrb[0].mxu0
  %v5450 = vadd.f32 0.0, %v5449
  %v5451 = vpop.f32.mrb[0].mxu0
  %v5452 = vadd.f32 0.0, %v5451
  %5453 = vmatprep.mubr.f32.mxu0 %v5291
  %5454 = vmatmul.mubr.f32.gmra.mrb[0].mxu0 %v5290
  %v5455 = vpop.f32.mrb[0].mxu0
  %v5456 = vadd.f32 0.0, %v5455
  %v5457 = vpop.f32.mrb[0].mxu0
  %v5458 = vadd.f32 0.0, %v5457
  %5459 = vmatprep.mubr.f32.mxu0 %v5294
  %5460 = vmatmul.mubr.f32.gmra.mrb[0].mxu0 %v5293
  %v5461 = vpop.f32.mrb[0].mxu0
  %v5462 = vadd.f32 0.0, %v5461
  %v5463 = vpop.f32.mrb[0].mxu0
  %v5464 = vadd.f32 0.0, %v5463
  %5465 = vmatprep.mubr.f32.mxu0 %v5297
  %5466 = vmatmul.mubr.f32.gmra.mrb[0].mxu0 %v5296
  %v5467 = vpop.f32.mrb[0].mxu0
  %v5468 = vadd.f32 0.0, %v5467
  %v5469 = vpop.f32.mrb[0].mxu0
  %v5470 = vadd.f32 0.0, %v5469
  %5471 = vdwg.mxu0
  %5472 = vmatprep.subr.mxu0 %v5364
  %5473 = vmatpush1.msra.mxu0 %v5363
  %5474 = vmatprep.subr.mxu0 %v5366
  %5475 = vmatpush1.msra.mxu0 %v5365
  %5476 = vmatprep.subr.mxu0 %v5368
  %5477 = vmatpush1.msra.mxu0 %v5367
  %5478 = vmatprep.subr.mxu0 %v5370
  %5479 = vmatpush1.msra.mxu0 %v5369
  %5480 = vmatprep.subr.mxu0 0.0
  %5481 = vmatpush1.msra.mxu0 0.0
  %5482 = vmatprep.subr.mxu0 0.0
  %5483 = vmatpush1.msra.mxu0 0.0
  %5484 = vmatprep.subr.mxu0 0.0
  %5485 = vmatpush1.msra.mxu0 0.0
  %5486 = vmatprep.subr.mxu0 0.0
  %5487 = vmatpush1.msra.mxu0 0.0
  %5488 = vmatprep.subr.mxu0 0.0
  %5489 = vmatpush1.msra.mxu0 0.0
  %5490 = vmatprep.subr.mxu0 0.0
  %5491 = vmatpush1.msra.mxu0 0.0
  %5492 = vmatprep.subr.mxu0 0.0
  %5493 = vmatpush1.msra.mxu0 0.0
  %5494 = vmatprep.subr.mxu0 0.0
  %5495 = vmatpush1.msra.mxu0 0.0
  %5496 = vmatprep.subr.mxu0 0.0
  %5497 = vmatpush1.msra.mxu0 0.0
  %5498 = vmatprep.subr.mxu0 0.0
  %5499 = vmatpush1.msra.mxu0 0.0
  %5500 = vmatprep.subr.mxu0 0.0
  %5501 = vmatpush1.msra.mxu0 0.0
  %5502 = vmatprep.subr.mxu0 0.0
  %5503 = vmatpush1.msra.mxu0 0.0
  %5504 = vmatprep.subr.mxu0 0.0
  %5505 = vmatpush1.msra.mxu0 0.0
  %5506 = vmatprep.subr.mxu0 0.0
  %5507 = vmatpush1.msra.mxu0 0.0
  %5508 = vmatprep.subr.mxu0 0.0
  %5509 = vmatpush1.msra.mxu0 0.0
  %5510 = vmatprep.subr.mxu0 0.0
  %5511 = vmatpush1.msra.mxu0 0.0
  %5512 = vmatprep.subr.mxu0 0.0
  %5513 = vmatpush1.msra.mxu0 0.0
  %5514 = vmatprep.subr.mxu0 0.0
  %5515 = vmatpush1.msra.mxu0 0.0
  %5516 = vmatprep.subr.mxu0 0.0
  %5517 = vmatpush1.msra.mxu0 0.0
  %5518 = vmatprep.subr.mxu0 0.0
  %5519 = vmatpush1.msra.mxu0 0.0
  %5520 = vmatprep.subr.mxu0 0.0
  %5521 = vmatpush1.msra.mxu0 0.0
  %5522 = vmatprep.subr.mxu0 0.0
  %5523 = vmatpush1.msra.mxu0 0.0
  %5524 = vmatprep.subr.mxu0 0.0
  %5525 = vmatpush1.msra.mxu0 0.0
  %5526 = vmatprep.subr.mxu0 0.0
  %5527 = vmatpush1.msra.mxu0 0.0
  %5528 = vmatprep.subr.mxu0 0.0
  %5529 = vmatpush1.msra.mxu0 0.0
  %5530 = vmatprep.subr.mxu0 0.0
  %5531 = vmatpush1.msra.mxu0 0.0
  %5532 = vmatprep.subr.mxu0 0.0
  %5533 = vmatpush1.msra.mxu0 0.0
  %5534 = vmatprep.subr.mxu0 0.0
  %5535 = vmatpush1.msra.mxu0 0.0
  %5536 = vmatprep.mubr.f32.mxu0 0.0
  %5537 = vmatmul.mubr.f32.gmra.mrb[0].mxu0 %v5372
  %v5538 = vpop.f32.mrb[0].mxu0
  %v5539 = vadd.f32 %v5450, %v5538
  %v5540 = vpop.f32.mrb[0].mxu0
  %v5541 = vadd.f32 %v5452, %v5540
  %5542 = vmatprep.mubr.f32.mxu0 0.0
  %5543 = vmatmul.mubr.f32.gmra.mrb[0].mxu0 %v5375
  %v5544 = vpop.f32.mrb[0].mxu0
  %v5545 = vadd.f32 %v5456, %v5544
  %v5546 = vpop.f32.mrb[0].mxu0
  %v5547 = vadd.f32 %v5458, %v5546
  %5548 = vmatprep.mubr.f32.mxu0 0.0
  %5549 = vmatmul.mubr.f32.gmra.mrb[0].mxu0 %v5378
  %v5550 = vpop.f32.mrb[0].mxu0
  %v5551 = vadd.f32 %v5462, %v5550
  %v5552 = vpop.f32.mrb[0].mxu0
  %v5553 = vadd.f32 %v5464, %v5552
  %5554 = vmatprep.mubr.f32.mxu0 0.0
  %5555 = vmatmul.mubr.f32.gmra.mrb[0].mxu0 %v5381
  %v5556 = vpop.f32.mrb[0].mxu0
  %v5557 = vadd.f32 %v5468, %v5556
  %v5558 = vpop.f32.mrb[0].mxu0
  %v5559 = vadd.f32 %v5470, %v5558
  %5560 = vdwg.mxu0
  %5562 = vset.pattern.permute.xlu0 0
  %5563 = vperm.xlu0 %5562, %v3999
  %v5564 = vpop.permute.xlu0 %5563
  %5567 = vset.pattern.permute.xlu0 0
  %5568 = vperm.xlu0 %5567, %v4000
  %v5569 = vpop.permute.xlu0 %5568
  %5572 = vset.pattern.permute.xlu0 0
  %5573 = vperm.xlu0 %5572, %v4001
  %v5574 = vpop.permute.xlu0 %5573
  %5577 = vset.pattern.permute.xlu0 0
  %5578 = vperm.xlu0 %5577, %v4002
  %v5579 = vpop.permute.xlu0 %5578
  %v5581 = vadd.f32 %v5264, %v5564
  %v5582 = vadd.f32 %v5266, %v5564
  %v5583 = vadd.f32 %v5539, %v5564
  %v5584 = vadd.f32 %v5541, %v5564
  %v5585 = vadd.f32 %v5270, %v5569
  %v5586 = vadd.f32 %v5272, %v5569
  %v5587 = vadd.f32 %v5545, %v5569
  %v5588 = vadd.f32 %v5547, %v5569
  %v5589 = vadd.f32 %v5276, %v5574
  %v5590 = vadd.f32 %v5278, %v5574
  %v5591 = vadd.f32 %v5551, %v5574
  %v5592 = vadd.f32 %v5553, %v5574
  %v5593 = vadd.f32 %v5282, %v5579
  %v5594 = vadd.f32 %v5284, %v5579
  %v5595 = vadd.f32 %v5557, %v5579
  %v5596 = vadd.f32 %v5559, %v5579
  %v5597 = vadd.f32 %v5581, %v5582
  %v5598 = vadd.f32 %v5597, %v5583
  %v5599 = vadd.f32 %v5598, %v5584
  %5600 = vadd.xlane.f32.xlu0 %v5599
  %v5601 = vpop.xlane.xlu0 %5600
  %v5602 = vadd.f32 %v5585, %v5586
  %v5603 = vadd.f32 %v5602, %v5587
  %v5604 = vadd.f32 %v5603, %v5588
  %5605 = vadd.xlane.f32.xlu0 %v5604
  %v5606 = vpop.xlane.xlu0 %5605
  %v5607 = vadd.f32 %v5589, %v5590
  %v5608 = vadd.f32 %v5607, %v5591
  %v5609 = vadd.f32 %v5608, %v5592
  %5610 = vadd.xlane.f32.xlu0 %v5609
  %v5611 = vpop.xlane.xlu0 %5610
  %v5612 = vsel %vm2038, %v5593, 0.0
  %v5613 = vsel %vm2038, %v5594, 0.0
  %v5614 = vadd.f32 %v5612, %v5613
  %v5615 = vsel %vm2038, %v5595, 0.0
  %v5616 = vadd.f32 %v5614, %v5615
  %v5617 = vsel %vm2038, %v5596, 0.0
  %v5618 = vadd.f32 %v5616, %v5617
  %5619 = vadd.xlane.f32.xlu0 %v5618
  %v5620 = vpop.xlane.xlu0 %5619
  %v5621 = vmul.f32 %v5601, %v2048
  %v5622 = vmul.f32 %v5606, %v2048
  %v5623 = vmul.f32 %v5611, %v2048
  %v5624 = vmul.f32 %v5620, %v2048
  %v5625 = vsub.f32 %v5581, %v5621
  %v5626 = vsub.f32 %v5582, %v5621
  %v5627 = vsub.f32 %v5583, %v5621
  %v5628 = vsub.f32 %v5584, %v5621
  %v5629 = vsub.f32 %v5585, %v5622
  %v5630 = vsub.f32 %v5586, %v5622
  %v5631 = vsub.f32 %v5587, %v5622
  %v5632 = vsub.f32 %v5588, %v5622
  %v5633 = vsub.f32 %v5589, %v5623
  %v5634 = vsub.f32 %v5590, %v5623
  %v5635 = vsub.f32 %v5591, %v5623
  %v5636 = vsub.f32 %v5592, %v5623
  %v5637 = vsub.f32 %v5593, %v5624
  %v5638 = vsub.f32 %v5594, %v5624
  %v5639 = vsub.f32 %v5595, %v5624
  %v5640 = vsub.f32 %v5596, %v5624
  %v5641 = vmul.f32 %v5625, %v5625
  %v5642 = vmul.f32 %v5626, %v5626
  %v5643 = vmul.f32 %v5627, %v5627
  %v5644 = vmul.f32 %v5628, %v5628
  %v5645 = vmul.f32 %v5629, %v5629
  %v5646 = vmul.f32 %v5630, %v5630
  %v5647 = vmul.f32 %v5631, %v5631
  %v5648 = vmul.f32 %v5632, %v5632
  %v5649 = vmul.f32 %v5633, %v5633
  %v5650 = vmul.f32 %v5634, %v5634
  %v5651 = vmul.f32 %v5635, %v5635
  %v5652 = vmul.f32 %v5636, %v5636
  %v5653 = vmul.f32 %v5637, %v5637
  %v5654 = vmul.f32 %v5638, %v5638
  %v5655 = vmul.f32 %v5639, %v5639
  %v5656 = vmul.f32 %v5640, %v5640
  %v5657 = vadd.f32 %v5641, %v5642
  %v5658 = vadd.f32 %v5657, %v5643
  %v5659 = vadd.f32 %v5658, %v5644
  %5660 = vadd.xlane.f32.xlu0 %v5659
  %v5661 = vpop.xlane.xlu0 %5660
  %v5662 = vadd.f32 %v5645, %v5646
  %v5663 = vadd.f32 %v5662, %v5647
  %v5664 = vadd.f32 %v5663, %v5648
  %5665 = vadd.xlane.f32.xlu0 %v5664
  %v5666 = vpop.xlane.xlu0 %5665
  %v5667 = vadd.f32 %v5649, %v5650
  %v5668 = vadd.f32 %v5667, %v5651
  %v5669 = vadd.f32 %v5668, %v5652
  %5670 = vadd.xlane.f32.xlu0 %v5669
  %v5671 = vpop.xlane.xlu0 %5670
  %v5672 = vsel %vm2038, %v5653, 0.0
  %v5673 = vsel %vm2038, %v5654, 0.0
  %v5674 = vadd.f32 %v5672, %v5673
  %v5675 = vsel %vm2038, %v5655, 0.0
  %v5676 = vadd.f32 %v5674, %v5675
  %v5677 = vsel %vm2038, %v5656, 0.0
  %v5678 = vadd.f32 %v5676, %v5677
  %5679 = vadd.xlane.f32.xlu0 %v5678
  %v5680 = vpop.xlane.xlu0 %5679
  %v5681 = vmul.f32 %v5661, %v2048
  %v5682 = vmul.f32 %v5666, %v2048
  %v5683 = vmul.f32 %v5671, %v2048
  %v5684 = vmul.f32 %v5680, %v2048
  %v5685 = vadd.f32 %v5681, 1e-05
  %v5686 = vadd.f32 %v5682, 1e-05
  %v5687 = vadd.f32 %v5683, 1e-05
  %v5688 = vadd.f32 %v5684, 1e-05
  %v5689 = vrsqrt.pop %v5685
  %v5690 = vrsqrt.pop %v5686
  %v5691 = vrsqrt.pop %v5687
  %v5692 = vrsqrt.pop %v5688
  %v5693 = vmul.f32 %v3999, %v5689
  %v5694 = vmul.f32 %v4000, %v5690
  %v5695 = vmul.f32 %v4001, %v5691
  %v5696 = vmul.f32 %v4002, %v5692
  %5698 = vset.pattern.permute.xlu0 1
  %5699 = vperm.xlu0 %5698, %v5693
  %v5700 = vpop.permute.xlu0 %5699
  %5703 = vset.pattern.permute.xlu0 1
  %5704 = vperm.xlu0 %5703, %v5694
  %v5705 = vpop.permute.xlu0 %5704
  %5708 = vset.pattern.permute.xlu0 1
  %5709 = vperm.xlu0 %5708, %v5695
  %v5710 = vpop.permute.xlu0 %5709
  %5713 = vset.pattern.permute.xlu0 1
  %5714 = vperm.xlu0 %5713, %v5696
  %v5715 = vpop.permute.xlu0 %5714
  %v5717 = vmul.f32 %v5625, %v5700
  %v5718 = vmul.f32 %v5626, %v5700
  %v5719 = vmul.f32 %v5627, %v5700
  %v5720 = vmul.f32 %v5628, %v5700
  %v5721 = vmul.f32 %v5629, %v5705
  %v5722 = vmul.f32 %v5630, %v5705
  %v5723 = vmul.f32 %v5631, %v5705
  %v5724 = vmul.f32 %v5632, %v5705
  %v5725 = vmul.f32 %v5633, %v5710
  %v5726 = vmul.f32 %v5634, %v5710
  %v5727 = vmul.f32 %v5635, %v5710
  %v5728 = vmul.f32 %v5636, %v5710
  %v5729 = vmul.f32 %v5637, %v5715
  %v5730 = vmul.f32 %v5638, %v5715
  %v5731 = vmul.f32 %v5639, %v5715
  %v5732 = vmul.f32 %v5640, %v5715
  %5733 = vset.pattern.permute.xlu0 2
  %5734 = vperm.xlu0 %5733, %v3999
  %v5735 = vpop.permute.xlu0 %5734
  %5737 = vset.pattern.permute.xlu0 2
  %5738 = vperm.xlu0 %5737, %v4000
  %v5739 = vpop.permute.xlu0 %5738
  %5741 = vset.pattern.permute.xlu0 2
  %5742 = vperm.xlu0 %5741, %v4001
  %v5743 = vpop.permute.xlu0 %5742
  %5745 = vset.pattern.permute.xlu0 2
  %5746 = vperm.xlu0 %5745, %v4002
  %v5747 = vpop.permute.xlu0 %5746
  %v5749 = vadd.f32 %v5717, %v5735
  %v5750 = vadd.f32 %v5718, %v5735
  %v5751 = vadd.f32 %v5719, %v5735
  %v5752 = vadd.f32 %v5720, %v5735
  %v5753 = vadd.f32 %v5721, %v5739
  %v5754 = vadd.f32 %v5722, %v5739
  %v5755 = vadd.f32 %v5723, %v5739
  %v5756 = vadd.f32 %v5724, %v5739
  %v5757 = vadd.f32 %v5725, %v5743
  %v5758 = vadd.f32 %v5726, %v5743
  %v5759 = vadd.f32 %v5727, %v5743
  %v5760 = vadd.f32 %v5728, %v5743
  %v5761 = vadd.f32 %v5729, %v5747
  %v5762 = vadd.f32 %v5730, %v5747
  %v5763 = vadd.f32 %v5731, %v5747
  %v5764 = vadd.f32 %v5732, %v5747
  %v5765 = vmax.f32 %v5749, 0.0
  %v5766 = vmax.f32 %v5750, 0.0
  %v5767 = vmax.f32 %v5751, 0.0
  %v5768 = vmax.f32 %v5752, 0.0
  %v5769 = vmax.f32 %v5753, 0.0
  %v5770 = vmax.f32 %v5754, 0.0
  %v5771 = vmax.f32 %v5755, 0.0
  %v5772 = vmax.f32 %v5756, 0.0
  %v5773 = vmax.f32 %v5757, 0.0
  %v5774 = vmax.f32 %v5758, 0.0
  %v5775 = vmax.f32 %v5759, 0.0
  %v5776 = vmax.f32 %v5760, 0.0
  %v5777 = vmax.f32 %v5761, 0.0
  %v5778 = vmax.f32 %v5762, 0.0
  %v5779 = vmax.f32 %v5763, 0.0
  %v5780 = vmax.f32 %v5764, 0.0
  %5785 = vrot.lane.b32.xlu0 %v5768, 17
  %v5786 = vpop.permute.xlu0 %5785
  %5787 = vrot.lane.b32.xlu0 %v5772, 17
  %v5788 = vpop.permute.xlu0 %5787
  %5789 = vrot.lane.b32.xlu0 %v5776, 17
  %v5790 = vpop.permute.xlu0 %5789
  %5791 = vrot.lane.b32.xlu0 %v5780, 17
  %v5792 = vpop.permute.xlu0 %5791
  %5809 = vrot.lane.b32.xlu0 %v5765, 17
  %v5810 = vpop.permute.xlu0 %5809
  %5811 = vrot.lane.b32.xlu0 %v5766, 17
  %v5812 = vpop.permute.xlu0 %5811
  %5813 = vrot.lane.b32.xlu0 %v5767, 17
  %v5814 = vpop.permute.xlu0 %5813
  %5815 = vrot.lane.b32.xlu0 %v5769, 17
  %v5816 = vpop.permute.xlu0 %5815
  %5817 = vrot.lane.b32.xlu0 %v5770, 17
  %v5818 = vpop.permute.xlu0 %5817
  %5819 = vrot.lane.b32.xlu0 %v5771, 17
  %v5820 = vpop.permute.xlu0 %5819
  %5821 = vrot.lane.b32.xlu0 %v5773, 17
  %v5822 = vpop.permute.xlu0 %5821
  %5823 = vrot.lane.b32.xlu0 %v5774, 17
  %v5824 = vpop.permute.xlu0 %5823
  %5825 = vrot.lane.b32.xlu0 %v5775, 17
  %v5826 = vpop.permute.xlu0 %5825
  %5827 = vrot.lane.b32.xlu0 %v5777, 17
  %v5828 = vpop.permute.xlu0 %5827
  %5829 = vrot.lane.b32.xlu0 %v5778, 17
  %v5830 = vpop.permute.xlu0 %5829
  %5831 = vrot.lane.b32.xlu0 %v5779, 17
  %v5832 = vpop.permute.xlu0 %5831
  %v5833 = vsel %vm466, %v5810, %v5812
  %v5834 = vsel %vm466, %v5812, %v5814
  %v5835 = vsel %vm466, %v5814, %v5786
  %v5836 = vsel %vm466, %v5816, %v5818
  %v5837 = vsel %vm466, %v5818, %v5820
  %v5838 = vsel %vm466, %v5820, %v5788
  %v5839 = vsel %vm466, %v5822, %v5824
  %v5840 = vsel %vm466, %v5824, %v5826
  %v5841 = vsel %vm466, %v5826, %v5790
  %v5842 = vsel %vm466, %v5828, %v5830
  %v5843 = vsel %vm466, %v5830, %v5832
  %v5844 = vsel %vm466, %v5832, %v5792
  %v5861 = vsel %vm466, %v5786, %v5810
  %v5862 = vsel %vm466, %v5788, %v5816
  %v5863 = vsel %vm466, %v5790, %v5822
  %v5864 = vsel %vm466, %v5792, %v5828
  %v5865 = vld [vmem:[%s6] ss:$8 sm:$0xf]
  %v5867 = vlaneseq
  %v5868 = vshrl.u32 %v5867, 7
  %v5869 = vsub.s32 0, %v5868
  %v5870 = vrot.slane %v5865, %v5869
  %v5871 = vlaneseq
  %v5872 = vshrl.u32 %v5871, 7
  %v5873 = vsub.s32 1, %v5872
  %v5874 = vrot.slane %v5865, %v5873
  %v5875 = vlaneseq
  %v5876 = vshrl.u32 %v5875, 7
  %v5877 = vsub.s32 2, %v5876
  %v5878 = vrot.slane %v5865, %v5877
  %v5879 = vlaneseq
  %v5880 = vshrl.u32 %v5879, 7
  %v5881 = vsub.s32 3, %v5880
  %v5882 = vrot.slane %v5865, %v5881
  %v5887 = vmul.f32 %v5861, %v5870
  %v5888 = vmul.f32 %v5833, %v5874
  %v5889 = vmul.f32 %v5834, %v5878
  %v5890 = vmul.f32 %v5835, %v5882
  %v5891 = vmul.f32 %v5862, %v5870
  %v5892 = vmul.f32 %v5836, %v5874
  %v5893 = vmul.f32 %v5837, %v5878
  %v5894 = vmul.f32 %v5838, %v5882
  %v5895 = vmul.f32 %v5863, %v5870
  %v5896 = vmul.f32 %v5839, %v5874
  %v5897 = vmul.f32 %v5840, %v5878
  %v5898 = vmul.f32 %v5841, %v5882
  %v5899 = vmul.f32 %v5864, %v5870
  %v5900 = vmul.f32 %v5842, %v5874
  %v5901 = vmul.f32 %v5843, %v5878
  %v5902 = vmul.f32 %v5844, %v5882
  %5903 = vst [vmem:[#allocation2] sm:$0xff] %v5887
  %5904 = vst [vmem:[#allocation2 + $0x8] sm:$0xff] %v5888
  %5905 = vst [vmem:[#allocation2 + $0x10] sm:$0xff] %v5889
  %5906 = vst [vmem:[#allocation2 + $0x18] sm:$0xff] %v5890
  %5907 = vst [vmem:[#allocation2 + $0x20] sm:$0xff] %v5891
  %5908 = vst [vmem:[#allocation2 + $0x28] sm:$0xff] %v5892
  %5909 = vst [vmem:[#allocation2 + $0x30] sm:$0xff] %v5893
  %5910 = vst [vmem:[#allocation2 + $0x38] sm:$0xff] %v5894
  %5911 = vst [vmem:[#allocation2 + $0x40] sm:$0xff] %v5895
  %5912 = vst [vmem:[#allocation2 + $0x48] sm:$0xff] %v5896
  %5913 = vst [vmem:[#allocation2 + $0x50] sm:$0xff] %v5897
  %5914 = vst [vmem:[#allocation2 + $0x58] sm:$0xff] %v5898
  %5915 = vst [vmem:[#allocation2 + $0x60] sm:$0x3f] %v5899
  %5916 = vst [vmem:[#allocation2 + $0x68] sm:$0x3f] %v5900
  %5917 = vst [vmem:[#allocation2 + $0x70] sm:$0x3f] %v5901
  %5918 = vst [vmem:[#allocation2 + $0x78] sm:$0x3f] %v5902
  %5919 = vrot.lane.b32.xlu0 %v5768, 16
  %v5920 = vpop.permute.xlu0 %5919
  %5921 = vrot.lane.b32.xlu0 %v5772, 16
  %v5922 = vpop.permute.xlu0 %5921
  %5923 = vrot.lane.b32.xlu0 %v5776, 16
  %v5924 = vpop.permute.xlu0 %5923
  %5925 = vrot.lane.b32.xlu0 %v5780, 16
  %v5926 = vpop.permute.xlu0 %5925
  %5931 = vrot.lane.b32.xlu0 %v5765, 16
  %v5932 = vpop.permute.xlu0 %5931
  %5933 = vrot.lane.b32.xlu0 %v5766, 16
  %v5934 = vpop.permute.xlu0 %5933
  %5935 = vrot.lane.b32.xlu0 %v5767, 16
  %v5936 = vpop.permute.xlu0 %5935
  %5937 = vrot.lane.b32.xlu0 %v5769, 16
  %v5938 = vpop.permute.xlu0 %5937
  %5939 = vrot.lane.b32.xlu0 %v5770, 16
  %v5940 = vpop.permute.xlu0 %5939
  %5941 = vrot.lane.b32.xlu0 %v5771, 16
  %v5942 = vpop.permute.xlu0 %5941
  %5943 = vrot.lane.b32.xlu0 %v5773, 16
  %v5944 = vpop.permute.xlu0 %5943
  %5945 = vrot.lane.b32.xlu0 %v5774, 16
  %v5946 = vpop.permute.xlu0 %5945
  %5947 = vrot.lane.b32.xlu0 %v5775, 16
  %v5948 = vpop.permute.xlu0 %5947
  %5949 = vrot.lane.b32.xlu0 %v5777, 16
  %v5950 = vpop.permute.xlu0 %5949
  %5951 = vrot.lane.b32.xlu0 %v5778, 16
  %v5952 = vpop.permute.xlu0 %5951
  %5953 = vrot.lane.b32.xlu0 %v5779, 16
  %v5954 = vpop.permute.xlu0 %5953
  %v5955 = vsel %vm589, %v5932, %v5934
  %v5956 = vsel %vm589, %v5934, %v5936
  %v5957 = vsel %vm589, %v5936, %v5920
  %v5958 = vsel %vm589, %v5938, %v5940
  %v5959 = vsel %vm589, %v5940, %v5942
  %v5960 = vsel %vm589, %v5942, %v5922
  %v5961 = vsel %vm589, %v5944, %v5946
  %v5962 = vsel %vm589, %v5946, %v5948
  %v5963 = vsel %vm589, %v5948, %v5924
  %v5964 = vsel %vm589, %v5950, %v5952
  %v5965 = vsel %vm589, %v5952, %v5954
  %v5966 = vsel %vm589, %v5954, %v5926
  %v5983 = vsel %vm589, %v5920, %v5932
  %v5984 = vsel %vm589, %v5922, %v5938
  %v5985 = vsel %vm589, %v5924, %v5944
  %v5986 = vsel %vm589, %v5926, %v5950
  %v5987 = vld [vmem:[%s622] ss:$8 sm:$0xf]
  %v5989 = vlaneseq
  %v5990 = vshrl.u32 %v5989, 7
  %v5991 = vsub.s32 0, %v5990
  %v5992 = vrot.slane %v5987, %v5991
  %v5993 = vlaneseq
  %v5994 = vshrl.u32 %v5993, 7
  %v5995 = vsub.s32 1, %v5994
  %v5996 = vrot.slane %v5987, %v5995
  %v5997 = vlaneseq
  %v5998 = vshrl.u32 %v5997, 7
  %v5999 = vsub.s32 2, %v5998
  %v6000 = vrot.slane %v5987, %v5999
  %v6001 = vlaneseq
  %v6002 = vshrl.u32 %v6001, 7
  %v6003 = vsub.s32 3, %v6002
  %v6004 = vrot.slane %v5987, %v6003
  %v6009 = vmul.f32 %v5983, %v5992
  %v6010 = vmul.f32 %v5955, %v5996
  %v6011 = vmul.f32 %v5956, %v6000
  %v6012 = vmul.f32 %v5957, %v6004
  %v6013 = vmul.f32 %v5984, %v5992
  %v6014 = vmul.f32 %v5958, %v5996
  %v6015 = vmul.f32 %v5959, %v6000
  %v6016 = vmul.f32 %v5960, %v6004
  %v6017 = vmul.f32 %v5985, %v5992
  %v6018 = vmul.f32 %v5961, %v5996
  %v6019 = vmul.f32 %v5962, %v6000
  %v6020 = vmul.f32 %v5963, %v6004
  %v6021 = vmul.f32 %v5986, %v5992
  %v6022 = vmul.f32 %v5964, %v5996
  %v6023 = vmul.f32 %v5965, %v6000
  %v6024 = vmul.f32 %v5966, %v6004
  %6025 = vst [vmem:[#allocation2 + $0x80] sm:$0xff] %v6009
  %6026 = vst [vmem:[#allocation2 + $0x88] sm:$0xff] %v6010
  %6027 = vst [vmem:[#allocation2 + $0x90] sm:$0xff] %v6011
  %6028 = vst [vmem:[#allocation2 + $0x98] sm:$0xff] %v6012
  %6029 = vst [vmem:[#allocation2 + $0xa0] sm:$0xff] %v6013
  %6030 = vst [vmem:[#allocation2 + $0xa8] sm:$0xff] %v6014
  %6031 = vst [vmem:[#allocation2 + $0xb0] sm:$0xff] %v6015
  %6032 = vst [vmem:[#allocation2 + $0xb8] sm:$0xff] %v6016
  %6033 = vst [vmem:[#allocation2 + $0xc0] sm:$0xff] %v6017
  %6034 = vst [vmem:[#allocation2 + $0xc8] sm:$0xff] %v6018
  %6035 = vst [vmem:[#allocation2 + $0xd0] sm:$0xff] %v6019
  %6036 = vst [vmem:[#allocation2 + $0xd8] sm:$0xff] %v6020
  %6037 = vst [vmem:[#allocation2 + $0xe0] sm:$0x3f] %v6021
  %6038 = vst [vmem:[#allocation2 + $0xe8] sm:$0x3f] %v6022
  %6039 = vst [vmem:[#allocation2 + $0xf0] sm:$0x3f] %v6023
  %6040 = vst [vmem:[#allocation2 + $0xf8] sm:$0x3f] %v6024
  %6041 = vrot.lane.b32.xlu0 %v5768, 15
  %v6042 = vpop.permute.xlu0 %6041
  %6043 = vrot.lane.b32.xlu0 %v5772, 15
  %v6044 = vpop.permute.xlu0 %6043
  %6045 = vrot.lane.b32.xlu0 %v5776, 15
  %v6046 = vpop.permute.xlu0 %6045
  %6047 = vrot.lane.b32.xlu0 %v5780, 15
  %v6048 = vpop.permute.xlu0 %6047
  %6053 = vrot.lane.b32.xlu0 %v5765, 15
  %v6054 = vpop.permute.xlu0 %6053
  %6055 = vrot.lane.b32.xlu0 %v5766, 15
  %v6056 = vpop.permute.xlu0 %6055
  %6057 = vrot.lane.b32.xlu0 %v5767, 15
  %v6058 = vpop.permute.xlu0 %6057
  %6059 = vrot.lane.b32.xlu0 %v5769, 15
  %v6060 = vpop.permute.xlu0 %6059
  %6061 = vrot.lane.b32.xlu0 %v5770, 15
  %v6062 = vpop.permute.xlu0 %6061
  %6063 = vrot.lane.b32.xlu0 %v5771, 15
  %v6064 = vpop.permute.xlu0 %6063
  %6065 = vrot.lane.b32.xlu0 %v5773, 15
  %v6066 = vpop.permute.xlu0 %6065
  %6067 = vrot.lane.b32.xlu0 %v5774, 15
  %v6068 = vpop.permute.xlu0 %6067
  %6069 = vrot.lane.b32.xlu0 %v5775, 15
  %v6070 = vpop.permute.xlu0 %6069
  %6071 = vrot.lane.b32.xlu0 %v5777, 15
  %v6072 = vpop.permute.xlu0 %6071
  %6073 = vrot.lane.b32.xlu0 %v5778, 15
  %v6074 = vpop.permute.xlu0 %6073
  %6075 = vrot.lane.b32.xlu0 %v5779, 15
  %v6076 = vpop.permute.xlu0 %6075
  %v6077 = vsel %vm713, %v6054, %v6056
  %v6078 = vsel %vm713, %v6056, %v6058
  %v6079 = vsel %vm713, %v6058, %v6042
  %v6080 = vsel %vm713, %v6060, %v6062
  %v6081 = vsel %vm713, %v6062, %v6064
  %v6082 = vsel %vm713, %v6064, %v6044
  %v6083 = vsel %vm713, %v6066, %v6068
  %v6084 = vsel %vm713, %v6068, %v6070
  %v6085 = vsel %vm713, %v6070, %v6046
  %v6086 = vsel %vm713, %v6072, %v6074
  %v6087 = vsel %vm713, %v6074, %v6076
  %v6088 = vsel %vm713, %v6076, %v6048
  %v6105 = vsel %vm713, %v6042, %v6054
  %v6106 = vsel %vm713, %v6044, %v6060
  %v6107 = vsel %vm713, %v6046, %v6066
  %v6108 = vsel %vm713, %v6048, %v6072
  %v6109 = vld [vmem:[%s746] ss:$8 sm:$0xf]
  %v6111 = vlaneseq
  %v6112 = vshrl.u32 %v6111, 7
  %v6113 = vsub.s32 0, %v6112
  %v6114 = vrot.slane %v6109, %v6113
  %v6115 = vlaneseq
  %v6116 = vshrl.u32 %v6115, 7
  %v6117 = vsub.s32 1, %v6116
  %v6118 = vrot.slane %v6109, %v6117
  %v6119 = vlaneseq
  %v6120 = vshrl.u32 %v6119, 7
  %v6121 = vsub.s32 2, %v6120
  %v6122 = vrot.slane %v6109, %v6121
  %v6123 = vlaneseq
  %v6124 = vshrl.u32 %v6123, 7
  %v6125 = vsub.s32 3, %v6124
  %v6126 = vrot.slane %v6109, %v6125
  %v6131 = vmul.f32 %v6105, %v6114
  %v6132 = vmul.f32 %v6077, %v6118
  %v6133 = vmul.f32 %v6078, %v6122
  %v6134 = vmul.f32 %v6079, %v6126
  %v6135 = vmul.f32 %v6106, %v6114
  %v6136 = vmul.f32 %v6080, %v6118
  %v6137 = vmul.f32 %v6081, %v6122
  %v6138 = vmul.f32 %v6082, %v6126
  %v6139 = vmul.f32 %v6107, %v6114
  %v6140 = vmul.f32 %v6083, %v6118
  %v6141 = vmul.f32 %v6084, %v6122
  %v6142 = vmul.f32 %v6085, %v6126
  %v6143 = vmul.f32 %v6108, %v6114
  %v6144 = vmul.f32 %v6086, %v6118
  %v6145 = vmul.f32 %v6087, %v6122
  %v6146 = vmul.f32 %v6088, %v6126
  %6147 = vst [vmem:[#allocation2 + $0x100] sm:$0xff] %v6131
  %6148 = vst [vmem:[#allocation2 + $0x108] sm:$0xff] %v6132
  %6149 = vst [vmem:[#allocation2 + $0x110] sm:$0xff] %v6133
  %6150 = vst [vmem:[#allocation2 + $0x118] sm:$0xff] %v6134
  %6151 = vst [vmem:[#allocation2 + $0x120] sm:$0xff] %v6135
  %6152 = vst [vmem:[#allocation2 + $0x128] sm:$0xff] %v6136
  %6153 = vst [vmem:[#allocation2 + $0x130] sm:$0xff] %v6137
  %6154 = vst [vmem:[#allocation2 + $0x138] sm:$0xff] %v6138
  %6155 = vst [vmem:[#allocation2 + $0x140] sm:$0xff] %v6139
  %6156 = vst [vmem:[#allocation2 + $0x148] sm:$0xff] %v6140
  %6157 = vst [vmem:[#allocation2 + $0x150] sm:$0xff] %v6141
  %6158 = vst [vmem:[#allocation2 + $0x158] sm:$0xff] %v6142
  %6159 = vst [vmem:[#allocation2 + $0x160] sm:$0x3f] %v6143
  %6160 = vst [vmem:[#allocation2 + $0x168] sm:$0x3f] %v6144
  %6161 = vst [vmem:[#allocation2 + $0x170] sm:$0x3f] %v6145
  %6162 = vst [vmem:[#allocation2 + $0x178] sm:$0x3f] %v6146
  %6163 = vrot.lane.b32.xlu0 %v5768, 1
  %v6164 = vpop.permute.xlu0 %6163
  %6165 = vrot.lane.b32.xlu0 %v5772, 1
  %v6166 = vpop.permute.xlu0 %6165
  %6167 = vrot.lane.b32.xlu0 %v5776, 1
  %v6168 = vpop.permute.xlu0 %6167
  %6169 = vrot.lane.b32.xlu0 %v5780, 1
  %v6170 = vpop.permute.xlu0 %6169
  %6175 = vrot.lane.b32.xlu0 %v5765, 1
  %v6176 = vpop.permute.xlu0 %6175
  %6177 = vrot.lane.b32.xlu0 %v5766, 1
  %v6178 = vpop.permute.xlu0 %6177
  %6179 = vrot.lane.b32.xlu0 %v5767, 1
  %v6180 = vpop.permute.xlu0 %6179
  %6181 = vrot.lane.b32.xlu0 %v5769, 1
  %v6182 = vpop.permute.xlu0 %6181
  %6183 = vrot.lane.b32.xlu0 %v5770, 1
  %v6184 = vpop.permute.xlu0 %6183
  %6185 = vrot.lane.b32.xlu0 %v5771, 1
  %v6186 = vpop.permute.xlu0 %6185
  %6187 = vrot.lane.b32.xlu0 %v5773, 1
  %v6188 = vpop.permute.xlu0 %6187
  %6189 = vrot.lane.b32.xlu0 %v5774, 1
  %v6190 = vpop.permute.xlu0 %6189
  %6191 = vrot.lane.b32.xlu0 %v5775, 1
  %v6192 = vpop.permute.xlu0 %6191
  %6193 = vrot.lane.b32.xlu0 %v5777, 1
  %v6194 = vpop.permute.xlu0 %6193
  %6195 = vrot.lane.b32.xlu0 %v5778, 1
  %v6196 = vpop.permute.xlu0 %6195
  %6197 = vrot.lane.b32.xlu0 %v5779, 1
  %v6198 = vpop.permute.xlu0 %6197
  %v6199 = vsel %vm837, %v6176, %v6178
  %v6200 = vsel %vm837, %v6178, %v6180
  %v6201 = vsel %vm837, %v6180, %v6164
  %v6202 = vsel %vm837, %v6182, %v6184
  %v6203 = vsel %vm837, %v6184, %v6186
  %v6204 = vsel %vm837, %v6186, %v6166
  %v6205 = vsel %vm837, %v6188, %v6190
  %v6206 = vsel %vm837, %v6190, %v6192
  %v6207 = vsel %vm837, %v6192, %v6168
  %v6208 = vsel %vm837, %v6194, %v6196
  %v6209 = vsel %vm837, %v6196, %v6198
  %v6210 = vsel %vm837, %v6198, %v6170
  %v6227 = vsel %vm837, %v6164, %v6176
  %v6228 = vsel %vm837, %v6166, %v6182
  %v6229 = vsel %vm837, %v6168, %v6188
  %v6230 = vsel %vm837, %v6170, %v6194
  %v6231 = vld [vmem:[%s870] ss:$8 sm:$0xf]
  %v6233 = vlaneseq
  %v6234 = vshrl.u32 %v6233, 7
  %v6235 = vsub.s32 0, %v6234
  %v6236 = vrot.slane %v6231, %v6235
  %v6237 = vlaneseq
  %v6238 = vshrl.u32 %v6237, 7
  %v6239 = vsub.s32 1, %v6238
  %v6240 = vrot.slane %v6231, %v6239
  %v6241 = vlaneseq
  %v6242 = vshrl.u32 %v6241, 7
  %v6243 = vsub.s32 2, %v6242
  %v6244 = vrot.slane %v6231, %v6243
  %v6245 = vlaneseq
  %v6246 = vshrl.u32 %v6245, 7
  %v6247 = vsub.s32 3, %v6246
  %v6248 = vrot.slane %v6231, %v6247
  %v6253 = vmul.f32 %v6227, %v6236
  %v6254 = vmul.f32 %v6199, %v6240
  %v6255 = vmul.f32 %v6200, %v6244
  %v6256 = vmul.f32 %v6201, %v6248
  %v6257 = vmul.f32 %v6228, %v6236
  %v6258 = vmul.f32 %v6202, %v6240
  %v6259 = vmul.f32 %v6203, %v6244
  %v6260 = vmul.f32 %v6204, %v6248
  %v6261 = vmul.f32 %v6229, %v6236
  %v6262 = vmul.f32 %v6205, %v6240
  %v6263 = vmul.f32 %v6206, %v6244
  %v6264 = vmul.f32 %v6207, %v6248
  %v6265 = vmul.f32 %v6230, %v6236
  %v6266 = vmul.f32 %v6208, %v6240
  %v6267 = vmul.f32 %v6209, %v6244
  %v6268 = vmul.f32 %v6210, %v6248
  %6269 = vst [vmem:[#allocation2 + $0x180] sm:$0xff] %v6253
  %6270 = vst [vmem:[#allocation2 + $0x188] sm:$0xff] %v6254
  %6271 = vst [vmem:[#allocation2 + $0x190] sm:$0xff] %v6255
  %6272 = vst [vmem:[#allocation2 + $0x198] sm:$0xff] %v6256
  %6273 = vst [vmem:[#allocation2 + $0x1a0] sm:$0xff] %v6257
  %6274 = vst [vmem:[#allocation2 + $0x1a8] sm:$0xff] %v6258
  %6275 = vst [vmem:[#allocation2 + $0x1b0] sm:$0xff] %v6259
  %6276 = vst [vmem:[#allocation2 + $0x1b8] sm:$0xff] %v6260
  %6277 = vst [vmem:[#allocation2 + $0x1c0] sm:$0xff] %v6261
  %6278 = vst [vmem:[#allocation2 + $0x1c8] sm:$0xff] %v6262
  %6279 = vst [vmem:[#allocation2 + $0x1d0] sm:$0xff] %v6263
  %6280 = vst [vmem:[#allocation2 + $0x1d8] sm:$0xff] %v6264
  %6281 = vst [vmem:[#allocation2 + $0x1e0] sm:$0x3f] %v6265
  %6282 = vst [vmem:[#allocation2 + $0x1e8] sm:$0x3f] %v6266
  %6283 = vst [vmem:[#allocation2 + $0x1f0] sm:$0x3f] %v6267
  %6284 = vst [vmem:[#allocation2 + $0x1f8] sm:$0x3f] %v6268
  %6285 = vst [vmem:[#allocation2 + $0x200] sm:$0xff] %v5765
  %6286 = vst [vmem:[#allocation2 + $0x208] sm:$0xff] %v5766
  %6287 = vst [vmem:[#allocation2 + $0x210] sm:$0xff] %v5767
  %6288 = vst [vmem:[#allocation2 + $0x218] sm:$0xff] %v5768
  %6289 = vst [vmem:[#allocation2 + $0x220] sm:$0xff] %v5769
  %6290 = vst [vmem:[#allocation2 + $0x228] sm:$0xff] %v5770
  %6291 = vst [vmem:[#allocation2 + $0x230] sm:$0xff] %v5771
  %6292 = vst [vmem:[#allocation2 + $0x238] sm:$0xff] %v5772
  %6293 = vst [vmem:[#allocation2 + $0x240] sm:$0xff] %v5773
  %6294 = vst [vmem:[#allocation2 + $0x248] sm:$0xff] %v5774
  %6295 = vst [vmem:[#allocation2 + $0x250] sm:$0xff] %v5775
  %6296 = vst [vmem:[#allocation2 + $0x258] sm:$0xff] %v5776
  %6297 = vst [vmem:[#allocation2 + $0x260] sm:$0x3f] %v5777
  %6298 = vst [vmem:[#allocation2 + $0x268] sm:$0x3f] %v5778
  %6299 = vst [vmem:[#allocation2 + $0x270] sm:$0x3f] %v5779
  %6300 = vst [vmem:[#allocation2 + $0x278] sm:$0x3f] %v5780
  %6301 = vrot.lane.b32.xlu0 %v5765, 127
  %v6302 = vpop.permute.xlu0 %6301
  %6303 = vrot.lane.b32.xlu0 %v5766, 127
  %v6304 = vpop.permute.xlu0 %6303
  %6305 = vrot.lane.b32.xlu0 %v5767, 127
  %v6306 = vpop.permute.xlu0 %6305
  %6307 = vrot.lane.b32.xlu0 %v5768, 127
  %v6308 = vpop.permute.xlu0 %6307
  %6309 = vrot.lane.b32.xlu0 %v5769, 127
  %v6310 = vpop.permute.xlu0 %6309
  %6311 = vrot.lane.b32.xlu0 %v5770, 127
  %v6312 = vpop.permute.xlu0 %6311
  %6313 = vrot.lane.b32.xlu0 %v5771, 127
  %v6314 = vpop.permute.xlu0 %6313
  %6315 = vrot.lane.b32.xlu0 %v5772, 127
  %v6316 = vpop.permute.xlu0 %6315
  %6317 = vrot.lane.b32.xlu0 %v5773, 127
  %v6318 = vpop.permute.xlu0 %6317
  %6319 = vrot.lane.b32.xlu0 %v5774, 127
  %v6320 = vpop.permute.xlu0 %6319
  %6321 = vrot.lane.b32.xlu0 %v5775, 127
  %v6322 = vpop.permute.xlu0 %6321
  %6323 = vrot.lane.b32.xlu0 %v5776, 127
  %v6324 = vpop.permute.xlu0 %6323
  %6325 = vrot.lane.b32.xlu0 %v5777, 127
  %v6326 = vpop.permute.xlu0 %6325
  %6327 = vrot.lane.b32.xlu0 %v5778, 127
  %v6328 = vpop.permute.xlu0 %6327
  %6329 = vrot.lane.b32.xlu0 %v5779, 127
  %v6330 = vpop.permute.xlu0 %6329
  %6331 = vrot.lane.b32.xlu0 %v5780, 127
  %v6332 = vpop.permute.xlu0 %6331
  %v6333 = vsel %vm973, %v6302, %v6304
  %v6334 = vsel %vm973, %v6304, %v6306
  %v6335 = vsel %vm973, %v6306, %v6308
  %v6336 = vsel %vm973, %v6310, %v6312
  %v6337 = vsel %vm973, %v6312, %v6314
  %v6338 = vsel %vm973, %v6314, %v6316
  %v6339 = vsel %vm973, %v6318, %v6320
  %v6340 = vsel %vm973, %v6320, %v6322
  %v6341 = vsel %vm973, %v6322, %v6324
  %v6342 = vsel %vm973, %v6326, %v6328
  %v6343 = vsel %vm973, %v6328, %v6330
  %v6344 = vsel %vm973, %v6330, %v6332
  %v6365 = vsel %vm973, %v6308, %v6302
  %v6366 = vsel %vm973, %v6316, %v6310
  %v6367 = vsel %vm973, %v6324, %v6318
  %v6368 = vsel %vm973, %v6332, %v6326
  %v6369 = vld [vmem:[%s1010] ss:$8 sm:$0xf]
  %v6371 = vlaneseq
  %v6372 = vshrl.u32 %v6371, 7
  %v6373 = vsub.s32 0, %v6372
  %v6374 = vrot.slane %v6369, %v6373
  %v6375 = vlaneseq
  %v6376 = vshrl.u32 %v6375, 7
  %v6377 = vsub.s32 1, %v6376
  %v6378 = vrot.slane %v6369, %v6377
  %v6379 = vlaneseq
  %v6380 = vshrl.u32 %v6379, 7
  %v6381 = vsub.s32 2, %v6380
  %v6382 = vrot.slane %v6369, %v6381
  %v6383 = vlaneseq
  %v6384 = vshrl.u32 %v6383, 7
  %v6385 = vsub.s32 3, %v6384
  %v6386 = vrot.slane %v6369, %v6385
  %v6391 = vmul.f32 %v6333, %v6374
  %v6392 = vmul.f32 %v6334, %v6378
  %v6393 = vmul.f32 %v6335, %v6382
  %v6394 = vmul.f32 %v6365, %v6386
  %v6395 = vmul.f32 %v6336, %v6374
  %v6396 = vmul.f32 %v6337, %v6378
  %v6397 = vmul.f32 %v6338, %v6382
  %v6398 = vmul.f32 %v6366, %v6386
  %v6399 = vmul.f32 %v6339, %v6374
  %v6400 = vmul.f32 %v6340, %v6378
  %v6401 = vmul.f32 %v6341, %v6382
  %v6402 = vmul.f32 %v6367, %v6386
  %v6403 = vmul.f32 %v6342, %v6374
  %v6404 = vmul.f32 %v6343, %v6378
  %v6405 = vmul.f32 %v6344, %v6382
  %v6406 = vmul.f32 %v6368, %v6386
  %6407 = vst [vmem:[#allocation2 + $0x280] sm:$0xff] %v6391
  %6408 = vst [vmem:[#allocation2 + $0x288] sm:$0xff] %v6392
  %6409 = vst [vmem:[#allocation2 + $0x290] sm:$0xff] %v6393
  %6410 = vst [vmem:[#allocation2 + $0x298] sm:$0xff] %v6394
  %6411 = vst [vmem:[#allocation2 + $0x2a0] sm:$0xff] %v6395
  %6412 = vst [vmem:[#allocation2 + $0x2a8] sm:$0xff] %v6396
  %6413 = vst [vmem:[#allocation2 + $0x2b0] sm:$0xff] %v6397
  %6414 = vst [vmem:[#allocation2 + $0x2b8] sm:$0xff] %v6398
  %6415 = vst [vmem:[#allocation2 + $0x2c0] sm:$0xff] %v6399
  %6416 = vst [vmem:[#allocation2 + $0x2c8] sm:$0xff] %v6400
  %6417 = vst [vmem:[#allocation2 + $0x2d0] sm:$0xff] %v6401
  %6418 = vst [vmem:[#allocation2 + $0x2d8] sm:$0xff] %v6402
  %6419 = vst [vmem:[#allocation2 + $0x2e0] sm:$0x3f] %v6403
  %6420 = vst [vmem:[#allocation2 + $0x2e8] sm:$0x3f] %v6404
  %6421 = vst [vmem:[#allocation2 + $0x2f0] sm:$0x3f] %v6405
  %6422 = vst [vmem:[#allocation2 + $0x2f8] sm:$0x3f] %v6406
  %6423 = vrot.lane.b32.xlu0 %v5765, 113
  %v6424 = vpop.permute.xlu0 %6423
  %6425 = vrot.lane.b32.xlu0 %v5766, 113
  %v6426 = vpop.permute.xlu0 %6425
  %6427 = vrot.lane.b32.xlu0 %v5767, 113
  %v6428 = vpop.permute.xlu0 %6427
  %6429 = vrot.lane.b32.xlu0 %v5768, 113
  %v6430 = vpop.permute.xlu0 %6429
  %6431 = vrot.lane.b32.xlu0 %v5769, 113
  %v6432 = vpop.permute.xlu0 %6431
  %6433 = vrot.lane.b32.xlu0 %v5770, 113
  %v6434 = vpop.permute.xlu0 %6433
  %6435 = vrot.lane.b32.xlu0 %v5771, 113
  %v6436 = vpop.permute.xlu0 %6435
  %6437 = vrot.lane.b32.xlu0 %v5772, 113
  %v6438 = vpop.permute.xlu0 %6437
  %6439 = vrot.lane.b32.xlu0 %v5773, 113
  %v6440 = vpop.permute.xlu0 %6439
  %6441 = vrot.lane.b32.xlu0 %v5774, 113
  %v6442 = vpop.permute.xlu0 %6441
  %6443 = vrot.lane.b32.xlu0 %v5775, 113
  %v6444 = vpop.permute.xlu0 %6443
  %6445 = vrot.lane.b32.xlu0 %v5776, 113
  %v6446 = vpop.permute.xlu0 %6445
  %6447 = vrot.lane.b32.xlu0 %v5777, 113
  %v6448 = vpop.permute.xlu0 %6447
  %6449 = vrot.lane.b32.xlu0 %v5778, 113
  %v6450 = vpop.permute.xlu0 %6449
  %6451 = vrot.lane.b32.xlu0 %v5779, 113
  %v6452 = vpop.permute.xlu0 %6451
  %6453 = vrot.lane.b32.xlu0 %v5780, 113
  %v6454 = vpop.permute.xlu0 %6453
  %v6455 = vsel %vm1097, %v6424, %v6426
  %v6456 = vsel %vm1097, %v6426, %v6428
  %v6457 = vsel %vm1097, %v6428, %v6430
  %v6458 = vsel %vm1097, %v6432, %v6434
  %v6459 = vsel %vm1097, %v6434, %v6436
  %v6460 = vsel %vm1097, %v6436, %v6438
  %v6461 = vsel %vm1097, %v6440, %v6442
  %v6462 = vsel %vm1097, %v6442, %v6444
  %v6463 = vsel %vm1097, %v6444, %v6446
  %v6464 = vsel %vm1097, %v6448, %v6450
  %v6465 = vsel %vm1097, %v6450, %v6452
  %v6466 = vsel %vm1097, %v6452, %v6454
  %v6487 = vsel %vm1097, %v6430, %v6424
  %v6488 = vsel %vm1097, %v6438, %v6432
  %v6489 = vsel %vm1097, %v6446, %v6440
  %v6490 = vsel %vm1097, %v6454, %v6448
  %v6491 = vld [vmem:[%s1134] ss:$8 sm:$0xf]
  %v6493 = vlaneseq
  %v6494 = vshrl.u32 %v6493, 7
  %v6495 = vsub.s32 0, %v6494
  %v6496 = vrot.slane %v6491, %v6495
  %v6497 = vlaneseq
  %v6498 = vshrl.u32 %v6497, 7
  %v6499 = vsub.s32 1, %v6498
  %v6500 = vrot.slane %v6491, %v6499
  %v6501 = vlaneseq
  %v6502 = vshrl.u32 %v6501, 7
  %v6503 = vsub.s32 2, %v6502
  %v6504 = vrot.slane %v6491, %v6503
  %v6505 = vlaneseq
  %v6506 = vshrl.u32 %v6505, 7
  %v6507 = vsub.s32 3, %v6506
  %v6508 = vrot.slane %v6491, %v6507
  %v6513 = vmul.f32 %v6455, %v6496
  %v6514 = vmul.f32 %v6456, %v6500
  %v6515 = vmul.f32 %v6457, %v6504
  %v6516 = vmul.f32 %v6487, %v6508
  %v6517 = vmul.f32 %v6458, %v6496
  %v6518 = vmul.f32 %v6459, %v6500
  %v6519 = vmul.f32 %v6460, %v6504
  %v6520 = vmul.f32 %v6488, %v6508
  %v6521 = vmul.f32 %v6461, %v6496
  %v6522 = vmul.f32 %v6462, %v6500
  %v6523 = vmul.f32 %v6463, %v6504
  %v6524 = vmul.f32 %v6489, %v6508
  %v6525 = vmul.f32 %v6464, %v6496
  %v6526 = vmul.f32 %v6465, %v6500
  %v6527 = vmul.f32 %v6466, %v6504
  %v6528 = vmul.f32 %v6490, %v6508
  %6529 = vst [vmem:[#allocation2 + $0x300] sm:$0xff] %v6513
  %6530 = vst [vmem:[#allocation2 + $0x308] sm:$0xff] %v6514
  %6531 = vst [vmem:[#allocation2 + $0x310] sm:$0xff] %v6515
  %6532 = vst [vmem:[#allocation2 + $0x318] sm:$0xff] %v6516
  %6533 = vst [vmem:[#allocation2 + $0x320] sm:$0xff] %v6517
  %6534 = vst [vmem:[#allocation2 + $0x328] sm:$0xff] %v6518
  %6535 = vst [vmem:[#allocation2 + $0x330] sm:$0xff] %v6519
  %6536 = vst [vmem:[#allocation2 + $0x338] sm:$0xff] %v6520
  %6537 = vst [vmem:[#allocation2 + $0x340] sm:$0xff] %v6521
  %6538 = vst [vmem:[#allocation2 + $0x348] sm:$0xff] %v6522
  %6539 = vst [vmem:[#allocation2 + $0x350] sm:$0xff] %v6523
  %6540 = vst [vmem:[#allocation2 + $0x358] sm:$0xff] %v6524
  %6541 = vst [vmem:[#allocation2 + $0x360] sm:$0x3f] %v6525
  %6542 = vst [vmem:[#allocation2 + $0x368] sm:$0x3f] %v6526
  %6543 = vst [vmem:[#allocation2 + $0x370] sm:$0x3f] %v6527
  %6544 = vst [vmem:[#allocation2 + $0x378] sm:$0x3f] %v6528
  %6545 = vrot.lane.b32.xlu0 %v5765, 112
  %v6546 = vpop.permute.xlu0 %6545
  %6547 = vrot.lane.b32.xlu0 %v5766, 112
  %v6548 = vpop.permute.xlu0 %6547
  %6549 = vrot.lane.b32.xlu0 %v5767, 112
  %v6550 = vpop.permute.xlu0 %6549
  %6551 = vrot.lane.b32.xlu0 %v5768, 112
  %v6552 = vpop.permute.xlu0 %6551
  %6553 = vrot.lane.b32.xlu0 %v5769, 112
  %v6554 = vpop.permute.xlu0 %6553
  %6555 = vrot.lane.b32.xlu0 %v5770, 112
  %v6556 = vpop.permute.xlu0 %6555
  %6557 = vrot.lane.b32.xlu0 %v5771, 112
  %v6558 = vpop.permute.xlu0 %6557
  %6559 = vrot.lane.b32.xlu0 %v5772, 112
  %v6560 = vpop.permute.xlu0 %6559
  %6561 = vrot.lane.b32.xlu0 %v5773, 112
  %v6562 = vpop.permute.xlu0 %6561
  %6563 = vrot.lane.b32.xlu0 %v5774, 112
  %v6564 = vpop.permute.xlu0 %6563
  %6565 = vrot.lane.b32.xlu0 %v5775, 112
  %v6566 = vpop.permute.xlu0 %6565
  %6567 = vrot.lane.b32.xlu0 %v5776, 112
  %v6568 = vpop.permute.xlu0 %6567
  %6569 = vrot.lane.b32.xlu0 %v5777, 112
  %v6570 = vpop.permute.xlu0 %6569
  %6571 = vrot.lane.b32.xlu0 %v5778, 112
  %v6572 = vpop.permute.xlu0 %6571
  %6573 = vrot.lane.b32.xlu0 %v5779, 112
  %v6574 = vpop.permute.xlu0 %6573
  %6575 = vrot.lane.b32.xlu0 %v5780, 112
  %v6576 = vpop.permute.xlu0 %6575
  %v6577 = vsel %vm1221, %v6546, %v6548
  %v6578 = vsel %vm1221, %v6548, %v6550
  %v6579 = vsel %vm1221, %v6550, %v6552
  %v6580 = vsel %vm1221, %v6554, %v6556
  %v6581 = vsel %vm1221, %v6556, %v6558
  %v6582 = vsel %vm1221, %v6558, %v6560
  %v6583 = vsel %vm1221, %v6562, %v6564
  %v6584 = vsel %vm1221, %v6564, %v6566
  %v6585 = vsel %vm1221, %v6566, %v6568
  %v6586 = vsel %vm1221, %v6570, %v6572
  %v6587 = vsel %vm1221, %v6572, %v6574
  %v6588 = vsel %vm1221, %v6574, %v6576
  %v6609 = vsel %vm1221, %v6552, %v6546
  %v6610 = vsel %vm1221, %v6560, %v6554
  %v6611 = vsel %vm1221, %v6568, %v6562
  %v6612 = vsel %vm1221, %v6576, %v6570
  %v6613 = vld [vmem:[%s1258] ss:$8 sm:$0xf]
  %v6615 = vlaneseq
  %v6616 = vshrl.u32 %v6615, 7
  %v6617 = vsub.s32 0, %v6616
  %v6618 = vrot.slane %v6613, %v6617
  %v6619 = vlaneseq
  %v6620 = vshrl.u32 %v6619, 7
  %v6621 = vsub.s32 1, %v6620
  %v6622 = vrot.slane %v6613, %v6621
  %v6623 = vlaneseq
  %v6624 = vshrl.u32 %v6623, 7
  %v6625 = vsub.s32 2, %v6624
  %v6626 = vrot.slane %v6613, %v6625
  %v6627 = vlaneseq
  %v6628 = vshrl.u32 %v6627, 7
  %v6629 = vsub.s32 3, %v6628
  %v6630 = vrot.slane %v6613, %v6629
  %v6635 = vmul.f32 %v6577, %v6618
  %v6636 = vmul.f32 %v6578, %v6622
  %v6637 = vmul.f32 %v6579, %v6626
  %v6638 = vmul.f32 %v6609, %v6630
  %v6639 = vmul.f32 %v6580, %v6618
  %v6640 = vmul.f32 %v6581, %v6622
  %v6641 = vmul.f32 %v6582, %v6626
  %v6642 = vmul.f32 %v6610, %v6630
  %v6643 = vmul.f32 %v6583, %v6618
  %v6644 = vmul.f32 %v6584, %v6622
  %v6645 = vmul.f32 %v6585, %v6626
  %v6646 = vmul.f32 %v6611, %v6630
  %v6647 = vmul.f32 %v6586, %v6618
  %v6648 = vmul.f32 %v6587, %v6622
  %v6649 = vmul.f32 %v6588, %v6626
  %v6650 = vmul.f32 %v6612, %v6630
  %6651 = vst [vmem:[#allocation2 + $0x380] sm:$0xff] %v6635
  %6652 = vst [vmem:[#allocation2 + $0x388] sm:$0xff] %v6636
  %6653 = vst [vmem:[#allocation2 + $0x390] sm:$0xff] %v6637
  %6654 = vst [vmem:[#allocation2 + $0x398] sm:$0xff] %v6638
  %6655 = vst [vmem:[#allocation2 + $0x3a0] sm:$0xff] %v6639
  %6656 = vst [vmem:[#allocation2 + $0x3a8] sm:$0xff] %v6640
  %6657 = vst [vmem:[#allocation2 + $0x3b0] sm:$0xff] %v6641
  %6658 = vst [vmem:[#allocation2 + $0x3b8] sm:$0xff] %v6642
  %6659 = vst [vmem:[#allocation2 + $0x3c0] sm:$0xff] %v6643
  %6660 = vst [vmem:[#allocation2 + $0x3c8] sm:$0xff] %v6644
  %6661 = vst [vmem:[#allocation2 + $0x3d0] sm:$0xff] %v6645
  %6662 = vst [vmem:[#allocation2 + $0x3d8] sm:$0xff] %v6646
  %6663 = vst [vmem:[#allocation2 + $0x3e0] sm:$0x3f] %v6647
  %6664 = vst [vmem:[#allocation2 + $0x3e8] sm:$0x3f] %v6648
  %6665 = vst [vmem:[#allocation2 + $0x3f0] sm:$0x3f] %v6649
  %6666 = vst [vmem:[#allocation2 + $0x3f8] sm:$0x3f] %v6650
  %6667 = vrot.lane.b32.xlu0 %v5765, 111
  %v6668 = vpop.permute.xlu0 %6667
  %6669 = vrot.lane.b32.xlu0 %v5766, 111
  %v6670 = vpop.permute.xlu0 %6669
  %6671 = vrot.lane.b32.xlu0 %v5767, 111
  %v6672 = vpop.permute.xlu0 %6671
  %6673 = vrot.lane.b32.xlu0 %v5768, 111
  %v6674 = vpop.permute.xlu0 %6673
  %6675 = vrot.lane.b32.xlu0 %v5769, 111
  %v6676 = vpop.permute.xlu0 %6675
  %6677 = vrot.lane.b32.xlu0 %v5770, 111
  %v6678 = vpop.permute.xlu0 %6677
  %6679 = vrot.lane.b32.xlu0 %v5771, 111
  %v6680 = vpop.permute.xlu0 %6679
  %6681 = vrot.lane.b32.xlu0 %v5772, 111
  %v6682 = vpop.permute.xlu0 %6681
  %6683 = vrot.lane.b32.xlu0 %v5773, 111
  %v6684 = vpop.permute.xlu0 %6683
  %6685 = vrot.lane.b32.xlu0 %v5774, 111
  %v6686 = vpop.permute.xlu0 %6685
  %6687 = vrot.lane.b32.xlu0 %v5775, 111
  %v6688 = vpop.permute.xlu0 %6687
  %6689 = vrot.lane.b32.xlu0 %v5776, 111
  %v6690 = vpop.permute.xlu0 %6689
  %6691 = vrot.lane.b32.xlu0 %v5777, 111
  %v6692 = vpop.permute.xlu0 %6691
  %6693 = vrot.lane.b32.xlu0 %v5778, 111
  %v6694 = vpop.permute.xlu0 %6693
  %6695 = vrot.lane.b32.xlu0 %v5779, 111
  %v6696 = vpop.permute.xlu0 %6695
  %6697 = vrot.lane.b32.xlu0 %v5780, 111
  %v6698 = vpop.permute.xlu0 %6697
  %v6699 = vsel %vm1345, %v6668, %v6670
  %v6700 = vsel %vm1345, %v6670, %v6672
  %v6701 = vsel %vm1345, %v6672, %v6674
  %v6702 = vsel %vm1345, %v6676, %v6678
  %v6703 = vsel %vm1345, %v6678, %v6680
  %v6704 = vsel %vm1345, %v6680, %v6682
  %v6705 = vsel %vm1345, %v6684, %v6686
  %v6706 = vsel %vm1345, %v6686, %v6688
  %v6707 = vsel %vm1345, %v6688, %v6690
  %v6708 = vsel %vm1345, %v6692, %v6694
  %v6709 = vsel %vm1345, %v6694, %v6696
  %v6710 = vsel %vm1345, %v6696, %v6698
  %v6731 = vsel %vm1345, %v6674, %v6668
  %v6732 = vsel %vm1345, %v6682, %v6676
  %v6733 = vsel %vm1345, %v6690, %v6684
  %v6734 = vsel %vm1345, %v6698, %v6692
  %v6735 = vld [vmem:[%s1382] ss:$8 sm:$0xf]
  %v6737 = vlaneseq
  %v6738 = vshrl.u32 %v6737, 7
  %v6739 = vsub.s32 0, %v6738
  %v6740 = vrot.slane %v6735, %v6739
  %v6741 = vlaneseq
  %v6742 = vshrl.u32 %v6741, 7
  %v6743 = vsub.s32 1, %v6742
  %v6744 = vrot.slane %v6735, %v6743
  %v6745 = vlaneseq
  %v6746 = vshrl.u32 %v6745, 7
  %v6747 = vsub.s32 2, %v6746
  %v6748 = vrot.slane %v6735, %v6747
  %v6749 = vlaneseq
  %v6750 = vshrl.u32 %v6749, 7
  %v6751 = vsub.s32 3, %v6750
  %v6752 = vrot.slane %v6735, %v6751
  %v6757 = vmul.f32 %v6699, %v6740
  %v6758 = vmul.f32 %v6700, %v6744
  %v6759 = vmul.f32 %v6701, %v6748
  %v6760 = vmul.f32 %v6731, %v6752
  %v6761 = vmul.f32 %v6702, %v6740
  %v6762 = vmul.f32 %v6703, %v6744
  %v6763 = vmul.f32 %v6704, %v6748
  %v6764 = vmul.f32 %v6732, %v6752
  %v6765 = vmul.f32 %v6705, %v6740
  %v6766 = vmul.f32 %v6706, %v6744
  %v6767 = vmul.f32 %v6707, %v6748
  %v6768 = vmul.f32 %v6733, %v6752
  %v6769 = vmul.f32 %v6708, %v6740
  %v6770 = vmul.f32 %v6709, %v6744
  %v6771 = vmul.f32 %v6710, %v6748
  %v6772 = vmul.f32 %v6734, %v6752
  %6773 = vst [vmem:[#allocation2 + $0x400] sm:$0xff] %v6757
  %6774 = vst [vmem:[#allocation2 + $0x408] sm:$0xff] %v6758
  %6775 = vst [vmem:[#allocation2 + $0x410] sm:$0xff] %v6759
  %6776 = vst [vmem:[#allocation2 + $0x418] sm:$0xff] %v6760
  %6777 = vst [vmem:[#allocation2 + $0x420] sm:$0xff] %v6761
  %6778 = vst [vmem:[#allocation2 + $0x428] sm:$0xff] %v6762
  %6779 = vst [vmem:[#allocation2 + $0x430] sm:$0xff] %v6763
  %6780 = vst [vmem:[#allocation2 + $0x438] sm:$0xff] %v6764
  %6781 = vst [vmem:[#allocation2 + $0x440] sm:$0xff] %v6765
  %6782 = vst [vmem:[#allocation2 + $0x448] sm:$0xff] %v6766
  %6783 = vst [vmem:[#allocation2 + $0x450] sm:$0xff] %v6767
  %6784 = vst [vmem:[#allocation2 + $0x458] sm:$0xff] %v6768
  %6785 = vst [vmem:[#allocation2 + $0x460] sm:$0x3f] %v6769
  %6786 = vst [vmem:[#allocation2 + $0x468] sm:$0x3f] %v6770
  %6787 = vst [vmem:[#allocation2 + $0x470] sm:$0x3f] %v6771
  %6788 = vst [vmem:[#allocation2 + $0x478] sm:$0x3f] %v6772
  %s6789 = scalar_lea.vmem %s3, 576
  %v6790 = vld [vmem:[%s6789] sm:$0xff]
  %v6791 = vld [vmem:[%s6789 + $0x8] sm:$0xff]
  %v6792 = vld [vmem:[%s6789 + $0x10] sm:$0xff]
  %v6793 = vld [vmem:[%s6789 + $0x18] sm:$0xff]
  %v6794 = vld [vmem:[%s6789 + $0x20] sm:$0xff]
  %v6795 = vld [vmem:[%s6789 + $0x28] sm:$0xff]
  %v6796 = vld [vmem:[%s6789 + $0x30] sm:$0xff]
  %v6797 = vld [vmem:[%s6789 + $0x38] sm:$0xff]
  %v6798 = vld [vmem:[%s6789 + $0x40] sm:$0xff]
  %v6799 = vld [vmem:[%s6789 + $0x48] sm:$0x3f]
  %v6800 = vld [vmem:[%s6789 + $0x50] sm:$0x3f]
  %v6801 = vld [vmem:[%s6789 + $0x58] sm:$0x3f]
  %v6802 = vld [vmem:[#allocation2] sm:$0xff]
  %v6803 = vld [vmem:[#allocation2 + $0x8] sm:$0xff]
  %v6804 = vld [vmem:[#allocation2 + $0x20] sm:$0xff]
  %v6805 = vld [vmem:[#allocation2 + $0x28] sm:$0xff]
  %v6806 = vld [vmem:[#allocation2 + $0x40] sm:$0xff]
  %v6807 = vld [vmem:[#allocation2 + $0x48] sm:$0xff]
  %v6808 = vld [vmem:[#allocation2 + $0x60] sm:$0xff]
  %v6809 = vld [vmem:[#allocation2 + $0x68] sm:$0xff]
  %v6810 = vld [vmem:[#allocation2 + $0x80] sm:$0xff]
  %v6811 = vld [vmem:[#allocation2 + $0x88] sm:$0xff]
  %v6812 = vld [vmem:[#allocation2 + $0xa0] sm:$0xff]
  %v6813 = vld [vmem:[#allocation2 + $0xa8] sm:$0xff]
  %v6814 = vld [vmem:[#allocation2 + $0xc0] sm:$0xff]
  %v6815 = vld [vmem:[#allocation2 + $0xc8] sm:$0xff]
  %v6816 = vld [vmem:[#allocation2 + $0xe0] sm:$0xff]
  %v6817 = vld [vmem:[#allocation2 + $0xe8] sm:$0xff]
  %v6818 = vld [vmem:[#allocation2 + $0x100] sm:$0xff]
  %v6819 = vld [vmem:[#allocation2 + $0x108] sm:$0xff]
  %v6820 = vld [vmem:[#allocation2 + $0x120] sm:$0xff]
  %v6821 = vld [vmem:[#allocation2 + $0x128] sm:$0xff]
  %v6822 = vld [vmem:[#allocation2 + $0x140] sm:$0xff]
  %v6823 = vld [vmem:[#allocation2 + $0x148] sm:$0xff]
  %v6824 = vld [vmem:[#allocation2 + $0x160] sm:$0xff]
  %v6825 = vld [vmem:[#allocation2 + $0x168] sm:$0xff]
  %v6826 = vld [vmem:[#allocation2 + $0x180] sm:$0xff]
  %v6827 = vld [vmem:[#allocation2 + $0x188] sm:$0xff]
  %v6828 = vld [vmem:[#allocation2 + $0x1a0] sm:$0xff]
  %v6829 = vld [vmem:[#allocation2 + $0x1a8] sm:$0xff]
  %v6830 = vld [vmem:[#allocation2 + $0x1c0] sm:$0xff]
  %v6831 = vld [vmem:[#allocation2 + $0x1c8] sm:$0xff]
  %v6832 = vld [vmem:[#allocation2 + $0x1e0] sm:$0xff]
  %v6833 = vld [vmem:[#allocation2 + $0x1e8] sm:$0xff]
  %v6834 = vld [vmem:[#allocation2 + $0x200] sm:$0xff]
  %v6835 = vld [vmem:[#allocation2 + $0x208] sm:$0xff]
  %v6836 = vld [vmem:[#allocation2 + $0x220] sm:$0xff]
  %v6837 = vld [vmem:[#allocation2 + $0x228] sm:$0xff]
  %v6838 = vld [vmem:[#allocation2 + $0x240] sm:$0xff]
  %v6839 = vld [vmem:[#allocation2 + $0x248] sm:$0xff]
  %v6840 = vld [vmem:[#allocation2 + $0x260] sm:$0xff]
  %v6841 = vld [vmem:[#allocation2 + $0x268] sm:$0xff]
  %v6842 = vld [vmem:[#allocation2 + $0x280] sm:$0xff]
  %v6843 = vld [vmem:[#allocation2 + $0x288] sm:$0xff]
  %v6844 = vld [vmem:[#allocation2 + $0x2a0] sm:$0xff]
  %v6845 = vld [vmem:[#allocation2 + $0x2a8] sm:$0xff]
  %v6846 = vld [vmem:[#allocation2 + $0x2c0] sm:$0xff]
  %v6847 = vld [vmem:[#allocation2 + $0x2c8] sm:$0xff]
  %v6848 = vld [vmem:[#allocation2 + $0x2e0] sm:$0xff]
  %v6849 = vld [vmem:[#allocation2 + $0x2e8] sm:$0xff]
  %v6850 = vld [vmem:[#allocation2 + $0x300] sm:$0xff]
  %v6851 = vld [vmem:[#allocation2 + $0x308] sm:$0xff]
  %v6852 = vld [vmem:[#allocation2 + $0x320] sm:$0xff]
  %v6853 = vld [vmem:[#allocation2 + $0x328] sm:$0xff]
  %v6854 = vld [vmem:[#allocation2 + $0x340] sm:$0xff]
  %v6855 = vld [vmem:[#allocation2 + $0x348] sm:$0xff]
  %v6856 = vld [vmem:[#allocation2 + $0x360] sm:$0xff]
  %v6857 = vld [vmem:[#allocation2 + $0x368] sm:$0xff]
  %v6858 = vld [vmem:[#allocation2 + $0x380] sm:$0xff]
  %v6859 = vld [vmem:[#allocation2 + $0x388] sm:$0xff]
  %v6860 = vld [vmem:[#allocation2 + $0x3a0] sm:$0xff]
  %v6861 = vld [vmem:[#allocation2 + $0x3a8] sm:$0xff]
  %v6862 = vld [vmem:[#allocation2 + $0x3c0] sm:$0xff]
  %v6863 = vld [vmem:[#allocation2 + $0x3c8] sm:$0xff]
  %v6864 = vld [vmem:[#allocation2 + $0x3e0] sm:$0xff]
  %v6865 = vld [vmem:[#allocation2 + $0x3e8] sm:$0xff]
  %v6866 = vld [vmem:[#allocation2 + $0x400] sm:$0xff]
  %v6867 = vld [vmem:[#allocation2 + $0x408] sm:$0xff]
  %v6868 = vld [vmem:[#allocation2 + $0x420] sm:$0xff]
  %v6869 = vld [vmem:[#allocation2 + $0x428] sm:$0xff]
  %v6870 = vld [vmem:[#allocation2 + $0x440] sm:$0xff]
  %v6871 = vld [vmem:[#allocation2 + $0x448] sm:$0xff]
  %v6872 = vld [vmem:[#allocation2 + $0x460] sm:$0xff]
  %v6873 = vld [vmem:[#allocation2 + $0x468] sm:$0xff]
  %v6875 = vsel %vm1521, %v6792, 0
  %v6878 = vsel %vm1521, %v6795, 0
  %v6881 = vsel %vm1521, %v6798, 0
  %v6884 = vsel %vm1521, %v6801, 0
  %6886 = vmatprep.subr.mxu0 %v6803
  %6887 = vmatpush1.msra.mxu0 %v6802
  %6888 = vmatprep.subr.mxu0 %v6805
  %6889 = vmatpush1.msra.mxu0 %v6804
  %6890 = vmatprep.subr.mxu0 %v6807
  %6891 = vmatpush1.msra.mxu0 %v6806
  %6892 = vmatprep.subr.mxu0 %v6809
  %6893 = vmatpush1.msra.mxu0 %v6808
  %6894 = vmatprep.subr.mxu0 %v6811
  %6895 = vmatpush1.msra.mxu0 %v6810
  %6896 = vmatprep.subr.mxu0 %v6813
  %6897 = vmatpush1.msra.mxu0 %v6812
  %6898 = vmatprep.subr.mxu0 %v6815
  %6899 = vmatpush1.msra.mxu0 %v6814
  %6900 = vmatprep.subr.mxu0 %v6817
  %6901 = vmatpush1.msra.mxu0 %v6816
  %6902 = vmatprep.subr.mxu0 %v6819
  %6903 = vmatpush1.msra.mxu0 %v6818
  %6904 = vmatprep.subr.mxu0 %v6821
  %6905 = vmatpush1.msra.mxu0 %v6820
  %6906 = vmatprep.subr.mxu0 %v6823
  %6907 = vmatpush1.msra.mxu0 %v6822
  %6908 = vmatprep.subr.mxu0 %v6825
  %6909 = vmatpush1.msra.mxu0 %v6824
  %6910 = vmatprep.subr.mxu0 %v6827
  %6911 = vmatpush1.msra.mxu0 %v6826
  %6912 = vmatprep.subr.mxu0 %v6829
  %6913 = vmatpush1.msra.mxu0 %v6828
  %6914 = vmatprep.subr.mxu0 %v6831
  %6915 = vmatpush1.msra.mxu0 %v6830
  %6916 = vmatprep.subr.mxu0 %v6833
  %6917 = vmatpush1.msra.mxu0 %v6832
  %6918 = vmatprep.subr.mxu0 %v6835
  %6919 = vmatpush1.msra.mxu0 %v6834
  %6920 = vmatprep.subr.mxu0 %v6837
  %6921 = vmatpush1.msra.mxu0 %v6836
  %6922 = vmatprep.subr.mxu0 %v6839
  %6923 = vmatpush1.msra.mxu0 %v6838
  %6924 = vmatprep.subr.mxu0 %v6841
  %6925 = vmatpush1.msra.mxu0 %v6840
  %6926 = vmatprep.subr.mxu0 %v6843
  %6927 = vmatpush1.msra.mxu0 %v6842
  %6928 = vmatprep.subr.mxu0 %v6845
  %6929 = vmatpush1.msra.mxu0 %v6844
  %6930 = vmatprep.subr.mxu0 %v6847
  %6931 = vmatpush1.msra.mxu0 %v6846
  %6932 = vmatprep.subr.mxu0 %v6849
  %6933 = vmatpush1.msra.mxu0 %v6848
  %6934 = vmatprep.subr.mxu0 %v6851
  %6935 = vmatpush1.msra.mxu0 %v6850
  %6936 = vmatprep.subr.mxu0 %v6853
  %6937 = vmatpush1.msra.mxu0 %v6852
  %6938 = vmatprep.subr.mxu0 %v6855
  %6939 = vmatpush1.msra.mxu0 %v6854
  %6940 = vmatprep.subr.mxu0 %v6857
  %6941 = vmatpush1.msra.mxu0 %v6856
  %6942 = vmatprep.subr.mxu0 %v6859
  %6943 = vmatpush1.msra.mxu0 %v6858
  %6944 = vmatprep.subr.mxu0 %v6861
  %6945 = vmatpush1.msra.mxu0 %v6860
  %6946 = vmatprep.subr.mxu0 %v6863
  %6947 = vmatpush1.msra.mxu0 %v6862
  %6948 = vmatprep.subr.mxu0 %v6865
  %6949 = vmatpush1.msra.mxu0 %v6864
  %6950 = vmatprep.mubr.f32.mxu0 %v6791
  %6951 = vmatmul.mubr.f32.gmra.mrb[0].mxu0 %v6790
  %v6952 = vpop.f32.mrb[0].mxu0
  %v6953 = vadd.f32 0.0, %v6952
  %v6954 = vpop.f32.mrb[0].mxu0
  %v6955 = vadd.f32 0.0, %v6954
  %6956 = vmatprep.mubr.f32.mxu0 %v6794
  %6957 = vmatmul.mubr.f32.gmra.mrb[0].mxu0 %v6793
  %v6958 = vpop.f32.mrb[0].mxu0
  %v6959 = vadd.f32 0.0, %v6958
  %v6960 = vpop.f32.mrb[0].mxu0
  %v6961 = vadd.f32 0.0, %v6960
  %6962 = vmatprep.mubr.f32.mxu0 %v6797
  %6963 = vmatmul.mubr.f32.gmra.mrb[0].mxu0 %v6796
  %v6964 = vpop.f32.mrb[0].mxu0
  %v6965 = vadd.f32 0.0, %v6964
  %v6966 = vpop.f32.mrb[0].mxu0
  %v6967 = vadd.f32 0.0, %v6966
  %6968 = vmatprep.mubr.f32.mxu0 %v6800
  %6969 = vmatmul.mubr.f32.gmra.mrb[0].mxu0 %v6799
  %v6970 = vpop.f32.mrb[0].mxu0
  %v6971 = vadd.f32 0.0, %v6970
  %v6972 = vpop.f32.mrb[0].mxu0
  %v6973 = vadd.f32 0.0, %v6972
  %6974 = vdwg.mxu0
  %6975 = vmatprep.subr.mxu0 %v6867
  %6976 = vmatpush1.msra.mxu0 %v6866
  %6977 = vmatprep.subr.mxu0 %v6869
  %6978 = vmatpush1.msra.mxu0 %v6868
  %6979 = vmatprep.subr.mxu0 %v6871
  %6980 = vmatpush1.msra.mxu0 %v6870
  %6981 = vmatprep.subr.mxu0 %v6873
  %6982 = vmatpush1.msra.mxu0 %v6872
  %6983 = vmatprep.subr.mxu0 0.0
  %6984 = vmatpush1.msra.mxu0 0.0
  %6985 = vmatprep.subr.mxu0 0.0
  %6986 = vmatpush1.msra.mxu0 0.0
  %6987 = vmatprep.subr.mxu0 0.0
  %6988 = vmatpush1.msra.mxu0 0.0
  %6989 = vmatprep.subr.mxu0 0.0
  %6990 = vmatpush1.msra.mxu0 0.0
  %6991 = vmatprep.subr.mxu0 0.0
  %6992 = vmatpush1.msra.mxu0 0.0
  %6993 = vmatprep.subr.mxu0 0.0
  %6994 = vmatpush1.msra.mxu0 0.0
  %6995 = vmatprep.subr.mxu0 0.0
  %6996 = vmatpush1.msra.mxu0 0.0
  %6997 = vmatprep.subr.mxu0 0.0
  %6998 = vmatpush1.msra.mxu0 0.0
  %6999 = vmatprep.subr.mxu0 0.0
  %7000 = vmatpush1.msra.mxu0 0.0
  %7001 = vmatprep.subr.mxu0 0.0
  %7002 = vmatpush1.msra.mxu0 0.0
  %7003 = vmatprep.subr.mxu0 0.0
  %7004 = vmatpush1.msra.mxu0 0.0
  %7005 = vmatprep.subr.mxu0 0.0
  %7006 = vmatpush1.msra.mxu0 0.0
  %7007 = vmatprep.subr.mxu0 0.0
  %7008 = vmatpush1.msra.mxu0 0.0
  %7009 = vmatprep.subr.mxu0 0.0
  %7010 = vmatpush1.msra.mxu0 0.0
  %7011 = vmatprep.subr.mxu0 0.0
  %7012 = vmatpush1.msra.mxu0 0.0
  %7013 = vmatprep.subr.mxu0 0.0
  %7014 = vmatpush1.msra.mxu0 0.0
  %7015 = vmatprep.subr.mxu0 0.0
  %7016 = vmatpush1.msra.mxu0 0.0
  %7017 = vmatprep.subr.mxu0 0.0
  %7018 = vmatpush1.msra.mxu0 0.0
  %7019 = vmatprep.subr.mxu0 0.0
  %7020 = vmatpush1.msra.mxu0 0.0
  %7021 = vmatprep.subr.mxu0 0.0
  %7022 = vmatpush1.msra.mxu0 0.0
  %7023 = vmatprep.subr.mxu0 0.0
  %7024 = vmatpush1.msra.mxu0 0.0
  %7025 = vmatprep.subr.mxu0 0.0
  %7026 = vmatpush1.msra.mxu0 0.0
  %7027 = vmatprep.subr.mxu0 0.0
  %7028 = vmatpush1.msra.mxu0 0.0
  %7029 = vmatprep.subr.mxu0 0.0
  %7030 = vmatpush1.msra.mxu0 0.0
  %7031 = vmatprep.subr.mxu0 0.0
  %7032 = vmatpush1.msra.mxu0 0.0
  %7033 = vmatprep.subr.mxu0 0.0
  %7034 = vmatpush1.msra.mxu0 0.0
  %7035 = vmatprep.subr.mxu0 0.0
  %7036 = vmatpush1.msra.mxu0 0.0
  %7037 = vmatprep.subr.mxu0 0.0
  %7038 = vmatpush1.msra.mxu0 0.0
  %7039 = vmatprep.mubr.f32.mxu0 0.0
  %7040 = vmatmul.mubr.f32.gmra.mrb[0].mxu0 %v6875
  %v7041 = vpop.f32.mrb[0].mxu0
  %v7042 = vadd.f32 %v6953, %v7041
  %v7043 = vpop.f32.mrb[0].mxu0
  %v7044 = vadd.f32 %v6955, %v7043
  %7045 = vmatprep.mubr.f32.mxu0 0.0
  %7046 = vmatmul.mubr.f32.gmra.mrb[0].mxu0 %v6878
  %v7047 = vpop.f32.mrb[0].mxu0
  %v7048 = vadd.f32 %v6959, %v7047
  %v7049 = vpop.f32.mrb[0].mxu0
  %v7050 = vadd.f32 %v6961, %v7049
  %7051 = vmatprep.mubr.f32.mxu0 0.0
  %7052 = vmatmul.mubr.f32.gmra.mrb[0].mxu0 %v6881
  %v7053 = vpop.f32.mrb[0].mxu0
  %v7054 = vadd.f32 %v6965, %v7053
  %v7055 = vpop.f32.mrb[0].mxu0
  %v7056 = vadd.f32 %v6967, %v7055
  %7057 = vmatprep.mubr.f32.mxu0 0.0
  %7058 = vmatmul.mubr.f32.gmra.mrb[0].mxu0 %v6884
  %v7059 = vpop.f32.mrb[0].mxu0
  %v7060 = vadd.f32 %v6971, %v7059
  %v7061 = vpop.f32.mrb[0].mxu0
  %v7062 = vadd.f32 %v6973, %v7061
  %7063 = vdwg.mxu0
  %s7064 = scalar_lea.vmem %s3, 672
  %v7065 = vld [vmem:[%s7064] sm:$0xff]
  %v7066 = vld [vmem:[%s7064 + $0x8] sm:$0xff]
  %v7067 = vld [vmem:[%s7064 + $0x10] sm:$0xff]
  %v7068 = vld [vmem:[%s7064 + $0x18] sm:$0xff]
  %v7069 = vld [vmem:[%s7064 + $0x20] sm:$0xff]
  %v7070 = vld [vmem:[%s7064 + $0x28] sm:$0xff]
  %v7071 = vld [vmem:[%s7064 + $0x30] sm:$0xff]
  %v7072 = vld [vmem:[%s7064 + $0x38] sm:$0xff]
  %v7073 = vld [vmem:[%s7064 + $0x40] sm:$0xff]
  %v7074 = vld [vmem:[%s7064 + $0x48] sm:$0x3f]
  %v7075 = vld [vmem:[%s7064 + $0x50] sm:$0x3f]
  %v7076 = vld [vmem:[%s7064 + $0x58] sm:$0x3f]
  %v7077 = vld [vmem:[#allocation2 + $0x10] sm:$0xff]
  %v7078 = vld [vmem:[#allocation2 + $0x18] sm:$0xff]
  %v7079 = vld [vmem:[#allocation2 + $0x30] sm:$0xff]
  %v7080 = vld [vmem:[#allocation2 + $0x38] sm:$0xff]
  %v7081 = vld [vmem:[#allocation2 + $0x50] sm:$0xff]
  %v7082 = vld [vmem:[#allocation2 + $0x58] sm:$0xff]
  %v7083 = vld [vmem:[#allocation2 + $0x70] sm:$0xff]
  %v7084 = vld [vmem:[#allocation2 + $0x78] sm:$0xff]
  %v7085 = vld [vmem:[#allocation2 + $0x90] sm:$0xff]
  %v7086 = vld [vmem:[#allocation2 + $0x98] sm:$0xff]
  %v7087 = vld [vmem:[#allocation2 + $0xb0] sm:$0xff]
  %v7088 = vld [vmem:[#allocation2 + $0xb8] sm:$0xff]
  %v7089 = vld [vmem:[#allocation2 + $0xd0] sm:$0xff]
  %v7090 = vld [vmem:[#allocation2 + $0xd8] sm:$0xff]
  %v7091 = vld [vmem:[#allocation2 + $0xf0] sm:$0xff]
  %v7092 = vld [vmem:[#allocation2 + $0xf8] sm:$0xff]
  %v7093 = vld [vmem:[#allocation2 + $0x110] sm:$0xff]
  %v7094 = vld [vmem:[#allocation2 + $0x118] sm:$0xff]
  %v7095 = vld [vmem:[#allocation2 + $0x130] sm:$0xff]
  %v7096 = vld [vmem:[#allocation2 + $0x138] sm:$0xff]
  %v7097 = vld [vmem:[#allocation2 + $0x150] sm:$0xff]
  %v7098 = vld [vmem:[#allocation2 + $0x158] sm:$0xff]
  %v7099 = vld [vmem:[#allocation2 + $0x170] sm:$0xff]
  %v7100 = vld [vmem:[#allocation2 + $0x178] sm:$0xff]
  %v7101 = vld [vmem:[#allocation2 + $0x190] sm:$0xff]
  %v7102 = vld [vmem:[#allocation2 + $0x198] sm:$0xff]
  %v7103 = vld [vmem:[#allocation2 + $0x1b0] sm:$0xff]
  %v7104 = vld [vmem:[#allocation2 + $0x1b8] sm:$0xff]
  %v7105 = vld [vmem:[#allocation2 + $0x1d0] sm:$0xff]
  %v7106 = vld [vmem:[#allocation2 + $0x1d8] sm:$0xff]
  %v7107 = vld [vmem:[#allocation2 + $0x1f0] sm:$0xff]
  %v7108 = vld [vmem:[#allocation2 + $0x1f8] sm:$0xff]
  %v7109 = vld [vmem:[#allocation2 + $0x210] sm:$0xff]
  %v7110 = vld [vmem:[#allocation2 + $0x218] sm:$0xff]
  %v7111 = vld [vmem:[#allocation2 + $0x230] sm:$0xff]
  %v7112 = vld [vmem:[#allocation2 + $0x238] sm:$0xff]
  %v7113 = vld [vmem:[#allocation2 + $0x250] sm:$0xff]
  %v7114 = vld [vmem:[#allocation2 + $0x258] sm:$0xff]
  %v7115 = vld [vmem:[#allocation2 + $0x270] sm:$0xff]
  %v7116 = vld [vmem:[#allocation2 + $0x278] sm:$0xff]
  %v7117 = vld [vmem:[#allocation2 + $0x290] sm:$0xff]
  %v7118 = vld [vmem:[#allocation2 + $0x298] sm:$0xff]
  %v7119 = vld [vmem:[#allocation2 + $0x2b0] sm:$0xff]
  %v7120 = vld [vmem:[#allocation2 + $0x2b8] sm:$0xff]
  %v7121 = vld [vmem:[#allocation2 + $0x2d0] sm:$0xff]
  %v7122 = vld [vmem:[#allocation2 + $0x2d8] sm:$0xff]
  %v7123 = vld [vmem:[#allocation2 + $0x2f0] sm:$0xff]
  %v7124 = vld [vmem:[#allocation2 + $0x2f8] sm:$0xff]
  %v7125 = vld [vmem:[#allocation2 + $0x310] sm:$0xff]
  %v7126 = vld [vmem:[#allocation2 + $0x318] sm:$0xff]
  %v7127 = vld [vmem:[#allocation2 + $0x330] sm:$0xff]
  %v7128 = vld [vmem:[#allocation2 + $0x338] sm:$0xff]
  %v7129 = vld [vmem:[#allocation2 + $0x350] sm:$0xff]
  %v7130 = vld [vmem:[#allocation2 + $0x358] sm:$0xff]
  %v7131 = vld [vmem:[#allocation2 + $0x370] sm:$0xff]
  %v7132 = vld [vmem:[#allocation2 + $0x378] sm:$0xff]
  %v7133 = vld [vmem:[#allocation2 + $0x390] sm:$0xff]
  %v7134 = vld [vmem:[#allocation2 + $0x398] sm:$0xff]
  %v7135 = vld [vmem:[#allocation2 + $0x3b0] sm:$0xff]
  %v7136 = vld [vmem:[#allocation2 + $0x3b8] sm:$0xff]
  %v7137 = vld [vmem:[#allocation2 + $0x3d0] sm:$0xff]
  %v7138 = vld [vmem:[#allocation2 + $0x3d8] sm:$0xff]
  %v7139 = vld [vmem:[#allocation2 + $0x3f0] sm:$0xff]
  %v7140 = vld [vmem:[#allocation2 + $0x3f8] sm:$0xff]
  %v7141 = vld [vmem:[#allocation2 + $0x410] sm:$0xff]
  %v7142 = vld [vmem:[#allocation2 + $0x418] sm:$0xff]
  %v7143 = vld [vmem:[#allocation2 + $0x430] sm:$0xff]
  %v7144 = vld [vmem:[#allocation2 + $0x438] sm:$0xff]
  %v7145 = vld [vmem:[#allocation2 + $0x450] sm:$0xff]
  %v7146 = vld [vmem:[#allocation2 + $0x458] sm:$0xff]
  %v7147 = vld [vmem:[#allocation2 + $0x470] sm:$0xff]
  %v7148 = vld [vmem:[#allocation2 + $0x478] sm:$0xff]
  %v7150 = vsel %vm1521, %v7067, 0
  %v7153 = vsel %vm1521, %v7070, 0
  %v7156 = vsel %vm1521, %v7073, 0
  %v7159 = vsel %vm1521, %v7076, 0
  %7161 = vmatprep.subr.mxu0 %v7078
  %7162 = vmatpush1.msra.mxu0 %v7077
  %7163 = vmatprep.subr.mxu0 %v7080
  %7164 = vmatpush1.msra.mxu0 %v7079
  %7165 = vmatprep.subr.mxu0 %v7082
  %7166 = vmatpush1.msra.mxu0 %v7081
  %7167 = vmatprep.subr.mxu0 %v7084
  %7168 = vmatpush1.msra.mxu0 %v7083
  %7169 = vmatprep.subr.mxu0 %v7086
  %7170 = vmatpush1.msra.mxu0 %v7085
  %7171 = vmatprep.subr.mxu0 %v7088
  %7172 = vmatpush1.msra.mxu0 %v7087
  %7173 = vmatprep.subr.mxu0 %v7090
  %7174 = vmatpush1.msra.mxu0 %v7089
  %7175 = vmatprep.subr.mxu0 %v7092
  %7176 = vmatpush1.msra.mxu0 %v7091
  %7177 = vmatprep.subr.mxu0 %v7094
  %7178 = vmatpush1.msra.mxu0 %v7093
  %7179 = vmatprep.subr.mxu0 %v7096
  %7180 = vmatpush1.msra.mxu0 %v7095
  %7181 = vmatprep.subr.mxu0 %v7098
  %7182 = vmatpush1.msra.mxu0 %v7097
  %7183 = vmatprep.subr.mxu0 %v7100
  %7184 = vmatpush1.msra.mxu0 %v7099
  %7185 = vmatprep.subr.mxu0 %v7102
  %7186 = vmatpush1.msra.mxu0 %v7101
  %7187 = vmatprep.subr.mxu0 %v7104
  %7188 = vmatpush1.msra.mxu0 %v7103
  %7189 = vmatprep.subr.mxu0 %v7106
  %7190 = vmatpush1.msra.mxu0 %v7105
  %7191 = vmatprep.subr.mxu0 %v7108
  %7192 = vmatpush1.msra.mxu0 %v7107
  %7193 = vmatprep.subr.mxu0 %v7110
  %7194 = vmatpush1.msra.mxu0 %v7109
  %7195 = vmatprep.subr.mxu0 %v7112
  %7196 = vmatpush1.msra.mxu0 %v7111
  %7197 = vmatprep.subr.mxu0 %v7114
  %7198 = vmatpush1.msra.mxu0 %v7113
  %7199 = vmatprep.subr.mxu0 %v7116
  %7200 = vmatpush1.msra.mxu0 %v7115
  %7201 = vmatprep.subr.mxu0 %v7118
  %7202 = vmatpush1.msra.mxu0 %v7117
  %7203 = vmatprep.subr.mxu0 %v7120
  %7204 = vmatpush1.msra.mxu0 %v7119
  %7205 = vmatprep.subr.mxu0 %v7122
  %7206 = vmatpush1.msra.mxu0 %v7121
  %7207 = vmatprep.subr.mxu0 %v7124
  %7208 = vmatpush1.msra.mxu0 %v7123
  %7209 = vmatprep.subr.mxu0 %v7126
  %7210 = vmatpush1.msra.mxu0 %v7125
  %7211 = vmatprep.subr.mxu0 %v7128
  %7212 = vmatpush1.msra.mxu0 %v7127
  %7213 = vmatprep.subr.mxu0 %v7130
  %7214 = vmatpush1.msra.mxu0 %v7129
  %7215 = vmatprep.subr.mxu0 %v7132
  %7216 = vmatpush1.msra.mxu0 %v7131
  %7217 = vmatprep.subr.mxu0 %v7134
  %7218 = vmatpush1.msra.mxu0 %v7133
  %7219 = vmatprep.subr.mxu0 %v7136
  %7220 = vmatpush1.msra.mxu0 %v7135
  %7221 = vmatprep.subr.mxu0 %v7138
  %7222 = vmatpush1.msra.mxu0 %v7137
  %7223 = vmatprep.subr.mxu0 %v7140
  %7224 = vmatpush1.msra.mxu0 %v7139
  %7225 = vmatprep.mubr.f32.mxu0 %v7066
  %7226 = vmatmul.mubr.f32.gmra.mrb[0].mxu0 %v7065
  %v7227 = vpop.f32.mrb[0].mxu0
  %v7228 = vadd.f32 0.0, %v7227
  %v7229 = vpop.f32.mrb[0].mxu0
  %v7230 = vadd.f32 0.0, %v7229
  %7231 = vmatprep.mubr.f32.mxu0 %v7069
  %7232 = vmatmul.mubr.f32.gmra.mrb[0].mxu0 %v7068
  %v7233 = vpop.f32.mrb[0].mxu0
  %v7234 = vadd.f32 0.0, %v7233
  %v7235 = vpop.f32.mrb[0].mxu0
  %v7236 = vadd.f32 0.0, %v7235
  %7237 = vmatprep.mubr.f32.mxu0 %v7072
  %7238 = vmatmul.mubr.f32.gmra.mrb[0].mxu0 %v7071
  %v7239 = vpop.f32.mrb[0].mxu0
  %v7240 = vadd.f32 0.0, %v7239
  %v7241 = vpop.f32.mrb[0].mxu0
  %v7242 = vadd.f32 0.0, %v7241
  %7243 = vmatprep.mubr.f32.mxu0 %v7075
  %7244 = vmatmul.mubr.f32.gmra.mrb[0].mxu0 %v7074
  %v7245 = vpop.f32.mrb[0].mxu0
  %v7246 = vadd.f32 0.0, %v7245
  %v7247 = vpop.f32.mrb[0].mxu0
  %v7248 = vadd.f32 0.0, %v7247
  %7249 = vdwg.mxu0
  %7250 = vmatprep.subr.mxu0 %v7142
  %7251 = vmatpush1.msra.mxu0 %v7141
  %7252 = vmatprep.subr.mxu0 %v7144
  %7253 = vmatpush1.msra.mxu0 %v7143
  %7254 = vmatprep.subr.mxu0 %v7146
  %7255 = vmatpush1.msra.mxu0 %v7145
  %7256 = vmatprep.subr.mxu0 %v7148
  %7257 = vmatpush1.msra.mxu0 %v7147
  %7258 = vmatprep.subr.mxu0 0.0
  %7259 = vmatpush1.msra.mxu0 0.0
  %7260 = vmatprep.subr.mxu0 0.0
  %7261 = vmatpush1.msra.mxu0 0.0
  %7262 = vmatprep.subr.mxu0 0.0
  %7263 = vmatpush1.msra.mxu0 0.0
  %7264 = vmatprep.subr.mxu0 0.0
  %7265 = vmatpush1.msra.mxu0 0.0
  %7266 = vmatprep.subr.mxu0 0.0
  %7267 = vmatpush1.msra.mxu0 0.0
  %7268 = vmatprep.subr.mxu0 0.0
  %7269 = vmatpush1.msra.mxu0 0.0
  %7270 = vmatprep.subr.mxu0 0.0
  %7271 = vmatpush1.msra.mxu0 0.0
  %7272 = vmatprep.subr.mxu0 0.0
  %7273 = vmatpush1.msra.mxu0 0.0
  %7274 = vmatprep.subr.mxu0 0.0
  %7275 = vmatpush1.msra.mxu0 0.0
  %7276 = vmatprep.subr.mxu0 0.0
  %7277 = vmatpush1.msra.mxu0 0.0
  %7278 = vmatprep.subr.mxu0 0.0
  %7279 = vmatpush1.msra.mxu0 0.0
  %7280 = vmatprep.subr.mxu0 0.0
  %7281 = vmatpush1.msra.mxu0 0.0
  %7282 = vmatprep.subr.mxu0 0.0
  %7283 = vmatpush1.msra.mxu0 0.0
  %7284 = vmatprep.subr.mxu0 0.0
  %7285 = vmatpush1.msra.mxu0 0.0
  %7286 = vmatprep.subr.mxu0 0.0
  %7287 = vmatpush1.msra.mxu0 0.0
  %7288 = vmatprep.subr.mxu0 0.0
  %7289 = vmatpush1.msra.mxu0 0.0
  %7290 = vmatprep.subr.mxu0 0.0
  %7291 = vmatpush1.msra.mxu0 0.0
  %7292 = vmatprep.subr.mxu0 0.0
  %7293 = vmatpush1.msra.mxu0 0.0
  %7294 = vmatprep.subr.mxu0 0.0
  %7295 = vmatpush1.msra.mxu0 0.0
  %7296 = vmatprep.subr.mxu0 0.0
  %7297 = vmatpush1.msra.mxu0 0.0
  %7298 = vmatprep.subr.mxu0 0.0
  %7299 = vmatpush1.msra.mxu0 0.0
  %7300 = vmatprep.subr.mxu0 0.0
  %7301 = vmatpush1.msra.mxu0 0.0
  %7302 = vmatprep.subr.mxu0 0.0
  %7303 = vmatpush1.msra.mxu0 0.0
  %7304 = vmatprep.subr.mxu0 0.0
  %7305 = vmatpush1.msra.mxu0 0.0
  %7306 = vmatprep.subr.mxu0 0.0
  %7307 = vmatpush1.msra.mxu0 0.0
  %7308 = vmatprep.subr.mxu0 0.0
  %7309 = vmatpush1.msra.mxu0 0.0
  %7310 = vmatprep.subr.mxu0 0.0
  %7311 = vmatpush1.msra.mxu0 0.0
  %7312 = vmatprep.subr.mxu0 0.0
  %7313 = vmatpush1.msra.mxu0 0.0
  %7314 = vmatprep.mubr.f32.mxu0 0.0
  %7315 = vmatmul.mubr.f32.gmra.mrb[0].mxu0 %v7150
  %v7316 = vpop.f32.mrb[0].mxu0
  %v7317 = vadd.f32 %v7228, %v7316
  %v7318 = vpop.f32.mrb[0].mxu0
  %v7319 = vadd.f32 %v7230, %v7318
  %7320 = vmatprep.mubr.f32.mxu0 0.0
  %7321 = vmatmul.mubr.f32.gmra.mrb[0].mxu0 %v7153
  %v7322 = vpop.f32.mrb[0].mxu0
  %v7323 = vadd.f32 %v7234, %v7322
  %v7324 = vpop.f32.mrb[0].mxu0
  %v7325 = vadd.f32 %v7236, %v7324
  %7326 = vmatprep.mubr.f32.mxu0 0.0
  %7327 = vmatmul.mubr.f32.gmra.mrb[0].mxu0 %v7156
  %v7328 = vpop.f32.mrb[0].mxu0
  %v7329 = vadd.f32 %v7240, %v7328
  %v7330 = vpop.f32.mrb[0].mxu0
  %v7331 = vadd.f32 %v7242, %v7330
  %7332 = vmatprep.mubr.f32.mxu0 0.0
  %7333 = vmatmul.mubr.f32.gmra.mrb[0].mxu0 %v7159
  %v7334 = vpop.f32.mrb[0].mxu0
  %v7335 = vadd.f32 %v7246, %v7334
  %v7336 = vpop.f32.mrb[0].mxu0
  %v7337 = vadd.f32 %v7248, %v7336
  %7338 = vdwg.mxu0
  %7339 = vset.pattern.permute.xlu0 3
  %7340 = vperm.xlu0 %7339, %v3999
  %v7341 = vpop.permute.xlu0 %7340
  %7343 = vset.pattern.permute.xlu0 3
  %7344 = vperm.xlu0 %7343, %v4000
  %v7345 = vpop.permute.xlu0 %7344
  %7347 = vset.pattern.permute.xlu0 3
  %7348 = vperm.xlu0 %7347, %v4001
  %v7349 = vpop.permute.xlu0 %7348
  %7351 = vset.pattern.permute.xlu0 3
  %7352 = vperm.xlu0 %7351, %v4002
  %v7353 = vpop.permute.xlu0 %7352
  %v7355 = vadd.f32 %v7042, %v7341
  %v7356 = vadd.f32 %v7044, %v7341
  %v7357 = vadd.f32 %v7317, %v7341
  %v7358 = vadd.f32 %v7319, %v7341
  %v7359 = vadd.f32 %v7048, %v7345
  %v7360 = vadd.f32 %v7050, %v7345
  %v7361 = vadd.f32 %v7323, %v7345
  %v7362 = vadd.f32 %v7325, %v7345
  %v7363 = vadd.f32 %v7054, %v7349
  %v7364 = vadd.f32 %v7056, %v7349
  %v7365 = vadd.f32 %v7329, %v7349
  %v7366 = vadd.f32 %v7331, %v7349
  %v7367 = vadd.f32 %v7060, %v7353
  %v7368 = vadd.f32 %v7062, %v7353
  %v7369 = vadd.f32 %v7335, %v7353
  %v7370 = vadd.f32 %v7337, %v7353
  %v7371 = vadd.f32 %v7355, %v7356
  %v7372 = vadd.f32 %v7371, %v7357
  %v7373 = vadd.f32 %v7372, %v7358
  %7374 = vadd.xlane.f32.xlu0 %v7373
  %v7375 = vpop.xlane.xlu0 %7374
  %v7376 = vadd.f32 %v7359, %v7360
  %v7377 = vadd.f32 %v7376, %v7361
  %v7378 = vadd.f32 %v7377, %v7362
  %7379 = vadd.xlane.f32.xlu0 %v7378
  %v7380 = vpop.xlane.xlu0 %7379
  %v7381 = vadd.f32 %v7363, %v7364
  %v7382 = vadd.f32 %v7381, %v7365
  %v7383 = vadd.f32 %v7382, %v7366
  %7384 = vadd.xlane.f32.xlu0 %v7383
  %v7385 = vpop.xlane.xlu0 %7384
  %v7386 = vsel %vm2038, %v7367, 0.0
  %v7387 = vsel %vm2038, %v7368, 0.0
  %v7388 = vadd.f32 %v7386, %v7387
  %v7389 = vsel %vm2038, %v7369, 0.0
  %v7390 = vadd.f32 %v7388, %v7389
  %v7391 = vsel %vm2038, %v7370, 0.0
  %v7392 = vadd.f32 %v7390, %v7391
  %7393 = vadd.xlane.f32.xlu0 %v7392
  %v7394 = vpop.xlane.xlu0 %7393
  %v7395 = vmul.f32 %v7375, %v2048
  %v7396 = vmul.f32 %v7380, %v2048
  %v7397 = vmul.f32 %v7385, %v2048
  %v7398 = vmul.f32 %v7394, %v2048
  %v7399 = vsub.f32 %v7355, %v7395
  %v7400 = vsub.f32 %v7356, %v7395
  %v7401 = vsub.f32 %v7357, %v7395
  %v7402 = vsub.f32 %v7358, %v7395
  %v7403 = vsub.f32 %v7359, %v7396
  %v7404 = vsub.f32 %v7360, %v7396
  %v7405 = vsub.f32 %v7361, %v7396
  %v7406 = vsub.f32 %v7362, %v7396
  %v7407 = vsub.f32 %v7363, %v7397
  %v7408 = vsub.f32 %v7364, %v7397
  %v7409 = vsub.f32 %v7365, %v7397
  %v7410 = vsub.f32 %v7366, %v7397
  %v7411 = vsub.f32 %v7367, %v7398
  %v7412 = vsub.f32 %v7368, %v7398
  %v7413 = vsub.f32 %v7369, %v7398
  %v7414 = vsub.f32 %v7370, %v7398
  %v7415 = vmul.f32 %v7399, %v7399
  %v7416 = vmul.f32 %v7400, %v7400
  %v7417 = vmul.f32 %v7401, %v7401
  %v7418 = vmul.f32 %v7402, %v7402
  %v7419 = vmul.f32 %v7403, %v7403
  %v7420 = vmul.f32 %v7404, %v7404
  %v7421 = vmul.f32 %v7405, %v7405
  %v7422 = vmul.f32 %v7406, %v7406
  %v7423 = vmul.f32 %v7407, %v7407
  %v7424 = vmul.f32 %v7408, %v7408
  %v7425 = vmul.f32 %v7409, %v7409
  %v7426 = vmul.f32 %v7410, %v7410
  %v7427 = vmul.f32 %v7411, %v7411
  %v7428 = vmul.f32 %v7412, %v7412
  %v7429 = vmul.f32 %v7413, %v7413
  %v7430 = vmul.f32 %v7414, %v7414
  %v7431 = vadd.f32 %v7415, %v7416
  %v7432 = vadd.f32 %v7431, %v7417
  %v7433 = vadd.f32 %v7432, %v7418
  %7434 = vadd.xlane.f32.xlu0 %v7433
  %v7435 = vpop.xlane.xlu0 %7434
  %v7436 = vadd.f32 %v7419, %v7420
  %v7437 = vadd.f32 %v7436, %v7421
  %v7438 = vadd.f32 %v7437, %v7422
  %7439 = vadd.xlane.f32.xlu0 %v7438
  %v7440 = vpop.xlane.xlu0 %7439
  %v7441 = vadd.f32 %v7423, %v7424
  %v7442 = vadd.f32 %v7441, %v7425
  %v7443 = vadd.f32 %v7442, %v7426
  %7444 = vadd.xlane.f32.xlu0 %v7443
  %v7445 = vpop.xlane.xlu0 %7444
  %v7446 = vsel %vm2038, %v7427, 0.0
  %v7447 = vsel %vm2038, %v7428, 0.0
  %v7448 = vadd.f32 %v7446, %v7447
  %v7449 = vsel %vm2038, %v7429, 0.0
  %v7450 = vadd.f32 %v7448, %v7449
  %v7451 = vsel %vm2038, %v7430, 0.0
  %v7452 = vadd.f32 %v7450, %v7451
  %7453 = vadd.xlane.f32.xlu0 %v7452
  %v7454 = vpop.xlane.xlu0 %7453
  %v7455 = vmul.f32 %v7435, %v2048
  %v7456 = vmul.f32 %v7440, %v2048
  %v7457 = vmul.f32 %v7445, %v2048
  %v7458 = vmul.f32 %v7454, %v2048
  %v7459 = vadd.f32 %v7455, 1e-05
  %v7460 = vadd.f32 %v7456, 1e-05
  %v7461 = vadd.f32 %v7457, 1e-05
  %v7462 = vadd.f32 %v7458, 1e-05
  %v7463 = vrsqrt.pop %v7459
  %v7464 = vrsqrt.pop %v7460
  %v7465 = vrsqrt.pop %v7461
  %v7466 = vrsqrt.pop %v7462
  %v7467 = vmul.f32 %v3999, %v7463
  %v7468 = vmul.f32 %v4000, %v7464
  %v7469 = vmul.f32 %v4001, %v7465
  %v7470 = vmul.f32 %v4002, %v7466
  %7472 = vset.pattern.permute.xlu0 4
  %7473 = vperm.xlu0 %7472, %v7467
  %v7474 = vpop.permute.xlu0 %7473
  %7477 = vset.pattern.permute.xlu0 4
  %7478 = vperm.xlu0 %7477, %v7468
  %v7479 = vpop.permute.xlu0 %7478
  %7482 = vset.pattern.permute.xlu0 4
  %7483 = vperm.xlu0 %7482, %v7469
  %v7484 = vpop.permute.xlu0 %7483
  %7487 = vset.pattern.permute.xlu0 4
  %7488 = vperm.xlu0 %7487, %v7470
  %v7489 = vpop.permute.xlu0 %7488
  %v7491 = vmul.f32 %v7399, %v7474
  %v7492 = vmul.f32 %v7400, %v7474
  %v7493 = vmul.f32 %v7401, %v7474
  %v7494 = vmul.f32 %v7402, %v7474
  %v7495 = vmul.f32 %v7403, %v7479
  %v7496 = vmul.f32 %v7404, %v7479
  %v7497 = vmul.f32 %v7405, %v7479
  %v7498 = vmul.f32 %v7406, %v7479
  %v7499 = vmul.f32 %v7407, %v7484
  %v7500 = vmul.f32 %v7408, %v7484
  %v7501 = vmul.f32 %v7409, %v7484
  %v7502 = vmul.f32 %v7410, %v7484
  %v7503 = vmul.f32 %v7411, %v7489
  %v7504 = vmul.f32 %v7412, %v7489
  %v7505 = vmul.f32 %v7413, %v7489
  %v7506 = vmul.f32 %v7414, %v7489
  %7507 = vset.pattern.permute.xlu0 5
  %7508 = vperm.xlu0 %7507, %v3999
  %v7509 = vpop.permute.xlu0 %7508
  %7511 = vset.pattern.permute.xlu0 5
  %7512 = vperm.xlu0 %7511, %v4000
  %v7513 = vpop.permute.xlu0 %7512
  %7515 = vset.pattern.permute.xlu0 5
  %7516 = vperm.xlu0 %7515, %v4001
  %v7517 = vpop.permute.xlu0 %7516
  %7519 = vset.pattern.permute.xlu0 5
  %7520 = vperm.xlu0 %7519, %v4002
  %v7521 = vpop.permute.xlu0 %7520
  %v7523 = vadd.f32 %v7491, %v7509
  %v7524 = vadd.f32 %v7492, %v7509
  %v7525 = vadd.f32 %v7493, %v7509
  %v7526 = vadd.f32 %v7494, %v7509
  %v7527 = vadd.f32 %v7495, %v7513
  %v7528 = vadd.f32 %v7496, %v7513
  %v7529 = vadd.f32 %v7497, %v7513
  %v7530 = vadd.f32 %v7498, %v7513
  %v7531 = vadd.f32 %v7499, %v7517
  %v7532 = vadd.f32 %v7500, %v7517
  %v7533 = vadd.f32 %v7501, %v7517
  %v7534 = vadd.f32 %v7502, %v7517
  %v7535 = vadd.f32 %v7503, %v7521
  %v7536 = vadd.f32 %v7504, %v7521
  %v7537 = vadd.f32 %v7505, %v7521
  %v7538 = vadd.f32 %v7506, %v7521
  %v7539 = vmul.f32 %v7523, 0.1
  %v7540 = vmul.f32 %v7524, 0.1
  %v7541 = vmul.f32 %v7525, 0.1
  %v7542 = vmul.f32 %v7526, 0.1
  %v7543 = vmul.f32 %v7527, 0.1
  %v7544 = vmul.f32 %v7528, 0.1
  %v7545 = vmul.f32 %v7529, 0.1
  %v7546 = vmul.f32 %v7530, 0.1
  %v7547 = vmul.f32 %v7531, 0.1
  %v7548 = vmul.f32 %v7532, 0.1
  %v7549 = vmul.f32 %v7533, 0.1
  %v7550 = vmul.f32 %v7534, 0.1
  %v7551 = vmul.f32 %v7535, 0.1
  %v7552 = vmul.f32 %v7536, 0.1
  %v7553 = vmul.f32 %v7537, 0.1
  %v7554 = vmul.f32 %v7538, 0.1
  %v7555 = vadd.f32 %v7539, %v3983
  %v7556 = vadd.f32 %v7540, %v3984
  %v7557 = vadd.f32 %v7541, %v3985
  %v7558 = vadd.f32 %v7542, %v3986
  %v7559 = vadd.f32 %v7543, %v3987
  %v7560 = vadd.f32 %v7544, %v3988
  %v7561 = vadd.f32 %v7545, %v3989
  %v7562 = vadd.f32 %v7546, %v3990
  %v7563 = vadd.f32 %v7547, %v3991
  %v7564 = vadd.f32 %v7548, %v3992
  %v7565 = vadd.f32 %v7549, %v3993
  %v7566 = vadd.f32 %v7550, %v3994
  %v7567 = vadd.f32 %v7551, %v3995
  %v7568 = vadd.f32 %v7552, %v3996
  %v7569 = vadd.f32 %v7553, %v3997
  %v7570 = vadd.f32 %v7554, %v3998
  %v7571 = vld [vmem:[%s7] sm:$0xf]
  %v7572 = vld [vmem:[%s8] sm:$0xf]
  %7574 = vset.pattern.permute.xlu0 0
  %7575 = vperm.xlu0 %7574, %v7572
  %v7576 = vpop.permute.xlu0 %7575
  %vm7578 = vcmask 244736
  %v7580 = vsel %vm7578, %v7571, 0
  %v7583 = vsel %vm2038, %v7567, 0
  %v7586 = vsel %vm2038, %v7568, 0
  %v7589 = vsel %vm2038, %v7569, 0
  %v7592 = vsel %vm2038, %v7570, 0
  %7594 = vmatprep.subr.mxu0 %v7556
  %7595 = vmatpush1.msra.mxu0 %v7555
  %7596 = vmatprep.subr.mxu0 %v7560
  %7597 = vmatpush1.msra.mxu0 %v7559
  %7598 = vmatprep.subr.mxu0 %v7564
  %7599 = vmatpush1.msra.mxu0 %v7563
  %7600 = vmatprep.subr.mxu0 %v7586
  %7601 = vmatpush1.msra.mxu0 %v7583
  %7602 = vmatprep.subr.mxu0 0.0
  %7603 = vmatpush1.msra.mxu0 0.0
  %7604 = vmatprep.subr.mxu0 0.0
  %7605 = vmatpush1.msra.mxu0 0.0
  %7606 = vmatprep.subr.mxu0 0.0
  %7607 = vmatpush1.msra.mxu0 0.0
  %7608 = vmatprep.subr.mxu0 0.0
  %7609 = vmatpush1.msra.mxu0 0.0
  %7610 = vmatprep.subr.mxu0 0.0
  %7611 = vmatpush1.msra.mxu0 0.0
  %7612 = vmatprep.subr.mxu0 0.0
  %7613 = vmatpush1.msra.mxu0 0.0
  %7614 = vmatprep.subr.mxu0 0.0
  %7615 = vmatpush1.msra.mxu0 0.0
  %7616 = vmatprep.subr.mxu0 0.0
  %7617 = vmatpush1.msra.mxu0 0.0
  %7618 = vmatprep.subr.mxu0 0.0
  %7619 = vmatpush1.msra.mxu0 0.0
  %7620 = vmatprep.subr.mxu0 0.0
  %7621 = vmatpush1.msra.mxu0 0.0
  %7622 = vmatprep.subr.mxu0 0.0
  %7623 = vmatpush1.msra.mxu0 0.0
  %7624 = vmatprep.subr.mxu0 0.0
  %7625 = vmatpush1.msra.mxu0 0.0
  %7626 = vmatprep.subr.mxu0 0.0
  %7627 = vmatpush1.msra.mxu0 0.0
  %7628 = vmatprep.subr.mxu0 0.0
  %7629 = vmatpush1.msra.mxu0 0.0
  %7630 = vmatprep.subr.mxu0 0.0
  %7631 = vmatpush1.msra.mxu0 0.0
  %7632 = vmatprep.subr.mxu0 0.0
  %7633 = vmatpush1.msra.mxu0 0.0
  %7634 = vmatprep.subr.mxu0 0.0
  %7635 = vmatpush1.msra.mxu0 0.0
  %7636 = vmatprep.subr.mxu0 0.0
  %7637 = vmatpush1.msra.mxu0 0.0
  %7638 = vmatprep.subr.mxu0 0.0
  %7639 = vmatpush1.msra.mxu0 0.0
  %7640 = vmatprep.subr.mxu0 0.0
  %7641 = vmatpush1.msra.mxu0 0.0
  %7642 = vmatprep.subr.mxu0 0.0
  %7643 = vmatpush1.msra.mxu0 0.0
  %7644 = vmatprep.subr.mxu0 0.0
  %7645 = vmatpush1.msra.mxu0 0.0
  %7646 = vmatprep.subr.mxu0 0.0
  %7647 = vmatpush1.msra.mxu0 0.0
  %7648 = vmatprep.subr.mxu0 0.0
  %7649 = vmatpush1.msra.mxu0 0.0
  %7650 = vmatprep.subr.mxu0 0.0
  %7651 = vmatpush1.msra.mxu0 0.0
  %7652 = vmatprep.subr.mxu0 0.0
  %7653 = vmatpush1.msra.mxu0 0.0
  %7654 = vmatprep.subr.mxu0 0.0
  %7655 = vmatpush1.msra.mxu0 0.0
  %7656 = vmatprep.subr.mxu0 0.0
  %7657 = vmatpush1.msra.mxu0 0.0
  %7658 = vmatprep.mubr.f32.mxu0 0.0
  %7659 = vmatmul.mubr.f32.gmra.mrb[0].mxu0 %v7580
  %v7660 = vpop.f32.mrb[0].mxu0
  %v7661 = vadd.f32 %v7576, %v7660
  %v7662 = vpop.f32.mrb[0].mxu0
  %v7663 = vadd.f32 %v7576, %v7662
  %7664 = vdwg.mxu0
  %7665 = vmatprep.subr.mxu0 %v7558
  %7666 = vmatpush1.msra.mxu0 %v7557
  %7667 = vmatprep.subr.mxu0 %v7562
  %7668 = vmatpush1.msra.mxu0 %v7561
  %7669 = vmatprep.subr.mxu0 %v7566
  %7670 = vmatpush1.msra.mxu0 %v7565
  %7671 = vmatprep.subr.mxu0 %v7592
  %7672 = vmatpush1.msra.mxu0 %v7589
  %7673 = vmatprep.subr.mxu0 0.0
  %7674 = vmatpush1.msra.mxu0 0.0
  %7675 = vmatprep.subr.mxu0 0.0
  %7676 = vmatpush1.msra.mxu0 0.0
  %7677 = vmatprep.subr.mxu0 0.0
  %7678 = vmatpush1.msra.mxu0 0.0
  %7679 = vmatprep.subr.mxu0 0.0
  %7680 = vmatpush1.msra.mxu0 0.0
  %7681 = vmatprep.subr.mxu0 0.0
  %7682 = vmatpush1.msra.mxu0 0.0
  %7683 = vmatprep.subr.mxu0 0.0
  %7684 = vmatpush1.msra.mxu0 0.0
  %7685 = vmatprep.subr.mxu0 0.0
  %7686 = vmatpush1.msra.mxu0 0.0
  %7687 = vmatprep.subr.mxu0 0.0
  %7688 = vmatpush1.msra.mxu0 0.0
  %7689 = vmatprep.subr.mxu0 0.0
  %7690 = vmatpush1.msra.mxu0 0.0
  %7691 = vmatprep.subr.mxu0 0.0
  %7692 = vmatpush1.msra.mxu0 0.0
  %7693 = vmatprep.subr.mxu0 0.0
  %7694 = vmatpush1.msra.mxu0 0.0
  %7695 = vmatprep.subr.mxu0 0.0
  %7696 = vmatpush1.msra.mxu0 0.0
  %7697 = vmatprep.subr.mxu0 0.0
  %7698 = vmatpush1.msra.mxu0 0.0
  %7699 = vmatprep.subr.mxu0 0.0
  %7700 = vmatpush1.msra.mxu0 0.0
  %7701 = vmatprep.subr.mxu0 0.0
  %7702 = vmatpush1.msra.mxu0 0.0
  %7703 = vmatprep.subr.mxu0 0.0
  %7704 = vmatpush1.msra.mxu0 0.0
  %7705 = vmatprep.subr.mxu0 0.0
  %7706 = vmatpush1.msra.mxu0 0.0
  %7707 = vmatprep.subr.mxu0 0.0
  %7708 = vmatpush1.msra.mxu0 0.0
  %7709 = vmatprep.subr.mxu0 0.0
  %7710 = vmatpush1.msra.mxu0 0.0
  %7711 = vmatprep.subr.mxu0 0.0
  %7712 = vmatpush1.msra.mxu0 0.0
  %7713 = vmatprep.subr.mxu0 0.0
  %7714 = vmatpush1.msra.mxu0 0.0
  %7715 = vmatprep.subr.mxu0 0.0
  %7716 = vmatpush1.msra.mxu0 0.0
  %7717 = vmatprep.subr.mxu0 0.0
  %7718 = vmatpush1.msra.mxu0 0.0
  %7719 = vmatprep.subr.mxu0 0.0
  %7720 = vmatpush1.msra.mxu0 0.0
  %7721 = vmatprep.subr.mxu0 0.0
  %7722 = vmatpush1.msra.mxu0 0.0
  %7723 = vmatprep.subr.mxu0 0.0
  %7724 = vmatpush1.msra.mxu0 0.0
  %7725 = vmatprep.subr.mxu0 0.0
  %7726 = vmatpush1.msra.mxu0 0.0
  %7727 = vmatprep.subr.mxu0 0.0
  %7728 = vmatpush1.msra.mxu0 0.0
  %7729 = vmatprep.mubr.f32.mxu0 0.0
  %7730 = vmatmul.mubr.f32.gmra.mrb[0].mxu0 %v7580
  %v7731 = vpop.f32.mrb[0].mxu0
  %v7732 = vadd.f32 %v7576, %v7731
  %v7733 = vpop.f32.mrb[0].mxu0
  %v7734 = vadd.f32 %v7576, %v7733
  %7735 = vdwg.mxu0
  %v7736 = vmax.f32 %v7661, 0.0
  %v7737 = vmax.f32 %v7663, 0.0
  %v7738 = vmax.f32 %v7732, 0.0
  %v7739 = vmax.f32 %v7734, 0.0
  %v7742 = vcombine.low %v7736, %v7737
  %7744 = vst [vmem:[%s9] sm:$0xff] %v7742
  %v7747 = vcombine.low %v7738, %v7739
  %s7749 = scalar_lea.vmem %s9, 8
  %7750 = vst [vmem:[%s7749] sm:$0xff] %v7747
  // Predicated region
  $region38: #{mapnet3_forward.1} parent=0 // pred_check
    _
  $region39: #{mapnet3_forward.1} parent=0 // pred_check_branch
    %7752 = sbr.rel (0) target = $region41
  $region40: #{mapnet3_forward.1} parent=0 // pred_region
    _
  $region41: #{mapnet3_forward.1} parent=0 // pred_fallthru
    _
  // Predicated region
  $region42: #{mapnet3_forward.1} parent=0 // pred_check
    _
  $region43: #{mapnet3_forward.1} parent=0 // pred_check_branch
    %7754 = sbr.rel (0) target = $region45
  $region44: #{mapnet3_forward.1} parent=0 // pred_region
    _
  $region45: #{mapnet3_forward.1} parent=0 // pred_fallthru
    _

</llo_original>
